<compile_context>
chip_gen: v6e
topology: v6e:2x2x1
jax: 0.10.0
libtpu: 0.0.40
codegen_flags: <defaults>
</compile_context>

<pallas_src>
import functools

import jax
import jax.numpy as jnp
from jax.experimental import pallas as pl
from jax.experimental.pallas import tpu as pltpu


def _conv_bn_kernel(x_ref, w_ref, bias_ref, o_ref, col_ref, *,
                    nb, cin_pad, stride, dilation, kh, kw,
                    strip_h, w_out, n_strips):
    # x_ref:    (nb, cin_pad, Hp, Wp)        bf16 zero-padded NCHW input block
    # w_ref:    (Cout, KH*KW*cin_pad)        bf16 BN-scale-folded weights
    # bias_ref: (Cout, 1)                    f32 folded BN bias
    # o_ref:    (nb, Cout, strip_h*Wo)       f32 NCHW output block (lane-dense)
    # col_ref:  (KH*KW*cin_pad, nb*strip_h*Wo) bf16 im2col scratch
    strip_m = strip_h * w_out
    region_h = (strip_h - 1) * stride + (kh - 1) * dilation + 1
    rows_span = (strip_h - 1) * stride + 1
    cols_span = (w_out - 1) * stride + 1

    for b in range(nb):
        if n_strips == 1:
            region = x_ref[b, :, 0:region_h, :]            # static slice
        else:
            row0 = pl.program_id(1) * (strip_h * stride)
            region = x_ref[b, :, pl.ds(row0, region_h), :]  # strip + halo
        for i in range(kh):
            r0 = i * dilation
            rows = region[:, r0:r0 + rows_span:stride, :]   # (cin_pad, strip_h, Wp)
            for j in range(kw):
                c0 = j * dilation
                tap = rows[:, :, c0:c0 + cols_span:stride]  # (cin_pad, strip_h, Wo)
                t = i * kw + j
                # Full-tile aligned store: 16-row-multiple x 128-lane-multiple.
                col_ref[t * cin_pad:(t + 1) * cin_pad,
                        b * strip_m:(b + 1) * strip_m] = tap.reshape(cin_pad, strip_m)

    # Single MXU contraction, bf16 x bf16 -> f32 accumulation, fused BN bias.
    acc = jnp.dot(w_ref[...], col_ref[...],
                  preferred_element_type=jnp.float32)       # (Cout, nb*strip_m)
    acc = acc + bias_ref[...]
    for b in range(nb):
        o_ref[b] = acc[:, b * strip_m:(b + 1) * strip_m].astype(o_ref.dtype)


def basic_conv2d(x_nchw, weight_oihw, gamma, beta, running_mean, running_var,
                 *, stride=1, padding=0, dilation=1, eps=1e-5):
    """Conv2d(bias=False) + BatchNorm2d (eval) matching the PyTorch module.

    x_nchw:      (N, Cin, H, W) float32
    weight_oihw: (Cout, Cin, KH, KW) float32
    returns:     (N, Cout, Ho, Wo) float32
    """
    n, cin, h, w = x_nchw.shape
    cout, _, kh, kw = weight_oihw.shape

    h_out = (h + 2 * padding - dilation * (kh - 1) - 1) // stride + 1
    w_out = (w + 2 * padding - dilation * (kw - 1) - 1) // stride + 1
    m_img = h_out * w_out

    # bf16 packs sublanes in pairs -> align each tap's channel block to 16 rows.
    cin_pad = ((cin + 15) // 16) * 16
    k_pad = kh * kw * cin_pad

    # Channel zero-pad (aligned col writes) + spatial conv pad; bf16 MXU feed.
    x_pad = jnp.pad(x_nchw, ((0, 0), (0, cin_pad - cin),
                             (padding, padding), (padding, padding)))
    x_pad = x_pad.astype(jnp.bfloat16)
    hp, wp = int(x_pad.shape[2]), int(x_pad.shape[3])

    # Fold eval-mode BatchNorm: scale into the weights, bias stays in f32.
    inv_std = 1.0 / jnp.sqrt(running_var.astype(jnp.float32) + eps)
    scale = gamma.astype(jnp.float32) * inv_std                       # (Cout,)
    bias = (beta.astype(jnp.float32)
            - running_mean.astype(jnp.float32) * scale).reshape(cout, 1)

    # (Cout,Cin,KH,KW) -> (Cout,KH,KW,cin_pad) -> (Cout, k_pad); K ordering =
    # (tap_row, tap_col, channel), matching the im2col buffer; cast to bf16.
    w_t = jnp.transpose(weight_oihw, (0, 2, 3, 1)) * scale[:, None, None, None]
    w_t = jnp.pad(w_t, ((0, 0), (0, 0), (0, 0), (0, cin_pad - cin)))
    w2d = w_t.reshape(cout, k_pad).astype(jnp.bfloat16)

    # ---- tiling: nb batch elements per step, Ho split into row strips ----
    in_budget = 12 << 20     # double-buffered bf16 input block
    col_budget = 8 << 20     # bf16 im2col scratch
    out_budget = 8 << 20     # double-buffered f32 output block
    nb = 1
    for d in [d for d in range(1, n + 1) if n % d == 0]:
        if d * cin_pad * hp * wp * 2 * 2 > in_budget:
            break
        nb = d
        if d * m_img >= 512:        # enough lanes to fill the MXU
            break

    strip_h = 1
    for s in range(1, h_out + 1):
        if h_out % s:
            continue
        col_b = k_pad * nb * s * w_out * 2
        out_b = nb * cout * s * w_out * 4 * 2
        if col_b <= col_budget and out_b <= out_budget:
            strip_h = s
    n_strips = h_out // strip_h
    strip_m = strip_h * w_out

    # Explicit VMEM limit (double-buffered blocks + scratch, with headroom).
    vmem_need = (nb * cin_pad * hp * wp * 2 * 2          # input blocks (bf16)
                 + nb * cout * strip_m * 4 * 2           # output blocks (f32)
                 + k_pad * nb * strip_m * 2              # col scratch (bf16)
                 + cout * k_pad * 2 * 2 + cout * 4 * 2)  # weights + bias
    vmem_limit = int(min(max(2 * vmem_need + (2 << 20), 16 << 20), 64 << 20))

    kernel = functools.partial(
        _conv_bn_kernel, nb=nb, cin_pad=cin_pad, stride=stride,
        dilation=dilation, kh=kh, kw=kw, strip_h=strip_h, w_out=w_out,
        n_strips=n_strips)

    flops = 2 * n * cout * (kh * kw * cin) * m_img
    bytes_accessed = (x_pad.size * 2 + w2d.size * 2 + bias.size * 4
                      + n * cout * m_img * 4)

    out = pl.pallas_call(
        kernel,
        out_shape=jax.ShapeDtypeStruct((n, cout, m_img), jnp.float32),
        grid_spec=pltpu.PrefetchScalarGridSpec(
            num_scalar_prefetch=0,
            grid=(n // nb, n_strips),
            in_specs=[
                pl.BlockSpec((nb, cin_pad, hp, wp), lambda g, s: (g, 0, 0, 0)),
                pl.BlockSpec((cout, k_pad), lambda g, s: (0, 0)),
                pl.BlockSpec((cout, 1), lambda g, s: (0, 0)),
            ],
            out_specs=pl.BlockSpec((nb, cout, strip_m), lambda g, s: (g, 0, s)),
            scratch_shapes=[pltpu.VMEM((k_pad, nb * strip_m), jnp.bfloat16)],
        ),
        compiler_params=pltpu.CompilerParams(
            dimension_semantics=("parallel", "parallel"),
            vmem_limit_bytes=vmem_limit),
        cost_estimate=pl.CostEstimate(
            flops=flops, transcendentals=0, bytes_accessed=bytes_accessed),
    )(x_pad, w2d, bias)

    # Free reshape (splits the contiguous last dim); output is already NCHW.
    return out.reshape(n, cout, h_out, w_out)


def _reference(x_nchw, weight_oihw, gamma, beta, mean, var,
               *, stride, padding, dilation, eps=1e-5):
    y = jax.lax.conv_general_dilated(
        x_nchw, weight_oihw,
        window_strides=(stride, stride),
        padding=((padding, padding), (padding, padding)),
        rhs_dilation=(dilation, dilation),
        dimension_numbers=("NCHW", "OIHW", "NCHW"))
    inv_std = 1.0 / jnp.sqrt(var + eps)
    scale = (gamma * inv_std)[None, :, None, None]
    shift = (beta - mean * gamma * inv_std)[None, :, None, None]
    return y * scale + shift


if __name__ == "__main__":
    # Module config: BasicConv2d(in_planes=4, out_planes=8, kernel_size=3,
    #                            stride=1, padding=1, dilation=1)
    N, Cin, H, W = 2, 4, 16, 16
    Cout, KH, KW = 8, 3, 3
    stride, padding, dilation = 1, 1, 1

    key = jax.random.PRNGKey(0)
    kx, kw_, kg, kb, km, kv = jax.random.split(key, 6)

    x = jax.random.normal(kx, (N, Cin, H, W), dtype=jnp.float32)
    weight = jax.random.normal(kw_, (Cout, Cin, KH, KW), dtype=jnp.float32) * 0.1
    gamma = 1.0 + 0.1 * jax.random.normal(kg, (Cout,), dtype=jnp.float32)
    beta = 0.1 * jax.random.normal(kb, (Cout,), dtype=jnp.float32)
    running_mean = 0.1 * jax.random.normal(km, (Cout,), dtype=jnp.float32)
    running_var = jnp.abs(jax.random.normal(kv, (Cout,), dtype=jnp.float32)) + 0.5

    out = basic_conv2d(x, weight, gamma, beta, running_mean, running_var,
                       stride=stride, padding=padding, dilation=dilation)
    out = jax.block_until_ready(out)

    ref = _reference(x, weight, gamma, beta, running_mean, running_var,
                     stride=stride, padding=padding, dilation=dilation)
    Ho = (H + 2 * padding - dilation * (KH - 1) - 1) // stride + 1
    Wo = (W + 2 * padding - dilation * (KW - 1) - 1) // stride + 1
    assert out.shape == (N, Cout, Ho, Wo)
    # bf16 MXU operands with f32 accumulation: typical max abs error ~5e-3.
    err = float(jnp.max(jnp.abs(out - ref)))
    assert jnp.allclose(out, ref, atol=3e-2, rtol=3e-2), f"max abs err {err}"

    print("KERNEL_OK")
</pallas_src>

<mosaic_0001>
module attributes {stable_mosaic.version = 11 : i64} {
  func.func @_conv_bn_kernel(%arg0: i32, %arg1: i32, %arg2: memref<2x16x18x18xbf16, #tpu.memory_space<vmem>>, %arg3: memref<8x144xbf16, #tpu.memory_space<vmem>>, %arg4: memref<8x1xf32, #tpu.memory_space<vmem>>, %arg5: memref<2x8x256xf32, #tpu.memory_space<vmem>>, %arg6: memref<144x512xbf16, #tpu.memory_space<vmem>>) attributes {dimension_semantics = [#tpu.dimension_semantics<parallel>, #tpu.dimension_semantics<parallel>], iteration_bounds = array<i64: 1, 1>, scalar_prefetch = 0 : i64, scratch_operands = 1 : i64, tpu.core_type = #tpu.core_type<tc>, window_params = [{transform_indices = @transform_0, window_bounds = array<i64: 2, 16, 18, 18>}, {pipeline_mode = #tpu.pipeline_mode<synchronous>, transform_indices = @transform_1, window_bounds = array<i64: 8, 144>}, {pipeline_mode = #tpu.pipeline_mode<synchronous>, transform_indices = @transform_2, window_bounds = array<i64: 8, 1>}, {transform_indices = @transform_3, window_bounds = array<i64: 2, 8, 256>}]} {
    %c0 = arith.constant 0 : index
    %c0_0 = arith.constant 0 : index
    %c0_1 = arith.constant 0 : index
    %c0_2 = arith.constant 0 : index
    %0 = vector.load %arg2[%c0, %c0_0, %c0_1, %c0_2] : memref<2x16x18x18xbf16, #tpu.memory_space<vmem>>, vector<1x16x18x18xbf16>
    %1 = vector.shape_cast %0 : vector<1x16x18x18xbf16> to vector<16x18x18xbf16>
    %2 = vector.extract_strided_slice %1 {offsets = [0, 0, 0], sizes = [16, 16, 18], strides = [1, 1, 1]} : vector<16x18x18xbf16> to vector<16x16x18xbf16>
    %3 = vector.extract_strided_slice %2 {offsets = [0, 0, 0], sizes = [16, 16, 16], strides = [1, 1, 1]} : vector<16x16x18xbf16> to vector<16x16x16xbf16>
    %4 = vector.shape_cast %3 : vector<16x16x16xbf16> to vector<16x256xbf16>
    %c0_3 = arith.constant 0 : index
    %c0_4 = arith.constant 0 : index
    %5 = vector.load %arg6[%c0_3, %c0_4] : memref<144x512xbf16, #tpu.memory_space<vmem>>, vector<16x256xbf16>
    tpu.vector_store %arg6[%c0_3, %c0_4], %4 {strides = array<i32>} : memref<144x512xbf16, #tpu.memory_space<vmem>>, vector<16x256xbf16>,
    %6 = vector.extract_strided_slice %2 {offsets = [0, 0, 1], sizes = [16, 16, 16], strides = [1, 1, 1]} : vector<16x16x18xbf16> to vector<16x16x16xbf16>
    %7 = vector.shape_cast %6 : vector<16x16x16xbf16> to vector<16x256xbf16>
    %c16 = arith.constant 16 : index
    %c0_5 = arith.constant 0 : index
    %8 = vector.load %arg6[%c16, %c0_5] : memref<144x512xbf16, #tpu.memory_space<vmem>>, vector<16x256xbf16>
    tpu.vector_store %arg6[%c16, %c0_5], %7 {strides = array<i32>} : memref<144x512xbf16, #tpu.memory_space<vmem>>, vector<16x256xbf16>,
    %9 = vector.extract_strided_slice %2 {offsets = [0, 0, 2], sizes = [16, 16, 16], strides = [1, 1, 1]} : vector<16x16x18xbf16> to vector<16x16x16xbf16>
    %10 = vector.shape_cast %9 : vector<16x16x16xbf16> to vector<16x256xbf16>
    %c32 = arith.constant 32 : index
    %c0_6 = arith.constant 0 : index
    %11 = vector.load %arg6[%c32, %c0_6] : memref<144x512xbf16, #tpu.memory_space<vmem>>, vector<16x256xbf16>
    tpu.vector_store %arg6[%c32, %c0_6], %10 {strides = array<i32>} : memref<144x512xbf16, #tpu.memory_space<vmem>>, vector<16x256xbf16>,
    %12 = vector.extract_strided_slice %1 {offsets = [0, 1, 0], sizes = [16, 16, 18], strides = [1, 1, 1]} : vector<16x18x18xbf16> to vector<16x16x18xbf16>
    %13 = vector.extract_strided_slice %12 {offsets = [0, 0, 0], sizes = [16, 16, 16], strides = [1, 1, 1]} : vector<16x16x18xbf16> to vector<16x16x16xbf16>
    %14 = vector.shape_cast %13 : vector<16x16x16xbf16> to vector<16x256xbf16>
    %c48 = arith.constant 48 : index
    %c0_7 = arith.constant 0 : index
    %15 = vector.load %arg6[%c48, %c0_7] : memref<144x512xbf16, #tpu.memory_space<vmem>>, vector<16x256xbf16>
    tpu.vector_store %arg6[%c48, %c0_7], %14 {strides = array<i32>} : memref<144x512xbf16, #tpu.memory_space<vmem>>, vector<16x256xbf16>,
    %16 = vector.extract_strided_slice %12 {offsets = [0, 0, 1], sizes = [16, 16, 16], strides = [1, 1, 1]} : vector<16x16x18xbf16> to vector<16x16x16xbf16>
    %17 = vector.shape_cast %16 : vector<16x16x16xbf16> to vector<16x256xbf16>
    %c64 = arith.constant 64 : index
    %c0_8 = arith.constant 0 : index
    %18 = vector.load %arg6[%c64, %c0_8] : memref<144x512xbf16, #tpu.memory_space<vmem>>, vector<16x256xbf16>
    tpu.vector_store %arg6[%c64, %c0_8], %17 {strides = array<i32>} : memref<144x512xbf16, #tpu.memory_space<vmem>>, vector<16x256xbf16>,
    %19 = vector.extract_strided_slice %12 {offsets = [0, 0, 2], sizes = [16, 16, 16], strides = [1, 1, 1]} : vector<16x16x18xbf16> to vector<16x16x16xbf16>
    %20 = vector.shape_cast %19 : vector<16x16x16xbf16> to vector<16x256xbf16>
    %c80 = arith.constant 80 : index
    %c0_9 = arith.constant 0 : index
    %21 = vector.load %arg6[%c80, %c0_9] : memref<144x512xbf16, #tpu.memory_space<vmem>>, vector<16x256xbf16>
    tpu.vector_store %arg6[%c80, %c0_9], %20 {strides = array<i32>} : memref<144x512xbf16, #tpu.memory_space<vmem>>, vector<16x256xbf16>,
    %22 = vector.extract_strided_slice %1 {offsets = [0, 2, 0], sizes = [16, 16, 18], strides = [1, 1, 1]} : vector<16x18x18xbf16> to vector<16x16x18xbf16>
    %23 = vector.extract_strided_slice %22 {offsets = [0, 0, 0], sizes = [16, 16, 16], strides = [1, 1, 1]} : vector<16x16x18xbf16> to vector<16x16x16xbf16>
    %24 = vector.shape_cast %23 : vector<16x16x16xbf16> to vector<16x256xbf16>
    %c96 = arith.constant 96 : index
    %c0_10 = arith.constant 0 : index
    %25 = vector.load %arg6[%c96, %c0_10] : memref<144x512xbf16, #tpu.memory_space<vmem>>, vector<16x256xbf16>
    tpu.vector_store %arg6[%c96, %c0_10], %24 {strides = array<i32>} : memref<144x512xbf16, #tpu.memory_space<vmem>>, vector<16x256xbf16>,
    %26 = vector.extract_strided_slice %22 {offsets = [0, 0, 1], sizes = [16, 16, 16], strides = [1, 1, 1]} : vector<16x16x18xbf16> to vector<16x16x16xbf16>
    %27 = vector.shape_cast %26 : vector<16x16x16xbf16> to vector<16x256xbf16>
    %c112 = arith.constant 112 : index
    %c0_11 = arith.constant 0 : index
    %28 = vector.load %arg6[%c112, %c0_11] : memref<144x512xbf16, #tpu.memory_space<vmem>>, vector<16x256xbf16>
    tpu.vector_store %arg6[%c112, %c0_11], %27 {strides = array<i32>} : memref<144x512xbf16, #tpu.memory_space<vmem>>, vector<16x256xbf16>,
    %29 = vector.extract_strided_slice %22 {offsets = [0, 0, 2], sizes = [16, 16, 16], strides = [1, 1, 1]} : vector<16x16x18xbf16> to vector<16x16x16xbf16>
    %30 = vector.shape_cast %29 : vector<16x16x16xbf16> to vector<16x256xbf16>
    %c128 = arith.constant 128 : index
    %c0_12 = arith.constant 0 : index
    %31 = vector.load %arg6[%c128, %c0_12] : memref<144x512xbf16, #tpu.memory_space<vmem>>, vector<16x256xbf16>
    tpu.vector_store %arg6[%c128, %c0_12], %30 {strides = array<i32>} : memref<144x512xbf16, #tpu.memory_space<vmem>>, vector<16x256xbf16>,
    %c1 = arith.constant 1 : index
    %c0_13 = arith.constant 0 : index
    %c0_14 = arith.constant 0 : index
    %c0_15 = arith.constant 0 : index
    %32 = vector.load %arg2[%c1, %c0_13, %c0_14, %c0_15] : memref<2x16x18x18xbf16, #tpu.memory_space<vmem>>, vector<1x16x18x18xbf16>
    %33 = vector.shape_cast %32 : vector<1x16x18x18xbf16> to vector<16x18x18xbf16>
    %34 = vector.extract_strided_slice %33 {offsets = [0, 0, 0], sizes = [16, 16, 18], strides = [1, 1, 1]} : vector<16x18x18xbf16> to vector<16x16x18xbf16>
    %35 = vector.extract_strided_slice %34 {offsets = [0, 0, 0], sizes = [16, 16, 16], strides = [1, 1, 1]} : vector<16x16x18xbf16> to vector<16x16x16xbf16>
    %36 = vector.shape_cast %35 : vector<16x16x16xbf16> to vector<16x256xbf16>
    %c0_16 = arith.constant 0 : index
    %c256 = arith.constant 256 : index
    %37 = vector.load %arg6[%c0_16, %c256] : memref<144x512xbf16, #tpu.memory_space<vmem>>, vector<16x256xbf16>
    tpu.vector_store %arg6[%c0_16, %c256], %36 {strides = array<i32>} : memref<144x512xbf16, #tpu.memory_space<vmem>>, vector<16x256xbf16>,
    %38 = vector.extract_strided_slice %34 {offsets = [0, 0, 1], sizes = [16, 16, 16], strides = [1, 1, 1]} : vector<16x16x18xbf16> to vector<16x16x16xbf16>
    %39 = vector.shape_cast %38 : vector<16x16x16xbf16> to vector<16x256xbf16>
    %c16_17 = arith.constant 16 : index
    %c256_18 = arith.constant 256 : index
    %40 = vector.load %arg6[%c16_17, %c256_18] : memref<144x512xbf16, #tpu.memory_space<vmem>>, vector<16x256xbf16>
    tpu.vector_store %arg6[%c16_17, %c256_18], %39 {strides = array<i32>} : memref<144x512xbf16, #tpu.memory_space<vmem>>, vector<16x256xbf16>,
    %41 = vector.extract_strided_slice %34 {offsets = [0, 0, 2], sizes = [16, 16, 16], strides = [1, 1, 1]} : vector<16x16x18xbf16> to vector<16x16x16xbf16>
    %42 = vector.shape_cast %41 : vector<16x16x16xbf16> to vector<16x256xbf16>
    %c32_19 = arith.constant 32 : index
    %c256_20 = arith.constant 256 : index
    %43 = vector.load %arg6[%c32_19, %c256_20] : memref<144x512xbf16, #tpu.memory_space<vmem>>, vector<16x256xbf16>
    tpu.vector_store %arg6[%c32_19, %c256_20], %42 {strides = array<i32>} : memref<144x512xbf16, #tpu.memory_space<vmem>>, vector<16x256xbf16>,
    %44 = vector.extract_strided_slice %33 {offsets = [0, 1, 0], sizes = [16, 16, 18], strides = [1, 1, 1]} : vector<16x18x18xbf16> to vector<16x16x18xbf16>
    %45 = vector.extract_strided_slice %44 {offsets = [0, 0, 0], sizes = [16, 16, 16], strides = [1, 1, 1]} : vector<16x16x18xbf16> to vector<16x16x16xbf16>
    %46 = vector.shape_cast %45 : vector<16x16x16xbf16> to vector<16x256xbf16>
    %c48_21 = arith.constant 48 : index
    %c256_22 = arith.constant 256 : index
    %47 = vector.load %arg6[%c48_21, %c256_22] : memref<144x512xbf16, #tpu.memory_space<vmem>>, vector<16x256xbf16>
    tpu.vector_store %arg6[%c48_21, %c256_22], %46 {strides = array<i32>} : memref<144x512xbf16, #tpu.memory_space<vmem>>, vector<16x256xbf16>,
    %48 = vector.extract_strided_slice %44 {offsets = [0, 0, 1], sizes = [16, 16, 16], strides = [1, 1, 1]} : vector<16x16x18xbf16> to vector<16x16x16xbf16>
    %49 = vector.shape_cast %48 : vector<16x16x16xbf16> to vector<16x256xbf16>
    %c64_23 = arith.constant 64 : index
    %c256_24 = arith.constant 256 : index
    %50 = vector.load %arg6[%c64_23, %c256_24] : memref<144x512xbf16, #tpu.memory_space<vmem>>, vector<16x256xbf16>
    tpu.vector_store %arg6[%c64_23, %c256_24], %49 {strides = array<i32>} : memref<144x512xbf16, #tpu.memory_space<vmem>>, vector<16x256xbf16>,
    %51 = vector.extract_strided_slice %44 {offsets = [0, 0, 2], sizes = [16, 16, 16], strides = [1, 1, 1]} : vector<16x16x18xbf16> to vector<16x16x16xbf16>
    %52 = vector.shape_cast %51 : vector<16x16x16xbf16> to vector<16x256xbf16>
    %c80_25 = arith.constant 80 : index
    %c256_26 = arith.constant 256 : index
    %53 = vector.load %arg6[%c80_25, %c256_26] : memref<144x512xbf16, #tpu.memory_space<vmem>>, vector<16x256xbf16>
    tpu.vector_store %arg6[%c80_25, %c256_26], %52 {strides = array<i32>} : memref<144x512xbf16, #tpu.memory_space<vmem>>, vector<16x256xbf16>,
    %54 = vector.extract_strided_slice %33 {offsets = [0, 2, 0], sizes = [16, 16, 18], strides = [1, 1, 1]} : vector<16x18x18xbf16> to vector<16x16x18xbf16>
    %55 = vector.extract_strided_slice %54 {offsets = [0, 0, 0], sizes = [16, 16, 16], strides = [1, 1, 1]} : vector<16x16x18xbf16> to vector<16x16x16xbf16>
    %56 = vector.shape_cast %55 : vector<16x16x16xbf16> to vector<16x256xbf16>
    %c96_27 = arith.constant 96 : index
    %c256_28 = arith.constant 256 : index
    %57 = vector.load %arg6[%c96_27, %c256_28] : memref<144x512xbf16, #tpu.memory_space<vmem>>, vector<16x256xbf16>
    tpu.vector_store %arg6[%c96_27, %c256_28], %56 {strides = array<i32>} : memref<144x512xbf16, #tpu.memory_space<vmem>>, vector<16x256xbf16>,
    %58 = vector.extract_strided_slice %54 {offsets = [0, 0, 1], sizes = [16, 16, 16], strides = [1, 1, 1]} : vector<16x16x18xbf16> to vector<16x16x16xbf16>
    %59 = vector.shape_cast %58 : vector<16x16x16xbf16> to vector<16x256xbf16>
    %c112_29 = arith.constant 112 : index
    %c256_30 = arith.constant 256 : index
    %60 = vector.load %arg6[%c112_29, %c256_30] : memref<144x512xbf16, #tpu.memory_space<vmem>>, vector<16x256xbf16>
    tpu.vector_store %arg6[%c112_29, %c256_30], %59 {strides = array<i32>} : memref<144x512xbf16, #tpu.memory_space<vmem>>, vector<16x256xbf16>,
    %61 = vector.extract_strided_slice %54 {offsets = [0, 0, 2], sizes = [16, 16, 16], strides = [1, 1, 1]} : vector<16x16x18xbf16> to vector<16x16x16xbf16>
    %62 = vector.shape_cast %61 : vector<16x16x16xbf16> to vector<16x256xbf16>
    %c128_31 = arith.constant 128 : index
    %c256_32 = arith.constant 256 : index
    %63 = vector.load %arg6[%c128_31, %c256_32] : memref<144x512xbf16, #tpu.memory_space<vmem>>, vector<16x256xbf16>
    tpu.vector_store %arg6[%c128_31, %c256_32], %62 {strides = array<i32>} : memref<144x512xbf16, #tpu.memory_space<vmem>>, vector<16x256xbf16>,
    %c0_33 = arith.constant 0 : index
    %c0_34 = arith.constant 0 : index
    %64 = vector.load %arg3[%c0_33, %c0_34] : memref<8x144xbf16, #tpu.memory_space<vmem>>, vector<8x144xbf16>
    %c0_35 = arith.constant 0 : index
    %c0_36 = arith.constant 0 : index
    %65 = vector.load %arg6[%c0_35, %c0_36] : memref<144x512xbf16, #tpu.memory_space<vmem>>, vector<144x512xbf16>
    %cst = arith.constant dense<0.000000e+00> : vector<8x512xf32>
    %66 = tpu.matmul %64, %65, %cst {dimension_numbers = #tpu.dot_dimension_numbers<[1], [0], [0], [1], [0, 0, 1, 1], [], []>} : vector<8x144xbf16>, vector<144x512xbf16>, vector<8x512xf32> -> vector<8x512xf32>
    %c0_37 = arith.constant 0 : index
    %c0_38 = arith.constant 0 : index
    %67 = vector.load %arg4[%c0_37, %c0_38] : memref<8x1xf32, #tpu.memory_space<vmem>>, vector<8x1xf32>
    %68 = vector.broadcast %67 : vector<8x1xf32> to vector<8x512xf32>
    %69 = arith.addf %66, %68 : vector<8x512xf32>
    %70 = vector.extract_strided_slice %69 {offsets = [0, 0], sizes = [8, 256], strides = [1, 1]} : vector<8x512xf32> to vector<8x256xf32>
    %c0_39 = arith.constant 0 : index
    %c0_40 = arith.constant 0 : index
    %c0_41 = arith.constant 0 : index
    %71 = vector.load %arg5[%c0_39, %c0_40, %c0_41] : memref<2x8x256xf32, #tpu.memory_space<vmem>>, vector<1x8x256xf32>
    %72 = vector.shape_cast %71 : vector<1x8x256xf32> to vector<8x256xf32>
    %73 = vector.shape_cast %70 : vector<8x256xf32> to vector<1x8x256xf32>
    tpu.vector_store %arg5[%c0_39, %c0_40, %c0_41], %73 {strides = array<i32>} : memref<2x8x256xf32, #tpu.memory_space<vmem>>, vector<1x8x256xf32>,
    %74 = vector.extract_strided_slice %69 {offsets = [0, 256], sizes = [8, 256], strides = [1, 1]} : vector<8x512xf32> to vector<8x256xf32>
    %c1_42 = arith.constant 1 : index
    %c0_43 = arith.constant 0 : index
    %c0_44 = arith.constant 0 : index
    %75 = vector.load %arg5[%c1_42, %c0_43, %c0_44] : memref<2x8x256xf32, #tpu.memory_space<vmem>>, vector<1x8x256xf32>
    %76 = vector.shape_cast %75 : vector<1x8x256xf32> to vector<8x256xf32>
    %77 = vector.shape_cast %74 : vector<8x256xf32> to vector<1x8x256xf32>
    tpu.vector_store %arg5[%c1_42, %c0_43, %c0_44], %77 {strides = array<i32>} : memref<2x8x256xf32, #tpu.memory_space<vmem>>, vector<1x8x256xf32>,
    return
  }
  func.func @transform_0(%arg0: i32, %arg1: i32) -> (i32, i32, i32, i32) {
    %c0_i32 = arith.constant 0 : i32
    %c0_i32_0 = arith.constant 0 : i32
    %c0_i32_1 = arith.constant 0 : i32
    %c0_i32_2 = arith.constant 0 : i32
    return %arg0, %c0_i32, %c0_i32_0, %c0_i32_1 : i32, i32, i32, i32
  }
  func.func @transform_1(%arg0: i32, %arg1: i32) -> (i32, i32) {
    %c0_i32 = arith.constant 0 : i32
    %c0_i32_0 = arith.constant 0 : i32
    %c0_i32_1 = arith.constant 0 : i32
    return %c0_i32, %c0_i32_0 : i32, i32
  }
  func.func @transform_2(%arg0: i32, %arg1: i32) -> (i32, i32) {
    %c0_i32 = arith.constant 0 : i32
    %c0_i32_0 = arith.constant 0 : i32
    %c0_i32_1 = arith.constant 0 : i32
    return %c0_i32, %c0_i32_0 : i32, i32
  }
  func.func @transform_3(%arg0: i32, %arg1: i32) -> (i32, i32, i32) {
    %c0_i32 = arith.constant 0 : i32
    %c0_i32_0 = arith.constant 0 : i32
    return %arg0, %c0_i32, %arg1 : i32, i32, i32
  }
}

</mosaic_0001>

<llo_original>
// kernel: tpu_custom_call.1
$region0: #{tpu_custom_call.1}
  #allocation0 [shape = 'u32[]', space=smem, size = 0x4, offset = 0x4, fixed_abs, tag = 'smem constant byte address 0x4 - core index']
  #allocation1 [shape = 'u32[144,128]{1,0:T(1,128)}', space=vmem, size = 0x12000, scoped, tag = 'internal scratch']
  #allocation2 [shape = 'bf16[144,512]{1,0:T(8,128)(2,1)}', space=vmem, size = 0x24000, scoped, tag = 'scratch operand']
  %s0 = inlined_call_operand.vmem [shape: bf16[2,16,18,18], index: 0, kind: input, shape index: {}]
  %s1 = inlined_call_operand.vmem [shape: bf16[8,144], index: 1, kind: input, shape index: {}]
  %s2 = inlined_call_operand.vmem [shape: f32[8,1], index: 2, kind: input, shape index: {}]
  %s3 = inlined_call_operand.hbm [shape: f32[2,8,256], index: 3, kind: output, shape index: {}]
  %s4 = sld [smem:[#allocation0]]
  $region22: #{tpu_custom_call.1} parent=0
    _
  %s6 = ssub.s32 1, %s4
  %s7 = scalar_select 0, %s6, %s4
  $region1: #{tpu_custom_call.1} parent=0
    #allocation3 [shape = 'u8[16384]{0}', space=vmem, size = 0x4000, scoped, tag = 'output window, operand 0, single buffered']
    #allocation4 [shape = 's32[1]{0}', space=sflag, size = 0x4, scoped, tag = 'scoped memory for tpu_custom_call.1']
    %8 = vsyncpa [#allocation4], 0
    // Predicated region
    $region2: #{tpu_custom_call.1} parent=1 // pred_check
      _
    $region3: #{tpu_custom_call.1} parent=1 // pred_check_branch
      %10 = sbr.rel (0) target = $region5
    $region4: #{tpu_custom_call.1} parent=1 // pred_region
      _
    $region5: #{tpu_custom_call.1} parent=1 // pred_fallthru
      _
    // Predicated region
    $region6: #{tpu_custom_call.1} parent=1 // pred_check
      _
    $region7: #{tpu_custom_call.1} parent=1 // pred_check_branch
      %12 = sbr.rel (0) target = $region9
    $region8: #{tpu_custom_call.1} parent=1 // pred_region
      _
    $region9: #{tpu_custom_call.1} parent=1 // pred_fallthru
      _
    // Predicated region
    $region10: #{tpu_custom_call.1} parent=1 // pred_check
      _
    $region11: #{tpu_custom_call.1} parent=1 // pred_check_branch
      %14 = sbr.rel (0) target = $region13
    $region12: #{tpu_custom_call.1} parent=1 // pred_region
      _
    $region13: #{tpu_custom_call.1} parent=1 // pred_fallthru
      _
    %v16 = vld [vmem:[%s0] sm:$0xf]
    %v17 = vld [vmem:[%s0 + $0x4] sm:$0xf]
    %v18 = vld [vmem:[%s0 + $0x8] sm:$0x1]
    %v19 = vld [vmem:[%s0 + $0xc] sm:$0xf]
    %v20 = vld [vmem:[%s0 + $0x10] sm:$0xf]
    %v21 = vld [vmem:[%s0 + $0x14] sm:$0x1]
    %v22 = vld [vmem:[%s0 + $0x18] sm:$0xf]
    %v23 = vld [vmem:[%s0 + $0x1c] sm:$0xf]
    %v24 = vld [vmem:[%s0 + $0x20] sm:$0x1]
    %v25 = vld [vmem:[%s0 + $0x24] sm:$0xf]
    %v26 = vld [vmem:[%s0 + $0x28] sm:$0xf]
    %v27 = vld [vmem:[%s0 + $0x2c] sm:$0x1]
    %v28 = vld [vmem:[%s0 + $0x30] sm:$0xf]
    %v29 = vld [vmem:[%s0 + $0x34] sm:$0xf]
    %v30 = vld [vmem:[%s0 + $0x38] sm:$0x1]
    %v31 = vld [vmem:[%s0 + $0x3c] sm:$0xf]
    %v32 = vld [vmem:[%s0 + $0x40] sm:$0xf]
    %v33 = vld [vmem:[%s0 + $0x44] sm:$0x1]
    %v34 = vld [vmem:[%s0 + $0x48] sm:$0xf]
    %v35 = vld [vmem:[%s0 + $0x4c] sm:$0xf]
    %v36 = vld [vmem:[%s0 + $0x50] sm:$0x1]
    %v37 = vld [vmem:[%s0 + $0x54] sm:$0xf]
    %v38 = vld [vmem:[%s0 + $0x58] sm:$0xf]
    %v39 = vld [vmem:[%s0 + $0x5c] sm:$0x1]
    %v40 = vld [vmem:[%s0 + $0x60] sm:$0xf]
    %v41 = vld [vmem:[%s0 + $0x64] sm:$0xf]
    %v42 = vld [vmem:[%s0 + $0x68] sm:$0x1]
    %v43 = vld [vmem:[%s0 + $0x6c] sm:$0xf]
    %v44 = vld [vmem:[%s0 + $0x70] sm:$0xf]
    %v45 = vld [vmem:[%s0 + $0x74] sm:$0x1]
    %v46 = vld [vmem:[%s0 + $0x78] sm:$0xf]
    %v47 = vld [vmem:[%s0 + $0x7c] sm:$0xf]
    %v48 = vld [vmem:[%s0 + $0x80] sm:$0x1]
    %v49 = vld [vmem:[%s0 + $0x84] sm:$0xf]
    %v50 = vld [vmem:[%s0 + $0x88] sm:$0xf]
    %v51 = vld [vmem:[%s0 + $0x8c] sm:$0x1]
    %v52 = vld [vmem:[%s0 + $0x90] sm:$0xf]
    %v53 = vld [vmem:[%s0 + $0x94] sm:$0xf]
    %v54 = vld [vmem:[%s0 + $0x98] sm:$0x1]
    %v55 = vld [vmem:[%s0 + $0x9c] sm:$0xf]
    %v56 = vld [vmem:[%s0 + $0xa0] sm:$0xf]
    %v57 = vld [vmem:[%s0 + $0xa4] sm:$0x1]
    %v58 = vld [vmem:[%s0 + $0xa8] sm:$0xf]
    %v59 = vld [vmem:[%s0 + $0xac] sm:$0xf]
    %v60 = vld [vmem:[%s0 + $0xb0] sm:$0x1]
    %v61 = vld [vmem:[%s0 + $0xb4] sm:$0xf]
    %v62 = vld [vmem:[%s0 + $0xb8] sm:$0xf]
    %v63 = vld [vmem:[%s0 + $0xbc] sm:$0x1]
    %v64 = vcombine.low %v16, %v28
    %v66 = vunpack.c.l.s4 1983009808
    %v67 = vunpack.c.0.s8 %v66
    %v68 = vlaneseq
    %v69 = vshrl.u32 %v68, 7
    %v70 = vsub.s32 %v67, %v69
    %v71 = vrot.slane %v64, %v70
    %v72 = vcombine.low %v22, %v34
    %v74 = vunpack.c.l.s4 1983009808
    %v75 = vunpack.c.0.s8 %v74
    %v76 = vlaneseq
    %v77 = vshrl.u32 %v76, 7
    %v78 = vsub.s32 %v75, %v77
    %v79 = vrot.slane %v72, %v78
    %v80 = vcombine.low %v71, %v79
    %v81 = vcombine.high %v71, %v79
    %v83 = vunpack.c.l.s4 1934713408
    %v84 = vunpack.c.0.s8 %v83
    %v85 = vlaneseq
    %v86 = vshrl.u32 %v85, 7
    %v87 = vsub.s32 %v84, %v86
    %v88 = vrot.slane %v80, %v87
    %v90 = vunpack.c.l.s4 1934713408
    %v91 = vunpack.c.0.s8 %v90
    %v92 = vlaneseq
    %v93 = vshrl.u32 %v92, 7
    %v94 = vsub.s32 %v91, %v93
    %v95 = vrot.slane %v81, %v94
    %v96 = vcombine.high %v88, 0
    %v97 = vcombine.high %v95, 0
    %v98 = vcombine.low %v19, %v31
    %v100 = vunpack.c.l.s4 1983009808
    %v101 = vunpack.c.0.s8 %v100
    %v102 = vlaneseq
    %v103 = vshrl.u32 %v102, 7
    %v104 = vsub.s32 %v101, %v103
    %v105 = vrot.slane %v98, %v104
    %v106 = vcombine.low %v25, %v37
    %v108 = vunpack.c.l.s4 1983009808
    %v109 = vunpack.c.0.s8 %v108
    %v110 = vlaneseq
    %v111 = vshrl.u32 %v110, 7
    %v112 = vsub.s32 %v109, %v111
    %v113 = vrot.slane %v106, %v112
    %v114 = vcombine.low %v105, %v113
    %v115 = vcombine.high %v105, %v113
    %v117 = vunpack.c.l.s4 1934713408
    %v118 = vunpack.c.0.s8 %v117
    %v119 = vlaneseq
    %v120 = vshrl.u32 %v119, 7
    %v121 = vsub.s32 %v118, %v120
    %v122 = vrot.slane %v114, %v121
    %v124 = vunpack.c.l.s4 1934713408
    %v125 = vunpack.c.0.s8 %v124
    %v126 = vlaneseq
    %v127 = vshrl.u32 %v126, 7
    %v128 = vsub.s32 %v125, %v127
    %v129 = vrot.slane %v115, %v128
    %v130 = vcombine.high %v122, 0
    %v131 = vcombine.high %v129, 0
    %v132 = vcombine.low %v40, %v52
    %v134 = vunpack.c.l.s4 1983009808
    %v135 = vunpack.c.0.s8 %v134
    %v136 = vlaneseq
    %v137 = vshrl.u32 %v136, 7
    %v138 = vsub.s32 %v135, %v137
    %v139 = vrot.slane %v132, %v138
    %v140 = vcombine.low %v46, %v58
    %v142 = vunpack.c.l.s4 1983009808
    %v143 = vunpack.c.0.s8 %v142
    %v144 = vlaneseq
    %v145 = vshrl.u32 %v144, 7
    %v146 = vsub.s32 %v143, %v145
    %v147 = vrot.slane %v140, %v146
    %v148 = vcombine.low %v139, %v147
    %v149 = vcombine.high %v139, %v147
    %v151 = vunpack.c.l.s4 1934713408
    %v152 = vunpack.c.0.s8 %v151
    %v153 = vlaneseq
    %v154 = vshrl.u32 %v153, 7
    %v155 = vsub.s32 %v152, %v154
    %v156 = vrot.slane %v148, %v155
    %v158 = vunpack.c.l.s4 1934713408
    %v159 = vunpack.c.0.s8 %v158
    %v160 = vlaneseq
    %v161 = vshrl.u32 %v160, 7
    %v162 = vsub.s32 %v159, %v161
    %v163 = vrot.slane %v149, %v162
    %v164 = vcombine.high %v156, 0
    %v165 = vcombine.high %v163, 0
    %v166 = vcombine.low %v43, %v55
    %v168 = vunpack.c.l.s4 1983009808
    %v169 = vunpack.c.0.s8 %v168
    %v170 = vlaneseq
    %v171 = vshrl.u32 %v170, 7
    %v172 = vsub.s32 %v169, %v171
    %v173 = vrot.slane %v166, %v172
    %v174 = vcombine.low %v49, %v61
    %v176 = vunpack.c.l.s4 1983009808
    %v177 = vunpack.c.0.s8 %v176
    %v178 = vlaneseq
    %v179 = vshrl.u32 %v178, 7
    %v180 = vsub.s32 %v177, %v179
    %v181 = vrot.slane %v174, %v180
    %v182 = vcombine.low %v173, %v181
    %v183 = vcombine.high %v173, %v181
    %v185 = vunpack.c.l.s4 1934713408
    %v186 = vunpack.c.0.s8 %v185
    %v187 = vlaneseq
    %v188 = vshrl.u32 %v187, 7
    %v189 = vsub.s32 %v186, %v188
    %v190 = vrot.slane %v182, %v189
    %v192 = vunpack.c.l.s4 1934713408
    %v193 = vunpack.c.0.s8 %v192
    %v194 = vlaneseq
    %v195 = vshrl.u32 %v194, 7
    %v196 = vsub.s32 %v193, %v195
    %v197 = vrot.slane %v183, %v196
    %v198 = vcombine.high %v190, 0
    %v199 = vcombine.high %v197, 0
    %v200 = vcombine.low %v17, %v29
    %v202 = vunpack.c.l.s4 1983009808
    %v203 = vunpack.c.0.s8 %v202
    %v204 = vlaneseq
    %v205 = vshrl.u32 %v204, 7
    %v206 = vsub.s32 %v203, %v205
    %v207 = vrot.slane %v200, %v206
    %v208 = vcombine.low %v23, %v35
    %v210 = vunpack.c.l.s4 1983009808
    %v211 = vunpack.c.0.s8 %v210
    %v212 = vlaneseq
    %v213 = vshrl.u32 %v212, 7
    %v214 = vsub.s32 %v211, %v213
    %v215 = vrot.slane %v208, %v214
    %v216 = vcombine.low %v207, %v215
    %v217 = vcombine.high %v207, %v215
    %v219 = vunpack.c.l.s4 1934713408
    %v220 = vunpack.c.0.s8 %v219
    %v221 = vlaneseq
    %v222 = vshrl.u32 %v221, 7
    %v223 = vsub.s32 %v220, %v222
    %v224 = vrot.slane %v216, %v223
    %v226 = vunpack.c.l.s4 1934713408
    %v227 = vunpack.c.0.s8 %v226
    %v228 = vlaneseq
    %v229 = vshrl.u32 %v228, 7
    %v230 = vsub.s32 %v227, %v229
    %v231 = vrot.slane %v217, %v230
    %v232 = vcombine.high %v224, 0
    %v233 = vcombine.high %v231, 0
    %v234 = vcombine.low %v20, %v32
    %v236 = vunpack.c.l.s4 1983009808
    %v237 = vunpack.c.0.s8 %v236
    %v238 = vlaneseq
    %v239 = vshrl.u32 %v238, 7
    %v240 = vsub.s32 %v237, %v239
    %v241 = vrot.slane %v234, %v240
    %v242 = vcombine.low %v26, %v38
    %v244 = vunpack.c.l.s4 1983009808
    %v245 = vunpack.c.0.s8 %v244
    %v246 = vlaneseq
    %v247 = vshrl.u32 %v246, 7
    %v248 = vsub.s32 %v245, %v247
    %v249 = vrot.slane %v242, %v248
    %v250 = vcombine.low %v241, %v249
    %v251 = vcombine.high %v241, %v249
    %v253 = vunpack.c.l.s4 1934713408
    %v254 = vunpack.c.0.s8 %v253
    %v255 = vlaneseq
    %v256 = vshrl.u32 %v255, 7
    %v257 = vsub.s32 %v254, %v256
    %v258 = vrot.slane %v250, %v257
    %v260 = vunpack.c.l.s4 1934713408
    %v261 = vunpack.c.0.s8 %v260
    %v262 = vlaneseq
    %v263 = vshrl.u32 %v262, 7
    %v264 = vsub.s32 %v261, %v263
    %v265 = vrot.slane %v251, %v264
    %v266 = vcombine.high %v258, 0
    %v267 = vcombine.high %v265, 0
    %v268 = vcombine.low %v41, %v53
    %v270 = vunpack.c.l.s4 1983009808
    %v271 = vunpack.c.0.s8 %v270
    %v272 = vlaneseq
    %v273 = vshrl.u32 %v272, 7
    %v274 = vsub.s32 %v271, %v273
    %v275 = vrot.slane %v268, %v274
    %v276 = vcombine.low %v47, %v59
    %v278 = vunpack.c.l.s4 1983009808
    %v279 = vunpack.c.0.s8 %v278
    %v280 = vlaneseq
    %v281 = vshrl.u32 %v280, 7
    %v282 = vsub.s32 %v279, %v281
    %v283 = vrot.slane %v276, %v282
    %v284 = vcombine.low %v275, %v283
    %v285 = vcombine.high %v275, %v283
    %v287 = vunpack.c.l.s4 1934713408
    %v288 = vunpack.c.0.s8 %v287
    %v289 = vlaneseq
    %v290 = vshrl.u32 %v289, 7
    %v291 = vsub.s32 %v288, %v290
    %v292 = vrot.slane %v284, %v291
    %v294 = vunpack.c.l.s4 1934713408
    %v295 = vunpack.c.0.s8 %v294
    %v296 = vlaneseq
    %v297 = vshrl.u32 %v296, 7
    %v298 = vsub.s32 %v295, %v297
    %v299 = vrot.slane %v285, %v298
    %v300 = vcombine.high %v292, 0
    %v301 = vcombine.high %v299, 0
    %v302 = vcombine.low %v44, %v56
    %v304 = vunpack.c.l.s4 1983009808
    %v305 = vunpack.c.0.s8 %v304
    %v306 = vlaneseq
    %v307 = vshrl.u32 %v306, 7
    %v308 = vsub.s32 %v305, %v307
    %v309 = vrot.slane %v302, %v308
    %v310 = vcombine.low %v50, %v62
    %v312 = vunpack.c.l.s4 1983009808
    %v313 = vunpack.c.0.s8 %v312
    %v314 = vlaneseq
    %v315 = vshrl.u32 %v314, 7
    %v316 = vsub.s32 %v313, %v315
    %v317 = vrot.slane %v310, %v316
    %v318 = vcombine.low %v309, %v317
    %v319 = vcombine.high %v309, %v317
    %v321 = vunpack.c.l.s4 1934713408
    %v322 = vunpack.c.0.s8 %v321
    %v323 = vlaneseq
    %v324 = vshrl.u32 %v323, 7
    %v325 = vsub.s32 %v322, %v324
    %v326 = vrot.slane %v318, %v325
    %v328 = vunpack.c.l.s4 1934713408
    %v329 = vunpack.c.0.s8 %v328
    %v330 = vlaneseq
    %v331 = vshrl.u32 %v330, 7
    %v332 = vsub.s32 %v329, %v331
    %v333 = vrot.slane %v319, %v332
    %v334 = vcombine.high %v326, 0
    %v335 = vcombine.high %v333, 0
    %v338 = vpack.i.b16 %v122, %v88
    %v339 = vshrl.u32 %v88, 16
    %v340 = vshrl.u32 %v122, 16
    %v341 = vpack.i.b16 %v340, %v339
    %v344 = vpack.i.b16 %v130, %v96
    %v345 = vshrl.u32 %v96, 16
    %v346 = vshrl.u32 %v130, 16
    %v347 = vpack.i.b16 %v346, %v345
    %v350 = vpack.i.b16 %v129, %v95
    %v351 = vshrl.u32 %v95, 16
    %v352 = vshrl.u32 %v129, 16
    %v353 = vpack.i.b16 %v352, %v351
    %v356 = vpack.i.b16 %v131, %v97
    %v357 = vshrl.u32 %v97, 16
    %v358 = vshrl.u32 %v131, 16
    %v359 = vpack.i.b16 %v358, %v357
    %v362 = vpack.i.b16 %v258, %v224
    %v363 = vshrl.u32 %v224, 16
    %v364 = vshrl.u32 %v258, 16
    %v365 = vpack.i.b16 %v364, %v363
    %v368 = vpack.i.b16 %v266, %v232
    %v369 = vshrl.u32 %v232, 16
    %v370 = vshrl.u32 %v266, 16
    %v371 = vpack.i.b16 %v370, %v369
    %v374 = vpack.i.b16 %v265, %v231
    %v375 = vshrl.u32 %v231, 16
    %v376 = vshrl.u32 %v265, 16
    %v377 = vpack.i.b16 %v376, %v375
    %v380 = vpack.i.b16 %v267, %v233
    %v381 = vshrl.u32 %v233, 16
    %v382 = vshrl.u32 %v267, 16
    %v383 = vpack.i.b16 %v382, %v381
    %v386 = vpack.i.b16 %v190, %v156
    %v387 = vshrl.u32 %v156, 16
    %v388 = vshrl.u32 %v190, 16
    %v389 = vpack.i.b16 %v388, %v387
    %v392 = vpack.i.b16 %v198, %v164
    %v393 = vshrl.u32 %v164, 16
    %v394 = vshrl.u32 %v198, 16
    %v395 = vpack.i.b16 %v394, %v393
    %v398 = vpack.i.b16 %v197, %v163
    %v399 = vshrl.u32 %v163, 16
    %v400 = vshrl.u32 %v197, 16
    %v401 = vpack.i.b16 %v400, %v399
    %v404 = vpack.i.b16 %v199, %v165
    %v405 = vshrl.u32 %v165, 16
    %v406 = vshrl.u32 %v199, 16
    %v407 = vpack.i.b16 %v406, %v405
    %v410 = vpack.i.b16 %v326, %v292
    %v411 = vshrl.u32 %v292, 16
    %v412 = vshrl.u32 %v326, 16
    %v413 = vpack.i.b16 %v412, %v411
    %v416 = vpack.i.b16 %v334, %v300
    %v417 = vshrl.u32 %v300, 16
    %v418 = vshrl.u32 %v334, 16
    %v419 = vpack.i.b16 %v418, %v417
    %v422 = vpack.i.b16 %v333, %v299
    %v423 = vshrl.u32 %v299, 16
    %v424 = vshrl.u32 %v333, 16
    %v425 = vpack.i.b16 %v424, %v423
    %v428 = vpack.i.b16 %v335, %v301
    %v429 = vshrl.u32 %v301, 16
    %v430 = vshrl.u32 %v335, 16
    %v431 = vpack.i.b16 %v430, %v429
    %v432 = vunpack.c.l.b16 %v338
    %v433 = vunpack.c.l.b16 %v386
    %v434 = vpack.c.b16 %v433, %v432
    %v435 = vunpack.c.l.b16 %v341
    %v436 = vunpack.c.l.b16 %v389
    %v437 = vpack.c.b16 %v436, %v435
    %438 = vrot.lane.b32.xlu0 %v437, 16
    %v439 = vpop.permute.xlu0 %438
    %v440 = vunpack.c.l.b16 %v344
    %v441 = vunpack.c.l.b16 %v392
    %v442 = vpack.c.b16 %v441, %v440
    %443 = vrot.lane.b32.xlu0 %v442, 32
    %v444 = vpop.permute.xlu0 %443
    %v445 = vunpack.c.l.b16 %v347
    %v446 = vunpack.c.l.b16 %v395
    %v447 = vpack.c.b16 %v446, %v445
    %448 = vrot.lane.b32.xlu0 %v447, 48
    %v449 = vpop.permute.xlu0 %448
    %v450 = vunpack.c.l.b16 %v350
    %v451 = vunpack.c.l.b16 %v398
    %v452 = vpack.c.b16 %v451, %v450
    %453 = vrot.lane.b32.xlu0 %v452, 64
    %v454 = vpop.permute.xlu0 %453
    %v455 = vunpack.c.l.b16 %v353
    %v456 = vunpack.c.l.b16 %v401
    %v457 = vpack.c.b16 %v456, %v455
    %458 = vrot.lane.b32.xlu0 %v457, 80
    %v459 = vpop.permute.xlu0 %458
    %v460 = vunpack.c.l.b16 %v356
    %v461 = vunpack.c.l.b16 %v404
    %v462 = vpack.c.b16 %v461, %v460
    %463 = vrot.lane.b32.xlu0 %v462, 96
    %v464 = vpop.permute.xlu0 %463
    %v465 = vunpack.c.l.b16 %v359
    %v466 = vunpack.c.l.b16 %v407
    %v467 = vpack.c.b16 %v466, %v465
    %468 = vrot.lane.b32.xlu0 %v467, 112
    %v469 = vpop.permute.xlu0 %468
    %v470 = vunpack.c.l.b16 %v362
    %v471 = vunpack.c.l.b16 %v410
    %v472 = vpack.c.b16 %v471, %v470
    %v473 = vunpack.c.l.b16 %v365
    %v474 = vunpack.c.l.b16 %v413
    %v475 = vpack.c.b16 %v474, %v473
    %476 = vrot.lane.b32.xlu0 %v475, 16
    %v477 = vpop.permute.xlu0 %476
    %v478 = vunpack.c.l.b16 %v368
    %v479 = vunpack.c.l.b16 %v416
    %v480 = vpack.c.b16 %v479, %v478
    %481 = vrot.lane.b32.xlu0 %v480, 32
    %v482 = vpop.permute.xlu0 %481
    %v483 = vunpack.c.l.b16 %v371
    %v484 = vunpack.c.l.b16 %v419
    %v485 = vpack.c.b16 %v484, %v483
    %486 = vrot.lane.b32.xlu0 %v485, 48
    %v487 = vpop.permute.xlu0 %486
    %v488 = vunpack.c.l.b16 %v374
    %v489 = vunpack.c.l.b16 %v422
    %v490 = vpack.c.b16 %v489, %v488
    %491 = vrot.lane.b32.xlu0 %v490, 64
    %v492 = vpop.permute.xlu0 %491
    %v493 = vunpack.c.l.b16 %v377
    %v494 = vunpack.c.l.b16 %v425
    %v495 = vpack.c.b16 %v494, %v493
    %496 = vrot.lane.b32.xlu0 %v495, 80
    %v497 = vpop.permute.xlu0 %496
    %v498 = vunpack.c.l.b16 %v380
    %v499 = vunpack.c.l.b16 %v428
    %v500 = vpack.c.b16 %v499, %v498
    %501 = vrot.lane.b32.xlu0 %v500, 96
    %v502 = vpop.permute.xlu0 %501
    %v503 = vunpack.c.l.b16 %v383
    %v504 = vunpack.c.l.b16 %v431
    %v505 = vpack.c.b16 %v504, %v503
    %506 = vrot.lane.b32.xlu0 %v505, 112
    %v507 = vpop.permute.xlu0 %506
    %vm508 = vcmask 130048
    %v511 = vsel %vm508, %v434, %v439
    %vm512 = vcmask 261120
    %v514 = vsel %vm512, %v511, %v444
    %vm515 = vcmask 392192
    %v517 = vsel %vm515, %v514, %v449
    %vm518 = vcmask 523264
    %v520 = vsel %vm518, %v517, %v454
    %vm521 = vcmask 654336
    %v523 = vsel %vm521, %v520, %v459
    %vm524 = vcmask 785408
    %v526 = vsel %vm524, %v523, %v464
    %vm527 = vcmask 916480
    %v529 = vsel %vm527, %v526, %v469
    %v532 = vsel %vm508, %v472, %v477
    %v534 = vsel %vm512, %v532, %v482
    %v536 = vsel %vm515, %v534, %v487
    %v538 = vsel %vm518, %v536, %v492
    %v540 = vsel %vm521, %v538, %v497
    %v542 = vsel %vm524, %v540, %v502
    %v544 = vsel %vm527, %v542, %v507
    %v547 = vunpack.c.l.b16 %v529
    %v548 = vunpack.c.l.b16 %v544
    %v549 = vunpack.c.h.b16 %v529
    %v550 = vunpack.c.h.b16 %v544
    %v551 = vpack.c.b16 %v548, %v547
    %v552 = vpack.c.b16 %v550, %v549
    %555 = vst [vmem:[#allocation2] sm:$0xff] %v551
    %556 = vst [vmem:[#allocation2 + $0x10] sm:$0xff] %v552
    %589 = vrot.lane.b32.xlu0 %v16, 127
    %v590 = vpop.permute.xlu0 %589
    %591 = vrot.lane.b32.xlu0 %v17, 127
    %v592 = vpop.permute.xlu0 %591
    %593 = vrot.lane.b32.xlu0 %v19, 127
    %v594 = vpop.permute.xlu0 %593
    %595 = vrot.lane.b32.xlu0 %v20, 127
    %v596 = vpop.permute.xlu0 %595
    %597 = vrot.lane.b32.xlu0 %v22, 127
    %v598 = vpop.permute.xlu0 %597
    %599 = vrot.lane.b32.xlu0 %v23, 127
    %v600 = vpop.permute.xlu0 %599
    %601 = vrot.lane.b32.xlu0 %v25, 127
    %v602 = vpop.permute.xlu0 %601
    %603 = vrot.lane.b32.xlu0 %v26, 127
    %v604 = vpop.permute.xlu0 %603
    %605 = vrot.lane.b32.xlu0 %v28, 127
    %v606 = vpop.permute.xlu0 %605
    %607 = vrot.lane.b32.xlu0 %v29, 127
    %v608 = vpop.permute.xlu0 %607
    %609 = vrot.lane.b32.xlu0 %v31, 127
    %v610 = vpop.permute.xlu0 %609
    %611 = vrot.lane.b32.xlu0 %v32, 127
    %v612 = vpop.permute.xlu0 %611
    %613 = vrot.lane.b32.xlu0 %v34, 127
    %v614 = vpop.permute.xlu0 %613
    %615 = vrot.lane.b32.xlu0 %v35, 127
    %v616 = vpop.permute.xlu0 %615
    %617 = vrot.lane.b32.xlu0 %v37, 127
    %v618 = vpop.permute.xlu0 %617
    %619 = vrot.lane.b32.xlu0 %v38, 127
    %v620 = vpop.permute.xlu0 %619
    %621 = vrot.lane.b32.xlu0 %v40, 127
    %v622 = vpop.permute.xlu0 %621
    %623 = vrot.lane.b32.xlu0 %v41, 127
    %v624 = vpop.permute.xlu0 %623
    %625 = vrot.lane.b32.xlu0 %v43, 127
    %v626 = vpop.permute.xlu0 %625
    %627 = vrot.lane.b32.xlu0 %v44, 127
    %v628 = vpop.permute.xlu0 %627
    %629 = vrot.lane.b32.xlu0 %v46, 127
    %v630 = vpop.permute.xlu0 %629
    %631 = vrot.lane.b32.xlu0 %v47, 127
    %v632 = vpop.permute.xlu0 %631
    %633 = vrot.lane.b32.xlu0 %v49, 127
    %v634 = vpop.permute.xlu0 %633
    %635 = vrot.lane.b32.xlu0 %v50, 127
    %v636 = vpop.permute.xlu0 %635
    %637 = vrot.lane.b32.xlu0 %v52, 127
    %v638 = vpop.permute.xlu0 %637
    %639 = vrot.lane.b32.xlu0 %v53, 127
    %v640 = vpop.permute.xlu0 %639
    %641 = vrot.lane.b32.xlu0 %v55, 127
    %v642 = vpop.permute.xlu0 %641
    %643 = vrot.lane.b32.xlu0 %v56, 127
    %v644 = vpop.permute.xlu0 %643
    %645 = vrot.lane.b32.xlu0 %v58, 127
    %v646 = vpop.permute.xlu0 %645
    %647 = vrot.lane.b32.xlu0 %v59, 127
    %v648 = vpop.permute.xlu0 %647
    %649 = vrot.lane.b32.xlu0 %v61, 127
    %v650 = vpop.permute.xlu0 %649
    %651 = vrot.lane.b32.xlu0 %v62, 127
    %v652 = vpop.permute.xlu0 %651
    %v685 = vcombine.low %v590, %v606
    %v687 = vunpack.c.l.s4 1983009808
    %v688 = vunpack.c.0.s8 %v687
    %v689 = vlaneseq
    %v690 = vshrl.u32 %v689, 7
    %v691 = vsub.s32 %v688, %v690
    %v692 = vrot.slane %v685, %v691
    %v693 = vcombine.low %v598, %v614
    %v695 = vunpack.c.l.s4 1983009808
    %v696 = vunpack.c.0.s8 %v695
    %v697 = vlaneseq
    %v698 = vshrl.u32 %v697, 7
    %v699 = vsub.s32 %v696, %v698
    %v700 = vrot.slane %v693, %v699
    %v701 = vcombine.low %v692, %v700
    %v702 = vcombine.high %v692, %v700
    %v704 = vunpack.c.l.s4 1934713408
    %v705 = vunpack.c.0.s8 %v704
    %v706 = vlaneseq
    %v707 = vshrl.u32 %v706, 7
    %v708 = vsub.s32 %v705, %v707
    %v709 = vrot.slane %v701, %v708
    %v711 = vunpack.c.l.s4 1934713408
    %v712 = vunpack.c.0.s8 %v711
    %v713 = vlaneseq
    %v714 = vshrl.u32 %v713, 7
    %v715 = vsub.s32 %v712, %v714
    %v716 = vrot.slane %v702, %v715
    %v717 = vcombine.high %v709, 0
    %v718 = vcombine.high %v716, 0
    %v719 = vcombine.low %v594, %v610
    %v721 = vunpack.c.l.s4 1983009808
    %v722 = vunpack.c.0.s8 %v721
    %v723 = vlaneseq
    %v724 = vshrl.u32 %v723, 7
    %v725 = vsub.s32 %v722, %v724
    %v726 = vrot.slane %v719, %v725
    %v727 = vcombine.low %v602, %v618
    %v729 = vunpack.c.l.s4 1983009808
    %v730 = vunpack.c.0.s8 %v729
    %v731 = vlaneseq
    %v732 = vshrl.u32 %v731, 7
    %v733 = vsub.s32 %v730, %v732
    %v734 = vrot.slane %v727, %v733
    %v735 = vcombine.low %v726, %v734
    %v736 = vcombine.high %v726, %v734
    %v738 = vunpack.c.l.s4 1934713408
    %v739 = vunpack.c.0.s8 %v738
    %v740 = vlaneseq
    %v741 = vshrl.u32 %v740, 7
    %v742 = vsub.s32 %v739, %v741
    %v743 = vrot.slane %v735, %v742
    %v745 = vunpack.c.l.s4 1934713408
    %v746 = vunpack.c.0.s8 %v745
    %v747 = vlaneseq
    %v748 = vshrl.u32 %v747, 7
    %v749 = vsub.s32 %v746, %v748
    %v750 = vrot.slane %v736, %v749
    %v751 = vcombine.high %v743, 0
    %v752 = vcombine.high %v750, 0
    %v753 = vcombine.low %v622, %v638
    %v755 = vunpack.c.l.s4 1983009808
    %v756 = vunpack.c.0.s8 %v755
    %v757 = vlaneseq
    %v758 = vshrl.u32 %v757, 7
    %v759 = vsub.s32 %v756, %v758
    %v760 = vrot.slane %v753, %v759
    %v761 = vcombine.low %v630, %v646
    %v763 = vunpack.c.l.s4 1983009808
    %v764 = vunpack.c.0.s8 %v763
    %v765 = vlaneseq
    %v766 = vshrl.u32 %v765, 7
    %v767 = vsub.s32 %v764, %v766
    %v768 = vrot.slane %v761, %v767
    %v769 = vcombine.low %v760, %v768
    %v770 = vcombine.high %v760, %v768
    %v772 = vunpack.c.l.s4 1934713408
    %v773 = vunpack.c.0.s8 %v772
    %v774 = vlaneseq
    %v775 = vshrl.u32 %v774, 7
    %v776 = vsub.s32 %v773, %v775
    %v777 = vrot.slane %v769, %v776
    %v779 = vunpack.c.l.s4 1934713408
    %v780 = vunpack.c.0.s8 %v779
    %v781 = vlaneseq
    %v782 = vshrl.u32 %v781, 7
    %v783 = vsub.s32 %v780, %v782
    %v784 = vrot.slane %v770, %v783
    %v785 = vcombine.high %v777, 0
    %v786 = vcombine.high %v784, 0
    %v787 = vcombine.low %v626, %v642
    %v789 = vunpack.c.l.s4 1983009808
    %v790 = vunpack.c.0.s8 %v789
    %v791 = vlaneseq
    %v792 = vshrl.u32 %v791, 7
    %v793 = vsub.s32 %v790, %v792
    %v794 = vrot.slane %v787, %v793
    %v795 = vcombine.low %v634, %v650
    %v797 = vunpack.c.l.s4 1983009808
    %v798 = vunpack.c.0.s8 %v797
    %v799 = vlaneseq
    %v800 = vshrl.u32 %v799, 7
    %v801 = vsub.s32 %v798, %v800
    %v802 = vrot.slane %v795, %v801
    %v803 = vcombine.low %v794, %v802
    %v804 = vcombine.high %v794, %v802
    %v806 = vunpack.c.l.s4 1934713408
    %v807 = vunpack.c.0.s8 %v806
    %v808 = vlaneseq
    %v809 = vshrl.u32 %v808, 7
    %v810 = vsub.s32 %v807, %v809
    %v811 = vrot.slane %v803, %v810
    %v813 = vunpack.c.l.s4 1934713408
    %v814 = vunpack.c.0.s8 %v813
    %v815 = vlaneseq
    %v816 = vshrl.u32 %v815, 7
    %v817 = vsub.s32 %v814, %v816
    %v818 = vrot.slane %v804, %v817
    %v819 = vcombine.high %v811, 0
    %v820 = vcombine.high %v818, 0
    %v821 = vcombine.low %v592, %v608
    %v823 = vunpack.c.l.s4 1983009808
    %v824 = vunpack.c.0.s8 %v823
    %v825 = vlaneseq
    %v826 = vshrl.u32 %v825, 7
    %v827 = vsub.s32 %v824, %v826
    %v828 = vrot.slane %v821, %v827
    %v829 = vcombine.low %v600, %v616
    %v831 = vunpack.c.l.s4 1983009808
    %v832 = vunpack.c.0.s8 %v831
    %v833 = vlaneseq
    %v834 = vshrl.u32 %v833, 7
    %v835 = vsub.s32 %v832, %v834
    %v836 = vrot.slane %v829, %v835
    %v837 = vcombine.low %v828, %v836
    %v838 = vcombine.high %v828, %v836
    %v840 = vunpack.c.l.s4 1934713408
    %v841 = vunpack.c.0.s8 %v840
    %v842 = vlaneseq
    %v843 = vshrl.u32 %v842, 7
    %v844 = vsub.s32 %v841, %v843
    %v845 = vrot.slane %v837, %v844
    %v847 = vunpack.c.l.s4 1934713408
    %v848 = vunpack.c.0.s8 %v847
    %v849 = vlaneseq
    %v850 = vshrl.u32 %v849, 7
    %v851 = vsub.s32 %v848, %v850
    %v852 = vrot.slane %v838, %v851
    %v853 = vcombine.high %v845, 0
    %v854 = vcombine.high %v852, 0
    %v855 = vcombine.low %v596, %v612
    %v857 = vunpack.c.l.s4 1983009808
    %v858 = vunpack.c.0.s8 %v857
    %v859 = vlaneseq
    %v860 = vshrl.u32 %v859, 7
    %v861 = vsub.s32 %v858, %v860
    %v862 = vrot.slane %v855, %v861
    %v863 = vcombine.low %v604, %v620
    %v865 = vunpack.c.l.s4 1983009808
    %v866 = vunpack.c.0.s8 %v865
    %v867 = vlaneseq
    %v868 = vshrl.u32 %v867, 7
    %v869 = vsub.s32 %v866, %v868
    %v870 = vrot.slane %v863, %v869
    %v871 = vcombine.low %v862, %v870
    %v872 = vcombine.high %v862, %v870
    %v874 = vunpack.c.l.s4 1934713408
    %v875 = vunpack.c.0.s8 %v874
    %v876 = vlaneseq
    %v877 = vshrl.u32 %v876, 7
    %v878 = vsub.s32 %v875, %v877
    %v879 = vrot.slane %v871, %v878
    %v881 = vunpack.c.l.s4 1934713408
    %v882 = vunpack.c.0.s8 %v881
    %v883 = vlaneseq
    %v884 = vshrl.u32 %v883, 7
    %v885 = vsub.s32 %v882, %v884
    %v886 = vrot.slane %v872, %v885
    %v887 = vcombine.high %v879, 0
    %v888 = vcombine.high %v886, 0
    %v889 = vcombine.low %v624, %v640
    %v891 = vunpack.c.l.s4 1983009808
    %v892 = vunpack.c.0.s8 %v891
    %v893 = vlaneseq
    %v894 = vshrl.u32 %v893, 7
    %v895 = vsub.s32 %v892, %v894
    %v896 = vrot.slane %v889, %v895
    %v897 = vcombine.low %v632, %v648
    %v899 = vunpack.c.l.s4 1983009808
    %v900 = vunpack.c.0.s8 %v899
    %v901 = vlaneseq
    %v902 = vshrl.u32 %v901, 7
    %v903 = vsub.s32 %v900, %v902
    %v904 = vrot.slane %v897, %v903
    %v905 = vcombine.low %v896, %v904
    %v906 = vcombine.high %v896, %v904
    %v908 = vunpack.c.l.s4 1934713408
    %v909 = vunpack.c.0.s8 %v908
    %v910 = vlaneseq
    %v911 = vshrl.u32 %v910, 7
    %v912 = vsub.s32 %v909, %v911
    %v913 = vrot.slane %v905, %v912
    %v915 = vunpack.c.l.s4 1934713408
    %v916 = vunpack.c.0.s8 %v915
    %v917 = vlaneseq
    %v918 = vshrl.u32 %v917, 7
    %v919 = vsub.s32 %v916, %v918
    %v920 = vrot.slane %v906, %v919
    %v921 = vcombine.high %v913, 0
    %v922 = vcombine.high %v920, 0
    %v923 = vcombine.low %v628, %v644
    %v925 = vunpack.c.l.s4 1983009808
    %v926 = vunpack.c.0.s8 %v925
    %v927 = vlaneseq
    %v928 = vshrl.u32 %v927, 7
    %v929 = vsub.s32 %v926, %v928
    %v930 = vrot.slane %v923, %v929
    %v931 = vcombine.low %v636, %v652
    %v933 = vunpack.c.l.s4 1983009808
    %v934 = vunpack.c.0.s8 %v933
    %v935 = vlaneseq
    %v936 = vshrl.u32 %v935, 7
    %v937 = vsub.s32 %v934, %v936
    %v938 = vrot.slane %v931, %v937
    %v939 = vcombine.low %v930, %v938
    %v940 = vcombine.high %v930, %v938
    %v942 = vunpack.c.l.s4 1934713408
    %v943 = vunpack.c.0.s8 %v942
    %v944 = vlaneseq
    %v945 = vshrl.u32 %v944, 7
    %v946 = vsub.s32 %v943, %v945
    %v947 = vrot.slane %v939, %v946
    %v949 = vunpack.c.l.s4 1934713408
    %v950 = vunpack.c.0.s8 %v949
    %v951 = vlaneseq
    %v952 = vshrl.u32 %v951, 7
    %v953 = vsub.s32 %v950, %v952
    %v954 = vrot.slane %v940, %v953
    %v955 = vcombine.high %v947, 0
    %v956 = vcombine.high %v954, 0
    %v959 = vpack.i.b16 %v743, %v709
    %v960 = vshrl.u32 %v709, 16
    %v961 = vshrl.u32 %v743, 16
    %v962 = vpack.i.b16 %v961, %v960
    %v965 = vpack.i.b16 %v751, %v717
    %v966 = vshrl.u32 %v717, 16
    %v967 = vshrl.u32 %v751, 16
    %v968 = vpack.i.b16 %v967, %v966
    %v971 = vpack.i.b16 %v750, %v716
    %v972 = vshrl.u32 %v716, 16
    %v973 = vshrl.u32 %v750, 16
    %v974 = vpack.i.b16 %v973, %v972
    %v977 = vpack.i.b16 %v752, %v718
    %v978 = vshrl.u32 %v718, 16
    %v979 = vshrl.u32 %v752, 16
    %v980 = vpack.i.b16 %v979, %v978
    %v983 = vpack.i.b16 %v879, %v845
    %v984 = vshrl.u32 %v845, 16
    %v985 = vshrl.u32 %v879, 16
    %v986 = vpack.i.b16 %v985, %v984
    %v989 = vpack.i.b16 %v887, %v853
    %v990 = vshrl.u32 %v853, 16
    %v991 = vshrl.u32 %v887, 16
    %v992 = vpack.i.b16 %v991, %v990
    %v995 = vpack.i.b16 %v886, %v852
    %v996 = vshrl.u32 %v852, 16
    %v997 = vshrl.u32 %v886, 16
    %v998 = vpack.i.b16 %v997, %v996
    %v1001 = vpack.i.b16 %v888, %v854
    %v1002 = vshrl.u32 %v854, 16
    %v1003 = vshrl.u32 %v888, 16
    %v1004 = vpack.i.b16 %v1003, %v1002
    %v1007 = vpack.i.b16 %v811, %v777
    %v1008 = vshrl.u32 %v777, 16
    %v1009 = vshrl.u32 %v811, 16
    %v1010 = vpack.i.b16 %v1009, %v1008
    %v1013 = vpack.i.b16 %v819, %v785
    %v1014 = vshrl.u32 %v785, 16
    %v1015 = vshrl.u32 %v819, 16
    %v1016 = vpack.i.b16 %v1015, %v1014
    %v1019 = vpack.i.b16 %v818, %v784
    %v1020 = vshrl.u32 %v784, 16
    %v1021 = vshrl.u32 %v818, 16
    %v1022 = vpack.i.b16 %v1021, %v1020
    %v1025 = vpack.i.b16 %v820, %v786
    %v1026 = vshrl.u32 %v786, 16
    %v1027 = vshrl.u32 %v820, 16
    %v1028 = vpack.i.b16 %v1027, %v1026
    %v1031 = vpack.i.b16 %v947, %v913
    %v1032 = vshrl.u32 %v913, 16
    %v1033 = vshrl.u32 %v947, 16
    %v1034 = vpack.i.b16 %v1033, %v1032
    %v1037 = vpack.i.b16 %v955, %v921
    %v1038 = vshrl.u32 %v921, 16
    %v1039 = vshrl.u32 %v955, 16
    %v1040 = vpack.i.b16 %v1039, %v1038
    %v1043 = vpack.i.b16 %v954, %v920
    %v1044 = vshrl.u32 %v920, 16
    %v1045 = vshrl.u32 %v954, 16
    %v1046 = vpack.i.b16 %v1045, %v1044
    %v1049 = vpack.i.b16 %v956, %v922
    %v1050 = vshrl.u32 %v922, 16
    %v1051 = vshrl.u32 %v956, 16
    %v1052 = vpack.i.b16 %v1051, %v1050
    %v1053 = vunpack.c.l.b16 %v959
    %v1054 = vunpack.c.l.b16 %v1007
    %v1055 = vpack.c.b16 %v1054, %v1053
    %v1056 = vunpack.c.l.b16 %v962
    %v1057 = vunpack.c.l.b16 %v1010
    %v1058 = vpack.c.b16 %v1057, %v1056
    %1059 = vrot.lane.b32.xlu0 %v1058, 16
    %v1060 = vpop.permute.xlu0 %1059
    %v1061 = vunpack.c.l.b16 %v965
    %v1062 = vunpack.c.l.b16 %v1013
    %v1063 = vpack.c.b16 %v1062, %v1061
    %1064 = vrot.lane.b32.xlu0 %v1063, 32
    %v1065 = vpop.permute.xlu0 %1064
    %v1066 = vunpack.c.l.b16 %v968
    %v1067 = vunpack.c.l.b16 %v1016
    %v1068 = vpack.c.b16 %v1067, %v1066
    %1069 = vrot.lane.b32.xlu0 %v1068, 48
    %v1070 = vpop.permute.xlu0 %1069
    %v1071 = vunpack.c.l.b16 %v971
    %v1072 = vunpack.c.l.b16 %v1019
    %v1073 = vpack.c.b16 %v1072, %v1071
    %1074 = vrot.lane.b32.xlu0 %v1073, 64
    %v1075 = vpop.permute.xlu0 %1074
    %v1076 = vunpack.c.l.b16 %v974
    %v1077 = vunpack.c.l.b16 %v1022
    %v1078 = vpack.c.b16 %v1077, %v1076
    %1079 = vrot.lane.b32.xlu0 %v1078, 80
    %v1080 = vpop.permute.xlu0 %1079
    %v1081 = vunpack.c.l.b16 %v977
    %v1082 = vunpack.c.l.b16 %v1025
    %v1083 = vpack.c.b16 %v1082, %v1081
    %1084 = vrot.lane.b32.xlu0 %v1083, 96
    %v1085 = vpop.permute.xlu0 %1084
    %v1086 = vunpack.c.l.b16 %v980
    %v1087 = vunpack.c.l.b16 %v1028
    %v1088 = vpack.c.b16 %v1087, %v1086
    %1089 = vrot.lane.b32.xlu0 %v1088, 112
    %v1090 = vpop.permute.xlu0 %1089
    %v1091 = vunpack.c.l.b16 %v983
    %v1092 = vunpack.c.l.b16 %v1031
    %v1093 = vpack.c.b16 %v1092, %v1091
    %v1094 = vunpack.c.l.b16 %v986
    %v1095 = vunpack.c.l.b16 %v1034
    %v1096 = vpack.c.b16 %v1095, %v1094
    %1097 = vrot.lane.b32.xlu0 %v1096, 16
    %v1098 = vpop.permute.xlu0 %1097
    %v1099 = vunpack.c.l.b16 %v989
    %v1100 = vunpack.c.l.b16 %v1037
    %v1101 = vpack.c.b16 %v1100, %v1099
    %1102 = vrot.lane.b32.xlu0 %v1101, 32
    %v1103 = vpop.permute.xlu0 %1102
    %v1104 = vunpack.c.l.b16 %v992
    %v1105 = vunpack.c.l.b16 %v1040
    %v1106 = vpack.c.b16 %v1105, %v1104
    %1107 = vrot.lane.b32.xlu0 %v1106, 48
    %v1108 = vpop.permute.xlu0 %1107
    %v1109 = vunpack.c.l.b16 %v995
    %v1110 = vunpack.c.l.b16 %v1043
    %v1111 = vpack.c.b16 %v1110, %v1109
    %1112 = vrot.lane.b32.xlu0 %v1111, 64
    %v1113 = vpop.permute.xlu0 %1112
    %v1114 = vunpack.c.l.b16 %v998
    %v1115 = vunpack.c.l.b16 %v1046
    %v1116 = vpack.c.b16 %v1115, %v1114
    %1117 = vrot.lane.b32.xlu0 %v1116, 80
    %v1118 = vpop.permute.xlu0 %1117
    %v1119 = vunpack.c.l.b16 %v1001
    %v1120 = vunpack.c.l.b16 %v1049
    %v1121 = vpack.c.b16 %v1120, %v1119
    %1122 = vrot.lane.b32.xlu0 %v1121, 96
    %v1123 = vpop.permute.xlu0 %1122
    %v1124 = vunpack.c.l.b16 %v1004
    %v1125 = vunpack.c.l.b16 %v1052
    %v1126 = vpack.c.b16 %v1125, %v1124
    %1127 = vrot.lane.b32.xlu0 %v1126, 112
    %v1128 = vpop.permute.xlu0 %1127
    %v1131 = vsel %vm508, %v1055, %v1060
    %v1133 = vsel %vm512, %v1131, %v1065
    %v1135 = vsel %vm515, %v1133, %v1070
    %v1137 = vsel %vm518, %v1135, %v1075
    %v1139 = vsel %vm521, %v1137, %v1080
    %v1141 = vsel %vm524, %v1139, %v1085
    %v1143 = vsel %vm527, %v1141, %v1090
    %v1146 = vsel %vm508, %v1093, %v1098
    %v1148 = vsel %vm512, %v1146, %v1103
    %v1150 = vsel %vm515, %v1148, %v1108
    %v1152 = vsel %vm518, %v1150, %v1113
    %v1154 = vsel %vm521, %v1152, %v1118
    %v1156 = vsel %vm524, %v1154, %v1123
    %v1158 = vsel %vm527, %v1156, %v1128
    %v1161 = vunpack.c.l.b16 %v1143
    %v1162 = vunpack.c.l.b16 %v1158
    %v1163 = vunpack.c.h.b16 %v1143
    %v1164 = vunpack.c.h.b16 %v1158
    %v1165 = vpack.c.b16 %v1162, %v1161
    %v1166 = vpack.c.b16 %v1164, %v1163
    %1169 = vst [vmem:[#allocation2 + $0x20] sm:$0xff] %v1165
    %1170 = vst [vmem:[#allocation2 + $0x30] sm:$0xff] %v1166
    %1171 = vrot.lane.b32.xlu0 %v16, 126
    %v1172 = vpop.permute.xlu0 %1171
    %1173 = vrot.lane.b32.xlu0 %v17, 126
    %v1174 = vpop.permute.xlu0 %1173
    %1175 = vrot.lane.b32.xlu0 %v19, 126
    %v1176 = vpop.permute.xlu0 %1175
    %1177 = vrot.lane.b32.xlu0 %v20, 126
    %v1178 = vpop.permute.xlu0 %1177
    %1179 = vrot.lane.b32.xlu0 %v22, 126
    %v1180 = vpop.permute.xlu0 %1179
    %1181 = vrot.lane.b32.xlu0 %v23, 126
    %v1182 = vpop.permute.xlu0 %1181
    %1183 = vrot.lane.b32.xlu0 %v25, 126
    %v1184 = vpop.permute.xlu0 %1183
    %1185 = vrot.lane.b32.xlu0 %v26, 126
    %v1186 = vpop.permute.xlu0 %1185
    %1187 = vrot.lane.b32.xlu0 %v28, 126
    %v1188 = vpop.permute.xlu0 %1187
    %1189 = vrot.lane.b32.xlu0 %v29, 126
    %v1190 = vpop.permute.xlu0 %1189
    %1191 = vrot.lane.b32.xlu0 %v31, 126
    %v1192 = vpop.permute.xlu0 %1191
    %1193 = vrot.lane.b32.xlu0 %v32, 126
    %v1194 = vpop.permute.xlu0 %1193
    %1195 = vrot.lane.b32.xlu0 %v34, 126
    %v1196 = vpop.permute.xlu0 %1195
    %1197 = vrot.lane.b32.xlu0 %v35, 126
    %v1198 = vpop.permute.xlu0 %1197
    %1199 = vrot.lane.b32.xlu0 %v37, 126
    %v1200 = vpop.permute.xlu0 %1199
    %1201 = vrot.lane.b32.xlu0 %v38, 126
    %v1202 = vpop.permute.xlu0 %1201
    %1203 = vrot.lane.b32.xlu0 %v40, 126
    %v1204 = vpop.permute.xlu0 %1203
    %1205 = vrot.lane.b32.xlu0 %v41, 126
    %v1206 = vpop.permute.xlu0 %1205
    %1207 = vrot.lane.b32.xlu0 %v43, 126
    %v1208 = vpop.permute.xlu0 %1207
    %1209 = vrot.lane.b32.xlu0 %v44, 126
    %v1210 = vpop.permute.xlu0 %1209
    %1211 = vrot.lane.b32.xlu0 %v46, 126
    %v1212 = vpop.permute.xlu0 %1211
    %1213 = vrot.lane.b32.xlu0 %v47, 126
    %v1214 = vpop.permute.xlu0 %1213
    %1215 = vrot.lane.b32.xlu0 %v49, 126
    %v1216 = vpop.permute.xlu0 %1215
    %1217 = vrot.lane.b32.xlu0 %v50, 126
    %v1218 = vpop.permute.xlu0 %1217
    %1219 = vrot.lane.b32.xlu0 %v52, 126
    %v1220 = vpop.permute.xlu0 %1219
    %1221 = vrot.lane.b32.xlu0 %v53, 126
    %v1222 = vpop.permute.xlu0 %1221
    %1223 = vrot.lane.b32.xlu0 %v55, 126
    %v1224 = vpop.permute.xlu0 %1223
    %1225 = vrot.lane.b32.xlu0 %v56, 126
    %v1226 = vpop.permute.xlu0 %1225
    %1227 = vrot.lane.b32.xlu0 %v58, 126
    %v1228 = vpop.permute.xlu0 %1227
    %1229 = vrot.lane.b32.xlu0 %v59, 126
    %v1230 = vpop.permute.xlu0 %1229
    %1231 = vrot.lane.b32.xlu0 %v61, 126
    %v1232 = vpop.permute.xlu0 %1231
    %1233 = vrot.lane.b32.xlu0 %v62, 126
    %v1234 = vpop.permute.xlu0 %1233
    %v1267 = vcombine.low %v1172, %v1188
    %v1269 = vunpack.c.l.s4 1983009808
    %v1270 = vunpack.c.0.s8 %v1269
    %v1271 = vlaneseq
    %v1272 = vshrl.u32 %v1271, 7
    %v1273 = vsub.s32 %v1270, %v1272
    %v1274 = vrot.slane %v1267, %v1273
    %v1275 = vcombine.low %v1180, %v1196
    %v1277 = vunpack.c.l.s4 1983009808
    %v1278 = vunpack.c.0.s8 %v1277
    %v1279 = vlaneseq
    %v1280 = vshrl.u32 %v1279, 7
    %v1281 = vsub.s32 %v1278, %v1280
    %v1282 = vrot.slane %v1275, %v1281
    %v1283 = vcombine.low %v1274, %v1282
    %v1284 = vcombine.high %v1274, %v1282
    %v1286 = vunpack.c.l.s4 1934713408
    %v1287 = vunpack.c.0.s8 %v1286
    %v1288 = vlaneseq
    %v1289 = vshrl.u32 %v1288, 7
    %v1290 = vsub.s32 %v1287, %v1289
    %v1291 = vrot.slane %v1283, %v1290
    %v1293 = vunpack.c.l.s4 1934713408
    %v1294 = vunpack.c.0.s8 %v1293
    %v1295 = vlaneseq
    %v1296 = vshrl.u32 %v1295, 7
    %v1297 = vsub.s32 %v1294, %v1296
    %v1298 = vrot.slane %v1284, %v1297
    %v1299 = vcombine.high %v1291, 0
    %v1300 = vcombine.high %v1298, 0
    %v1301 = vcombine.low %v1176, %v1192
    %v1303 = vunpack.c.l.s4 1983009808
    %v1304 = vunpack.c.0.s8 %v1303
    %v1305 = vlaneseq
    %v1306 = vshrl.u32 %v1305, 7
    %v1307 = vsub.s32 %v1304, %v1306
    %v1308 = vrot.slane %v1301, %v1307
    %v1309 = vcombine.low %v1184, %v1200
    %v1311 = vunpack.c.l.s4 1983009808
    %v1312 = vunpack.c.0.s8 %v1311
    %v1313 = vlaneseq
    %v1314 = vshrl.u32 %v1313, 7
    %v1315 = vsub.s32 %v1312, %v1314
    %v1316 = vrot.slane %v1309, %v1315
    %v1317 = vcombine.low %v1308, %v1316
    %v1318 = vcombine.high %v1308, %v1316
    %v1320 = vunpack.c.l.s4 1934713408
    %v1321 = vunpack.c.0.s8 %v1320
    %v1322 = vlaneseq
    %v1323 = vshrl.u32 %v1322, 7
    %v1324 = vsub.s32 %v1321, %v1323
    %v1325 = vrot.slane %v1317, %v1324
    %v1327 = vunpack.c.l.s4 1934713408
    %v1328 = vunpack.c.0.s8 %v1327
    %v1329 = vlaneseq
    %v1330 = vshrl.u32 %v1329, 7
    %v1331 = vsub.s32 %v1328, %v1330
    %v1332 = vrot.slane %v1318, %v1331
    %v1333 = vcombine.high %v1325, 0
    %v1334 = vcombine.high %v1332, 0
    %v1335 = vcombine.low %v1204, %v1220
    %v1337 = vunpack.c.l.s4 1983009808
    %v1338 = vunpack.c.0.s8 %v1337
    %v1339 = vlaneseq
    %v1340 = vshrl.u32 %v1339, 7
    %v1341 = vsub.s32 %v1338, %v1340
    %v1342 = vrot.slane %v1335, %v1341
    %v1343 = vcombine.low %v1212, %v1228
    %v1345 = vunpack.c.l.s4 1983009808
    %v1346 = vunpack.c.0.s8 %v1345
    %v1347 = vlaneseq
    %v1348 = vshrl.u32 %v1347, 7
    %v1349 = vsub.s32 %v1346, %v1348
    %v1350 = vrot.slane %v1343, %v1349
    %v1351 = vcombine.low %v1342, %v1350
    %v1352 = vcombine.high %v1342, %v1350
    %v1354 = vunpack.c.l.s4 1934713408
    %v1355 = vunpack.c.0.s8 %v1354
    %v1356 = vlaneseq
    %v1357 = vshrl.u32 %v1356, 7
    %v1358 = vsub.s32 %v1355, %v1357
    %v1359 = vrot.slane %v1351, %v1358
    %v1361 = vunpack.c.l.s4 1934713408
    %v1362 = vunpack.c.0.s8 %v1361
    %v1363 = vlaneseq
    %v1364 = vshrl.u32 %v1363, 7
    %v1365 = vsub.s32 %v1362, %v1364
    %v1366 = vrot.slane %v1352, %v1365
    %v1367 = vcombine.high %v1359, 0
    %v1368 = vcombine.high %v1366, 0
    %v1369 = vcombine.low %v1208, %v1224
    %v1371 = vunpack.c.l.s4 1983009808
    %v1372 = vunpack.c.0.s8 %v1371
    %v1373 = vlaneseq
    %v1374 = vshrl.u32 %v1373, 7
    %v1375 = vsub.s32 %v1372, %v1374
    %v1376 = vrot.slane %v1369, %v1375
    %v1377 = vcombine.low %v1216, %v1232
    %v1379 = vunpack.c.l.s4 1983009808
    %v1380 = vunpack.c.0.s8 %v1379
    %v1381 = vlaneseq
    %v1382 = vshrl.u32 %v1381, 7
    %v1383 = vsub.s32 %v1380, %v1382
    %v1384 = vrot.slane %v1377, %v1383
    %v1385 = vcombine.low %v1376, %v1384
    %v1386 = vcombine.high %v1376, %v1384
    %v1388 = vunpack.c.l.s4 1934713408
    %v1389 = vunpack.c.0.s8 %v1388
    %v1390 = vlaneseq
    %v1391 = vshrl.u32 %v1390, 7
    %v1392 = vsub.s32 %v1389, %v1391
    %v1393 = vrot.slane %v1385, %v1392
    %v1395 = vunpack.c.l.s4 1934713408
    %v1396 = vunpack.c.0.s8 %v1395
    %v1397 = vlaneseq
    %v1398 = vshrl.u32 %v1397, 7
    %v1399 = vsub.s32 %v1396, %v1398
    %v1400 = vrot.slane %v1386, %v1399
    %v1401 = vcombine.high %v1393, 0
    %v1402 = vcombine.high %v1400, 0
    %v1403 = vcombine.low %v1174, %v1190
    %v1405 = vunpack.c.l.s4 1983009808
    %v1406 = vunpack.c.0.s8 %v1405
    %v1407 = vlaneseq
    %v1408 = vshrl.u32 %v1407, 7
    %v1409 = vsub.s32 %v1406, %v1408
    %v1410 = vrot.slane %v1403, %v1409
    %v1411 = vcombine.low %v1182, %v1198
    %v1413 = vunpack.c.l.s4 1983009808
    %v1414 = vunpack.c.0.s8 %v1413
    %v1415 = vlaneseq
    %v1416 = vshrl.u32 %v1415, 7
    %v1417 = vsub.s32 %v1414, %v1416
    %v1418 = vrot.slane %v1411, %v1417
    %v1419 = vcombine.low %v1410, %v1418
    %v1420 = vcombine.high %v1410, %v1418
    %v1422 = vunpack.c.l.s4 1934713408
    %v1423 = vunpack.c.0.s8 %v1422
    %v1424 = vlaneseq
    %v1425 = vshrl.u32 %v1424, 7
    %v1426 = vsub.s32 %v1423, %v1425
    %v1427 = vrot.slane %v1419, %v1426
    %v1429 = vunpack.c.l.s4 1934713408
    %v1430 = vunpack.c.0.s8 %v1429
    %v1431 = vlaneseq
    %v1432 = vshrl.u32 %v1431, 7
    %v1433 = vsub.s32 %v1430, %v1432
    %v1434 = vrot.slane %v1420, %v1433
    %v1435 = vcombine.high %v1427, 0
    %v1436 = vcombine.high %v1434, 0
    %v1437 = vcombine.low %v1178, %v1194
    %v1439 = vunpack.c.l.s4 1983009808
    %v1440 = vunpack.c.0.s8 %v1439
    %v1441 = vlaneseq
    %v1442 = vshrl.u32 %v1441, 7
    %v1443 = vsub.s32 %v1440, %v1442
    %v1444 = vrot.slane %v1437, %v1443
    %v1445 = vcombine.low %v1186, %v1202
    %v1447 = vunpack.c.l.s4 1983009808
    %v1448 = vunpack.c.0.s8 %v1447
    %v1449 = vlaneseq
    %v1450 = vshrl.u32 %v1449, 7
    %v1451 = vsub.s32 %v1448, %v1450
    %v1452 = vrot.slane %v1445, %v1451
    %v1453 = vcombine.low %v1444, %v1452
    %v1454 = vcombine.high %v1444, %v1452
    %v1456 = vunpack.c.l.s4 1934713408
    %v1457 = vunpack.c.0.s8 %v1456
    %v1458 = vlaneseq
    %v1459 = vshrl.u32 %v1458, 7
    %v1460 = vsub.s32 %v1457, %v1459
    %v1461 = vrot.slane %v1453, %v1460
    %v1463 = vunpack.c.l.s4 1934713408
    %v1464 = vunpack.c.0.s8 %v1463
    %v1465 = vlaneseq
    %v1466 = vshrl.u32 %v1465, 7
    %v1467 = vsub.s32 %v1464, %v1466
    %v1468 = vrot.slane %v1454, %v1467
    %v1469 = vcombine.high %v1461, 0
    %v1470 = vcombine.high %v1468, 0
    %v1471 = vcombine.low %v1206, %v1222
    %v1473 = vunpack.c.l.s4 1983009808
    %v1474 = vunpack.c.0.s8 %v1473
    %v1475 = vlaneseq
    %v1476 = vshrl.u32 %v1475, 7
    %v1477 = vsub.s32 %v1474, %v1476
    %v1478 = vrot.slane %v1471, %v1477
    %v1479 = vcombine.low %v1214, %v1230
    %v1481 = vunpack.c.l.s4 1983009808
    %v1482 = vunpack.c.0.s8 %v1481
    %v1483 = vlaneseq
    %v1484 = vshrl.u32 %v1483, 7
    %v1485 = vsub.s32 %v1482, %v1484
    %v1486 = vrot.slane %v1479, %v1485
    %v1487 = vcombine.low %v1478, %v1486
    %v1488 = vcombine.high %v1478, %v1486
    %v1490 = vunpack.c.l.s4 1934713408
    %v1491 = vunpack.c.0.s8 %v1490
    %v1492 = vlaneseq
    %v1493 = vshrl.u32 %v1492, 7
    %v1494 = vsub.s32 %v1491, %v1493
    %v1495 = vrot.slane %v1487, %v1494
    %v1497 = vunpack.c.l.s4 1934713408
    %v1498 = vunpack.c.0.s8 %v1497
    %v1499 = vlaneseq
    %v1500 = vshrl.u32 %v1499, 7
    %v1501 = vsub.s32 %v1498, %v1500
    %v1502 = vrot.slane %v1488, %v1501
    %v1503 = vcombine.high %v1495, 0
    %v1504 = vcombine.high %v1502, 0
    %v1505 = vcombine.low %v1210, %v1226
    %v1507 = vunpack.c.l.s4 1983009808
    %v1508 = vunpack.c.0.s8 %v1507
    %v1509 = vlaneseq
    %v1510 = vshrl.u32 %v1509, 7
    %v1511 = vsub.s32 %v1508, %v1510
    %v1512 = vrot.slane %v1505, %v1511
    %v1513 = vcombine.low %v1218, %v1234
    %v1515 = vunpack.c.l.s4 1983009808
    %v1516 = vunpack.c.0.s8 %v1515
    %v1517 = vlaneseq
    %v1518 = vshrl.u32 %v1517, 7
    %v1519 = vsub.s32 %v1516, %v1518
    %v1520 = vrot.slane %v1513, %v1519
    %v1521 = vcombine.low %v1512, %v1520
    %v1522 = vcombine.high %v1512, %v1520
    %v1524 = vunpack.c.l.s4 1934713408
    %v1525 = vunpack.c.0.s8 %v1524
    %v1526 = vlaneseq
    %v1527 = vshrl.u32 %v1526, 7
    %v1528 = vsub.s32 %v1525, %v1527
    %v1529 = vrot.slane %v1521, %v1528
    %v1531 = vunpack.c.l.s4 1934713408
    %v1532 = vunpack.c.0.s8 %v1531
    %v1533 = vlaneseq
    %v1534 = vshrl.u32 %v1533, 7
    %v1535 = vsub.s32 %v1532, %v1534
    %v1536 = vrot.slane %v1522, %v1535
    %v1537 = vcombine.high %v1529, 0
    %v1538 = vcombine.high %v1536, 0
    %v1541 = vpack.i.b16 %v1325, %v1291
    %v1542 = vshrl.u32 %v1291, 16
    %v1543 = vshrl.u32 %v1325, 16
    %v1544 = vpack.i.b16 %v1543, %v1542
    %v1547 = vpack.i.b16 %v1333, %v1299
    %v1548 = vshrl.u32 %v1299, 16
    %v1549 = vshrl.u32 %v1333, 16
    %v1550 = vpack.i.b16 %v1549, %v1548
    %v1553 = vpack.i.b16 %v1332, %v1298
    %v1554 = vshrl.u32 %v1298, 16
    %v1555 = vshrl.u32 %v1332, 16
    %v1556 = vpack.i.b16 %v1555, %v1554
    %v1559 = vpack.i.b16 %v1334, %v1300
    %v1560 = vshrl.u32 %v1300, 16
    %v1561 = vshrl.u32 %v1334, 16
    %v1562 = vpack.i.b16 %v1561, %v1560
    %v1565 = vpack.i.b16 %v1461, %v1427
    %v1566 = vshrl.u32 %v1427, 16
    %v1567 = vshrl.u32 %v1461, 16
    %v1568 = vpack.i.b16 %v1567, %v1566
    %v1571 = vpack.i.b16 %v1469, %v1435
    %v1572 = vshrl.u32 %v1435, 16
    %v1573 = vshrl.u32 %v1469, 16
    %v1574 = vpack.i.b16 %v1573, %v1572
    %v1577 = vpack.i.b16 %v1468, %v1434
    %v1578 = vshrl.u32 %v1434, 16
    %v1579 = vshrl.u32 %v1468, 16
    %v1580 = vpack.i.b16 %v1579, %v1578
    %v1583 = vpack.i.b16 %v1470, %v1436
    %v1584 = vshrl.u32 %v1436, 16
    %v1585 = vshrl.u32 %v1470, 16
    %v1586 = vpack.i.b16 %v1585, %v1584
    %v1589 = vpack.i.b16 %v1393, %v1359
    %v1590 = vshrl.u32 %v1359, 16
    %v1591 = vshrl.u32 %v1393, 16
    %v1592 = vpack.i.b16 %v1591, %v1590
    %v1595 = vpack.i.b16 %v1401, %v1367
    %v1596 = vshrl.u32 %v1367, 16
    %v1597 = vshrl.u32 %v1401, 16
    %v1598 = vpack.i.b16 %v1597, %v1596
    %v1601 = vpack.i.b16 %v1400, %v1366
    %v1602 = vshrl.u32 %v1366, 16
    %v1603 = vshrl.u32 %v1400, 16
    %v1604 = vpack.i.b16 %v1603, %v1602
    %v1607 = vpack.i.b16 %v1402, %v1368
    %v1608 = vshrl.u32 %v1368, 16
    %v1609 = vshrl.u32 %v1402, 16
    %v1610 = vpack.i.b16 %v1609, %v1608
    %v1613 = vpack.i.b16 %v1529, %v1495
    %v1614 = vshrl.u32 %v1495, 16
    %v1615 = vshrl.u32 %v1529, 16
    %v1616 = vpack.i.b16 %v1615, %v1614
    %v1619 = vpack.i.b16 %v1537, %v1503
    %v1620 = vshrl.u32 %v1503, 16
    %v1621 = vshrl.u32 %v1537, 16
    %v1622 = vpack.i.b16 %v1621, %v1620
    %v1625 = vpack.i.b16 %v1536, %v1502
    %v1626 = vshrl.u32 %v1502, 16
    %v1627 = vshrl.u32 %v1536, 16
    %v1628 = vpack.i.b16 %v1627, %v1626
    %v1631 = vpack.i.b16 %v1538, %v1504
    %v1632 = vshrl.u32 %v1504, 16
    %v1633 = vshrl.u32 %v1538, 16
    %v1634 = vpack.i.b16 %v1633, %v1632
    %v1635 = vunpack.c.l.b16 %v1541
    %v1636 = vunpack.c.l.b16 %v1589
    %v1637 = vpack.c.b16 %v1636, %v1635
    %v1638 = vunpack.c.l.b16 %v1544
    %v1639 = vunpack.c.l.b16 %v1592
    %v1640 = vpack.c.b16 %v1639, %v1638
    %1641 = vrot.lane.b32.xlu0 %v1640, 16
    %v1642 = vpop.permute.xlu0 %1641
    %v1643 = vunpack.c.l.b16 %v1547
    %v1644 = vunpack.c.l.b16 %v1595
    %v1645 = vpack.c.b16 %v1644, %v1643
    %1646 = vrot.lane.b32.xlu0 %v1645, 32
    %v1647 = vpop.permute.xlu0 %1646
    %v1648 = vunpack.c.l.b16 %v1550
    %v1649 = vunpack.c.l.b16 %v1598
    %v1650 = vpack.c.b16 %v1649, %v1648
    %1651 = vrot.lane.b32.xlu0 %v1650, 48
    %v1652 = vpop.permute.xlu0 %1651
    %v1653 = vunpack.c.l.b16 %v1553
    %v1654 = vunpack.c.l.b16 %v1601
    %v1655 = vpack.c.b16 %v1654, %v1653
    %1656 = vrot.lane.b32.xlu0 %v1655, 64
    %v1657 = vpop.permute.xlu0 %1656
    %v1658 = vunpack.c.l.b16 %v1556
    %v1659 = vunpack.c.l.b16 %v1604
    %v1660 = vpack.c.b16 %v1659, %v1658
    %1661 = vrot.lane.b32.xlu0 %v1660, 80
    %v1662 = vpop.permute.xlu0 %1661
    %v1663 = vunpack.c.l.b16 %v1559
    %v1664 = vunpack.c.l.b16 %v1607
    %v1665 = vpack.c.b16 %v1664, %v1663
    %1666 = vrot.lane.b32.xlu0 %v1665, 96
    %v1667 = vpop.permute.xlu0 %1666
    %v1668 = vunpack.c.l.b16 %v1562
    %v1669 = vunpack.c.l.b16 %v1610
    %v1670 = vpack.c.b16 %v1669, %v1668
    %1671 = vrot.lane.b32.xlu0 %v1670, 112
    %v1672 = vpop.permute.xlu0 %1671
    %v1673 = vunpack.c.l.b16 %v1565
    %v1674 = vunpack.c.l.b16 %v1613
    %v1675 = vpack.c.b16 %v1674, %v1673
    %v1676 = vunpack.c.l.b16 %v1568
    %v1677 = vunpack.c.l.b16 %v1616
    %v1678 = vpack.c.b16 %v1677, %v1676
    %1679 = vrot.lane.b32.xlu0 %v1678, 16
    %v1680 = vpop.permute.xlu0 %1679
    %v1681 = vunpack.c.l.b16 %v1571
    %v1682 = vunpack.c.l.b16 %v1619
    %v1683 = vpack.c.b16 %v1682, %v1681
    %1684 = vrot.lane.b32.xlu0 %v1683, 32
    %v1685 = vpop.permute.xlu0 %1684
    %v1686 = vunpack.c.l.b16 %v1574
    %v1687 = vunpack.c.l.b16 %v1622
    %v1688 = vpack.c.b16 %v1687, %v1686
    %1689 = vrot.lane.b32.xlu0 %v1688, 48
    %v1690 = vpop.permute.xlu0 %1689
    %v1691 = vunpack.c.l.b16 %v1577
    %v1692 = vunpack.c.l.b16 %v1625
    %v1693 = vpack.c.b16 %v1692, %v1691
    %1694 = vrot.lane.b32.xlu0 %v1693, 64
    %v1695 = vpop.permute.xlu0 %1694
    %v1696 = vunpack.c.l.b16 %v1580
    %v1697 = vunpack.c.l.b16 %v1628
    %v1698 = vpack.c.b16 %v1697, %v1696
    %1699 = vrot.lane.b32.xlu0 %v1698, 80
    %v1700 = vpop.permute.xlu0 %1699
    %v1701 = vunpack.c.l.b16 %v1583
    %v1702 = vunpack.c.l.b16 %v1631
    %v1703 = vpack.c.b16 %v1702, %v1701
    %1704 = vrot.lane.b32.xlu0 %v1703, 96
    %v1705 = vpop.permute.xlu0 %1704
    %v1706 = vunpack.c.l.b16 %v1586
    %v1707 = vunpack.c.l.b16 %v1634
    %v1708 = vpack.c.b16 %v1707, %v1706
    %1709 = vrot.lane.b32.xlu0 %v1708, 112
    %v1710 = vpop.permute.xlu0 %1709
    %v1713 = vsel %vm508, %v1637, %v1642
    %v1715 = vsel %vm512, %v1713, %v1647
    %v1717 = vsel %vm515, %v1715, %v1652
    %v1719 = vsel %vm518, %v1717, %v1657
    %v1721 = vsel %vm521, %v1719, %v1662
    %v1723 = vsel %vm524, %v1721, %v1667
    %v1725 = vsel %vm527, %v1723, %v1672
    %v1728 = vsel %vm508, %v1675, %v1680
    %v1730 = vsel %vm512, %v1728, %v1685
    %v1732 = vsel %vm515, %v1730, %v1690
    %v1734 = vsel %vm518, %v1732, %v1695
    %v1736 = vsel %vm521, %v1734, %v1700
    %v1738 = vsel %vm524, %v1736, %v1705
    %v1740 = vsel %vm527, %v1738, %v1710
    %v1743 = vunpack.c.l.b16 %v1725
    %v1744 = vunpack.c.l.b16 %v1740
    %v1745 = vunpack.c.h.b16 %v1725
    %v1746 = vunpack.c.h.b16 %v1740
    %v1747 = vpack.c.b16 %v1744, %v1743
    %v1748 = vpack.c.b16 %v1746, %v1745
    %1751 = vst [vmem:[#allocation2 + $0x40] sm:$0xff] %v1747
    %1752 = vst [vmem:[#allocation2 + $0x50] sm:$0xff] %v1748
    %vm1753 = vsmask.f32 3328
    %vm1754 = vsmask.f32 7440
    %vm1755 = vmor %vm1753, %vm1754
    %v1757 = vshrl.u32 %v16, 16
    %v1759 = vrot.slane %v1757, 4
    %v1760 = vshll.u32 %v16, 16
    %v1762 = vrot.slane %v1760, 5
    %v1763 = vor.u32 %v1759, %v1762
    %v1764 = vrot.slane %v1763, 4
    %v1766 = vshll.u32 %v17, 16
    %v1768 = vrot.slane %v1766, 5
    %v1769 = vsel %vm1755, %v1764, %v1768
    %v1770 = vshrl.u32 %v17, 16
    %v1772 = vrot.slane %v1770, 4
    %v1773 = vor.u32 %v1772, %v1768
    %v1774 = vrot.slane %v1773, 4
    %v1776 = vshll.u32 %v18, 16
    %v1778 = vrot.slane %v1776, 5
    %v1779 = vsel %vm1755, %v1774, %v1778
    %v1781 = vshrl.u32 %v19, 16
    %v1783 = vrot.slane %v1781, 4
    %v1784 = vshll.u32 %v19, 16
    %v1786 = vrot.slane %v1784, 5
    %v1787 = vor.u32 %v1783, %v1786
    %v1788 = vrot.slane %v1787, 4
    %v1790 = vshll.u32 %v20, 16
    %v1792 = vrot.slane %v1790, 5
    %v1793 = vsel %vm1755, %v1788, %v1792
    %v1794 = vshrl.u32 %v20, 16
    %v1796 = vrot.slane %v1794, 4
    %v1797 = vor.u32 %v1796, %v1792
    %v1798 = vrot.slane %v1797, 4
    %v1800 = vshll.u32 %v21, 16
    %v1802 = vrot.slane %v1800, 5
    %v1803 = vsel %vm1755, %v1798, %v1802
    %v1805 = vshrl.u32 %v22, 16
    %v1807 = vrot.slane %v1805, 4
    %v1808 = vshll.u32 %v22, 16
    %v1810 = vrot.slane %v1808, 5
    %v1811 = vor.u32 %v1807, %v1810
    %v1812 = vrot.slane %v1811, 4
    %v1814 = vshll.u32 %v23, 16
    %v1816 = vrot.slane %v1814, 5
    %v1817 = vsel %vm1755, %v1812, %v1816
    %v1818 = vshrl.u32 %v23, 16
    %v1820 = vrot.slane %v1818, 4
    %v1821 = vor.u32 %v1820, %v1816
    %v1822 = vrot.slane %v1821, 4
    %v1824 = vshll.u32 %v24, 16
    %v1826 = vrot.slane %v1824, 5
    %v1827 = vsel %vm1755, %v1822, %v1826
    %v1829 = vshrl.u32 %v25, 16
    %v1831 = vrot.slane %v1829, 4
    %v1832 = vshll.u32 %v25, 16
    %v1834 = vrot.slane %v1832, 5
    %v1835 = vor.u32 %v1831, %v1834
    %v1836 = vrot.slane %v1835, 4
    %v1838 = vshll.u32 %v26, 16
    %v1840 = vrot.slane %v1838, 5
    %v1841 = vsel %vm1755, %v1836, %v1840
    %v1842 = vshrl.u32 %v26, 16
    %v1844 = vrot.slane %v1842, 4
    %v1845 = vor.u32 %v1844, %v1840
    %v1846 = vrot.slane %v1845, 4
    %v1848 = vshll.u32 %v27, 16
    %v1850 = vrot.slane %v1848, 5
    %v1851 = vsel %vm1755, %v1846, %v1850
    %v1853 = vshrl.u32 %v28, 16
    %v1855 = vrot.slane %v1853, 4
    %v1856 = vshll.u32 %v28, 16
    %v1858 = vrot.slane %v1856, 5
    %v1859 = vor.u32 %v1855, %v1858
    %v1860 = vrot.slane %v1859, 4
    %v1862 = vshll.u32 %v29, 16
    %v1864 = vrot.slane %v1862, 5
    %v1865 = vsel %vm1755, %v1860, %v1864
    %v1866 = vshrl.u32 %v29, 16
    %v1868 = vrot.slane %v1866, 4
    %v1869 = vor.u32 %v1868, %v1864
    %v1870 = vrot.slane %v1869, 4
    %v1872 = vshll.u32 %v30, 16
    %v1874 = vrot.slane %v1872, 5
    %v1875 = vsel %vm1755, %v1870, %v1874
    %v1877 = vshrl.u32 %v31, 16
    %v1879 = vrot.slane %v1877, 4
    %v1880 = vshll.u32 %v31, 16
    %v1882 = vrot.slane %v1880, 5
    %v1883 = vor.u32 %v1879, %v1882
    %v1884 = vrot.slane %v1883, 4
    %v1886 = vshll.u32 %v32, 16
    %v1888 = vrot.slane %v1886, 5
    %v1889 = vsel %vm1755, %v1884, %v1888
    %v1890 = vshrl.u32 %v32, 16
    %v1892 = vrot.slane %v1890, 4
    %v1893 = vor.u32 %v1892, %v1888
    %v1894 = vrot.slane %v1893, 4
    %v1896 = vshll.u32 %v33, 16
    %v1898 = vrot.slane %v1896, 5
    %v1899 = vsel %vm1755, %v1894, %v1898
    %v1901 = vshrl.u32 %v34, 16
    %v1903 = vrot.slane %v1901, 4
    %v1904 = vshll.u32 %v34, 16
    %v1906 = vrot.slane %v1904, 5
    %v1907 = vor.u32 %v1903, %v1906
    %v1908 = vrot.slane %v1907, 4
    %v1910 = vshll.u32 %v35, 16
    %v1912 = vrot.slane %v1910, 5
    %v1913 = vsel %vm1755, %v1908, %v1912
    %v1914 = vshrl.u32 %v35, 16
    %v1916 = vrot.slane %v1914, 4
    %v1917 = vor.u32 %v1916, %v1912
    %v1918 = vrot.slane %v1917, 4
    %v1920 = vshll.u32 %v36, 16
    %v1922 = vrot.slane %v1920, 5
    %v1923 = vsel %vm1755, %v1918, %v1922
    %v1925 = vshrl.u32 %v37, 16
    %v1927 = vrot.slane %v1925, 4
    %v1928 = vshll.u32 %v37, 16
    %v1930 = vrot.slane %v1928, 5
    %v1931 = vor.u32 %v1927, %v1930
    %v1932 = vrot.slane %v1931, 4
    %v1934 = vshll.u32 %v38, 16
    %v1936 = vrot.slane %v1934, 5
    %v1937 = vsel %vm1755, %v1932, %v1936
    %v1938 = vshrl.u32 %v38, 16
    %v1940 = vrot.slane %v1938, 4
    %v1941 = vor.u32 %v1940, %v1936
    %v1942 = vrot.slane %v1941, 4
    %v1944 = vshll.u32 %v39, 16
    %v1946 = vrot.slane %v1944, 5
    %v1947 = vsel %vm1755, %v1942, %v1946
    %v1949 = vshrl.u32 %v40, 16
    %v1951 = vrot.slane %v1949, 4
    %v1952 = vshll.u32 %v40, 16
    %v1954 = vrot.slane %v1952, 5
    %v1955 = vor.u32 %v1951, %v1954
    %v1956 = vrot.slane %v1955, 4
    %v1958 = vshll.u32 %v41, 16
    %v1960 = vrot.slane %v1958, 5
    %v1961 = vsel %vm1755, %v1956, %v1960
    %v1962 = vshrl.u32 %v41, 16
    %v1964 = vrot.slane %v1962, 4
    %v1965 = vor.u32 %v1964, %v1960
    %v1966 = vrot.slane %v1965, 4
    %v1968 = vshll.u32 %v42, 16
    %v1970 = vrot.slane %v1968, 5
    %v1971 = vsel %vm1755, %v1966, %v1970
    %v1973 = vshrl.u32 %v43, 16
    %v1975 = vrot.slane %v1973, 4
    %v1976 = vshll.u32 %v43, 16
    %v1978 = vrot.slane %v1976, 5
    %v1979 = vor.u32 %v1975, %v1978
    %v1980 = vrot.slane %v1979, 4
    %v1982 = vshll.u32 %v44, 16
    %v1984 = vrot.slane %v1982, 5
    %v1985 = vsel %vm1755, %v1980, %v1984
    %v1986 = vshrl.u32 %v44, 16
    %v1988 = vrot.slane %v1986, 4
    %v1989 = vor.u32 %v1988, %v1984
    %v1990 = vrot.slane %v1989, 4
    %v1992 = vshll.u32 %v45, 16
    %v1994 = vrot.slane %v1992, 5
    %v1995 = vsel %vm1755, %v1990, %v1994
    %v1997 = vshrl.u32 %v46, 16
    %v1999 = vrot.slane %v1997, 4
    %v2000 = vshll.u32 %v46, 16
    %v2002 = vrot.slane %v2000, 5
    %v2003 = vor.u32 %v1999, %v2002
    %v2004 = vrot.slane %v2003, 4
    %v2006 = vshll.u32 %v47, 16
    %v2008 = vrot.slane %v2006, 5
    %v2009 = vsel %vm1755, %v2004, %v2008
    %v2010 = vshrl.u32 %v47, 16
    %v2012 = vrot.slane %v2010, 4
    %v2013 = vor.u32 %v2012, %v2008
    %v2014 = vrot.slane %v2013, 4
    %v2016 = vshll.u32 %v48, 16
    %v2018 = vrot.slane %v2016, 5
    %v2019 = vsel %vm1755, %v2014, %v2018
    %v2021 = vshrl.u32 %v49, 16
    %v2023 = vrot.slane %v2021, 4
    %v2024 = vshll.u32 %v49, 16
    %v2026 = vrot.slane %v2024, 5
    %v2027 = vor.u32 %v2023, %v2026
    %v2028 = vrot.slane %v2027, 4
    %v2030 = vshll.u32 %v50, 16
    %v2032 = vrot.slane %v2030, 5
    %v2033 = vsel %vm1755, %v2028, %v2032
    %v2034 = vshrl.u32 %v50, 16
    %v2036 = vrot.slane %v2034, 4
    %v2037 = vor.u32 %v2036, %v2032
    %v2038 = vrot.slane %v2037, 4
    %v2040 = vshll.u32 %v51, 16
    %v2042 = vrot.slane %v2040, 5
    %v2043 = vsel %vm1755, %v2038, %v2042
    %v2045 = vshrl.u32 %v52, 16
    %v2047 = vrot.slane %v2045, 4
    %v2048 = vshll.u32 %v52, 16
    %v2050 = vrot.slane %v2048, 5
    %v2051 = vor.u32 %v2047, %v2050
    %v2052 = vrot.slane %v2051, 4
    %v2054 = vshll.u32 %v53, 16
    %v2056 = vrot.slane %v2054, 5
    %v2057 = vsel %vm1755, %v2052, %v2056
    %v2058 = vshrl.u32 %v53, 16
    %v2060 = vrot.slane %v2058, 4
    %v2061 = vor.u32 %v2060, %v2056
    %v2062 = vrot.slane %v2061, 4
    %v2064 = vshll.u32 %v54, 16
    %v2066 = vrot.slane %v2064, 5
    %v2067 = vsel %vm1755, %v2062, %v2066
    %v2069 = vshrl.u32 %v55, 16
    %v2071 = vrot.slane %v2069, 4
    %v2072 = vshll.u32 %v55, 16
    %v2074 = vrot.slane %v2072, 5
    %v2075 = vor.u32 %v2071, %v2074
    %v2076 = vrot.slane %v2075, 4
    %v2078 = vshll.u32 %v56, 16
    %v2080 = vrot.slane %v2078, 5
    %v2081 = vsel %vm1755, %v2076, %v2080
    %v2082 = vshrl.u32 %v56, 16
    %v2084 = vrot.slane %v2082, 4
    %v2085 = vor.u32 %v2084, %v2080
    %v2086 = vrot.slane %v2085, 4
    %v2088 = vshll.u32 %v57, 16
    %v2090 = vrot.slane %v2088, 5
    %v2091 = vsel %vm1755, %v2086, %v2090
    %v2093 = vshrl.u32 %v58, 16
    %v2095 = vrot.slane %v2093, 4
    %v2096 = vshll.u32 %v58, 16
    %v2098 = vrot.slane %v2096, 5
    %v2099 = vor.u32 %v2095, %v2098
    %v2100 = vrot.slane %v2099, 4
    %v2102 = vshll.u32 %v59, 16
    %v2104 = vrot.slane %v2102, 5
    %v2105 = vsel %vm1755, %v2100, %v2104
    %v2106 = vshrl.u32 %v59, 16
    %v2108 = vrot.slane %v2106, 4
    %v2109 = vor.u32 %v2108, %v2104
    %v2110 = vrot.slane %v2109, 4
    %v2112 = vshll.u32 %v60, 16
    %v2114 = vrot.slane %v2112, 5
    %v2115 = vsel %vm1755, %v2110, %v2114
    %v2117 = vshrl.u32 %v61, 16
    %v2119 = vrot.slane %v2117, 4
    %v2120 = vshll.u32 %v61, 16
    %v2122 = vrot.slane %v2120, 5
    %v2123 = vor.u32 %v2119, %v2122
    %v2124 = vrot.slane %v2123, 4
    %v2126 = vshll.u32 %v62, 16
    %v2128 = vrot.slane %v2126, 5
    %v2129 = vsel %vm1755, %v2124, %v2128
    %v2130 = vshrl.u32 %v62, 16
    %v2132 = vrot.slane %v2130, 4
    %v2133 = vor.u32 %v2132, %v2128
    %v2134 = vrot.slane %v2133, 4
    %v2136 = vshll.u32 %v63, 16
    %v2138 = vrot.slane %v2136, 5
    %v2139 = vsel %vm1755, %v2134, %v2138
    %v2172 = vcombine.low %v1769, %v1865
    %v2174 = vunpack.c.l.s4 1983009808
    %v2175 = vunpack.c.0.s8 %v2174
    %v2176 = vlaneseq
    %v2177 = vshrl.u32 %v2176, 7
    %v2178 = vsub.s32 %v2175, %v2177
    %v2179 = vrot.slane %v2172, %v2178
    %v2180 = vcombine.low %v1817, %v1913
    %v2182 = vunpack.c.l.s4 1983009808
    %v2183 = vunpack.c.0.s8 %v2182
    %v2184 = vlaneseq
    %v2185 = vshrl.u32 %v2184, 7
    %v2186 = vsub.s32 %v2183, %v2185
    %v2187 = vrot.slane %v2180, %v2186
    %v2188 = vcombine.low %v2179, %v2187
    %v2189 = vcombine.high %v2179, %v2187
    %v2191 = vunpack.c.l.s4 1934713408
    %v2192 = vunpack.c.0.s8 %v2191
    %v2193 = vlaneseq
    %v2194 = vshrl.u32 %v2193, 7
    %v2195 = vsub.s32 %v2192, %v2194
    %v2196 = vrot.slane %v2188, %v2195
    %v2198 = vunpack.c.l.s4 1934713408
    %v2199 = vunpack.c.0.s8 %v2198
    %v2200 = vlaneseq
    %v2201 = vshrl.u32 %v2200, 7
    %v2202 = vsub.s32 %v2199, %v2201
    %v2203 = vrot.slane %v2189, %v2202
    %v2204 = vcombine.high %v2196, 0
    %v2205 = vcombine.high %v2203, 0
    %v2206 = vcombine.low %v1793, %v1889
    %v2208 = vunpack.c.l.s4 1983009808
    %v2209 = vunpack.c.0.s8 %v2208
    %v2210 = vlaneseq
    %v2211 = vshrl.u32 %v2210, 7
    %v2212 = vsub.s32 %v2209, %v2211
    %v2213 = vrot.slane %v2206, %v2212
    %v2214 = vcombine.low %v1841, %v1937
    %v2216 = vunpack.c.l.s4 1983009808
    %v2217 = vunpack.c.0.s8 %v2216
    %v2218 = vlaneseq
    %v2219 = vshrl.u32 %v2218, 7
    %v2220 = vsub.s32 %v2217, %v2219
    %v2221 = vrot.slane %v2214, %v2220
    %v2222 = vcombine.low %v2213, %v2221
    %v2223 = vcombine.high %v2213, %v2221
    %v2225 = vunpack.c.l.s4 1934713408
    %v2226 = vunpack.c.0.s8 %v2225
    %v2227 = vlaneseq
    %v2228 = vshrl.u32 %v2227, 7
    %v2229 = vsub.s32 %v2226, %v2228
    %v2230 = vrot.slane %v2222, %v2229
    %v2232 = vunpack.c.l.s4 1934713408
    %v2233 = vunpack.c.0.s8 %v2232
    %v2234 = vlaneseq
    %v2235 = vshrl.u32 %v2234, 7
    %v2236 = vsub.s32 %v2233, %v2235
    %v2237 = vrot.slane %v2223, %v2236
    %v2238 = vcombine.high %v2230, 0
    %v2239 = vcombine.high %v2237, 0
    %v2240 = vcombine.low %v1961, %v2057
    %v2242 = vunpack.c.l.s4 1983009808
    %v2243 = vunpack.c.0.s8 %v2242
    %v2244 = vlaneseq
    %v2245 = vshrl.u32 %v2244, 7
    %v2246 = vsub.s32 %v2243, %v2245
    %v2247 = vrot.slane %v2240, %v2246
    %v2248 = vcombine.low %v2009, %v2105
    %v2250 = vunpack.c.l.s4 1983009808
    %v2251 = vunpack.c.0.s8 %v2250
    %v2252 = vlaneseq
    %v2253 = vshrl.u32 %v2252, 7
    %v2254 = vsub.s32 %v2251, %v2253
    %v2255 = vrot.slane %v2248, %v2254
    %v2256 = vcombine.low %v2247, %v2255
    %v2257 = vcombine.high %v2247, %v2255
    %v2259 = vunpack.c.l.s4 1934713408
    %v2260 = vunpack.c.0.s8 %v2259
    %v2261 = vlaneseq
    %v2262 = vshrl.u32 %v2261, 7
    %v2263 = vsub.s32 %v2260, %v2262
    %v2264 = vrot.slane %v2256, %v2263
    %v2266 = vunpack.c.l.s4 1934713408
    %v2267 = vunpack.c.0.s8 %v2266
    %v2268 = vlaneseq
    %v2269 = vshrl.u32 %v2268, 7
    %v2270 = vsub.s32 %v2267, %v2269
    %v2271 = vrot.slane %v2257, %v2270
    %v2272 = vcombine.high %v2264, 0
    %v2273 = vcombine.high %v2271, 0
    %v2274 = vcombine.low %v1985, %v2081
    %v2276 = vunpack.c.l.s4 1983009808
    %v2277 = vunpack.c.0.s8 %v2276
    %v2278 = vlaneseq
    %v2279 = vshrl.u32 %v2278, 7
    %v2280 = vsub.s32 %v2277, %v2279
    %v2281 = vrot.slane %v2274, %v2280
    %v2282 = vcombine.low %v2033, %v2129
    %v2284 = vunpack.c.l.s4 1983009808
    %v2285 = vunpack.c.0.s8 %v2284
    %v2286 = vlaneseq
    %v2287 = vshrl.u32 %v2286, 7
    %v2288 = vsub.s32 %v2285, %v2287
    %v2289 = vrot.slane %v2282, %v2288
    %v2290 = vcombine.low %v2281, %v2289
    %v2291 = vcombine.high %v2281, %v2289
    %v2293 = vunpack.c.l.s4 1934713408
    %v2294 = vunpack.c.0.s8 %v2293
    %v2295 = vlaneseq
    %v2296 = vshrl.u32 %v2295, 7
    %v2297 = vsub.s32 %v2294, %v2296
    %v2298 = vrot.slane %v2290, %v2297
    %v2300 = vunpack.c.l.s4 1934713408
    %v2301 = vunpack.c.0.s8 %v2300
    %v2302 = vlaneseq
    %v2303 = vshrl.u32 %v2302, 7
    %v2304 = vsub.s32 %v2301, %v2303
    %v2305 = vrot.slane %v2291, %v2304
    %v2306 = vcombine.high %v2298, 0
    %v2307 = vcombine.high %v2305, 0
    %v2308 = vcombine.low %v1779, %v1875
    %v2310 = vunpack.c.l.s4 1983009808
    %v2311 = vunpack.c.0.s8 %v2310
    %v2312 = vlaneseq
    %v2313 = vshrl.u32 %v2312, 7
    %v2314 = vsub.s32 %v2311, %v2313
    %v2315 = vrot.slane %v2308, %v2314
    %v2316 = vcombine.low %v1827, %v1923
    %v2318 = vunpack.c.l.s4 1983009808
    %v2319 = vunpack.c.0.s8 %v2318
    %v2320 = vlaneseq
    %v2321 = vshrl.u32 %v2320, 7
    %v2322 = vsub.s32 %v2319, %v2321
    %v2323 = vrot.slane %v2316, %v2322
    %v2324 = vcombine.low %v2315, %v2323
    %v2325 = vcombine.high %v2315, %v2323
    %v2327 = vunpack.c.l.s4 1934713408
    %v2328 = vunpack.c.0.s8 %v2327
    %v2329 = vlaneseq
    %v2330 = vshrl.u32 %v2329, 7
    %v2331 = vsub.s32 %v2328, %v2330
    %v2332 = vrot.slane %v2324, %v2331
    %v2334 = vunpack.c.l.s4 1934713408
    %v2335 = vunpack.c.0.s8 %v2334
    %v2336 = vlaneseq
    %v2337 = vshrl.u32 %v2336, 7
    %v2338 = vsub.s32 %v2335, %v2337
    %v2339 = vrot.slane %v2325, %v2338
    %v2340 = vcombine.high %v2332, 0
    %v2341 = vcombine.high %v2339, 0
    %v2342 = vcombine.low %v1803, %v1899
    %v2344 = vunpack.c.l.s4 1983009808
    %v2345 = vunpack.c.0.s8 %v2344
    %v2346 = vlaneseq
    %v2347 = vshrl.u32 %v2346, 7
    %v2348 = vsub.s32 %v2345, %v2347
    %v2349 = vrot.slane %v2342, %v2348
    %v2350 = vcombine.low %v1851, %v1947
    %v2352 = vunpack.c.l.s4 1983009808
    %v2353 = vunpack.c.0.s8 %v2352
    %v2354 = vlaneseq
    %v2355 = vshrl.u32 %v2354, 7
    %v2356 = vsub.s32 %v2353, %v2355
    %v2357 = vrot.slane %v2350, %v2356
    %v2358 = vcombine.low %v2349, %v2357
    %v2359 = vcombine.high %v2349, %v2357
    %v2361 = vunpack.c.l.s4 1934713408
    %v2362 = vunpack.c.0.s8 %v2361
    %v2363 = vlaneseq
    %v2364 = vshrl.u32 %v2363, 7
    %v2365 = vsub.s32 %v2362, %v2364
    %v2366 = vrot.slane %v2358, %v2365
    %v2368 = vunpack.c.l.s4 1934713408
    %v2369 = vunpack.c.0.s8 %v2368
    %v2370 = vlaneseq
    %v2371 = vshrl.u32 %v2370, 7
    %v2372 = vsub.s32 %v2369, %v2371
    %v2373 = vrot.slane %v2359, %v2372
    %v2374 = vcombine.high %v2366, 0
    %v2375 = vcombine.high %v2373, 0
    %v2376 = vcombine.low %v1971, %v2067
    %v2378 = vunpack.c.l.s4 1983009808
    %v2379 = vunpack.c.0.s8 %v2378
    %v2380 = vlaneseq
    %v2381 = vshrl.u32 %v2380, 7
    %v2382 = vsub.s32 %v2379, %v2381
    %v2383 = vrot.slane %v2376, %v2382
    %v2384 = vcombine.low %v2019, %v2115
    %v2386 = vunpack.c.l.s4 1983009808
    %v2387 = vunpack.c.0.s8 %v2386
    %v2388 = vlaneseq
    %v2389 = vshrl.u32 %v2388, 7
    %v2390 = vsub.s32 %v2387, %v2389
    %v2391 = vrot.slane %v2384, %v2390
    %v2392 = vcombine.low %v2383, %v2391
    %v2393 = vcombine.high %v2383, %v2391
    %v2395 = vunpack.c.l.s4 1934713408
    %v2396 = vunpack.c.0.s8 %v2395
    %v2397 = vlaneseq
    %v2398 = vshrl.u32 %v2397, 7
    %v2399 = vsub.s32 %v2396, %v2398
    %v2400 = vrot.slane %v2392, %v2399
    %v2402 = vunpack.c.l.s4 1934713408
    %v2403 = vunpack.c.0.s8 %v2402
    %v2404 = vlaneseq
    %v2405 = vshrl.u32 %v2404, 7
    %v2406 = vsub.s32 %v2403, %v2405
    %v2407 = vrot.slane %v2393, %v2406
    %v2408 = vcombine.high %v2400, 0
    %v2409 = vcombine.high %v2407, 0
    %v2410 = vcombine.low %v1995, %v2091
    %v2412 = vunpack.c.l.s4 1983009808
    %v2413 = vunpack.c.0.s8 %v2412
    %v2414 = vlaneseq
    %v2415 = vshrl.u32 %v2414, 7
    %v2416 = vsub.s32 %v2413, %v2415
    %v2417 = vrot.slane %v2410, %v2416
    %v2418 = vcombine.low %v2043, %v2139
    %v2420 = vunpack.c.l.s4 1983009808
    %v2421 = vunpack.c.0.s8 %v2420
    %v2422 = vlaneseq
    %v2423 = vshrl.u32 %v2422, 7
    %v2424 = vsub.s32 %v2421, %v2423
    %v2425 = vrot.slane %v2418, %v2424
    %v2426 = vcombine.low %v2417, %v2425
    %v2427 = vcombine.high %v2417, %v2425
    %v2429 = vunpack.c.l.s4 1934713408
    %v2430 = vunpack.c.0.s8 %v2429
    %v2431 = vlaneseq
    %v2432 = vshrl.u32 %v2431, 7
    %v2433 = vsub.s32 %v2430, %v2432
    %v2434 = vrot.slane %v2426, %v2433
    %v2436 = vunpack.c.l.s4 1934713408
    %v2437 = vunpack.c.0.s8 %v2436
    %v2438 = vlaneseq
    %v2439 = vshrl.u32 %v2438, 7
    %v2440 = vsub.s32 %v2437, %v2439
    %v2441 = vrot.slane %v2427, %v2440
    %v2442 = vcombine.high %v2434, 0
    %v2443 = vcombine.high %v2441, 0
    %v2446 = vpack.i.b16 %v2230, %v2196
    %v2447 = vshrl.u32 %v2196, 16
    %v2448 = vshrl.u32 %v2230, 16
    %v2449 = vpack.i.b16 %v2448, %v2447
    %v2452 = vpack.i.b16 %v2238, %v2204
    %v2453 = vshrl.u32 %v2204, 16
    %v2454 = vshrl.u32 %v2238, 16
    %v2455 = vpack.i.b16 %v2454, %v2453
    %v2458 = vpack.i.b16 %v2237, %v2203
    %v2459 = vshrl.u32 %v2203, 16
    %v2460 = vshrl.u32 %v2237, 16
    %v2461 = vpack.i.b16 %v2460, %v2459
    %v2464 = vpack.i.b16 %v2239, %v2205
    %v2465 = vshrl.u32 %v2205, 16
    %v2466 = vshrl.u32 %v2239, 16
    %v2467 = vpack.i.b16 %v2466, %v2465
    %v2470 = vpack.i.b16 %v2366, %v2332
    %v2471 = vshrl.u32 %v2332, 16
    %v2472 = vshrl.u32 %v2366, 16
    %v2473 = vpack.i.b16 %v2472, %v2471
    %v2476 = vpack.i.b16 %v2374, %v2340
    %v2477 = vshrl.u32 %v2340, 16
    %v2478 = vshrl.u32 %v2374, 16
    %v2479 = vpack.i.b16 %v2478, %v2477
    %v2482 = vpack.i.b16 %v2373, %v2339
    %v2483 = vshrl.u32 %v2339, 16
    %v2484 = vshrl.u32 %v2373, 16
    %v2485 = vpack.i.b16 %v2484, %v2483
    %v2488 = vpack.i.b16 %v2375, %v2341
    %v2489 = vshrl.u32 %v2341, 16
    %v2490 = vshrl.u32 %v2375, 16
    %v2491 = vpack.i.b16 %v2490, %v2489
    %v2494 = vpack.i.b16 %v2298, %v2264
    %v2495 = vshrl.u32 %v2264, 16
    %v2496 = vshrl.u32 %v2298, 16
    %v2497 = vpack.i.b16 %v2496, %v2495
    %v2500 = vpack.i.b16 %v2306, %v2272
    %v2501 = vshrl.u32 %v2272, 16
    %v2502 = vshrl.u32 %v2306, 16
    %v2503 = vpack.i.b16 %v2502, %v2501
    %v2506 = vpack.i.b16 %v2305, %v2271
    %v2507 = vshrl.u32 %v2271, 16
    %v2508 = vshrl.u32 %v2305, 16
    %v2509 = vpack.i.b16 %v2508, %v2507
    %v2512 = vpack.i.b16 %v2307, %v2273
    %v2513 = vshrl.u32 %v2273, 16
    %v2514 = vshrl.u32 %v2307, 16
    %v2515 = vpack.i.b16 %v2514, %v2513
    %v2518 = vpack.i.b16 %v2434, %v2400
    %v2519 = vshrl.u32 %v2400, 16
    %v2520 = vshrl.u32 %v2434, 16
    %v2521 = vpack.i.b16 %v2520, %v2519
    %v2524 = vpack.i.b16 %v2442, %v2408
    %v2525 = vshrl.u32 %v2408, 16
    %v2526 = vshrl.u32 %v2442, 16
    %v2527 = vpack.i.b16 %v2526, %v2525
    %v2530 = vpack.i.b16 %v2441, %v2407
    %v2531 = vshrl.u32 %v2407, 16
    %v2532 = vshrl.u32 %v2441, 16
    %v2533 = vpack.i.b16 %v2532, %v2531
    %v2536 = vpack.i.b16 %v2443, %v2409
    %v2537 = vshrl.u32 %v2409, 16
    %v2538 = vshrl.u32 %v2443, 16
    %v2539 = vpack.i.b16 %v2538, %v2537
    %v2540 = vunpack.c.l.b16 %v2446
    %v2541 = vunpack.c.l.b16 %v2494
    %v2542 = vpack.c.b16 %v2541, %v2540
    %v2543 = vunpack.c.l.b16 %v2449
    %v2544 = vunpack.c.l.b16 %v2497
    %v2545 = vpack.c.b16 %v2544, %v2543
    %2546 = vrot.lane.b32.xlu0 %v2545, 16
    %v2547 = vpop.permute.xlu0 %2546
    %v2548 = vunpack.c.l.b16 %v2452
    %v2549 = vunpack.c.l.b16 %v2500
    %v2550 = vpack.c.b16 %v2549, %v2548
    %2551 = vrot.lane.b32.xlu0 %v2550, 32
    %v2552 = vpop.permute.xlu0 %2551
    %v2553 = vunpack.c.l.b16 %v2455
    %v2554 = vunpack.c.l.b16 %v2503
    %v2555 = vpack.c.b16 %v2554, %v2553
    %2556 = vrot.lane.b32.xlu0 %v2555, 48
    %v2557 = vpop.permute.xlu0 %2556
    %v2558 = vunpack.c.l.b16 %v2458
    %v2559 = vunpack.c.l.b16 %v2506
    %v2560 = vpack.c.b16 %v2559, %v2558
    %2561 = vrot.lane.b32.xlu0 %v2560, 64
    %v2562 = vpop.permute.xlu0 %2561
    %v2563 = vunpack.c.l.b16 %v2461
    %v2564 = vunpack.c.l.b16 %v2509
    %v2565 = vpack.c.b16 %v2564, %v2563
    %2566 = vrot.lane.b32.xlu0 %v2565, 80
    %v2567 = vpop.permute.xlu0 %2566
    %v2568 = vunpack.c.l.b16 %v2464
    %v2569 = vunpack.c.l.b16 %v2512
    %v2570 = vpack.c.b16 %v2569, %v2568
    %2571 = vrot.lane.b32.xlu0 %v2570, 96
    %v2572 = vpop.permute.xlu0 %2571
    %v2573 = vunpack.c.l.b16 %v2467
    %v2574 = vunpack.c.l.b16 %v2515
    %v2575 = vpack.c.b16 %v2574, %v2573
    %2576 = vrot.lane.b32.xlu0 %v2575, 112
    %v2577 = vpop.permute.xlu0 %2576
    %v2578 = vunpack.c.l.b16 %v2470
    %v2579 = vunpack.c.l.b16 %v2518
    %v2580 = vpack.c.b16 %v2579, %v2578
    %v2581 = vunpack.c.l.b16 %v2473
    %v2582 = vunpack.c.l.b16 %v2521
    %v2583 = vpack.c.b16 %v2582, %v2581
    %2584 = vrot.lane.b32.xlu0 %v2583, 16
    %v2585 = vpop.permute.xlu0 %2584
    %v2586 = vunpack.c.l.b16 %v2476
    %v2587 = vunpack.c.l.b16 %v2524
    %v2588 = vpack.c.b16 %v2587, %v2586
    %2589 = vrot.lane.b32.xlu0 %v2588, 32
    %v2590 = vpop.permute.xlu0 %2589
    %v2591 = vunpack.c.l.b16 %v2479
    %v2592 = vunpack.c.l.b16 %v2527
    %v2593 = vpack.c.b16 %v2592, %v2591
    %2594 = vrot.lane.b32.xlu0 %v2593, 48
    %v2595 = vpop.permute.xlu0 %2594
    %v2596 = vunpack.c.l.b16 %v2482
    %v2597 = vunpack.c.l.b16 %v2530
    %v2598 = vpack.c.b16 %v2597, %v2596
    %2599 = vrot.lane.b32.xlu0 %v2598, 64
    %v2600 = vpop.permute.xlu0 %2599
    %v2601 = vunpack.c.l.b16 %v2485
    %v2602 = vunpack.c.l.b16 %v2533
    %v2603 = vpack.c.b16 %v2602, %v2601
    %2604 = vrot.lane.b32.xlu0 %v2603, 80
    %v2605 = vpop.permute.xlu0 %2604
    %v2606 = vunpack.c.l.b16 %v2488
    %v2607 = vunpack.c.l.b16 %v2536
    %v2608 = vpack.c.b16 %v2607, %v2606
    %2609 = vrot.lane.b32.xlu0 %v2608, 96
    %v2610 = vpop.permute.xlu0 %2609
    %v2611 = vunpack.c.l.b16 %v2491
    %v2612 = vunpack.c.l.b16 %v2539
    %v2613 = vpack.c.b16 %v2612, %v2611
    %2614 = vrot.lane.b32.xlu0 %v2613, 112
    %v2615 = vpop.permute.xlu0 %2614
    %v2618 = vsel %vm508, %v2542, %v2547
    %v2620 = vsel %vm512, %v2618, %v2552
    %v2622 = vsel %vm515, %v2620, %v2557
    %v2624 = vsel %vm518, %v2622, %v2562
    %v2626 = vsel %vm521, %v2624, %v2567
    %v2628 = vsel %vm524, %v2626, %v2572
    %v2630 = vsel %vm527, %v2628, %v2577
    %v2633 = vsel %vm508, %v2580, %v2585
    %v2635 = vsel %vm512, %v2633, %v2590
    %v2637 = vsel %vm515, %v2635, %v2595
    %v2639 = vsel %vm518, %v2637, %v2600
    %v2641 = vsel %vm521, %v2639, %v2605
    %v2643 = vsel %vm524, %v2641, %v2610
    %v2645 = vsel %vm527, %v2643, %v2615
    %v2648 = vunpack.c.l.b16 %v2630
    %v2649 = vunpack.c.l.b16 %v2645
    %v2650 = vunpack.c.h.b16 %v2630
    %v2651 = vunpack.c.h.b16 %v2645
    %v2652 = vpack.c.b16 %v2649, %v2648
    %v2653 = vpack.c.b16 %v2651, %v2650
    %2656 = vst [vmem:[#allocation2 + $0x60] sm:$0xff] %v2652
    %2657 = vst [vmem:[#allocation2 + $0x70] sm:$0xff] %v2653
    %2658 = vrot.lane.b32.xlu0 %v1769, 127
    %v2659 = vpop.permute.xlu0 %2658
    %2660 = vrot.lane.b32.xlu0 %v1779, 127
    %v2661 = vpop.permute.xlu0 %2660
    %2662 = vrot.lane.b32.xlu0 %v1793, 127
    %v2663 = vpop.permute.xlu0 %2662
    %2664 = vrot.lane.b32.xlu0 %v1803, 127
    %v2665 = vpop.permute.xlu0 %2664
    %2666 = vrot.lane.b32.xlu0 %v1817, 127
    %v2667 = vpop.permute.xlu0 %2666
    %2668 = vrot.lane.b32.xlu0 %v1827, 127
    %v2669 = vpop.permute.xlu0 %2668
    %2670 = vrot.lane.b32.xlu0 %v1841, 127
    %v2671 = vpop.permute.xlu0 %2670
    %2672 = vrot.lane.b32.xlu0 %v1851, 127
    %v2673 = vpop.permute.xlu0 %2672
    %2674 = vrot.lane.b32.xlu0 %v1865, 127
    %v2675 = vpop.permute.xlu0 %2674
    %2676 = vrot.lane.b32.xlu0 %v1875, 127
    %v2677 = vpop.permute.xlu0 %2676
    %2678 = vrot.lane.b32.xlu0 %v1889, 127
    %v2679 = vpop.permute.xlu0 %2678
    %2680 = vrot.lane.b32.xlu0 %v1899, 127
    %v2681 = vpop.permute.xlu0 %2680
    %2682 = vrot.lane.b32.xlu0 %v1913, 127
    %v2683 = vpop.permute.xlu0 %2682
    %2684 = vrot.lane.b32.xlu0 %v1923, 127
    %v2685 = vpop.permute.xlu0 %2684
    %2686 = vrot.lane.b32.xlu0 %v1937, 127
    %v2687 = vpop.permute.xlu0 %2686
    %2688 = vrot.lane.b32.xlu0 %v1947, 127
    %v2689 = vpop.permute.xlu0 %2688
    %2690 = vrot.lane.b32.xlu0 %v1961, 127
    %v2691 = vpop.permute.xlu0 %2690
    %2692 = vrot.lane.b32.xlu0 %v1971, 127
    %v2693 = vpop.permute.xlu0 %2692
    %2694 = vrot.lane.b32.xlu0 %v1985, 127
    %v2695 = vpop.permute.xlu0 %2694
    %2696 = vrot.lane.b32.xlu0 %v1995, 127
    %v2697 = vpop.permute.xlu0 %2696
    %2698 = vrot.lane.b32.xlu0 %v2009, 127
    %v2699 = vpop.permute.xlu0 %2698
    %2700 = vrot.lane.b32.xlu0 %v2019, 127
    %v2701 = vpop.permute.xlu0 %2700
    %2702 = vrot.lane.b32.xlu0 %v2033, 127
    %v2703 = vpop.permute.xlu0 %2702
    %2704 = vrot.lane.b32.xlu0 %v2043, 127
    %v2705 = vpop.permute.xlu0 %2704
    %2706 = vrot.lane.b32.xlu0 %v2057, 127
    %v2707 = vpop.permute.xlu0 %2706
    %2708 = vrot.lane.b32.xlu0 %v2067, 127
    %v2709 = vpop.permute.xlu0 %2708
    %2710 = vrot.lane.b32.xlu0 %v2081, 127
    %v2711 = vpop.permute.xlu0 %2710
    %2712 = vrot.lane.b32.xlu0 %v2091, 127
    %v2713 = vpop.permute.xlu0 %2712
    %2714 = vrot.lane.b32.xlu0 %v2105, 127
    %v2715 = vpop.permute.xlu0 %2714
    %2716 = vrot.lane.b32.xlu0 %v2115, 127
    %v2717 = vpop.permute.xlu0 %2716
    %2718 = vrot.lane.b32.xlu0 %v2129, 127
    %v2719 = vpop.permute.xlu0 %2718
    %2720 = vrot.lane.b32.xlu0 %v2139, 127
    %v2721 = vpop.permute.xlu0 %2720
    %v2754 = vcombine.low %v2659, %v2675
    %v2756 = vunpack.c.l.s4 1983009808
    %v2757 = vunpack.c.0.s8 %v2756
    %v2758 = vlaneseq
    %v2759 = vshrl.u32 %v2758, 7
    %v2760 = vsub.s32 %v2757, %v2759
    %v2761 = vrot.slane %v2754, %v2760
    %v2762 = vcombine.low %v2667, %v2683
    %v2764 = vunpack.c.l.s4 1983009808
    %v2765 = vunpack.c.0.s8 %v2764
    %v2766 = vlaneseq
    %v2767 = vshrl.u32 %v2766, 7
    %v2768 = vsub.s32 %v2765, %v2767
    %v2769 = vrot.slane %v2762, %v2768
    %v2770 = vcombine.low %v2761, %v2769
    %v2771 = vcombine.high %v2761, %v2769
    %v2773 = vunpack.c.l.s4 1934713408
    %v2774 = vunpack.c.0.s8 %v2773
    %v2775 = vlaneseq
    %v2776 = vshrl.u32 %v2775, 7
    %v2777 = vsub.s32 %v2774, %v2776
    %v2778 = vrot.slane %v2770, %v2777
    %v2780 = vunpack.c.l.s4 1934713408
    %v2781 = vunpack.c.0.s8 %v2780
    %v2782 = vlaneseq
    %v2783 = vshrl.u32 %v2782, 7
    %v2784 = vsub.s32 %v2781, %v2783
    %v2785 = vrot.slane %v2771, %v2784
    %v2786 = vcombine.high %v2778, 0
    %v2787 = vcombine.high %v2785, 0
    %v2788 = vcombine.low %v2663, %v2679
    %v2790 = vunpack.c.l.s4 1983009808
    %v2791 = vunpack.c.0.s8 %v2790
    %v2792 = vlaneseq
    %v2793 = vshrl.u32 %v2792, 7
    %v2794 = vsub.s32 %v2791, %v2793
    %v2795 = vrot.slane %v2788, %v2794
    %v2796 = vcombine.low %v2671, %v2687
    %v2798 = vunpack.c.l.s4 1983009808
    %v2799 = vunpack.c.0.s8 %v2798
    %v2800 = vlaneseq
    %v2801 = vshrl.u32 %v2800, 7
    %v2802 = vsub.s32 %v2799, %v2801
    %v2803 = vrot.slane %v2796, %v2802
    %v2804 = vcombine.low %v2795, %v2803
    %v2805 = vcombine.high %v2795, %v2803
    %v2807 = vunpack.c.l.s4 1934713408
    %v2808 = vunpack.c.0.s8 %v2807
    %v2809 = vlaneseq
    %v2810 = vshrl.u32 %v2809, 7
    %v2811 = vsub.s32 %v2808, %v2810
    %v2812 = vrot.slane %v2804, %v2811
    %v2814 = vunpack.c.l.s4 1934713408
    %v2815 = vunpack.c.0.s8 %v2814
    %v2816 = vlaneseq
    %v2817 = vshrl.u32 %v2816, 7
    %v2818 = vsub.s32 %v2815, %v2817
    %v2819 = vrot.slane %v2805, %v2818
    %v2820 = vcombine.high %v2812, 0
    %v2821 = vcombine.high %v2819, 0
    %v2822 = vcombine.low %v2691, %v2707
    %v2824 = vunpack.c.l.s4 1983009808
    %v2825 = vunpack.c.0.s8 %v2824
    %v2826 = vlaneseq
    %v2827 = vshrl.u32 %v2826, 7
    %v2828 = vsub.s32 %v2825, %v2827
    %v2829 = vrot.slane %v2822, %v2828
    %v2830 = vcombine.low %v2699, %v2715
    %v2832 = vunpack.c.l.s4 1983009808
    %v2833 = vunpack.c.0.s8 %v2832
    %v2834 = vlaneseq
    %v2835 = vshrl.u32 %v2834, 7
    %v2836 = vsub.s32 %v2833, %v2835
    %v2837 = vrot.slane %v2830, %v2836
    %v2838 = vcombine.low %v2829, %v2837
    %v2839 = vcombine.high %v2829, %v2837
    %v2841 = vunpack.c.l.s4 1934713408
    %v2842 = vunpack.c.0.s8 %v2841
    %v2843 = vlaneseq
    %v2844 = vshrl.u32 %v2843, 7
    %v2845 = vsub.s32 %v2842, %v2844
    %v2846 = vrot.slane %v2838, %v2845
    %v2848 = vunpack.c.l.s4 1934713408
    %v2849 = vunpack.c.0.s8 %v2848
    %v2850 = vlaneseq
    %v2851 = vshrl.u32 %v2850, 7
    %v2852 = vsub.s32 %v2849, %v2851
    %v2853 = vrot.slane %v2839, %v2852
    %v2854 = vcombine.high %v2846, 0
    %v2855 = vcombine.high %v2853, 0
    %v2856 = vcombine.low %v2695, %v2711
    %v2858 = vunpack.c.l.s4 1983009808
    %v2859 = vunpack.c.0.s8 %v2858
    %v2860 = vlaneseq
    %v2861 = vshrl.u32 %v2860, 7
    %v2862 = vsub.s32 %v2859, %v2861
    %v2863 = vrot.slane %v2856, %v2862
    %v2864 = vcombine.low %v2703, %v2719
    %v2866 = vunpack.c.l.s4 1983009808
    %v2867 = vunpack.c.0.s8 %v2866
    %v2868 = vlaneseq
    %v2869 = vshrl.u32 %v2868, 7
    %v2870 = vsub.s32 %v2867, %v2869
    %v2871 = vrot.slane %v2864, %v2870
    %v2872 = vcombine.low %v2863, %v2871
    %v2873 = vcombine.high %v2863, %v2871
    %v2875 = vunpack.c.l.s4 1934713408
    %v2876 = vunpack.c.0.s8 %v2875
    %v2877 = vlaneseq
    %v2878 = vshrl.u32 %v2877, 7
    %v2879 = vsub.s32 %v2876, %v2878
    %v2880 = vrot.slane %v2872, %v2879
    %v2882 = vunpack.c.l.s4 1934713408
    %v2883 = vunpack.c.0.s8 %v2882
    %v2884 = vlaneseq
    %v2885 = vshrl.u32 %v2884, 7
    %v2886 = vsub.s32 %v2883, %v2885
    %v2887 = vrot.slane %v2873, %v2886
    %v2888 = vcombine.high %v2880, 0
    %v2889 = vcombine.high %v2887, 0
    %v2890 = vcombine.low %v2661, %v2677
    %v2892 = vunpack.c.l.s4 1983009808
    %v2893 = vunpack.c.0.s8 %v2892
    %v2894 = vlaneseq
    %v2895 = vshrl.u32 %v2894, 7
    %v2896 = vsub.s32 %v2893, %v2895
    %v2897 = vrot.slane %v2890, %v2896
    %v2898 = vcombine.low %v2669, %v2685
    %v2900 = vunpack.c.l.s4 1983009808
    %v2901 = vunpack.c.0.s8 %v2900
    %v2902 = vlaneseq
    %v2903 = vshrl.u32 %v2902, 7
    %v2904 = vsub.s32 %v2901, %v2903
    %v2905 = vrot.slane %v2898, %v2904
    %v2906 = vcombine.low %v2897, %v2905
    %v2907 = vcombine.high %v2897, %v2905
    %v2909 = vunpack.c.l.s4 1934713408
    %v2910 = vunpack.c.0.s8 %v2909
    %v2911 = vlaneseq
    %v2912 = vshrl.u32 %v2911, 7
    %v2913 = vsub.s32 %v2910, %v2912
    %v2914 = vrot.slane %v2906, %v2913
    %v2916 = vunpack.c.l.s4 1934713408
    %v2917 = vunpack.c.0.s8 %v2916
    %v2918 = vlaneseq
    %v2919 = vshrl.u32 %v2918, 7
    %v2920 = vsub.s32 %v2917, %v2919
    %v2921 = vrot.slane %v2907, %v2920
    %v2922 = vcombine.high %v2914, 0
    %v2923 = vcombine.high %v2921, 0
    %v2924 = vcombine.low %v2665, %v2681
    %v2926 = vunpack.c.l.s4 1983009808
    %v2927 = vunpack.c.0.s8 %v2926
    %v2928 = vlaneseq
    %v2929 = vshrl.u32 %v2928, 7
    %v2930 = vsub.s32 %v2927, %v2929
    %v2931 = vrot.slane %v2924, %v2930
    %v2932 = vcombine.low %v2673, %v2689
    %v2934 = vunpack.c.l.s4 1983009808
    %v2935 = vunpack.c.0.s8 %v2934
    %v2936 = vlaneseq
    %v2937 = vshrl.u32 %v2936, 7
    %v2938 = vsub.s32 %v2935, %v2937
    %v2939 = vrot.slane %v2932, %v2938
    %v2940 = vcombine.low %v2931, %v2939
    %v2941 = vcombine.high %v2931, %v2939
    %v2943 = vunpack.c.l.s4 1934713408
    %v2944 = vunpack.c.0.s8 %v2943
    %v2945 = vlaneseq
    %v2946 = vshrl.u32 %v2945, 7
    %v2947 = vsub.s32 %v2944, %v2946
    %v2948 = vrot.slane %v2940, %v2947
    %v2950 = vunpack.c.l.s4 1934713408
    %v2951 = vunpack.c.0.s8 %v2950
    %v2952 = vlaneseq
    %v2953 = vshrl.u32 %v2952, 7
    %v2954 = vsub.s32 %v2951, %v2953
    %v2955 = vrot.slane %v2941, %v2954
    %v2956 = vcombine.high %v2948, 0
    %v2957 = vcombine.high %v2955, 0
    %v2958 = vcombine.low %v2693, %v2709
    %v2960 = vunpack.c.l.s4 1983009808
    %v2961 = vunpack.c.0.s8 %v2960
    %v2962 = vlaneseq
    %v2963 = vshrl.u32 %v2962, 7
    %v2964 = vsub.s32 %v2961, %v2963
    %v2965 = vrot.slane %v2958, %v2964
    %v2966 = vcombine.low %v2701, %v2717
    %v2968 = vunpack.c.l.s4 1983009808
    %v2969 = vunpack.c.0.s8 %v2968
    %v2970 = vlaneseq
    %v2971 = vshrl.u32 %v2970, 7
    %v2972 = vsub.s32 %v2969, %v2971
    %v2973 = vrot.slane %v2966, %v2972
    %v2974 = vcombine.low %v2965, %v2973
    %v2975 = vcombine.high %v2965, %v2973
    %v2977 = vunpack.c.l.s4 1934713408
    %v2978 = vunpack.c.0.s8 %v2977
    %v2979 = vlaneseq
    %v2980 = vshrl.u32 %v2979, 7
    %v2981 = vsub.s32 %v2978, %v2980
    %v2982 = vrot.slane %v2974, %v2981
    %v2984 = vunpack.c.l.s4 1934713408
    %v2985 = vunpack.c.0.s8 %v2984
    %v2986 = vlaneseq
    %v2987 = vshrl.u32 %v2986, 7
    %v2988 = vsub.s32 %v2985, %v2987
    %v2989 = vrot.slane %v2975, %v2988
    %v2990 = vcombine.high %v2982, 0
    %v2991 = vcombine.high %v2989, 0
    %v2992 = vcombine.low %v2697, %v2713
    %v2994 = vunpack.c.l.s4 1983009808
    %v2995 = vunpack.c.0.s8 %v2994
    %v2996 = vlaneseq
    %v2997 = vshrl.u32 %v2996, 7
    %v2998 = vsub.s32 %v2995, %v2997
    %v2999 = vrot.slane %v2992, %v2998
    %v3000 = vcombine.low %v2705, %v2721
    %v3002 = vunpack.c.l.s4 1983009808
    %v3003 = vunpack.c.0.s8 %v3002
    %v3004 = vlaneseq
    %v3005 = vshrl.u32 %v3004, 7
    %v3006 = vsub.s32 %v3003, %v3005
    %v3007 = vrot.slane %v3000, %v3006
    %v3008 = vcombine.low %v2999, %v3007
    %v3009 = vcombine.high %v2999, %v3007
    %v3011 = vunpack.c.l.s4 1934713408
    %v3012 = vunpack.c.0.s8 %v3011
    %v3013 = vlaneseq
    %v3014 = vshrl.u32 %v3013, 7
    %v3015 = vsub.s32 %v3012, %v3014
    %v3016 = vrot.slane %v3008, %v3015
    %v3018 = vunpack.c.l.s4 1934713408
    %v3019 = vunpack.c.0.s8 %v3018
    %v3020 = vlaneseq
    %v3021 = vshrl.u32 %v3020, 7
    %v3022 = vsub.s32 %v3019, %v3021
    %v3023 = vrot.slane %v3009, %v3022
    %v3024 = vcombine.high %v3016, 0
    %v3025 = vcombine.high %v3023, 0
    %v3028 = vpack.i.b16 %v2812, %v2778
    %v3029 = vshrl.u32 %v2778, 16
    %v3030 = vshrl.u32 %v2812, 16
    %v3031 = vpack.i.b16 %v3030, %v3029
    %v3034 = vpack.i.b16 %v2820, %v2786
    %v3035 = vshrl.u32 %v2786, 16
    %v3036 = vshrl.u32 %v2820, 16
    %v3037 = vpack.i.b16 %v3036, %v3035
    %v3040 = vpack.i.b16 %v2819, %v2785
    %v3041 = vshrl.u32 %v2785, 16
    %v3042 = vshrl.u32 %v2819, 16
    %v3043 = vpack.i.b16 %v3042, %v3041
    %v3046 = vpack.i.b16 %v2821, %v2787
    %v3047 = vshrl.u32 %v2787, 16
    %v3048 = vshrl.u32 %v2821, 16
    %v3049 = vpack.i.b16 %v3048, %v3047
    %v3052 = vpack.i.b16 %v2948, %v2914
    %v3053 = vshrl.u32 %v2914, 16
    %v3054 = vshrl.u32 %v2948, 16
    %v3055 = vpack.i.b16 %v3054, %v3053
    %v3058 = vpack.i.b16 %v2956, %v2922
    %v3059 = vshrl.u32 %v2922, 16
    %v3060 = vshrl.u32 %v2956, 16
    %v3061 = vpack.i.b16 %v3060, %v3059
    %v3064 = vpack.i.b16 %v2955, %v2921
    %v3065 = vshrl.u32 %v2921, 16
    %v3066 = vshrl.u32 %v2955, 16
    %v3067 = vpack.i.b16 %v3066, %v3065
    %v3070 = vpack.i.b16 %v2957, %v2923
    %v3071 = vshrl.u32 %v2923, 16
    %v3072 = vshrl.u32 %v2957, 16
    %v3073 = vpack.i.b16 %v3072, %v3071
    %v3076 = vpack.i.b16 %v2880, %v2846
    %v3077 = vshrl.u32 %v2846, 16
    %v3078 = vshrl.u32 %v2880, 16
    %v3079 = vpack.i.b16 %v3078, %v3077
    %v3082 = vpack.i.b16 %v2888, %v2854
    %v3083 = vshrl.u32 %v2854, 16
    %v3084 = vshrl.u32 %v2888, 16
    %v3085 = vpack.i.b16 %v3084, %v3083
    %v3088 = vpack.i.b16 %v2887, %v2853
    %v3089 = vshrl.u32 %v2853, 16
    %v3090 = vshrl.u32 %v2887, 16
    %v3091 = vpack.i.b16 %v3090, %v3089
    %v3094 = vpack.i.b16 %v2889, %v2855
    %v3095 = vshrl.u32 %v2855, 16
    %v3096 = vshrl.u32 %v2889, 16
    %v3097 = vpack.i.b16 %v3096, %v3095
    %v3100 = vpack.i.b16 %v3016, %v2982
    %v3101 = vshrl.u32 %v2982, 16
    %v3102 = vshrl.u32 %v3016, 16
    %v3103 = vpack.i.b16 %v3102, %v3101
    %v3106 = vpack.i.b16 %v3024, %v2990
    %v3107 = vshrl.u32 %v2990, 16
    %v3108 = vshrl.u32 %v3024, 16
    %v3109 = vpack.i.b16 %v3108, %v3107
    %v3112 = vpack.i.b16 %v3023, %v2989
    %v3113 = vshrl.u32 %v2989, 16
    %v3114 = vshrl.u32 %v3023, 16
    %v3115 = vpack.i.b16 %v3114, %v3113
    %v3118 = vpack.i.b16 %v3025, %v2991
    %v3119 = vshrl.u32 %v2991, 16
    %v3120 = vshrl.u32 %v3025, 16
    %v3121 = vpack.i.b16 %v3120, %v3119
    %v3122 = vunpack.c.l.b16 %v3028
    %v3123 = vunpack.c.l.b16 %v3076
    %v3124 = vpack.c.b16 %v3123, %v3122
    %v3125 = vunpack.c.l.b16 %v3031
    %v3126 = vunpack.c.l.b16 %v3079
    %v3127 = vpack.c.b16 %v3126, %v3125
    %3128 = vrot.lane.b32.xlu0 %v3127, 16
    %v3129 = vpop.permute.xlu0 %3128
    %v3130 = vunpack.c.l.b16 %v3034
    %v3131 = vunpack.c.l.b16 %v3082
    %v3132 = vpack.c.b16 %v3131, %v3130
    %3133 = vrot.lane.b32.xlu0 %v3132, 32
    %v3134 = vpop.permute.xlu0 %3133
    %v3135 = vunpack.c.l.b16 %v3037
    %v3136 = vunpack.c.l.b16 %v3085
    %v3137 = vpack.c.b16 %v3136, %v3135
    %3138 = vrot.lane.b32.xlu0 %v3137, 48
    %v3139 = vpop.permute.xlu0 %3138
    %v3140 = vunpack.c.l.b16 %v3040
    %v3141 = vunpack.c.l.b16 %v3088
    %v3142 = vpack.c.b16 %v3141, %v3140
    %3143 = vrot.lane.b32.xlu0 %v3142, 64
    %v3144 = vpop.permute.xlu0 %3143
    %v3145 = vunpack.c.l.b16 %v3043
    %v3146 = vunpack.c.l.b16 %v3091
    %v3147 = vpack.c.b16 %v3146, %v3145
    %3148 = vrot.lane.b32.xlu0 %v3147, 80
    %v3149 = vpop.permute.xlu0 %3148
    %v3150 = vunpack.c.l.b16 %v3046
    %v3151 = vunpack.c.l.b16 %v3094
    %v3152 = vpack.c.b16 %v3151, %v3150
    %3153 = vrot.lane.b32.xlu0 %v3152, 96
    %v3154 = vpop.permute.xlu0 %3153
    %v3155 = vunpack.c.l.b16 %v3049
    %v3156 = vunpack.c.l.b16 %v3097
    %v3157 = vpack.c.b16 %v3156, %v3155
    %3158 = vrot.lane.b32.xlu0 %v3157, 112
    %v3159 = vpop.permute.xlu0 %3158
    %v3160 = vunpack.c.l.b16 %v3052
    %v3161 = vunpack.c.l.b16 %v3100
    %v3162 = vpack.c.b16 %v3161, %v3160
    %v3163 = vunpack.c.l.b16 %v3055
    %v3164 = vunpack.c.l.b16 %v3103
    %v3165 = vpack.c.b16 %v3164, %v3163
    %3166 = vrot.lane.b32.xlu0 %v3165, 16
    %v3167 = vpop.permute.xlu0 %3166
    %v3168 = vunpack.c.l.b16 %v3058
    %v3169 = vunpack.c.l.b16 %v3106
    %v3170 = vpack.c.b16 %v3169, %v3168
    %3171 = vrot.lane.b32.xlu0 %v3170, 32
    %v3172 = vpop.permute.xlu0 %3171
    %v3173 = vunpack.c.l.b16 %v3061
    %v3174 = vunpack.c.l.b16 %v3109
    %v3175 = vpack.c.b16 %v3174, %v3173
    %3176 = vrot.lane.b32.xlu0 %v3175, 48
    %v3177 = vpop.permute.xlu0 %3176
    %v3178 = vunpack.c.l.b16 %v3064
    %v3179 = vunpack.c.l.b16 %v3112
    %v3180 = vpack.c.b16 %v3179, %v3178
    %3181 = vrot.lane.b32.xlu0 %v3180, 64
    %v3182 = vpop.permute.xlu0 %3181
    %v3183 = vunpack.c.l.b16 %v3067
    %v3184 = vunpack.c.l.b16 %v3115
    %v3185 = vpack.c.b16 %v3184, %v3183
    %3186 = vrot.lane.b32.xlu0 %v3185, 80
    %v3187 = vpop.permute.xlu0 %3186
    %v3188 = vunpack.c.l.b16 %v3070
    %v3189 = vunpack.c.l.b16 %v3118
    %v3190 = vpack.c.b16 %v3189, %v3188
    %3191 = vrot.lane.b32.xlu0 %v3190, 96
    %v3192 = vpop.permute.xlu0 %3191
    %v3193 = vunpack.c.l.b16 %v3073
    %v3194 = vunpack.c.l.b16 %v3121
    %v3195 = vpack.c.b16 %v3194, %v3193
    %3196 = vrot.lane.b32.xlu0 %v3195, 112
    %v3197 = vpop.permute.xlu0 %3196
    %v3200 = vsel %vm508, %v3124, %v3129
    %v3202 = vsel %vm512, %v3200, %v3134
    %v3204 = vsel %vm515, %v3202, %v3139
    %v3206 = vsel %vm518, %v3204, %v3144
    %v3208 = vsel %vm521, %v3206, %v3149
    %v3210 = vsel %vm524, %v3208, %v3154
    %v3212 = vsel %vm527, %v3210, %v3159
    %v3215 = vsel %vm508, %v3162, %v3167
    %v3217 = vsel %vm512, %v3215, %v3172
    %v3219 = vsel %vm515, %v3217, %v3177
    %v3221 = vsel %vm518, %v3219, %v3182
    %v3223 = vsel %vm521, %v3221, %v3187
    %v3225 = vsel %vm524, %v3223, %v3192
    %v3227 = vsel %vm527, %v3225, %v3197
    %v3230 = vunpack.c.l.b16 %v3212
    %v3231 = vunpack.c.l.b16 %v3227
    %v3232 = vunpack.c.h.b16 %v3212
    %v3233 = vunpack.c.h.b16 %v3227
    %v3234 = vpack.c.b16 %v3231, %v3230
    %v3235 = vpack.c.b16 %v3233, %v3232
    %3238 = vst [vmem:[#allocation2 + $0x80] sm:$0xff] %v3234
    %3239 = vst [vmem:[#allocation2 + $0x90] sm:$0xff] %v3235
    %3240 = vrot.lane.b32.xlu0 %v1769, 126
    %v3241 = vpop.permute.xlu0 %3240
    %3242 = vrot.lane.b32.xlu0 %v1779, 126
    %v3243 = vpop.permute.xlu0 %3242
    %3244 = vrot.lane.b32.xlu0 %v1793, 126
    %v3245 = vpop.permute.xlu0 %3244
    %3246 = vrot.lane.b32.xlu0 %v1803, 126
    %v3247 = vpop.permute.xlu0 %3246
    %3248 = vrot.lane.b32.xlu0 %v1817, 126
    %v3249 = vpop.permute.xlu0 %3248
    %3250 = vrot.lane.b32.xlu0 %v1827, 126
    %v3251 = vpop.permute.xlu0 %3250
    %3252 = vrot.lane.b32.xlu0 %v1841, 126
    %v3253 = vpop.permute.xlu0 %3252
    %3254 = vrot.lane.b32.xlu0 %v1851, 126
    %v3255 = vpop.permute.xlu0 %3254
    %3256 = vrot.lane.b32.xlu0 %v1865, 126
    %v3257 = vpop.permute.xlu0 %3256
    %3258 = vrot.lane.b32.xlu0 %v1875, 126
    %v3259 = vpop.permute.xlu0 %3258
    %3260 = vrot.lane.b32.xlu0 %v1889, 126
    %v3261 = vpop.permute.xlu0 %3260
    %3262 = vrot.lane.b32.xlu0 %v1899, 126
    %v3263 = vpop.permute.xlu0 %3262
    %3264 = vrot.lane.b32.xlu0 %v1913, 126
    %v3265 = vpop.permute.xlu0 %3264
    %3266 = vrot.lane.b32.xlu0 %v1923, 126
    %v3267 = vpop.permute.xlu0 %3266
    %3268 = vrot.lane.b32.xlu0 %v1937, 126
    %v3269 = vpop.permute.xlu0 %3268
    %3270 = vrot.lane.b32.xlu0 %v1947, 126
    %v3271 = vpop.permute.xlu0 %3270
    %3272 = vrot.lane.b32.xlu0 %v1961, 126
    %v3273 = vpop.permute.xlu0 %3272
    %3274 = vrot.lane.b32.xlu0 %v1971, 126
    %v3275 = vpop.permute.xlu0 %3274
    %3276 = vrot.lane.b32.xlu0 %v1985, 126
    %v3277 = vpop.permute.xlu0 %3276
    %3278 = vrot.lane.b32.xlu0 %v1995, 126
    %v3279 = vpop.permute.xlu0 %3278
    %3280 = vrot.lane.b32.xlu0 %v2009, 126
    %v3281 = vpop.permute.xlu0 %3280
    %3282 = vrot.lane.b32.xlu0 %v2019, 126
    %v3283 = vpop.permute.xlu0 %3282
    %3284 = vrot.lane.b32.xlu0 %v2033, 126
    %v3285 = vpop.permute.xlu0 %3284
    %3286 = vrot.lane.b32.xlu0 %v2043, 126
    %v3287 = vpop.permute.xlu0 %3286
    %3288 = vrot.lane.b32.xlu0 %v2057, 126
    %v3289 = vpop.permute.xlu0 %3288
    %3290 = vrot.lane.b32.xlu0 %v2067, 126
    %v3291 = vpop.permute.xlu0 %3290
    %3292 = vrot.lane.b32.xlu0 %v2081, 126
    %v3293 = vpop.permute.xlu0 %3292
    %3294 = vrot.lane.b32.xlu0 %v2091, 126
    %v3295 = vpop.permute.xlu0 %3294
    %3296 = vrot.lane.b32.xlu0 %v2105, 126
    %v3297 = vpop.permute.xlu0 %3296
    %3298 = vrot.lane.b32.xlu0 %v2115, 126
    %v3299 = vpop.permute.xlu0 %3298
    %3300 = vrot.lane.b32.xlu0 %v2129, 126
    %v3301 = vpop.permute.xlu0 %3300
    %3302 = vrot.lane.b32.xlu0 %v2139, 126
    %v3303 = vpop.permute.xlu0 %3302
    %v3336 = vcombine.low %v3241, %v3257
    %v3338 = vunpack.c.l.s4 1983009808
    %v3339 = vunpack.c.0.s8 %v3338
    %v3340 = vlaneseq
    %v3341 = vshrl.u32 %v3340, 7
    %v3342 = vsub.s32 %v3339, %v3341
    %v3343 = vrot.slane %v3336, %v3342
    %v3344 = vcombine.low %v3249, %v3265
    %v3346 = vunpack.c.l.s4 1983009808
    %v3347 = vunpack.c.0.s8 %v3346
    %v3348 = vlaneseq
    %v3349 = vshrl.u32 %v3348, 7
    %v3350 = vsub.s32 %v3347, %v3349
    %v3351 = vrot.slane %v3344, %v3350
    %v3352 = vcombine.low %v3343, %v3351
    %v3353 = vcombine.high %v3343, %v3351
    %v3355 = vunpack.c.l.s4 1934713408
    %v3356 = vunpack.c.0.s8 %v3355
    %v3357 = vlaneseq
    %v3358 = vshrl.u32 %v3357, 7
    %v3359 = vsub.s32 %v3356, %v3358
    %v3360 = vrot.slane %v3352, %v3359
    %v3362 = vunpack.c.l.s4 1934713408
    %v3363 = vunpack.c.0.s8 %v3362
    %v3364 = vlaneseq
    %v3365 = vshrl.u32 %v3364, 7
    %v3366 = vsub.s32 %v3363, %v3365
    %v3367 = vrot.slane %v3353, %v3366
    %v3368 = vcombine.high %v3360, 0
    %v3369 = vcombine.high %v3367, 0
    %v3370 = vcombine.low %v3245, %v3261
    %v3372 = vunpack.c.l.s4 1983009808
    %v3373 = vunpack.c.0.s8 %v3372
    %v3374 = vlaneseq
    %v3375 = vshrl.u32 %v3374, 7
    %v3376 = vsub.s32 %v3373, %v3375
    %v3377 = vrot.slane %v3370, %v3376
    %v3378 = vcombine.low %v3253, %v3269
    %v3380 = vunpack.c.l.s4 1983009808
    %v3381 = vunpack.c.0.s8 %v3380
    %v3382 = vlaneseq
    %v3383 = vshrl.u32 %v3382, 7
    %v3384 = vsub.s32 %v3381, %v3383
    %v3385 = vrot.slane %v3378, %v3384
    %v3386 = vcombine.low %v3377, %v3385
    %v3387 = vcombine.high %v3377, %v3385
    %v3389 = vunpack.c.l.s4 1934713408
    %v3390 = vunpack.c.0.s8 %v3389
    %v3391 = vlaneseq
    %v3392 = vshrl.u32 %v3391, 7
    %v3393 = vsub.s32 %v3390, %v3392
    %v3394 = vrot.slane %v3386, %v3393
    %v3396 = vunpack.c.l.s4 1934713408
    %v3397 = vunpack.c.0.s8 %v3396
    %v3398 = vlaneseq
    %v3399 = vshrl.u32 %v3398, 7
    %v3400 = vsub.s32 %v3397, %v3399
    %v3401 = vrot.slane %v3387, %v3400
    %v3402 = vcombine.high %v3394, 0
    %v3403 = vcombine.high %v3401, 0
    %v3404 = vcombine.low %v3273, %v3289
    %v3406 = vunpack.c.l.s4 1983009808
    %v3407 = vunpack.c.0.s8 %v3406
    %v3408 = vlaneseq
    %v3409 = vshrl.u32 %v3408, 7
    %v3410 = vsub.s32 %v3407, %v3409
    %v3411 = vrot.slane %v3404, %v3410
    %v3412 = vcombine.low %v3281, %v3297
    %v3414 = vunpack.c.l.s4 1983009808
    %v3415 = vunpack.c.0.s8 %v3414
    %v3416 = vlaneseq
    %v3417 = vshrl.u32 %v3416, 7
    %v3418 = vsub.s32 %v3415, %v3417
    %v3419 = vrot.slane %v3412, %v3418
    %v3420 = vcombine.low %v3411, %v3419
    %v3421 = vcombine.high %v3411, %v3419
    %v3423 = vunpack.c.l.s4 1934713408
    %v3424 = vunpack.c.0.s8 %v3423
    %v3425 = vlaneseq
    %v3426 = vshrl.u32 %v3425, 7
    %v3427 = vsub.s32 %v3424, %v3426
    %v3428 = vrot.slane %v3420, %v3427
    %v3430 = vunpack.c.l.s4 1934713408
    %v3431 = vunpack.c.0.s8 %v3430
    %v3432 = vlaneseq
    %v3433 = vshrl.u32 %v3432, 7
    %v3434 = vsub.s32 %v3431, %v3433
    %v3435 = vrot.slane %v3421, %v3434
    %v3436 = vcombine.high %v3428, 0
    %v3437 = vcombine.high %v3435, 0
    %v3438 = vcombine.low %v3277, %v3293
    %v3440 = vunpack.c.l.s4 1983009808
    %v3441 = vunpack.c.0.s8 %v3440
    %v3442 = vlaneseq
    %v3443 = vshrl.u32 %v3442, 7
    %v3444 = vsub.s32 %v3441, %v3443
    %v3445 = vrot.slane %v3438, %v3444
    %v3446 = vcombine.low %v3285, %v3301
    %v3448 = vunpack.c.l.s4 1983009808
    %v3449 = vunpack.c.0.s8 %v3448
    %v3450 = vlaneseq
    %v3451 = vshrl.u32 %v3450, 7
    %v3452 = vsub.s32 %v3449, %v3451
    %v3453 = vrot.slane %v3446, %v3452
    %v3454 = vcombine.low %v3445, %v3453
    %v3455 = vcombine.high %v3445, %v3453
    %v3457 = vunpack.c.l.s4 1934713408
    %v3458 = vunpack.c.0.s8 %v3457
    %v3459 = vlaneseq
    %v3460 = vshrl.u32 %v3459, 7
    %v3461 = vsub.s32 %v3458, %v3460
    %v3462 = vrot.slane %v3454, %v3461
    %v3464 = vunpack.c.l.s4 1934713408
    %v3465 = vunpack.c.0.s8 %v3464
    %v3466 = vlaneseq
    %v3467 = vshrl.u32 %v3466, 7
    %v3468 = vsub.s32 %v3465, %v3467
    %v3469 = vrot.slane %v3455, %v3468
    %v3470 = vcombine.high %v3462, 0
    %v3471 = vcombine.high %v3469, 0
    %v3472 = vcombine.low %v3243, %v3259
    %v3474 = vunpack.c.l.s4 1983009808
    %v3475 = vunpack.c.0.s8 %v3474
    %v3476 = vlaneseq
    %v3477 = vshrl.u32 %v3476, 7
    %v3478 = vsub.s32 %v3475, %v3477
    %v3479 = vrot.slane %v3472, %v3478
    %v3480 = vcombine.low %v3251, %v3267
    %v3482 = vunpack.c.l.s4 1983009808
    %v3483 = vunpack.c.0.s8 %v3482
    %v3484 = vlaneseq
    %v3485 = vshrl.u32 %v3484, 7
    %v3486 = vsub.s32 %v3483, %v3485
    %v3487 = vrot.slane %v3480, %v3486
    %v3488 = vcombine.low %v3479, %v3487
    %v3489 = vcombine.high %v3479, %v3487
    %v3491 = vunpack.c.l.s4 1934713408
    %v3492 = vunpack.c.0.s8 %v3491
    %v3493 = vlaneseq
    %v3494 = vshrl.u32 %v3493, 7
    %v3495 = vsub.s32 %v3492, %v3494
    %v3496 = vrot.slane %v3488, %v3495
    %v3498 = vunpack.c.l.s4 1934713408
    %v3499 = vunpack.c.0.s8 %v3498
    %v3500 = vlaneseq
    %v3501 = vshrl.u32 %v3500, 7
    %v3502 = vsub.s32 %v3499, %v3501
    %v3503 = vrot.slane %v3489, %v3502
    %v3504 = vcombine.high %v3496, 0
    %v3505 = vcombine.high %v3503, 0
    %v3506 = vcombine.low %v3247, %v3263
    %v3508 = vunpack.c.l.s4 1983009808
    %v3509 = vunpack.c.0.s8 %v3508
    %v3510 = vlaneseq
    %v3511 = vshrl.u32 %v3510, 7
    %v3512 = vsub.s32 %v3509, %v3511
    %v3513 = vrot.slane %v3506, %v3512
    %v3514 = vcombine.low %v3255, %v3271
    %v3516 = vunpack.c.l.s4 1983009808
    %v3517 = vunpack.c.0.s8 %v3516
    %v3518 = vlaneseq
    %v3519 = vshrl.u32 %v3518, 7
    %v3520 = vsub.s32 %v3517, %v3519
    %v3521 = vrot.slane %v3514, %v3520
    %v3522 = vcombine.low %v3513, %v3521
    %v3523 = vcombine.high %v3513, %v3521
    %v3525 = vunpack.c.l.s4 1934713408
    %v3526 = vunpack.c.0.s8 %v3525
    %v3527 = vlaneseq
    %v3528 = vshrl.u32 %v3527, 7
    %v3529 = vsub.s32 %v3526, %v3528
    %v3530 = vrot.slane %v3522, %v3529
    %v3532 = vunpack.c.l.s4 1934713408
    %v3533 = vunpack.c.0.s8 %v3532
    %v3534 = vlaneseq
    %v3535 = vshrl.u32 %v3534, 7
    %v3536 = vsub.s32 %v3533, %v3535
    %v3537 = vrot.slane %v3523, %v3536
    %v3538 = vcombine.high %v3530, 0
    %v3539 = vcombine.high %v3537, 0
    %v3540 = vcombine.low %v3275, %v3291
    %v3542 = vunpack.c.l.s4 1983009808
    %v3543 = vunpack.c.0.s8 %v3542
    %v3544 = vlaneseq
    %v3545 = vshrl.u32 %v3544, 7
    %v3546 = vsub.s32 %v3543, %v3545
    %v3547 = vrot.slane %v3540, %v3546
    %v3548 = vcombine.low %v3283, %v3299
    %v3550 = vunpack.c.l.s4 1983009808
    %v3551 = vunpack.c.0.s8 %v3550
    %v3552 = vlaneseq
    %v3553 = vshrl.u32 %v3552, 7
    %v3554 = vsub.s32 %v3551, %v3553
    %v3555 = vrot.slane %v3548, %v3554
    %v3556 = vcombine.low %v3547, %v3555
    %v3557 = vcombine.high %v3547, %v3555
    %v3559 = vunpack.c.l.s4 1934713408
    %v3560 = vunpack.c.0.s8 %v3559
    %v3561 = vlaneseq
    %v3562 = vshrl.u32 %v3561, 7
    %v3563 = vsub.s32 %v3560, %v3562
    %v3564 = vrot.slane %v3556, %v3563
    %v3566 = vunpack.c.l.s4 1934713408
    %v3567 = vunpack.c.0.s8 %v3566
    %v3568 = vlaneseq
    %v3569 = vshrl.u32 %v3568, 7
    %v3570 = vsub.s32 %v3567, %v3569
    %v3571 = vrot.slane %v3557, %v3570
    %v3572 = vcombine.high %v3564, 0
    %v3573 = vcombine.high %v3571, 0
    %v3574 = vcombine.low %v3279, %v3295
    %v3576 = vunpack.c.l.s4 1983009808
    %v3577 = vunpack.c.0.s8 %v3576
    %v3578 = vlaneseq
    %v3579 = vshrl.u32 %v3578, 7
    %v3580 = vsub.s32 %v3577, %v3579
    %v3581 = vrot.slane %v3574, %v3580
    %v3582 = vcombine.low %v3287, %v3303
    %v3584 = vunpack.c.l.s4 1983009808
    %v3585 = vunpack.c.0.s8 %v3584
    %v3586 = vlaneseq
    %v3587 = vshrl.u32 %v3586, 7
    %v3588 = vsub.s32 %v3585, %v3587
    %v3589 = vrot.slane %v3582, %v3588
    %v3590 = vcombine.low %v3581, %v3589
    %v3591 = vcombine.high %v3581, %v3589
    %v3593 = vunpack.c.l.s4 1934713408
    %v3594 = vunpack.c.0.s8 %v3593
    %v3595 = vlaneseq
    %v3596 = vshrl.u32 %v3595, 7
    %v3597 = vsub.s32 %v3594, %v3596
    %v3598 = vrot.slane %v3590, %v3597
    %v3600 = vunpack.c.l.s4 1934713408
    %v3601 = vunpack.c.0.s8 %v3600
    %v3602 = vlaneseq
    %v3603 = vshrl.u32 %v3602, 7
    %v3604 = vsub.s32 %v3601, %v3603
    %v3605 = vrot.slane %v3591, %v3604
    %v3606 = vcombine.high %v3598, 0
    %v3607 = vcombine.high %v3605, 0
    %v3610 = vpack.i.b16 %v3394, %v3360
    %v3611 = vshrl.u32 %v3360, 16
    %v3612 = vshrl.u32 %v3394, 16
    %v3613 = vpack.i.b16 %v3612, %v3611
    %v3616 = vpack.i.b16 %v3402, %v3368
    %v3617 = vshrl.u32 %v3368, 16
    %v3618 = vshrl.u32 %v3402, 16
    %v3619 = vpack.i.b16 %v3618, %v3617
    %v3622 = vpack.i.b16 %v3401, %v3367
    %v3623 = vshrl.u32 %v3367, 16
    %v3624 = vshrl.u32 %v3401, 16
    %v3625 = vpack.i.b16 %v3624, %v3623
    %v3628 = vpack.i.b16 %v3403, %v3369
    %v3629 = vshrl.u32 %v3369, 16
    %v3630 = vshrl.u32 %v3403, 16
    %v3631 = vpack.i.b16 %v3630, %v3629
    %v3634 = vpack.i.b16 %v3530, %v3496
    %v3635 = vshrl.u32 %v3496, 16
    %v3636 = vshrl.u32 %v3530, 16
    %v3637 = vpack.i.b16 %v3636, %v3635
    %v3640 = vpack.i.b16 %v3538, %v3504
    %v3641 = vshrl.u32 %v3504, 16
    %v3642 = vshrl.u32 %v3538, 16
    %v3643 = vpack.i.b16 %v3642, %v3641
    %v3646 = vpack.i.b16 %v3537, %v3503
    %v3647 = vshrl.u32 %v3503, 16
    %v3648 = vshrl.u32 %v3537, 16
    %v3649 = vpack.i.b16 %v3648, %v3647
    %v3652 = vpack.i.b16 %v3539, %v3505
    %v3653 = vshrl.u32 %v3505, 16
    %v3654 = vshrl.u32 %v3539, 16
    %v3655 = vpack.i.b16 %v3654, %v3653
    %v3658 = vpack.i.b16 %v3462, %v3428
    %v3659 = vshrl.u32 %v3428, 16
    %v3660 = vshrl.u32 %v3462, 16
    %v3661 = vpack.i.b16 %v3660, %v3659
    %v3664 = vpack.i.b16 %v3470, %v3436
    %v3665 = vshrl.u32 %v3436, 16
    %v3666 = vshrl.u32 %v3470, 16
    %v3667 = vpack.i.b16 %v3666, %v3665
    %v3670 = vpack.i.b16 %v3469, %v3435
    %v3671 = vshrl.u32 %v3435, 16
    %v3672 = vshrl.u32 %v3469, 16
    %v3673 = vpack.i.b16 %v3672, %v3671
    %v3676 = vpack.i.b16 %v3471, %v3437
    %v3677 = vshrl.u32 %v3437, 16
    %v3678 = vshrl.u32 %v3471, 16
    %v3679 = vpack.i.b16 %v3678, %v3677
    %v3682 = vpack.i.b16 %v3598, %v3564
    %v3683 = vshrl.u32 %v3564, 16
    %v3684 = vshrl.u32 %v3598, 16
    %v3685 = vpack.i.b16 %v3684, %v3683
    %v3688 = vpack.i.b16 %v3606, %v3572
    %v3689 = vshrl.u32 %v3572, 16
    %v3690 = vshrl.u32 %v3606, 16
    %v3691 = vpack.i.b16 %v3690, %v3689
    %v3694 = vpack.i.b16 %v3605, %v3571
    %v3695 = vshrl.u32 %v3571, 16
    %v3696 = vshrl.u32 %v3605, 16
    %v3697 = vpack.i.b16 %v3696, %v3695
    %v3700 = vpack.i.b16 %v3607, %v3573
    %v3701 = vshrl.u32 %v3573, 16
    %v3702 = vshrl.u32 %v3607, 16
    %v3703 = vpack.i.b16 %v3702, %v3701
    %v3704 = vunpack.c.l.b16 %v3610
    %v3705 = vunpack.c.l.b16 %v3658
    %v3706 = vpack.c.b16 %v3705, %v3704
    %v3707 = vunpack.c.l.b16 %v3613
    %v3708 = vunpack.c.l.b16 %v3661
    %v3709 = vpack.c.b16 %v3708, %v3707
    %3710 = vrot.lane.b32.xlu0 %v3709, 16
    %v3711 = vpop.permute.xlu0 %3710
    %v3712 = vunpack.c.l.b16 %v3616
    %v3713 = vunpack.c.l.b16 %v3664
    %v3714 = vpack.c.b16 %v3713, %v3712
    %3715 = vrot.lane.b32.xlu0 %v3714, 32
    %v3716 = vpop.permute.xlu0 %3715
    %v3717 = vunpack.c.l.b16 %v3619
    %v3718 = vunpack.c.l.b16 %v3667
    %v3719 = vpack.c.b16 %v3718, %v3717
    %3720 = vrot.lane.b32.xlu0 %v3719, 48
    %v3721 = vpop.permute.xlu0 %3720
    %v3722 = vunpack.c.l.b16 %v3622
    %v3723 = vunpack.c.l.b16 %v3670
    %v3724 = vpack.c.b16 %v3723, %v3722
    %3725 = vrot.lane.b32.xlu0 %v3724, 64
    %v3726 = vpop.permute.xlu0 %3725
    %v3727 = vunpack.c.l.b16 %v3625
    %v3728 = vunpack.c.l.b16 %v3673
    %v3729 = vpack.c.b16 %v3728, %v3727
    %3730 = vrot.lane.b32.xlu0 %v3729, 80
    %v3731 = vpop.permute.xlu0 %3730
    %v3732 = vunpack.c.l.b16 %v3628
    %v3733 = vunpack.c.l.b16 %v3676
    %v3734 = vpack.c.b16 %v3733, %v3732
    %3735 = vrot.lane.b32.xlu0 %v3734, 96
    %v3736 = vpop.permute.xlu0 %3735
    %v3737 = vunpack.c.l.b16 %v3631
    %v3738 = vunpack.c.l.b16 %v3679
    %v3739 = vpack.c.b16 %v3738, %v3737
    %3740 = vrot.lane.b32.xlu0 %v3739, 112
    %v3741 = vpop.permute.xlu0 %3740
    %v3742 = vunpack.c.l.b16 %v3634
    %v3743 = vunpack.c.l.b16 %v3682
    %v3744 = vpack.c.b16 %v3743, %v3742
    %v3745 = vunpack.c.l.b16 %v3637
    %v3746 = vunpack.c.l.b16 %v3685
    %v3747 = vpack.c.b16 %v3746, %v3745
    %3748 = vrot.lane.b32.xlu0 %v3747, 16
    %v3749 = vpop.permute.xlu0 %3748
    %v3750 = vunpack.c.l.b16 %v3640
    %v3751 = vunpack.c.l.b16 %v3688
    %v3752 = vpack.c.b16 %v3751, %v3750
    %3753 = vrot.lane.b32.xlu0 %v3752, 32
    %v3754 = vpop.permute.xlu0 %3753
    %v3755 = vunpack.c.l.b16 %v3643
    %v3756 = vunpack.c.l.b16 %v3691
    %v3757 = vpack.c.b16 %v3756, %v3755
    %3758 = vrot.lane.b32.xlu0 %v3757, 48
    %v3759 = vpop.permute.xlu0 %3758
    %v3760 = vunpack.c.l.b16 %v3646
    %v3761 = vunpack.c.l.b16 %v3694
    %v3762 = vpack.c.b16 %v3761, %v3760
    %3763 = vrot.lane.b32.xlu0 %v3762, 64
    %v3764 = vpop.permute.xlu0 %3763
    %v3765 = vunpack.c.l.b16 %v3649
    %v3766 = vunpack.c.l.b16 %v3697
    %v3767 = vpack.c.b16 %v3766, %v3765
    %3768 = vrot.lane.b32.xlu0 %v3767, 80
    %v3769 = vpop.permute.xlu0 %3768
    %v3770 = vunpack.c.l.b16 %v3652
    %v3771 = vunpack.c.l.b16 %v3700
    %v3772 = vpack.c.b16 %v3771, %v3770
    %3773 = vrot.lane.b32.xlu0 %v3772, 96
    %v3774 = vpop.permute.xlu0 %3773
    %v3775 = vunpack.c.l.b16 %v3655
    %v3776 = vunpack.c.l.b16 %v3703
    %v3777 = vpack.c.b16 %v3776, %v3775
    %3778 = vrot.lane.b32.xlu0 %v3777, 112
    %v3779 = vpop.permute.xlu0 %3778
    %v3782 = vsel %vm508, %v3706, %v3711
    %v3784 = vsel %vm512, %v3782, %v3716
    %v3786 = vsel %vm515, %v3784, %v3721
    %v3788 = vsel %vm518, %v3786, %v3726
    %v3790 = vsel %vm521, %v3788, %v3731
    %v3792 = vsel %vm524, %v3790, %v3736
    %v3794 = vsel %vm527, %v3792, %v3741
    %v3797 = vsel %vm508, %v3744, %v3749
    %v3799 = vsel %vm512, %v3797, %v3754
    %v3801 = vsel %vm515, %v3799, %v3759
    %v3803 = vsel %vm518, %v3801, %v3764
    %v3805 = vsel %vm521, %v3803, %v3769
    %v3807 = vsel %vm524, %v3805, %v3774
    %v3809 = vsel %vm527, %v3807, %v3779
    %v3812 = vunpack.c.l.b16 %v3794
    %v3813 = vunpack.c.l.b16 %v3809
    %v3814 = vunpack.c.h.b16 %v3794
    %v3815 = vunpack.c.h.b16 %v3809
    %v3816 = vpack.c.b16 %v3813, %v3812
    %v3817 = vpack.c.b16 %v3815, %v3814
    %3820 = vst [vmem:[#allocation2 + $0xa0] sm:$0xff] %v3816
    %3821 = vst [vmem:[#allocation2 + $0xb0] sm:$0xff] %v3817
    %vm3838 = vcmask 1042432
    %vm3839 = vcmask 1046532
    %vm3840 = vmor %vm3838, %vm3839
    %v3841 = vrot.slane %v16, 5
    %v3842 = vrot.slane %v3841, 4
    %v3843 = vrot.slane %v17, 5
    %v3844 = vsel %vm3840, %v3842, %v3843
    %v3845 = vrot.slane %v3843, 4
    %v3846 = vrot.slane %v18, 5
    %v3847 = vsel %vm3840, %v3845, %v3846
    %v3848 = vrot.slane %v19, 5
    %v3849 = vrot.slane %v3848, 4
    %v3850 = vrot.slane %v20, 5
    %v3851 = vsel %vm3840, %v3849, %v3850
    %v3852 = vrot.slane %v3850, 4
    %v3853 = vrot.slane %v21, 5
    %v3854 = vsel %vm3840, %v3852, %v3853
    %v3855 = vrot.slane %v22, 5
    %v3856 = vrot.slane %v3855, 4
    %v3857 = vrot.slane %v23, 5
    %v3858 = vsel %vm3840, %v3856, %v3857
    %v3859 = vrot.slane %v3857, 4
    %v3860 = vrot.slane %v24, 5
    %v3861 = vsel %vm3840, %v3859, %v3860
    %v3862 = vrot.slane %v25, 5
    %v3863 = vrot.slane %v3862, 4
    %v3864 = vrot.slane %v26, 5
    %v3865 = vsel %vm3840, %v3863, %v3864
    %v3866 = vrot.slane %v3864, 4
    %v3867 = vrot.slane %v27, 5
    %v3868 = vsel %vm3840, %v3866, %v3867
    %v3869 = vrot.slane %v28, 5
    %v3870 = vrot.slane %v3869, 4
    %v3871 = vrot.slane %v29, 5
    %v3872 = vsel %vm3840, %v3870, %v3871
    %v3873 = vrot.slane %v3871, 4
    %v3874 = vrot.slane %v30, 5
    %v3875 = vsel %vm3840, %v3873, %v3874
    %v3876 = vrot.slane %v31, 5
    %v3877 = vrot.slane %v3876, 4
    %v3878 = vrot.slane %v32, 5
    %v3879 = vsel %vm3840, %v3877, %v3878
    %v3880 = vrot.slane %v3878, 4
    %v3881 = vrot.slane %v33, 5
    %v3882 = vsel %vm3840, %v3880, %v3881
    %v3883 = vrot.slane %v34, 5
    %v3884 = vrot.slane %v3883, 4
    %v3885 = vrot.slane %v35, 5
    %v3886 = vsel %vm3840, %v3884, %v3885
    %v3887 = vrot.slane %v3885, 4
    %v3888 = vrot.slane %v36, 5
    %v3889 = vsel %vm3840, %v3887, %v3888
    %v3890 = vrot.slane %v37, 5
    %v3891 = vrot.slane %v3890, 4
    %v3892 = vrot.slane %v38, 5
    %v3893 = vsel %vm3840, %v3891, %v3892
    %v3894 = vrot.slane %v3892, 4
    %v3895 = vrot.slane %v39, 5
    %v3896 = vsel %vm3840, %v3894, %v3895
    %v3897 = vrot.slane %v40, 5
    %v3898 = vrot.slane %v3897, 4
    %v3899 = vrot.slane %v41, 5
    %v3900 = vsel %vm3840, %v3898, %v3899
    %v3901 = vrot.slane %v3899, 4
    %v3902 = vrot.slane %v42, 5
    %v3903 = vsel %vm3840, %v3901, %v3902
    %v3904 = vrot.slane %v43, 5
    %v3905 = vrot.slane %v3904, 4
    %v3906 = vrot.slane %v44, 5
    %v3907 = vsel %vm3840, %v3905, %v3906
    %v3908 = vrot.slane %v3906, 4
    %v3909 = vrot.slane %v45, 5
    %v3910 = vsel %vm3840, %v3908, %v3909
    %v3911 = vrot.slane %v46, 5
    %v3912 = vrot.slane %v3911, 4
    %v3913 = vrot.slane %v47, 5
    %v3914 = vsel %vm3840, %v3912, %v3913
    %v3915 = vrot.slane %v3913, 4
    %v3916 = vrot.slane %v48, 5
    %v3917 = vsel %vm3840, %v3915, %v3916
    %v3918 = vrot.slane %v49, 5
    %v3919 = vrot.slane %v3918, 4
    %v3920 = vrot.slane %v50, 5
    %v3921 = vsel %vm3840, %v3919, %v3920
    %v3922 = vrot.slane %v3920, 4
    %v3923 = vrot.slane %v51, 5
    %v3924 = vsel %vm3840, %v3922, %v3923
    %v3925 = vrot.slane %v52, 5
    %v3926 = vrot.slane %v3925, 4
    %v3927 = vrot.slane %v53, 5
    %v3928 = vsel %vm3840, %v3926, %v3927
    %v3929 = vrot.slane %v3927, 4
    %v3930 = vrot.slane %v54, 5
    %v3931 = vsel %vm3840, %v3929, %v3930
    %v3932 = vrot.slane %v55, 5
    %v3933 = vrot.slane %v3932, 4
    %v3934 = vrot.slane %v56, 5
    %v3935 = vsel %vm3840, %v3933, %v3934
    %v3936 = vrot.slane %v3934, 4
    %v3937 = vrot.slane %v57, 5
    %v3938 = vsel %vm3840, %v3936, %v3937
    %v3939 = vrot.slane %v58, 5
    %v3940 = vrot.slane %v3939, 4
    %v3941 = vrot.slane %v59, 5
    %v3942 = vsel %vm3840, %v3940, %v3941
    %v3943 = vrot.slane %v3941, 4
    %v3944 = vrot.slane %v60, 5
    %v3945 = vsel %vm3840, %v3943, %v3944
    %v3946 = vrot.slane %v61, 5
    %v3947 = vrot.slane %v3946, 4
    %v3948 = vrot.slane %v62, 5
    %v3949 = vsel %vm3840, %v3947, %v3948
    %v3950 = vrot.slane %v3948, 4
    %v3951 = vrot.slane %v63, 5
    %v3952 = vsel %vm3840, %v3950, %v3951
    %v3985 = vcombine.low %v3844, %v3872
    %v3987 = vunpack.c.l.s4 1983009808
    %v3988 = vunpack.c.0.s8 %v3987
    %v3989 = vlaneseq
    %v3990 = vshrl.u32 %v3989, 7
    %v3991 = vsub.s32 %v3988, %v3990
    %v3992 = vrot.slane %v3985, %v3991
    %v3993 = vcombine.low %v3858, %v3886
    %v3995 = vunpack.c.l.s4 1983009808
    %v3996 = vunpack.c.0.s8 %v3995
    %v3997 = vlaneseq
    %v3998 = vshrl.u32 %v3997, 7
    %v3999 = vsub.s32 %v3996, %v3998
    %v4000 = vrot.slane %v3993, %v3999
    %v4001 = vcombine.low %v3992, %v4000
    %v4002 = vcombine.high %v3992, %v4000
    %v4004 = vunpack.c.l.s4 1934713408
    %v4005 = vunpack.c.0.s8 %v4004
    %v4006 = vlaneseq
    %v4007 = vshrl.u32 %v4006, 7
    %v4008 = vsub.s32 %v4005, %v4007
    %v4009 = vrot.slane %v4001, %v4008
    %v4011 = vunpack.c.l.s4 1934713408
    %v4012 = vunpack.c.0.s8 %v4011
    %v4013 = vlaneseq
    %v4014 = vshrl.u32 %v4013, 7
    %v4015 = vsub.s32 %v4012, %v4014
    %v4016 = vrot.slane %v4002, %v4015
    %v4017 = vcombine.high %v4009, 0
    %v4018 = vcombine.high %v4016, 0
    %v4019 = vcombine.low %v3851, %v3879
    %v4021 = vunpack.c.l.s4 1983009808
    %v4022 = vunpack.c.0.s8 %v4021
    %v4023 = vlaneseq
    %v4024 = vshrl.u32 %v4023, 7
    %v4025 = vsub.s32 %v4022, %v4024
    %v4026 = vrot.slane %v4019, %v4025
    %v4027 = vcombine.low %v3865, %v3893
    %v4029 = vunpack.c.l.s4 1983009808
    %v4030 = vunpack.c.0.s8 %v4029
    %v4031 = vlaneseq
    %v4032 = vshrl.u32 %v4031, 7
    %v4033 = vsub.s32 %v4030, %v4032
    %v4034 = vrot.slane %v4027, %v4033
    %v4035 = vcombine.low %v4026, %v4034
    %v4036 = vcombine.high %v4026, %v4034
    %v4038 = vunpack.c.l.s4 1934713408
    %v4039 = vunpack.c.0.s8 %v4038
    %v4040 = vlaneseq
    %v4041 = vshrl.u32 %v4040, 7
    %v4042 = vsub.s32 %v4039, %v4041
    %v4043 = vrot.slane %v4035, %v4042
    %v4045 = vunpack.c.l.s4 1934713408
    %v4046 = vunpack.c.0.s8 %v4045
    %v4047 = vlaneseq
    %v4048 = vshrl.u32 %v4047, 7
    %v4049 = vsub.s32 %v4046, %v4048
    %v4050 = vrot.slane %v4036, %v4049
    %v4051 = vcombine.high %v4043, 0
    %v4052 = vcombine.high %v4050, 0
    %v4053 = vcombine.low %v3900, %v3928
    %v4055 = vunpack.c.l.s4 1983009808
    %v4056 = vunpack.c.0.s8 %v4055
    %v4057 = vlaneseq
    %v4058 = vshrl.u32 %v4057, 7
    %v4059 = vsub.s32 %v4056, %v4058
    %v4060 = vrot.slane %v4053, %v4059
    %v4061 = vcombine.low %v3914, %v3942
    %v4063 = vunpack.c.l.s4 1983009808
    %v4064 = vunpack.c.0.s8 %v4063
    %v4065 = vlaneseq
    %v4066 = vshrl.u32 %v4065, 7
    %v4067 = vsub.s32 %v4064, %v4066
    %v4068 = vrot.slane %v4061, %v4067
    %v4069 = vcombine.low %v4060, %v4068
    %v4070 = vcombine.high %v4060, %v4068
    %v4072 = vunpack.c.l.s4 1934713408
    %v4073 = vunpack.c.0.s8 %v4072
    %v4074 = vlaneseq
    %v4075 = vshrl.u32 %v4074, 7
    %v4076 = vsub.s32 %v4073, %v4075
    %v4077 = vrot.slane %v4069, %v4076
    %v4079 = vunpack.c.l.s4 1934713408
    %v4080 = vunpack.c.0.s8 %v4079
    %v4081 = vlaneseq
    %v4082 = vshrl.u32 %v4081, 7
    %v4083 = vsub.s32 %v4080, %v4082
    %v4084 = vrot.slane %v4070, %v4083
    %v4085 = vcombine.high %v4077, 0
    %v4086 = vcombine.high %v4084, 0
    %v4087 = vcombine.low %v3907, %v3935
    %v4089 = vunpack.c.l.s4 1983009808
    %v4090 = vunpack.c.0.s8 %v4089
    %v4091 = vlaneseq
    %v4092 = vshrl.u32 %v4091, 7
    %v4093 = vsub.s32 %v4090, %v4092
    %v4094 = vrot.slane %v4087, %v4093
    %v4095 = vcombine.low %v3921, %v3949
    %v4097 = vunpack.c.l.s4 1983009808
    %v4098 = vunpack.c.0.s8 %v4097
    %v4099 = vlaneseq
    %v4100 = vshrl.u32 %v4099, 7
    %v4101 = vsub.s32 %v4098, %v4100
    %v4102 = vrot.slane %v4095, %v4101
    %v4103 = vcombine.low %v4094, %v4102
    %v4104 = vcombine.high %v4094, %v4102
    %v4106 = vunpack.c.l.s4 1934713408
    %v4107 = vunpack.c.0.s8 %v4106
    %v4108 = vlaneseq
    %v4109 = vshrl.u32 %v4108, 7
    %v4110 = vsub.s32 %v4107, %v4109
    %v4111 = vrot.slane %v4103, %v4110
    %v4113 = vunpack.c.l.s4 1934713408
    %v4114 = vunpack.c.0.s8 %v4113
    %v4115 = vlaneseq
    %v4116 = vshrl.u32 %v4115, 7
    %v4117 = vsub.s32 %v4114, %v4116
    %v4118 = vrot.slane %v4104, %v4117
    %v4119 = vcombine.high %v4111, 0
    %v4120 = vcombine.high %v4118, 0
    %v4121 = vcombine.low %v3847, %v3875
    %v4123 = vunpack.c.l.s4 1983009808
    %v4124 = vunpack.c.0.s8 %v4123
    %v4125 = vlaneseq
    %v4126 = vshrl.u32 %v4125, 7
    %v4127 = vsub.s32 %v4124, %v4126
    %v4128 = vrot.slane %v4121, %v4127
    %v4129 = vcombine.low %v3861, %v3889
    %v4131 = vunpack.c.l.s4 1983009808
    %v4132 = vunpack.c.0.s8 %v4131
    %v4133 = vlaneseq
    %v4134 = vshrl.u32 %v4133, 7
    %v4135 = vsub.s32 %v4132, %v4134
    %v4136 = vrot.slane %v4129, %v4135
    %v4137 = vcombine.low %v4128, %v4136
    %v4138 = vcombine.high %v4128, %v4136
    %v4140 = vunpack.c.l.s4 1934713408
    %v4141 = vunpack.c.0.s8 %v4140
    %v4142 = vlaneseq
    %v4143 = vshrl.u32 %v4142, 7
    %v4144 = vsub.s32 %v4141, %v4143
    %v4145 = vrot.slane %v4137, %v4144
    %v4147 = vunpack.c.l.s4 1934713408
    %v4148 = vunpack.c.0.s8 %v4147
    %v4149 = vlaneseq
    %v4150 = vshrl.u32 %v4149, 7
    %v4151 = vsub.s32 %v4148, %v4150
    %v4152 = vrot.slane %v4138, %v4151
    %v4153 = vcombine.high %v4145, 0
    %v4154 = vcombine.high %v4152, 0
    %v4155 = vcombine.low %v3854, %v3882
    %v4157 = vunpack.c.l.s4 1983009808
    %v4158 = vunpack.c.0.s8 %v4157
    %v4159 = vlaneseq
    %v4160 = vshrl.u32 %v4159, 7
    %v4161 = vsub.s32 %v4158, %v4160
    %v4162 = vrot.slane %v4155, %v4161
    %v4163 = vcombine.low %v3868, %v3896
    %v4165 = vunpack.c.l.s4 1983009808
    %v4166 = vunpack.c.0.s8 %v4165
    %v4167 = vlaneseq
    %v4168 = vshrl.u32 %v4167, 7
    %v4169 = vsub.s32 %v4166, %v4168
    %v4170 = vrot.slane %v4163, %v4169
    %v4171 = vcombine.low %v4162, %v4170
    %v4172 = vcombine.high %v4162, %v4170
    %v4174 = vunpack.c.l.s4 1934713408
    %v4175 = vunpack.c.0.s8 %v4174
    %v4176 = vlaneseq
    %v4177 = vshrl.u32 %v4176, 7
    %v4178 = vsub.s32 %v4175, %v4177
    %v4179 = vrot.slane %v4171, %v4178
    %v4181 = vunpack.c.l.s4 1934713408
    %v4182 = vunpack.c.0.s8 %v4181
    %v4183 = vlaneseq
    %v4184 = vshrl.u32 %v4183, 7
    %v4185 = vsub.s32 %v4182, %v4184
    %v4186 = vrot.slane %v4172, %v4185
    %v4187 = vcombine.high %v4179, 0
    %v4188 = vcombine.high %v4186, 0
    %v4189 = vcombine.low %v3903, %v3931
    %v4191 = vunpack.c.l.s4 1983009808
    %v4192 = vunpack.c.0.s8 %v4191
    %v4193 = vlaneseq
    %v4194 = vshrl.u32 %v4193, 7
    %v4195 = vsub.s32 %v4192, %v4194
    %v4196 = vrot.slane %v4189, %v4195
    %v4197 = vcombine.low %v3917, %v3945
    %v4199 = vunpack.c.l.s4 1983009808
    %v4200 = vunpack.c.0.s8 %v4199
    %v4201 = vlaneseq
    %v4202 = vshrl.u32 %v4201, 7
    %v4203 = vsub.s32 %v4200, %v4202
    %v4204 = vrot.slane %v4197, %v4203
    %v4205 = vcombine.low %v4196, %v4204
    %v4206 = vcombine.high %v4196, %v4204
    %v4208 = vunpack.c.l.s4 1934713408
    %v4209 = vunpack.c.0.s8 %v4208
    %v4210 = vlaneseq
    %v4211 = vshrl.u32 %v4210, 7
    %v4212 = vsub.s32 %v4209, %v4211
    %v4213 = vrot.slane %v4205, %v4212
    %v4215 = vunpack.c.l.s4 1934713408
    %v4216 = vunpack.c.0.s8 %v4215
    %v4217 = vlaneseq
    %v4218 = vshrl.u32 %v4217, 7
    %v4219 = vsub.s32 %v4216, %v4218
    %v4220 = vrot.slane %v4206, %v4219
    %v4221 = vcombine.high %v4213, 0
    %v4222 = vcombine.high %v4220, 0
    %v4223 = vcombine.low %v3910, %v3938
    %v4225 = vunpack.c.l.s4 1983009808
    %v4226 = vunpack.c.0.s8 %v4225
    %v4227 = vlaneseq
    %v4228 = vshrl.u32 %v4227, 7
    %v4229 = vsub.s32 %v4226, %v4228
    %v4230 = vrot.slane %v4223, %v4229
    %v4231 = vcombine.low %v3924, %v3952
    %v4233 = vunpack.c.l.s4 1983009808
    %v4234 = vunpack.c.0.s8 %v4233
    %v4235 = vlaneseq
    %v4236 = vshrl.u32 %v4235, 7
    %v4237 = vsub.s32 %v4234, %v4236
    %v4238 = vrot.slane %v4231, %v4237
    %v4239 = vcombine.low %v4230, %v4238
    %v4240 = vcombine.high %v4230, %v4238
    %v4242 = vunpack.c.l.s4 1934713408
    %v4243 = vunpack.c.0.s8 %v4242
    %v4244 = vlaneseq
    %v4245 = vshrl.u32 %v4244, 7
    %v4246 = vsub.s32 %v4243, %v4245
    %v4247 = vrot.slane %v4239, %v4246
    %v4249 = vunpack.c.l.s4 1934713408
    %v4250 = vunpack.c.0.s8 %v4249
    %v4251 = vlaneseq
    %v4252 = vshrl.u32 %v4251, 7
    %v4253 = vsub.s32 %v4250, %v4252
    %v4254 = vrot.slane %v4240, %v4253
    %v4255 = vcombine.high %v4247, 0
    %v4256 = vcombine.high %v4254, 0
    %v4259 = vpack.i.b16 %v4043, %v4009
    %v4260 = vshrl.u32 %v4009, 16
    %v4261 = vshrl.u32 %v4043, 16
    %v4262 = vpack.i.b16 %v4261, %v4260
    %v4265 = vpack.i.b16 %v4051, %v4017
    %v4266 = vshrl.u32 %v4017, 16
    %v4267 = vshrl.u32 %v4051, 16
    %v4268 = vpack.i.b16 %v4267, %v4266
    %v4271 = vpack.i.b16 %v4050, %v4016
    %v4272 = vshrl.u32 %v4016, 16
    %v4273 = vshrl.u32 %v4050, 16
    %v4274 = vpack.i.b16 %v4273, %v4272
    %v4277 = vpack.i.b16 %v4052, %v4018
    %v4278 = vshrl.u32 %v4018, 16
    %v4279 = vshrl.u32 %v4052, 16
    %v4280 = vpack.i.b16 %v4279, %v4278
    %v4283 = vpack.i.b16 %v4179, %v4145
    %v4284 = vshrl.u32 %v4145, 16
    %v4285 = vshrl.u32 %v4179, 16
    %v4286 = vpack.i.b16 %v4285, %v4284
    %v4289 = vpack.i.b16 %v4187, %v4153
    %v4290 = vshrl.u32 %v4153, 16
    %v4291 = vshrl.u32 %v4187, 16
    %v4292 = vpack.i.b16 %v4291, %v4290
    %v4295 = vpack.i.b16 %v4186, %v4152
    %v4296 = vshrl.u32 %v4152, 16
    %v4297 = vshrl.u32 %v4186, 16
    %v4298 = vpack.i.b16 %v4297, %v4296
    %v4301 = vpack.i.b16 %v4188, %v4154
    %v4302 = vshrl.u32 %v4154, 16
    %v4303 = vshrl.u32 %v4188, 16
    %v4304 = vpack.i.b16 %v4303, %v4302
    %v4307 = vpack.i.b16 %v4111, %v4077
    %v4308 = vshrl.u32 %v4077, 16
    %v4309 = vshrl.u32 %v4111, 16
    %v4310 = vpack.i.b16 %v4309, %v4308
    %v4313 = vpack.i.b16 %v4119, %v4085
    %v4314 = vshrl.u32 %v4085, 16
    %v4315 = vshrl.u32 %v4119, 16
    %v4316 = vpack.i.b16 %v4315, %v4314
    %v4319 = vpack.i.b16 %v4118, %v4084
    %v4320 = vshrl.u32 %v4084, 16
    %v4321 = vshrl.u32 %v4118, 16
    %v4322 = vpack.i.b16 %v4321, %v4320
    %v4325 = vpack.i.b16 %v4120, %v4086
    %v4326 = vshrl.u32 %v4086, 16
    %v4327 = vshrl.u32 %v4120, 16
    %v4328 = vpack.i.b16 %v4327, %v4326
    %v4331 = vpack.i.b16 %v4247, %v4213
    %v4332 = vshrl.u32 %v4213, 16
    %v4333 = vshrl.u32 %v4247, 16
    %v4334 = vpack.i.b16 %v4333, %v4332
    %v4337 = vpack.i.b16 %v4255, %v4221
    %v4338 = vshrl.u32 %v4221, 16
    %v4339 = vshrl.u32 %v4255, 16
    %v4340 = vpack.i.b16 %v4339, %v4338
    %v4343 = vpack.i.b16 %v4254, %v4220
    %v4344 = vshrl.u32 %v4220, 16
    %v4345 = vshrl.u32 %v4254, 16
    %v4346 = vpack.i.b16 %v4345, %v4344
    %v4349 = vpack.i.b16 %v4256, %v4222
    %v4350 = vshrl.u32 %v4222, 16
    %v4351 = vshrl.u32 %v4256, 16
    %v4352 = vpack.i.b16 %v4351, %v4350
    %v4353 = vunpack.c.l.b16 %v4259
    %v4354 = vunpack.c.l.b16 %v4307
    %v4355 = vpack.c.b16 %v4354, %v4353
    %v4356 = vunpack.c.l.b16 %v4262
    %v4357 = vunpack.c.l.b16 %v4310
    %v4358 = vpack.c.b16 %v4357, %v4356
    %4359 = vrot.lane.b32.xlu0 %v4358, 16
    %v4360 = vpop.permute.xlu0 %4359
    %v4361 = vunpack.c.l.b16 %v4265
    %v4362 = vunpack.c.l.b16 %v4313
    %v4363 = vpack.c.b16 %v4362, %v4361
    %4364 = vrot.lane.b32.xlu0 %v4363, 32
    %v4365 = vpop.permute.xlu0 %4364
    %v4366 = vunpack.c.l.b16 %v4268
    %v4367 = vunpack.c.l.b16 %v4316
    %v4368 = vpack.c.b16 %v4367, %v4366
    %4369 = vrot.lane.b32.xlu0 %v4368, 48
    %v4370 = vpop.permute.xlu0 %4369
    %v4371 = vunpack.c.l.b16 %v4271
    %v4372 = vunpack.c.l.b16 %v4319
    %v4373 = vpack.c.b16 %v4372, %v4371
    %4374 = vrot.lane.b32.xlu0 %v4373, 64
    %v4375 = vpop.permute.xlu0 %4374
    %v4376 = vunpack.c.l.b16 %v4274
    %v4377 = vunpack.c.l.b16 %v4322
    %v4378 = vpack.c.b16 %v4377, %v4376
    %4379 = vrot.lane.b32.xlu0 %v4378, 80
    %v4380 = vpop.permute.xlu0 %4379
    %v4381 = vunpack.c.l.b16 %v4277
    %v4382 = vunpack.c.l.b16 %v4325
    %v4383 = vpack.c.b16 %v4382, %v4381
    %4384 = vrot.lane.b32.xlu0 %v4383, 96
    %v4385 = vpop.permute.xlu0 %4384
    %v4386 = vunpack.c.l.b16 %v4280
    %v4387 = vunpack.c.l.b16 %v4328
    %v4388 = vpack.c.b16 %v4387, %v4386
    %4389 = vrot.lane.b32.xlu0 %v4388, 112
    %v4390 = vpop.permute.xlu0 %4389
    %v4391 = vunpack.c.l.b16 %v4283
    %v4392 = vunpack.c.l.b16 %v4331
    %v4393 = vpack.c.b16 %v4392, %v4391
    %v4394 = vunpack.c.l.b16 %v4286
    %v4395 = vunpack.c.l.b16 %v4334
    %v4396 = vpack.c.b16 %v4395, %v4394
    %4397 = vrot.lane.b32.xlu0 %v4396, 16
    %v4398 = vpop.permute.xlu0 %4397
    %v4399 = vunpack.c.l.b16 %v4289
    %v4400 = vunpack.c.l.b16 %v4337
    %v4401 = vpack.c.b16 %v4400, %v4399
    %4402 = vrot.lane.b32.xlu0 %v4401, 32
    %v4403 = vpop.permute.xlu0 %4402
    %v4404 = vunpack.c.l.b16 %v4292
    %v4405 = vunpack.c.l.b16 %v4340
    %v4406 = vpack.c.b16 %v4405, %v4404
    %4407 = vrot.lane.b32.xlu0 %v4406, 48
    %v4408 = vpop.permute.xlu0 %4407
    %v4409 = vunpack.c.l.b16 %v4295
    %v4410 = vunpack.c.l.b16 %v4343
    %v4411 = vpack.c.b16 %v4410, %v4409
    %4412 = vrot.lane.b32.xlu0 %v4411, 64
    %v4413 = vpop.permute.xlu0 %4412
    %v4414 = vunpack.c.l.b16 %v4298
    %v4415 = vunpack.c.l.b16 %v4346
    %v4416 = vpack.c.b16 %v4415, %v4414
    %4417 = vrot.lane.b32.xlu0 %v4416, 80
    %v4418 = vpop.permute.xlu0 %4417
    %v4419 = vunpack.c.l.b16 %v4301
    %v4420 = vunpack.c.l.b16 %v4349
    %v4421 = vpack.c.b16 %v4420, %v4419
    %4422 = vrot.lane.b32.xlu0 %v4421, 96
    %v4423 = vpop.permute.xlu0 %4422
    %v4424 = vunpack.c.l.b16 %v4304
    %v4425 = vunpack.c.l.b16 %v4352
    %v4426 = vpack.c.b16 %v4425, %v4424
    %4427 = vrot.lane.b32.xlu0 %v4426, 112
    %v4428 = vpop.permute.xlu0 %4427
    %v4431 = vsel %vm508, %v4355, %v4360
    %v4433 = vsel %vm512, %v4431, %v4365
    %v4435 = vsel %vm515, %v4433, %v4370
    %v4437 = vsel %vm518, %v4435, %v4375
    %v4439 = vsel %vm521, %v4437, %v4380
    %v4441 = vsel %vm524, %v4439, %v4385
    %v4443 = vsel %vm527, %v4441, %v4390
    %v4446 = vsel %vm508, %v4393, %v4398
    %v4448 = vsel %vm512, %v4446, %v4403
    %v4450 = vsel %vm515, %v4448, %v4408
    %v4452 = vsel %vm518, %v4450, %v4413
    %v4454 = vsel %vm521, %v4452, %v4418
    %v4456 = vsel %vm524, %v4454, %v4423
    %v4458 = vsel %vm527, %v4456, %v4428
    %v4461 = vunpack.c.l.b16 %v4443
    %v4462 = vunpack.c.l.b16 %v4458
    %v4463 = vunpack.c.h.b16 %v4443
    %v4464 = vunpack.c.h.b16 %v4458
    %v4465 = vpack.c.b16 %v4462, %v4461
    %v4466 = vpack.c.b16 %v4464, %v4463
    %4469 = vst [vmem:[#allocation2 + $0xc0] sm:$0xff] %v4465
    %4470 = vst [vmem:[#allocation2 + $0xd0] sm:$0xff] %v4466
    %4471 = vrot.lane.b32.xlu0 %v3844, 127
    %v4472 = vpop.permute.xlu0 %4471
    %4473 = vrot.lane.b32.xlu0 %v3847, 127
    %v4474 = vpop.permute.xlu0 %4473
    %4475 = vrot.lane.b32.xlu0 %v3851, 127
    %v4476 = vpop.permute.xlu0 %4475
    %4477 = vrot.lane.b32.xlu0 %v3854, 127
    %v4478 = vpop.permute.xlu0 %4477
    %4479 = vrot.lane.b32.xlu0 %v3858, 127
    %v4480 = vpop.permute.xlu0 %4479
    %4481 = vrot.lane.b32.xlu0 %v3861, 127
    %v4482 = vpop.permute.xlu0 %4481
    %4483 = vrot.lane.b32.xlu0 %v3865, 127
    %v4484 = vpop.permute.xlu0 %4483
    %4485 = vrot.lane.b32.xlu0 %v3868, 127
    %v4486 = vpop.permute.xlu0 %4485
    %4487 = vrot.lane.b32.xlu0 %v3872, 127
    %v4488 = vpop.permute.xlu0 %4487
    %4489 = vrot.lane.b32.xlu0 %v3875, 127
    %v4490 = vpop.permute.xlu0 %4489
    %4491 = vrot.lane.b32.xlu0 %v3879, 127
    %v4492 = vpop.permute.xlu0 %4491
    %4493 = vrot.lane.b32.xlu0 %v3882, 127
    %v4494 = vpop.permute.xlu0 %4493
    %4495 = vrot.lane.b32.xlu0 %v3886, 127
    %v4496 = vpop.permute.xlu0 %4495
    %4497 = vrot.lane.b32.xlu0 %v3889, 127
    %v4498 = vpop.permute.xlu0 %4497
    %4499 = vrot.lane.b32.xlu0 %v3893, 127
    %v4500 = vpop.permute.xlu0 %4499
    %4501 = vrot.lane.b32.xlu0 %v3896, 127
    %v4502 = vpop.permute.xlu0 %4501
    %4503 = vrot.lane.b32.xlu0 %v3900, 127
    %v4504 = vpop.permute.xlu0 %4503
    %4505 = vrot.lane.b32.xlu0 %v3903, 127
    %v4506 = vpop.permute.xlu0 %4505
    %4507 = vrot.lane.b32.xlu0 %v3907, 127
    %v4508 = vpop.permute.xlu0 %4507
    %4509 = vrot.lane.b32.xlu0 %v3910, 127
    %v4510 = vpop.permute.xlu0 %4509
    %4511 = vrot.lane.b32.xlu0 %v3914, 127
    %v4512 = vpop.permute.xlu0 %4511
    %4513 = vrot.lane.b32.xlu0 %v3917, 127
    %v4514 = vpop.permute.xlu0 %4513
    %4515 = vrot.lane.b32.xlu0 %v3921, 127
    %v4516 = vpop.permute.xlu0 %4515
    %4517 = vrot.lane.b32.xlu0 %v3924, 127
    %v4518 = vpop.permute.xlu0 %4517
    %4519 = vrot.lane.b32.xlu0 %v3928, 127
    %v4520 = vpop.permute.xlu0 %4519
    %4521 = vrot.lane.b32.xlu0 %v3931, 127
    %v4522 = vpop.permute.xlu0 %4521
    %4523 = vrot.lane.b32.xlu0 %v3935, 127
    %v4524 = vpop.permute.xlu0 %4523
    %4525 = vrot.lane.b32.xlu0 %v3938, 127
    %v4526 = vpop.permute.xlu0 %4525
    %4527 = vrot.lane.b32.xlu0 %v3942, 127
    %v4528 = vpop.permute.xlu0 %4527
    %4529 = vrot.lane.b32.xlu0 %v3945, 127
    %v4530 = vpop.permute.xlu0 %4529
    %4531 = vrot.lane.b32.xlu0 %v3949, 127
    %v4532 = vpop.permute.xlu0 %4531
    %4533 = vrot.lane.b32.xlu0 %v3952, 127
    %v4534 = vpop.permute.xlu0 %4533
    %v4567 = vcombine.low %v4472, %v4488
    %v4569 = vunpack.c.l.s4 1983009808
    %v4570 = vunpack.c.0.s8 %v4569
    %v4571 = vlaneseq
    %v4572 = vshrl.u32 %v4571, 7
    %v4573 = vsub.s32 %v4570, %v4572
    %v4574 = vrot.slane %v4567, %v4573
    %v4575 = vcombine.low %v4480, %v4496
    %v4577 = vunpack.c.l.s4 1983009808
    %v4578 = vunpack.c.0.s8 %v4577
    %v4579 = vlaneseq
    %v4580 = vshrl.u32 %v4579, 7
    %v4581 = vsub.s32 %v4578, %v4580
    %v4582 = vrot.slane %v4575, %v4581
    %v4583 = vcombine.low %v4574, %v4582
    %v4584 = vcombine.high %v4574, %v4582
    %v4586 = vunpack.c.l.s4 1934713408
    %v4587 = vunpack.c.0.s8 %v4586
    %v4588 = vlaneseq
    %v4589 = vshrl.u32 %v4588, 7
    %v4590 = vsub.s32 %v4587, %v4589
    %v4591 = vrot.slane %v4583, %v4590
    %v4593 = vunpack.c.l.s4 1934713408
    %v4594 = vunpack.c.0.s8 %v4593
    %v4595 = vlaneseq
    %v4596 = vshrl.u32 %v4595, 7
    %v4597 = vsub.s32 %v4594, %v4596
    %v4598 = vrot.slane %v4584, %v4597
    %v4599 = vcombine.high %v4591, 0
    %v4600 = vcombine.high %v4598, 0
    %v4601 = vcombine.low %v4476, %v4492
    %v4603 = vunpack.c.l.s4 1983009808
    %v4604 = vunpack.c.0.s8 %v4603
    %v4605 = vlaneseq
    %v4606 = vshrl.u32 %v4605, 7
    %v4607 = vsub.s32 %v4604, %v4606
    %v4608 = vrot.slane %v4601, %v4607
    %v4609 = vcombine.low %v4484, %v4500
    %v4611 = vunpack.c.l.s4 1983009808
    %v4612 = vunpack.c.0.s8 %v4611
    %v4613 = vlaneseq
    %v4614 = vshrl.u32 %v4613, 7
    %v4615 = vsub.s32 %v4612, %v4614
    %v4616 = vrot.slane %v4609, %v4615
    %v4617 = vcombine.low %v4608, %v4616
    %v4618 = vcombine.high %v4608, %v4616
    %v4620 = vunpack.c.l.s4 1934713408
    %v4621 = vunpack.c.0.s8 %v4620
    %v4622 = vlaneseq
    %v4623 = vshrl.u32 %v4622, 7
    %v4624 = vsub.s32 %v4621, %v4623
    %v4625 = vrot.slane %v4617, %v4624
    %v4627 = vunpack.c.l.s4 1934713408
    %v4628 = vunpack.c.0.s8 %v4627
    %v4629 = vlaneseq
    %v4630 = vshrl.u32 %v4629, 7
    %v4631 = vsub.s32 %v4628, %v4630
    %v4632 = vrot.slane %v4618, %v4631
    %v4633 = vcombine.high %v4625, 0
    %v4634 = vcombine.high %v4632, 0
    %v4635 = vcombine.low %v4504, %v4520
    %v4637 = vunpack.c.l.s4 1983009808
    %v4638 = vunpack.c.0.s8 %v4637
    %v4639 = vlaneseq
    %v4640 = vshrl.u32 %v4639, 7
    %v4641 = vsub.s32 %v4638, %v4640
    %v4642 = vrot.slane %v4635, %v4641
    %v4643 = vcombine.low %v4512, %v4528
    %v4645 = vunpack.c.l.s4 1983009808
    %v4646 = vunpack.c.0.s8 %v4645
    %v4647 = vlaneseq
    %v4648 = vshrl.u32 %v4647, 7
    %v4649 = vsub.s32 %v4646, %v4648
    %v4650 = vrot.slane %v4643, %v4649
    %v4651 = vcombine.low %v4642, %v4650
    %v4652 = vcombine.high %v4642, %v4650
    %v4654 = vunpack.c.l.s4 1934713408
    %v4655 = vunpack.c.0.s8 %v4654
    %v4656 = vlaneseq
    %v4657 = vshrl.u32 %v4656, 7
    %v4658 = vsub.s32 %v4655, %v4657
    %v4659 = vrot.slane %v4651, %v4658
    %v4661 = vunpack.c.l.s4 1934713408
    %v4662 = vunpack.c.0.s8 %v4661
    %v4663 = vlaneseq
    %v4664 = vshrl.u32 %v4663, 7
    %v4665 = vsub.s32 %v4662, %v4664
    %v4666 = vrot.slane %v4652, %v4665
    %v4667 = vcombine.high %v4659, 0
    %v4668 = vcombine.high %v4666, 0
    %v4669 = vcombine.low %v4508, %v4524
    %v4671 = vunpack.c.l.s4 1983009808
    %v4672 = vunpack.c.0.s8 %v4671
    %v4673 = vlaneseq
    %v4674 = vshrl.u32 %v4673, 7
    %v4675 = vsub.s32 %v4672, %v4674
    %v4676 = vrot.slane %v4669, %v4675
    %v4677 = vcombine.low %v4516, %v4532
    %v4679 = vunpack.c.l.s4 1983009808
    %v4680 = vunpack.c.0.s8 %v4679
    %v4681 = vlaneseq
    %v4682 = vshrl.u32 %v4681, 7
    %v4683 = vsub.s32 %v4680, %v4682
    %v4684 = vrot.slane %v4677, %v4683
    %v4685 = vcombine.low %v4676, %v4684
    %v4686 = vcombine.high %v4676, %v4684
    %v4688 = vunpack.c.l.s4 1934713408
    %v4689 = vunpack.c.0.s8 %v4688
    %v4690 = vlaneseq
    %v4691 = vshrl.u32 %v4690, 7
    %v4692 = vsub.s32 %v4689, %v4691
    %v4693 = vrot.slane %v4685, %v4692
    %v4695 = vunpack.c.l.s4 1934713408
    %v4696 = vunpack.c.0.s8 %v4695
    %v4697 = vlaneseq
    %v4698 = vshrl.u32 %v4697, 7
    %v4699 = vsub.s32 %v4696, %v4698
    %v4700 = vrot.slane %v4686, %v4699
    %v4701 = vcombine.high %v4693, 0
    %v4702 = vcombine.high %v4700, 0
    %v4703 = vcombine.low %v4474, %v4490
    %v4705 = vunpack.c.l.s4 1983009808
    %v4706 = vunpack.c.0.s8 %v4705
    %v4707 = vlaneseq
    %v4708 = vshrl.u32 %v4707, 7
    %v4709 = vsub.s32 %v4706, %v4708
    %v4710 = vrot.slane %v4703, %v4709
    %v4711 = vcombine.low %v4482, %v4498
    %v4713 = vunpack.c.l.s4 1983009808
    %v4714 = vunpack.c.0.s8 %v4713
    %v4715 = vlaneseq
    %v4716 = vshrl.u32 %v4715, 7
    %v4717 = vsub.s32 %v4714, %v4716
    %v4718 = vrot.slane %v4711, %v4717
    %v4719 = vcombine.low %v4710, %v4718
    %v4720 = vcombine.high %v4710, %v4718
    %v4722 = vunpack.c.l.s4 1934713408
    %v4723 = vunpack.c.0.s8 %v4722
    %v4724 = vlaneseq
    %v4725 = vshrl.u32 %v4724, 7
    %v4726 = vsub.s32 %v4723, %v4725
    %v4727 = vrot.slane %v4719, %v4726
    %v4729 = vunpack.c.l.s4 1934713408
    %v4730 = vunpack.c.0.s8 %v4729
    %v4731 = vlaneseq
    %v4732 = vshrl.u32 %v4731, 7
    %v4733 = vsub.s32 %v4730, %v4732
    %v4734 = vrot.slane %v4720, %v4733
    %v4735 = vcombine.high %v4727, 0
    %v4736 = vcombine.high %v4734, 0
    %v4737 = vcombine.low %v4478, %v4494
    %v4739 = vunpack.c.l.s4 1983009808
    %v4740 = vunpack.c.0.s8 %v4739
    %v4741 = vlaneseq
    %v4742 = vshrl.u32 %v4741, 7
    %v4743 = vsub.s32 %v4740, %v4742
    %v4744 = vrot.slane %v4737, %v4743
    %v4745 = vcombine.low %v4486, %v4502
    %v4747 = vunpack.c.l.s4 1983009808
    %v4748 = vunpack.c.0.s8 %v4747
    %v4749 = vlaneseq
    %v4750 = vshrl.u32 %v4749, 7
    %v4751 = vsub.s32 %v4748, %v4750
    %v4752 = vrot.slane %v4745, %v4751
    %v4753 = vcombine.low %v4744, %v4752
    %v4754 = vcombine.high %v4744, %v4752
    %v4756 = vunpack.c.l.s4 1934713408
    %v4757 = vunpack.c.0.s8 %v4756
    %v4758 = vlaneseq
    %v4759 = vshrl.u32 %v4758, 7
    %v4760 = vsub.s32 %v4757, %v4759
    %v4761 = vrot.slane %v4753, %v4760
    %v4763 = vunpack.c.l.s4 1934713408
    %v4764 = vunpack.c.0.s8 %v4763
    %v4765 = vlaneseq
    %v4766 = vshrl.u32 %v4765, 7
    %v4767 = vsub.s32 %v4764, %v4766
    %v4768 = vrot.slane %v4754, %v4767
    %v4769 = vcombine.high %v4761, 0
    %v4770 = vcombine.high %v4768, 0
    %v4771 = vcombine.low %v4506, %v4522
    %v4773 = vunpack.c.l.s4 1983009808
    %v4774 = vunpack.c.0.s8 %v4773
    %v4775 = vlaneseq
    %v4776 = vshrl.u32 %v4775, 7
    %v4777 = vsub.s32 %v4774, %v4776
    %v4778 = vrot.slane %v4771, %v4777
    %v4779 = vcombine.low %v4514, %v4530
    %v4781 = vunpack.c.l.s4 1983009808
    %v4782 = vunpack.c.0.s8 %v4781
    %v4783 = vlaneseq
    %v4784 = vshrl.u32 %v4783, 7
    %v4785 = vsub.s32 %v4782, %v4784
    %v4786 = vrot.slane %v4779, %v4785
    %v4787 = vcombine.low %v4778, %v4786
    %v4788 = vcombine.high %v4778, %v4786
    %v4790 = vunpack.c.l.s4 1934713408
    %v4791 = vunpack.c.0.s8 %v4790
    %v4792 = vlaneseq
    %v4793 = vshrl.u32 %v4792, 7
    %v4794 = vsub.s32 %v4791, %v4793
    %v4795 = vrot.slane %v4787, %v4794
    %v4797 = vunpack.c.l.s4 1934713408
    %v4798 = vunpack.c.0.s8 %v4797
    %v4799 = vlaneseq
    %v4800 = vshrl.u32 %v4799, 7
    %v4801 = vsub.s32 %v4798, %v4800
    %v4802 = vrot.slane %v4788, %v4801
    %v4803 = vcombine.high %v4795, 0
    %v4804 = vcombine.high %v4802, 0
    %v4805 = vcombine.low %v4510, %v4526
    %v4807 = vunpack.c.l.s4 1983009808
    %v4808 = vunpack.c.0.s8 %v4807
    %v4809 = vlaneseq
    %v4810 = vshrl.u32 %v4809, 7
    %v4811 = vsub.s32 %v4808, %v4810
    %v4812 = vrot.slane %v4805, %v4811
    %v4813 = vcombine.low %v4518, %v4534
    %v4815 = vunpack.c.l.s4 1983009808
    %v4816 = vunpack.c.0.s8 %v4815
    %v4817 = vlaneseq
    %v4818 = vshrl.u32 %v4817, 7
    %v4819 = vsub.s32 %v4816, %v4818
    %v4820 = vrot.slane %v4813, %v4819
    %v4821 = vcombine.low %v4812, %v4820
    %v4822 = vcombine.high %v4812, %v4820
    %v4824 = vunpack.c.l.s4 1934713408
    %v4825 = vunpack.c.0.s8 %v4824
    %v4826 = vlaneseq
    %v4827 = vshrl.u32 %v4826, 7
    %v4828 = vsub.s32 %v4825, %v4827
    %v4829 = vrot.slane %v4821, %v4828
    %v4831 = vunpack.c.l.s4 1934713408
    %v4832 = vunpack.c.0.s8 %v4831
    %v4833 = vlaneseq
    %v4834 = vshrl.u32 %v4833, 7
    %v4835 = vsub.s32 %v4832, %v4834
    %v4836 = vrot.slane %v4822, %v4835
    %v4837 = vcombine.high %v4829, 0
    %v4838 = vcombine.high %v4836, 0
    %v4841 = vpack.i.b16 %v4625, %v4591
    %v4842 = vshrl.u32 %v4591, 16
    %v4843 = vshrl.u32 %v4625, 16
    %v4844 = vpack.i.b16 %v4843, %v4842
    %v4847 = vpack.i.b16 %v4633, %v4599
    %v4848 = vshrl.u32 %v4599, 16
    %v4849 = vshrl.u32 %v4633, 16
    %v4850 = vpack.i.b16 %v4849, %v4848
    %v4853 = vpack.i.b16 %v4632, %v4598
    %v4854 = vshrl.u32 %v4598, 16
    %v4855 = vshrl.u32 %v4632, 16
    %v4856 = vpack.i.b16 %v4855, %v4854
    %v4859 = vpack.i.b16 %v4634, %v4600
    %v4860 = vshrl.u32 %v4600, 16
    %v4861 = vshrl.u32 %v4634, 16
    %v4862 = vpack.i.b16 %v4861, %v4860
    %v4865 = vpack.i.b16 %v4761, %v4727
    %v4866 = vshrl.u32 %v4727, 16
    %v4867 = vshrl.u32 %v4761, 16
    %v4868 = vpack.i.b16 %v4867, %v4866
    %v4871 = vpack.i.b16 %v4769, %v4735
    %v4872 = vshrl.u32 %v4735, 16
    %v4873 = vshrl.u32 %v4769, 16
    %v4874 = vpack.i.b16 %v4873, %v4872
    %v4877 = vpack.i.b16 %v4768, %v4734
    %v4878 = vshrl.u32 %v4734, 16
    %v4879 = vshrl.u32 %v4768, 16
    %v4880 = vpack.i.b16 %v4879, %v4878
    %v4883 = vpack.i.b16 %v4770, %v4736
    %v4884 = vshrl.u32 %v4736, 16
    %v4885 = vshrl.u32 %v4770, 16
    %v4886 = vpack.i.b16 %v4885, %v4884
    %v4889 = vpack.i.b16 %v4693, %v4659
    %v4890 = vshrl.u32 %v4659, 16
    %v4891 = vshrl.u32 %v4693, 16
    %v4892 = vpack.i.b16 %v4891, %v4890
    %v4895 = vpack.i.b16 %v4701, %v4667
    %v4896 = vshrl.u32 %v4667, 16
    %v4897 = vshrl.u32 %v4701, 16
    %v4898 = vpack.i.b16 %v4897, %v4896
    %v4901 = vpack.i.b16 %v4700, %v4666
    %v4902 = vshrl.u32 %v4666, 16
    %v4903 = vshrl.u32 %v4700, 16
    %v4904 = vpack.i.b16 %v4903, %v4902
    %v4907 = vpack.i.b16 %v4702, %v4668
    %v4908 = vshrl.u32 %v4668, 16
    %v4909 = vshrl.u32 %v4702, 16
    %v4910 = vpack.i.b16 %v4909, %v4908
    %v4913 = vpack.i.b16 %v4829, %v4795
    %v4914 = vshrl.u32 %v4795, 16
    %v4915 = vshrl.u32 %v4829, 16
    %v4916 = vpack.i.b16 %v4915, %v4914
    %v4919 = vpack.i.b16 %v4837, %v4803
    %v4920 = vshrl.u32 %v4803, 16
    %v4921 = vshrl.u32 %v4837, 16
    %v4922 = vpack.i.b16 %v4921, %v4920
    %v4925 = vpack.i.b16 %v4836, %v4802
    %v4926 = vshrl.u32 %v4802, 16
    %v4927 = vshrl.u32 %v4836, 16
    %v4928 = vpack.i.b16 %v4927, %v4926
    %v4931 = vpack.i.b16 %v4838, %v4804
    %v4932 = vshrl.u32 %v4804, 16
    %v4933 = vshrl.u32 %v4838, 16
    %v4934 = vpack.i.b16 %v4933, %v4932
    %v4935 = vunpack.c.l.b16 %v4841
    %v4936 = vunpack.c.l.b16 %v4889
    %v4937 = vpack.c.b16 %v4936, %v4935
    %v4938 = vunpack.c.l.b16 %v4844
    %v4939 = vunpack.c.l.b16 %v4892
    %v4940 = vpack.c.b16 %v4939, %v4938
    %4941 = vrot.lane.b32.xlu0 %v4940, 16
    %v4942 = vpop.permute.xlu0 %4941
    %v4943 = vunpack.c.l.b16 %v4847
    %v4944 = vunpack.c.l.b16 %v4895
    %v4945 = vpack.c.b16 %v4944, %v4943
    %4946 = vrot.lane.b32.xlu0 %v4945, 32
    %v4947 = vpop.permute.xlu0 %4946
    %v4948 = vunpack.c.l.b16 %v4850
    %v4949 = vunpack.c.l.b16 %v4898
    %v4950 = vpack.c.b16 %v4949, %v4948
    %4951 = vrot.lane.b32.xlu0 %v4950, 48
    %v4952 = vpop.permute.xlu0 %4951
    %v4953 = vunpack.c.l.b16 %v4853
    %v4954 = vunpack.c.l.b16 %v4901
    %v4955 = vpack.c.b16 %v4954, %v4953
    %4956 = vrot.lane.b32.xlu0 %v4955, 64
    %v4957 = vpop.permute.xlu0 %4956
    %v4958 = vunpack.c.l.b16 %v4856
    %v4959 = vunpack.c.l.b16 %v4904
    %v4960 = vpack.c.b16 %v4959, %v4958
    %4961 = vrot.lane.b32.xlu0 %v4960, 80
    %v4962 = vpop.permute.xlu0 %4961
    %v4963 = vunpack.c.l.b16 %v4859
    %v4964 = vunpack.c.l.b16 %v4907
    %v4965 = vpack.c.b16 %v4964, %v4963
    %4966 = vrot.lane.b32.xlu0 %v4965, 96
    %v4967 = vpop.permute.xlu0 %4966
    %v4968 = vunpack.c.l.b16 %v4862
    %v4969 = vunpack.c.l.b16 %v4910
    %v4970 = vpack.c.b16 %v4969, %v4968
    %4971 = vrot.lane.b32.xlu0 %v4970, 112
    %v4972 = vpop.permute.xlu0 %4971
    %v4973 = vunpack.c.l.b16 %v4865
    %v4974 = vunpack.c.l.b16 %v4913
    %v4975 = vpack.c.b16 %v4974, %v4973
    %v4976 = vunpack.c.l.b16 %v4868
    %v4977 = vunpack.c.l.b16 %v4916
    %v4978 = vpack.c.b16 %v4977, %v4976
    %4979 = vrot.lane.b32.xlu0 %v4978, 16
    %v4980 = vpop.permute.xlu0 %4979
    %v4981 = vunpack.c.l.b16 %v4871
    %v4982 = vunpack.c.l.b16 %v4919
    %v4983 = vpack.c.b16 %v4982, %v4981
    %4984 = vrot.lane.b32.xlu0 %v4983, 32
    %v4985 = vpop.permute.xlu0 %4984
    %v4986 = vunpack.c.l.b16 %v4874
    %v4987 = vunpack.c.l.b16 %v4922
    %v4988 = vpack.c.b16 %v4987, %v4986
    %4989 = vrot.lane.b32.xlu0 %v4988, 48
    %v4990 = vpop.permute.xlu0 %4989
    %v4991 = vunpack.c.l.b16 %v4877
    %v4992 = vunpack.c.l.b16 %v4925
    %v4993 = vpack.c.b16 %v4992, %v4991
    %4994 = vrot.lane.b32.xlu0 %v4993, 64
    %v4995 = vpop.permute.xlu0 %4994
    %v4996 = vunpack.c.l.b16 %v4880
    %v4997 = vunpack.c.l.b16 %v4928
    %v4998 = vpack.c.b16 %v4997, %v4996
    %4999 = vrot.lane.b32.xlu0 %v4998, 80
    %v5000 = vpop.permute.xlu0 %4999
    %v5001 = vunpack.c.l.b16 %v4883
    %v5002 = vunpack.c.l.b16 %v4931
    %v5003 = vpack.c.b16 %v5002, %v5001
    %5004 = vrot.lane.b32.xlu0 %v5003, 96
    %v5005 = vpop.permute.xlu0 %5004
    %v5006 = vunpack.c.l.b16 %v4886
    %v5007 = vunpack.c.l.b16 %v4934
    %v5008 = vpack.c.b16 %v5007, %v5006
    %5009 = vrot.lane.b32.xlu0 %v5008, 112
    %v5010 = vpop.permute.xlu0 %5009
    %v5013 = vsel %vm508, %v4937, %v4942
    %v5015 = vsel %vm512, %v5013, %v4947
    %v5017 = vsel %vm515, %v5015, %v4952
    %v5019 = vsel %vm518, %v5017, %v4957
    %v5021 = vsel %vm521, %v5019, %v4962
    %v5023 = vsel %vm524, %v5021, %v4967
    %v5025 = vsel %vm527, %v5023, %v4972
    %v5028 = vsel %vm508, %v4975, %v4980
    %v5030 = vsel %vm512, %v5028, %v4985
    %v5032 = vsel %vm515, %v5030, %v4990
    %v5034 = vsel %vm518, %v5032, %v4995
    %v5036 = vsel %vm521, %v5034, %v5000
    %v5038 = vsel %vm524, %v5036, %v5005
    %v5040 = vsel %vm527, %v5038, %v5010
    %v5043 = vunpack.c.l.b16 %v5025
    %v5044 = vunpack.c.l.b16 %v5040
    %v5045 = vunpack.c.h.b16 %v5025
    %v5046 = vunpack.c.h.b16 %v5040
    %v5047 = vpack.c.b16 %v5044, %v5043
    %v5048 = vpack.c.b16 %v5046, %v5045
    %5051 = vst [vmem:[#allocation2 + $0xe0] sm:$0xff] %v5047
    %5052 = vst [vmem:[#allocation2 + $0xf0] sm:$0xff] %v5048
    %5053 = vrot.lane.b32.xlu0 %v3844, 126
    %v5054 = vpop.permute.xlu0 %5053
    %5055 = vrot.lane.b32.xlu0 %v3847, 126
    %v5056 = vpop.permute.xlu0 %5055
    %5057 = vrot.lane.b32.xlu0 %v3851, 126
    %v5058 = vpop.permute.xlu0 %5057
    %5059 = vrot.lane.b32.xlu0 %v3854, 126
    %v5060 = vpop.permute.xlu0 %5059
    %5061 = vrot.lane.b32.xlu0 %v3858, 126
    %v5062 = vpop.permute.xlu0 %5061
    %5063 = vrot.lane.b32.xlu0 %v3861, 126
    %v5064 = vpop.permute.xlu0 %5063
    %5065 = vrot.lane.b32.xlu0 %v3865, 126
    %v5066 = vpop.permute.xlu0 %5065
    %5067 = vrot.lane.b32.xlu0 %v3868, 126
    %v5068 = vpop.permute.xlu0 %5067
    %5069 = vrot.lane.b32.xlu0 %v3872, 126
    %v5070 = vpop.permute.xlu0 %5069
    %5071 = vrot.lane.b32.xlu0 %v3875, 126
    %v5072 = vpop.permute.xlu0 %5071
    %5073 = vrot.lane.b32.xlu0 %v3879, 126
    %v5074 = vpop.permute.xlu0 %5073
    %5075 = vrot.lane.b32.xlu0 %v3882, 126
    %v5076 = vpop.permute.xlu0 %5075
    %5077 = vrot.lane.b32.xlu0 %v3886, 126
    %v5078 = vpop.permute.xlu0 %5077
    %5079 = vrot.lane.b32.xlu0 %v3889, 126
    %v5080 = vpop.permute.xlu0 %5079
    %5081 = vrot.lane.b32.xlu0 %v3893, 126
    %v5082 = vpop.permute.xlu0 %5081
    %5083 = vrot.lane.b32.xlu0 %v3896, 126
    %v5084 = vpop.permute.xlu0 %5083
    %5085 = vrot.lane.b32.xlu0 %v3900, 126
    %v5086 = vpop.permute.xlu0 %5085
    %5087 = vrot.lane.b32.xlu0 %v3903, 126
    %v5088 = vpop.permute.xlu0 %5087
    %5089 = vrot.lane.b32.xlu0 %v3907, 126
    %v5090 = vpop.permute.xlu0 %5089
    %5091 = vrot.lane.b32.xlu0 %v3910, 126
    %v5092 = vpop.permute.xlu0 %5091
    %5093 = vrot.lane.b32.xlu0 %v3914, 126
    %v5094 = vpop.permute.xlu0 %5093
    %5095 = vrot.lane.b32.xlu0 %v3917, 126
    %v5096 = vpop.permute.xlu0 %5095
    %5097 = vrot.lane.b32.xlu0 %v3921, 126
    %v5098 = vpop.permute.xlu0 %5097
    %5099 = vrot.lane.b32.xlu0 %v3924, 126
    %v5100 = vpop.permute.xlu0 %5099
    %5101 = vrot.lane.b32.xlu0 %v3928, 126
    %v5102 = vpop.permute.xlu0 %5101
    %5103 = vrot.lane.b32.xlu0 %v3931, 126
    %v5104 = vpop.permute.xlu0 %5103
    %5105 = vrot.lane.b32.xlu0 %v3935, 126
    %v5106 = vpop.permute.xlu0 %5105
    %5107 = vrot.lane.b32.xlu0 %v3938, 126
    %v5108 = vpop.permute.xlu0 %5107
    %5109 = vrot.lane.b32.xlu0 %v3942, 126
    %v5110 = vpop.permute.xlu0 %5109
    %5111 = vrot.lane.b32.xlu0 %v3945, 126
    %v5112 = vpop.permute.xlu0 %5111
    %5113 = vrot.lane.b32.xlu0 %v3949, 126
    %v5114 = vpop.permute.xlu0 %5113
    %5115 = vrot.lane.b32.xlu0 %v3952, 126
    %v5116 = vpop.permute.xlu0 %5115
    %v5149 = vcombine.low %v5054, %v5070
    %v5151 = vunpack.c.l.s4 1983009808
    %v5152 = vunpack.c.0.s8 %v5151
    %v5153 = vlaneseq
    %v5154 = vshrl.u32 %v5153, 7
    %v5155 = vsub.s32 %v5152, %v5154
    %v5156 = vrot.slane %v5149, %v5155
    %v5157 = vcombine.low %v5062, %v5078
    %v5159 = vunpack.c.l.s4 1983009808
    %v5160 = vunpack.c.0.s8 %v5159
    %v5161 = vlaneseq
    %v5162 = vshrl.u32 %v5161, 7
    %v5163 = vsub.s32 %v5160, %v5162
    %v5164 = vrot.slane %v5157, %v5163
    %v5165 = vcombine.low %v5156, %v5164
    %v5166 = vcombine.high %v5156, %v5164
    %v5168 = vunpack.c.l.s4 1934713408
    %v5169 = vunpack.c.0.s8 %v5168
    %v5170 = vlaneseq
    %v5171 = vshrl.u32 %v5170, 7
    %v5172 = vsub.s32 %v5169, %v5171
    %v5173 = vrot.slane %v5165, %v5172
    %v5175 = vunpack.c.l.s4 1934713408
    %v5176 = vunpack.c.0.s8 %v5175
    %v5177 = vlaneseq
    %v5178 = vshrl.u32 %v5177, 7
    %v5179 = vsub.s32 %v5176, %v5178
    %v5180 = vrot.slane %v5166, %v5179
    %v5181 = vcombine.high %v5173, 0
    %v5182 = vcombine.high %v5180, 0
    %v5183 = vcombine.low %v5058, %v5074
    %v5185 = vunpack.c.l.s4 1983009808
    %v5186 = vunpack.c.0.s8 %v5185
    %v5187 = vlaneseq
    %v5188 = vshrl.u32 %v5187, 7
    %v5189 = vsub.s32 %v5186, %v5188
    %v5190 = vrot.slane %v5183, %v5189
    %v5191 = vcombine.low %v5066, %v5082
    %v5193 = vunpack.c.l.s4 1983009808
    %v5194 = vunpack.c.0.s8 %v5193
    %v5195 = vlaneseq
    %v5196 = vshrl.u32 %v5195, 7
    %v5197 = vsub.s32 %v5194, %v5196
    %v5198 = vrot.slane %v5191, %v5197
    %v5199 = vcombine.low %v5190, %v5198
    %v5200 = vcombine.high %v5190, %v5198
    %v5202 = vunpack.c.l.s4 1934713408
    %v5203 = vunpack.c.0.s8 %v5202
    %v5204 = vlaneseq
    %v5205 = vshrl.u32 %v5204, 7
    %v5206 = vsub.s32 %v5203, %v5205
    %v5207 = vrot.slane %v5199, %v5206
    %v5209 = vunpack.c.l.s4 1934713408
    %v5210 = vunpack.c.0.s8 %v5209
    %v5211 = vlaneseq
    %v5212 = vshrl.u32 %v5211, 7
    %v5213 = vsub.s32 %v5210, %v5212
    %v5214 = vrot.slane %v5200, %v5213
    %v5215 = vcombine.high %v5207, 0
    %v5216 = vcombine.high %v5214, 0
    %v5217 = vcombine.low %v5086, %v5102
    %v5219 = vunpack.c.l.s4 1983009808
    %v5220 = vunpack.c.0.s8 %v5219
    %v5221 = vlaneseq
    %v5222 = vshrl.u32 %v5221, 7
    %v5223 = vsub.s32 %v5220, %v5222
    %v5224 = vrot.slane %v5217, %v5223
    %v5225 = vcombine.low %v5094, %v5110
    %v5227 = vunpack.c.l.s4 1983009808
    %v5228 = vunpack.c.0.s8 %v5227
    %v5229 = vlaneseq
    %v5230 = vshrl.u32 %v5229, 7
    %v5231 = vsub.s32 %v5228, %v5230
    %v5232 = vrot.slane %v5225, %v5231
    %v5233 = vcombine.low %v5224, %v5232
    %v5234 = vcombine.high %v5224, %v5232
    %v5236 = vunpack.c.l.s4 1934713408
    %v5237 = vunpack.c.0.s8 %v5236
    %v5238 = vlaneseq
    %v5239 = vshrl.u32 %v5238, 7
    %v5240 = vsub.s32 %v5237, %v5239
    %v5241 = vrot.slane %v5233, %v5240
    %v5243 = vunpack.c.l.s4 1934713408
    %v5244 = vunpack.c.0.s8 %v5243
    %v5245 = vlaneseq
    %v5246 = vshrl.u32 %v5245, 7
    %v5247 = vsub.s32 %v5244, %v5246
    %v5248 = vrot.slane %v5234, %v5247
    %v5249 = vcombine.high %v5241, 0
    %v5250 = vcombine.high %v5248, 0
    %v5251 = vcombine.low %v5090, %v5106
    %v5253 = vunpack.c.l.s4 1983009808
    %v5254 = vunpack.c.0.s8 %v5253
    %v5255 = vlaneseq
    %v5256 = vshrl.u32 %v5255, 7
    %v5257 = vsub.s32 %v5254, %v5256
    %v5258 = vrot.slane %v5251, %v5257
    %v5259 = vcombine.low %v5098, %v5114
    %v5261 = vunpack.c.l.s4 1983009808
    %v5262 = vunpack.c.0.s8 %v5261
    %v5263 = vlaneseq
    %v5264 = vshrl.u32 %v5263, 7
    %v5265 = vsub.s32 %v5262, %v5264
    %v5266 = vrot.slane %v5259, %v5265
    %v5267 = vcombine.low %v5258, %v5266
    %v5268 = vcombine.high %v5258, %v5266
    %v5270 = vunpack.c.l.s4 1934713408
    %v5271 = vunpack.c.0.s8 %v5270
    %v5272 = vlaneseq
    %v5273 = vshrl.u32 %v5272, 7
    %v5274 = vsub.s32 %v5271, %v5273
    %v5275 = vrot.slane %v5267, %v5274
    %v5277 = vunpack.c.l.s4 1934713408
    %v5278 = vunpack.c.0.s8 %v5277
    %v5279 = vlaneseq
    %v5280 = vshrl.u32 %v5279, 7
    %v5281 = vsub.s32 %v5278, %v5280
    %v5282 = vrot.slane %v5268, %v5281
    %v5283 = vcombine.high %v5275, 0
    %v5284 = vcombine.high %v5282, 0
    %v5285 = vcombine.low %v5056, %v5072
    %v5287 = vunpack.c.l.s4 1983009808
    %v5288 = vunpack.c.0.s8 %v5287
    %v5289 = vlaneseq
    %v5290 = vshrl.u32 %v5289, 7
    %v5291 = vsub.s32 %v5288, %v5290
    %v5292 = vrot.slane %v5285, %v5291
    %v5293 = vcombine.low %v5064, %v5080
    %v5295 = vunpack.c.l.s4 1983009808
    %v5296 = vunpack.c.0.s8 %v5295
    %v5297 = vlaneseq
    %v5298 = vshrl.u32 %v5297, 7
    %v5299 = vsub.s32 %v5296, %v5298
    %v5300 = vrot.slane %v5293, %v5299
    %v5301 = vcombine.low %v5292, %v5300
    %v5302 = vcombine.high %v5292, %v5300
    %v5304 = vunpack.c.l.s4 1934713408
    %v5305 = vunpack.c.0.s8 %v5304
    %v5306 = vlaneseq
    %v5307 = vshrl.u32 %v5306, 7
    %v5308 = vsub.s32 %v5305, %v5307
    %v5309 = vrot.slane %v5301, %v5308
    %v5311 = vunpack.c.l.s4 1934713408
    %v5312 = vunpack.c.0.s8 %v5311
    %v5313 = vlaneseq
    %v5314 = vshrl.u32 %v5313, 7
    %v5315 = vsub.s32 %v5312, %v5314
    %v5316 = vrot.slane %v5302, %v5315
    %v5317 = vcombine.high %v5309, 0
    %v5318 = vcombine.high %v5316, 0
    %v5319 = vcombine.low %v5060, %v5076
    %v5321 = vunpack.c.l.s4 1983009808
    %v5322 = vunpack.c.0.s8 %v5321
    %v5323 = vlaneseq
    %v5324 = vshrl.u32 %v5323, 7
    %v5325 = vsub.s32 %v5322, %v5324
    %v5326 = vrot.slane %v5319, %v5325
    %v5327 = vcombine.low %v5068, %v5084
    %v5329 = vunpack.c.l.s4 1983009808
    %v5330 = vunpack.c.0.s8 %v5329
    %v5331 = vlaneseq
    %v5332 = vshrl.u32 %v5331, 7
    %v5333 = vsub.s32 %v5330, %v5332
    %v5334 = vrot.slane %v5327, %v5333
    %v5335 = vcombine.low %v5326, %v5334
    %v5336 = vcombine.high %v5326, %v5334
    %v5338 = vunpack.c.l.s4 1934713408
    %v5339 = vunpack.c.0.s8 %v5338
    %v5340 = vlaneseq
    %v5341 = vshrl.u32 %v5340, 7
    %v5342 = vsub.s32 %v5339, %v5341
    %v5343 = vrot.slane %v5335, %v5342
    %v5345 = vunpack.c.l.s4 1934713408
    %v5346 = vunpack.c.0.s8 %v5345
    %v5347 = vlaneseq
    %v5348 = vshrl.u32 %v5347, 7
    %v5349 = vsub.s32 %v5346, %v5348
    %v5350 = vrot.slane %v5336, %v5349
    %v5351 = vcombine.high %v5343, 0
    %v5352 = vcombine.high %v5350, 0
    %v5353 = vcombine.low %v5088, %v5104
    %v5355 = vunpack.c.l.s4 1983009808
    %v5356 = vunpack.c.0.s8 %v5355
    %v5357 = vlaneseq
    %v5358 = vshrl.u32 %v5357, 7
    %v5359 = vsub.s32 %v5356, %v5358
    %v5360 = vrot.slane %v5353, %v5359
    %v5361 = vcombine.low %v5096, %v5112
    %v5363 = vunpack.c.l.s4 1983009808
    %v5364 = vunpack.c.0.s8 %v5363
    %v5365 = vlaneseq
    %v5366 = vshrl.u32 %v5365, 7
    %v5367 = vsub.s32 %v5364, %v5366
    %v5368 = vrot.slane %v5361, %v5367
    %v5369 = vcombine.low %v5360, %v5368
    %v5370 = vcombine.high %v5360, %v5368
    %v5372 = vunpack.c.l.s4 1934713408
    %v5373 = vunpack.c.0.s8 %v5372
    %v5374 = vlaneseq
    %v5375 = vshrl.u32 %v5374, 7
    %v5376 = vsub.s32 %v5373, %v5375
    %v5377 = vrot.slane %v5369, %v5376
    %v5379 = vunpack.c.l.s4 1934713408
    %v5380 = vunpack.c.0.s8 %v5379
    %v5381 = vlaneseq
    %v5382 = vshrl.u32 %v5381, 7
    %v5383 = vsub.s32 %v5380, %v5382
    %v5384 = vrot.slane %v5370, %v5383
    %v5385 = vcombine.high %v5377, 0
    %v5386 = vcombine.high %v5384, 0
    %v5387 = vcombine.low %v5092, %v5108
    %v5389 = vunpack.c.l.s4 1983009808
    %v5390 = vunpack.c.0.s8 %v5389
    %v5391 = vlaneseq
    %v5392 = vshrl.u32 %v5391, 7
    %v5393 = vsub.s32 %v5390, %v5392
    %v5394 = vrot.slane %v5387, %v5393
    %v5395 = vcombine.low %v5100, %v5116
    %v5397 = vunpack.c.l.s4 1983009808
    %v5398 = vunpack.c.0.s8 %v5397
    %v5399 = vlaneseq
    %v5400 = vshrl.u32 %v5399, 7
    %v5401 = vsub.s32 %v5398, %v5400
    %v5402 = vrot.slane %v5395, %v5401
    %v5403 = vcombine.low %v5394, %v5402
    %v5404 = vcombine.high %v5394, %v5402
    %v5406 = vunpack.c.l.s4 1934713408
    %v5407 = vunpack.c.0.s8 %v5406
    %v5408 = vlaneseq
    %v5409 = vshrl.u32 %v5408, 7
    %v5410 = vsub.s32 %v5407, %v5409
    %v5411 = vrot.slane %v5403, %v5410
    %v5413 = vunpack.c.l.s4 1934713408
    %v5414 = vunpack.c.0.s8 %v5413
    %v5415 = vlaneseq
    %v5416 = vshrl.u32 %v5415, 7
    %v5417 = vsub.s32 %v5414, %v5416
    %v5418 = vrot.slane %v5404, %v5417
    %v5419 = vcombine.high %v5411, 0
    %v5420 = vcombine.high %v5418, 0
    %v5423 = vpack.i.b16 %v5207, %v5173
    %v5424 = vshrl.u32 %v5173, 16
    %v5425 = vshrl.u32 %v5207, 16
    %v5426 = vpack.i.b16 %v5425, %v5424
    %v5429 = vpack.i.b16 %v5215, %v5181
    %v5430 = vshrl.u32 %v5181, 16
    %v5431 = vshrl.u32 %v5215, 16
    %v5432 = vpack.i.b16 %v5431, %v5430
    %v5435 = vpack.i.b16 %v5214, %v5180
    %v5436 = vshrl.u32 %v5180, 16
    %v5437 = vshrl.u32 %v5214, 16
    %v5438 = vpack.i.b16 %v5437, %v5436
    %v5441 = vpack.i.b16 %v5216, %v5182
    %v5442 = vshrl.u32 %v5182, 16
    %v5443 = vshrl.u32 %v5216, 16
    %v5444 = vpack.i.b16 %v5443, %v5442
    %v5447 = vpack.i.b16 %v5343, %v5309
    %v5448 = vshrl.u32 %v5309, 16
    %v5449 = vshrl.u32 %v5343, 16
    %v5450 = vpack.i.b16 %v5449, %v5448
    %v5453 = vpack.i.b16 %v5351, %v5317
    %v5454 = vshrl.u32 %v5317, 16
    %v5455 = vshrl.u32 %v5351, 16
    %v5456 = vpack.i.b16 %v5455, %v5454
    %v5459 = vpack.i.b16 %v5350, %v5316
    %v5460 = vshrl.u32 %v5316, 16
    %v5461 = vshrl.u32 %v5350, 16
    %v5462 = vpack.i.b16 %v5461, %v5460
    %v5465 = vpack.i.b16 %v5352, %v5318
    %v5466 = vshrl.u32 %v5318, 16
    %v5467 = vshrl.u32 %v5352, 16
    %v5468 = vpack.i.b16 %v5467, %v5466
    %v5471 = vpack.i.b16 %v5275, %v5241
    %v5472 = vshrl.u32 %v5241, 16
    %v5473 = vshrl.u32 %v5275, 16
    %v5474 = vpack.i.b16 %v5473, %v5472
    %v5477 = vpack.i.b16 %v5283, %v5249
    %v5478 = vshrl.u32 %v5249, 16
    %v5479 = vshrl.u32 %v5283, 16
    %v5480 = vpack.i.b16 %v5479, %v5478
    %v5483 = vpack.i.b16 %v5282, %v5248
    %v5484 = vshrl.u32 %v5248, 16
    %v5485 = vshrl.u32 %v5282, 16
    %v5486 = vpack.i.b16 %v5485, %v5484
    %v5489 = vpack.i.b16 %v5284, %v5250
    %v5490 = vshrl.u32 %v5250, 16
    %v5491 = vshrl.u32 %v5284, 16
    %v5492 = vpack.i.b16 %v5491, %v5490
    %v5495 = vpack.i.b16 %v5411, %v5377
    %v5496 = vshrl.u32 %v5377, 16
    %v5497 = vshrl.u32 %v5411, 16
    %v5498 = vpack.i.b16 %v5497, %v5496
    %v5501 = vpack.i.b16 %v5419, %v5385
    %v5502 = vshrl.u32 %v5385, 16
    %v5503 = vshrl.u32 %v5419, 16
    %v5504 = vpack.i.b16 %v5503, %v5502
    %v5507 = vpack.i.b16 %v5418, %v5384
    %v5508 = vshrl.u32 %v5384, 16
    %v5509 = vshrl.u32 %v5418, 16
    %v5510 = vpack.i.b16 %v5509, %v5508
    %v5513 = vpack.i.b16 %v5420, %v5386
    %v5514 = vshrl.u32 %v5386, 16
    %v5515 = vshrl.u32 %v5420, 16
    %v5516 = vpack.i.b16 %v5515, %v5514
    %v5517 = vunpack.c.l.b16 %v5423
    %v5518 = vunpack.c.l.b16 %v5471
    %v5519 = vpack.c.b16 %v5518, %v5517
    %v5520 = vunpack.c.l.b16 %v5426
    %v5521 = vunpack.c.l.b16 %v5474
    %v5522 = vpack.c.b16 %v5521, %v5520
    %5523 = vrot.lane.b32.xlu0 %v5522, 16
    %v5524 = vpop.permute.xlu0 %5523
    %v5525 = vunpack.c.l.b16 %v5429
    %v5526 = vunpack.c.l.b16 %v5477
    %v5527 = vpack.c.b16 %v5526, %v5525
    %5528 = vrot.lane.b32.xlu0 %v5527, 32
    %v5529 = vpop.permute.xlu0 %5528
    %v5530 = vunpack.c.l.b16 %v5432
    %v5531 = vunpack.c.l.b16 %v5480
    %v5532 = vpack.c.b16 %v5531, %v5530
    %5533 = vrot.lane.b32.xlu0 %v5532, 48
    %v5534 = vpop.permute.xlu0 %5533
    %v5535 = vunpack.c.l.b16 %v5435
    %v5536 = vunpack.c.l.b16 %v5483
    %v5537 = vpack.c.b16 %v5536, %v5535
    %5538 = vrot.lane.b32.xlu0 %v5537, 64
    %v5539 = vpop.permute.xlu0 %5538
    %v5540 = vunpack.c.l.b16 %v5438
    %v5541 = vunpack.c.l.b16 %v5486
    %v5542 = vpack.c.b16 %v5541, %v5540
    %5543 = vrot.lane.b32.xlu0 %v5542, 80
    %v5544 = vpop.permute.xlu0 %5543
    %v5545 = vunpack.c.l.b16 %v5441
    %v5546 = vunpack.c.l.b16 %v5489
    %v5547 = vpack.c.b16 %v5546, %v5545
    %5548 = vrot.lane.b32.xlu0 %v5547, 96
    %v5549 = vpop.permute.xlu0 %5548
    %v5550 = vunpack.c.l.b16 %v5444
    %v5551 = vunpack.c.l.b16 %v5492
    %v5552 = vpack.c.b16 %v5551, %v5550
    %5553 = vrot.lane.b32.xlu0 %v5552, 112
    %v5554 = vpop.permute.xlu0 %5553
    %v5555 = vunpack.c.l.b16 %v5447
    %v5556 = vunpack.c.l.b16 %v5495
    %v5557 = vpack.c.b16 %v5556, %v5555
    %v5558 = vunpack.c.l.b16 %v5450
    %v5559 = vunpack.c.l.b16 %v5498
    %v5560 = vpack.c.b16 %v5559, %v5558
    %5561 = vrot.lane.b32.xlu0 %v5560, 16
    %v5562 = vpop.permute.xlu0 %5561
    %v5563 = vunpack.c.l.b16 %v5453
    %v5564 = vunpack.c.l.b16 %v5501
    %v5565 = vpack.c.b16 %v5564, %v5563
    %5566 = vrot.lane.b32.xlu0 %v5565, 32
    %v5567 = vpop.permute.xlu0 %5566
    %v5568 = vunpack.c.l.b16 %v5456
    %v5569 = vunpack.c.l.b16 %v5504
    %v5570 = vpack.c.b16 %v5569, %v5568
    %5571 = vrot.lane.b32.xlu0 %v5570, 48
    %v5572 = vpop.permute.xlu0 %5571
    %v5573 = vunpack.c.l.b16 %v5459
    %v5574 = vunpack.c.l.b16 %v5507
    %v5575 = vpack.c.b16 %v5574, %v5573
    %5576 = vrot.lane.b32.xlu0 %v5575, 64
    %v5577 = vpop.permute.xlu0 %5576
    %v5578 = vunpack.c.l.b16 %v5462
    %v5579 = vunpack.c.l.b16 %v5510
    %v5580 = vpack.c.b16 %v5579, %v5578
    %5581 = vrot.lane.b32.xlu0 %v5580, 80
    %v5582 = vpop.permute.xlu0 %5581
    %v5583 = vunpack.c.l.b16 %v5465
    %v5584 = vunpack.c.l.b16 %v5513
    %v5585 = vpack.c.b16 %v5584, %v5583
    %5586 = vrot.lane.b32.xlu0 %v5585, 96
    %v5587 = vpop.permute.xlu0 %5586
    %v5588 = vunpack.c.l.b16 %v5468
    %v5589 = vunpack.c.l.b16 %v5516
    %v5590 = vpack.c.b16 %v5589, %v5588
    %5591 = vrot.lane.b32.xlu0 %v5590, 112
    %v5592 = vpop.permute.xlu0 %5591
    %v5595 = vsel %vm508, %v5519, %v5524
    %v5597 = vsel %vm512, %v5595, %v5529
    %v5599 = vsel %vm515, %v5597, %v5534
    %v5601 = vsel %vm518, %v5599, %v5539
    %v5603 = vsel %vm521, %v5601, %v5544
    %v5605 = vsel %vm524, %v5603, %v5549
    %v5607 = vsel %vm527, %v5605, %v5554
    %v5610 = vsel %vm508, %v5557, %v5562
    %v5612 = vsel %vm512, %v5610, %v5567
    %v5614 = vsel %vm515, %v5612, %v5572
    %v5616 = vsel %vm518, %v5614, %v5577
    %v5618 = vsel %vm521, %v5616, %v5582
    %v5620 = vsel %vm524, %v5618, %v5587
    %v5622 = vsel %vm527, %v5620, %v5592
    %v5625 = vunpack.c.l.b16 %v5607
    %v5626 = vunpack.c.l.b16 %v5622
    %v5627 = vunpack.c.h.b16 %v5607
    %v5628 = vunpack.c.h.b16 %v5622
    %v5629 = vpack.c.b16 %v5626, %v5625
    %v5630 = vpack.c.b16 %v5628, %v5627
    %5633 = vst [vmem:[#allocation2 + $0x100] sm:$0xff] %v5629
    %5634 = vst [vmem:[#allocation2 + $0x110] sm:$0xff] %v5630
    %s5635 = scalar_lea.vmem %s0, 192
    %v5636 = vld [vmem:[%s5635] sm:$0xf]
    %v5637 = vld [vmem:[%s5635 + $0x4] sm:$0xf]
    %v5638 = vld [vmem:[%s5635 + $0x8] sm:$0x1]
    %v5639 = vld [vmem:[%s5635 + $0xc] sm:$0xf]
    %v5640 = vld [vmem:[%s5635 + $0x10] sm:$0xf]
    %v5641 = vld [vmem:[%s5635 + $0x14] sm:$0x1]
    %v5642 = vld [vmem:[%s5635 + $0x18] sm:$0xf]
    %v5643 = vld [vmem:[%s5635 + $0x1c] sm:$0xf]
    %v5644 = vld [vmem:[%s5635 + $0x20] sm:$0x1]
    %v5645 = vld [vmem:[%s5635 + $0x24] sm:$0xf]
    %v5646 = vld [vmem:[%s5635 + $0x28] sm:$0xf]
    %v5647 = vld [vmem:[%s5635 + $0x2c] sm:$0x1]
    %v5648 = vld [vmem:[%s5635 + $0x30] sm:$0xf]
    %v5649 = vld [vmem:[%s5635 + $0x34] sm:$0xf]
    %v5650 = vld [vmem:[%s5635 + $0x38] sm:$0x1]
    %v5651 = vld [vmem:[%s5635 + $0x3c] sm:$0xf]
    %v5652 = vld [vmem:[%s5635 + $0x40] sm:$0xf]
    %v5653 = vld [vmem:[%s5635 + $0x44] sm:$0x1]
    %v5654 = vld [vmem:[%s5635 + $0x48] sm:$0xf]
    %v5655 = vld [vmem:[%s5635 + $0x4c] sm:$0xf]
    %v5656 = vld [vmem:[%s5635 + $0x50] sm:$0x1]
    %v5657 = vld [vmem:[%s5635 + $0x54] sm:$0xf]
    %v5658 = vld [vmem:[%s5635 + $0x58] sm:$0xf]
    %v5659 = vld [vmem:[%s5635 + $0x5c] sm:$0x1]
    %v5660 = vld [vmem:[%s5635 + $0x60] sm:$0xf]
    %v5661 = vld [vmem:[%s5635 + $0x64] sm:$0xf]
    %v5662 = vld [vmem:[%s5635 + $0x68] sm:$0x1]
    %v5663 = vld [vmem:[%s5635 + $0x6c] sm:$0xf]
    %v5664 = vld [vmem:[%s5635 + $0x70] sm:$0xf]
    %v5665 = vld [vmem:[%s5635 + $0x74] sm:$0x1]
    %v5666 = vld [vmem:[%s5635 + $0x78] sm:$0xf]
    %v5667 = vld [vmem:[%s5635 + $0x7c] sm:$0xf]
    %v5668 = vld [vmem:[%s5635 + $0x80] sm:$0x1]
    %v5669 = vld [vmem:[%s5635 + $0x84] sm:$0xf]
    %v5670 = vld [vmem:[%s5635 + $0x88] sm:$0xf]
    %v5671 = vld [vmem:[%s5635 + $0x8c] sm:$0x1]
    %v5672 = vld [vmem:[%s5635 + $0x90] sm:$0xf]
    %v5673 = vld [vmem:[%s5635 + $0x94] sm:$0xf]
    %v5674 = vld [vmem:[%s5635 + $0x98] sm:$0x1]
    %v5675 = vld [vmem:[%s5635 + $0x9c] sm:$0xf]
    %v5676 = vld [vmem:[%s5635 + $0xa0] sm:$0xf]
    %v5677 = vld [vmem:[%s5635 + $0xa4] sm:$0x1]
    %v5678 = vld [vmem:[%s5635 + $0xa8] sm:$0xf]
    %v5679 = vld [vmem:[%s5635 + $0xac] sm:$0xf]
    %v5680 = vld [vmem:[%s5635 + $0xb0] sm:$0x1]
    %v5681 = vld [vmem:[%s5635 + $0xb4] sm:$0xf]
    %v5682 = vld [vmem:[%s5635 + $0xb8] sm:$0xf]
    %v5683 = vld [vmem:[%s5635 + $0xbc] sm:$0x1]
    %v5684 = vcombine.low %v5636, %v5648
    %v5686 = vunpack.c.l.s4 1983009808
    %v5687 = vunpack.c.0.s8 %v5686
    %v5688 = vlaneseq
    %v5689 = vshrl.u32 %v5688, 7
    %v5690 = vsub.s32 %v5687, %v5689
    %v5691 = vrot.slane %v5684, %v5690
    %v5692 = vcombine.low %v5642, %v5654
    %v5694 = vunpack.c.l.s4 1983009808
    %v5695 = vunpack.c.0.s8 %v5694
    %v5696 = vlaneseq
    %v5697 = vshrl.u32 %v5696, 7
    %v5698 = vsub.s32 %v5695, %v5697
    %v5699 = vrot.slane %v5692, %v5698
    %v5700 = vcombine.low %v5691, %v5699
    %v5701 = vcombine.high %v5691, %v5699
    %v5703 = vunpack.c.l.s4 1934713408
    %v5704 = vunpack.c.0.s8 %v5703
    %v5705 = vlaneseq
    %v5706 = vshrl.u32 %v5705, 7
    %v5707 = vsub.s32 %v5704, %v5706
    %v5708 = vrot.slane %v5700, %v5707
    %v5710 = vunpack.c.l.s4 1934713408
    %v5711 = vunpack.c.0.s8 %v5710
    %v5712 = vlaneseq
    %v5713 = vshrl.u32 %v5712, 7
    %v5714 = vsub.s32 %v5711, %v5713
    %v5715 = vrot.slane %v5701, %v5714
    %v5716 = vcombine.high %v5708, 0
    %v5717 = vcombine.high %v5715, 0
    %v5718 = vcombine.low %v5639, %v5651
    %v5720 = vunpack.c.l.s4 1983009808
    %v5721 = vunpack.c.0.s8 %v5720
    %v5722 = vlaneseq
    %v5723 = vshrl.u32 %v5722, 7
    %v5724 = vsub.s32 %v5721, %v5723
    %v5725 = vrot.slane %v5718, %v5724
    %v5726 = vcombine.low %v5645, %v5657
    %v5728 = vunpack.c.l.s4 1983009808
    %v5729 = vunpack.c.0.s8 %v5728
    %v5730 = vlaneseq
    %v5731 = vshrl.u32 %v5730, 7
    %v5732 = vsub.s32 %v5729, %v5731
    %v5733 = vrot.slane %v5726, %v5732
    %v5734 = vcombine.low %v5725, %v5733
    %v5735 = vcombine.high %v5725, %v5733
    %v5737 = vunpack.c.l.s4 1934713408
    %v5738 = vunpack.c.0.s8 %v5737
    %v5739 = vlaneseq
    %v5740 = vshrl.u32 %v5739, 7
    %v5741 = vsub.s32 %v5738, %v5740
    %v5742 = vrot.slane %v5734, %v5741
    %v5744 = vunpack.c.l.s4 1934713408
    %v5745 = vunpack.c.0.s8 %v5744
    %v5746 = vlaneseq
    %v5747 = vshrl.u32 %v5746, 7
    %v5748 = vsub.s32 %v5745, %v5747
    %v5749 = vrot.slane %v5735, %v5748
    %v5750 = vcombine.high %v5742, 0
    %v5751 = vcombine.high %v5749, 0
    %v5752 = vcombine.low %v5660, %v5672
    %v5754 = vunpack.c.l.s4 1983009808
    %v5755 = vunpack.c.0.s8 %v5754
    %v5756 = vlaneseq
    %v5757 = vshrl.u32 %v5756, 7
    %v5758 = vsub.s32 %v5755, %v5757
    %v5759 = vrot.slane %v5752, %v5758
    %v5760 = vcombine.low %v5666, %v5678
    %v5762 = vunpack.c.l.s4 1983009808
    %v5763 = vunpack.c.0.s8 %v5762
    %v5764 = vlaneseq
    %v5765 = vshrl.u32 %v5764, 7
    %v5766 = vsub.s32 %v5763, %v5765
    %v5767 = vrot.slane %v5760, %v5766
    %v5768 = vcombine.low %v5759, %v5767
    %v5769 = vcombine.high %v5759, %v5767
    %v5771 = vunpack.c.l.s4 1934713408
    %v5772 = vunpack.c.0.s8 %v5771
    %v5773 = vlaneseq
    %v5774 = vshrl.u32 %v5773, 7
    %v5775 = vsub.s32 %v5772, %v5774
    %v5776 = vrot.slane %v5768, %v5775
    %v5778 = vunpack.c.l.s4 1934713408
    %v5779 = vunpack.c.0.s8 %v5778
    %v5780 = vlaneseq
    %v5781 = vshrl.u32 %v5780, 7
    %v5782 = vsub.s32 %v5779, %v5781
    %v5783 = vrot.slane %v5769, %v5782
    %v5784 = vcombine.high %v5776, 0
    %v5785 = vcombine.high %v5783, 0
    %v5786 = vcombine.low %v5663, %v5675
    %v5788 = vunpack.c.l.s4 1983009808
    %v5789 = vunpack.c.0.s8 %v5788
    %v5790 = vlaneseq
    %v5791 = vshrl.u32 %v5790, 7
    %v5792 = vsub.s32 %v5789, %v5791
    %v5793 = vrot.slane %v5786, %v5792
    %v5794 = vcombine.low %v5669, %v5681
    %v5796 = vunpack.c.l.s4 1983009808
    %v5797 = vunpack.c.0.s8 %v5796
    %v5798 = vlaneseq
    %v5799 = vshrl.u32 %v5798, 7
    %v5800 = vsub.s32 %v5797, %v5799
    %v5801 = vrot.slane %v5794, %v5800
    %v5802 = vcombine.low %v5793, %v5801
    %v5803 = vcombine.high %v5793, %v5801
    %v5805 = vunpack.c.l.s4 1934713408
    %v5806 = vunpack.c.0.s8 %v5805
    %v5807 = vlaneseq
    %v5808 = vshrl.u32 %v5807, 7
    %v5809 = vsub.s32 %v5806, %v5808
    %v5810 = vrot.slane %v5802, %v5809
    %v5812 = vunpack.c.l.s4 1934713408
    %v5813 = vunpack.c.0.s8 %v5812
    %v5814 = vlaneseq
    %v5815 = vshrl.u32 %v5814, 7
    %v5816 = vsub.s32 %v5813, %v5815
    %v5817 = vrot.slane %v5803, %v5816
    %v5818 = vcombine.high %v5810, 0
    %v5819 = vcombine.high %v5817, 0
    %v5820 = vcombine.low %v5637, %v5649
    %v5822 = vunpack.c.l.s4 1983009808
    %v5823 = vunpack.c.0.s8 %v5822
    %v5824 = vlaneseq
    %v5825 = vshrl.u32 %v5824, 7
    %v5826 = vsub.s32 %v5823, %v5825
    %v5827 = vrot.slane %v5820, %v5826
    %v5828 = vcombine.low %v5643, %v5655
    %v5830 = vunpack.c.l.s4 1983009808
    %v5831 = vunpack.c.0.s8 %v5830
    %v5832 = vlaneseq
    %v5833 = vshrl.u32 %v5832, 7
    %v5834 = vsub.s32 %v5831, %v5833
    %v5835 = vrot.slane %v5828, %v5834
    %v5836 = vcombine.low %v5827, %v5835
    %v5837 = vcombine.high %v5827, %v5835
    %v5839 = vunpack.c.l.s4 1934713408
    %v5840 = vunpack.c.0.s8 %v5839
    %v5841 = vlaneseq
    %v5842 = vshrl.u32 %v5841, 7
    %v5843 = vsub.s32 %v5840, %v5842
    %v5844 = vrot.slane %v5836, %v5843
    %v5846 = vunpack.c.l.s4 1934713408
    %v5847 = vunpack.c.0.s8 %v5846
    %v5848 = vlaneseq
    %v5849 = vshrl.u32 %v5848, 7
    %v5850 = vsub.s32 %v5847, %v5849
    %v5851 = vrot.slane %v5837, %v5850
    %v5852 = vcombine.high %v5844, 0
    %v5853 = vcombine.high %v5851, 0
    %v5854 = vcombine.low %v5640, %v5652
    %v5856 = vunpack.c.l.s4 1983009808
    %v5857 = vunpack.c.0.s8 %v5856
    %v5858 = vlaneseq
    %v5859 = vshrl.u32 %v5858, 7
    %v5860 = vsub.s32 %v5857, %v5859
    %v5861 = vrot.slane %v5854, %v5860
    %v5862 = vcombine.low %v5646, %v5658
    %v5864 = vunpack.c.l.s4 1983009808
    %v5865 = vunpack.c.0.s8 %v5864
    %v5866 = vlaneseq
    %v5867 = vshrl.u32 %v5866, 7
    %v5868 = vsub.s32 %v5865, %v5867
    %v5869 = vrot.slane %v5862, %v5868
    %v5870 = vcombine.low %v5861, %v5869
    %v5871 = vcombine.high %v5861, %v5869
    %v5873 = vunpack.c.l.s4 1934713408
    %v5874 = vunpack.c.0.s8 %v5873
    %v5875 = vlaneseq
    %v5876 = vshrl.u32 %v5875, 7
    %v5877 = vsub.s32 %v5874, %v5876
    %v5878 = vrot.slane %v5870, %v5877
    %v5880 = vunpack.c.l.s4 1934713408
    %v5881 = vunpack.c.0.s8 %v5880
    %v5882 = vlaneseq
    %v5883 = vshrl.u32 %v5882, 7
    %v5884 = vsub.s32 %v5881, %v5883
    %v5885 = vrot.slane %v5871, %v5884
    %v5886 = vcombine.high %v5878, 0
    %v5887 = vcombine.high %v5885, 0
    %v5888 = vcombine.low %v5661, %v5673
    %v5890 = vunpack.c.l.s4 1983009808
    %v5891 = vunpack.c.0.s8 %v5890
    %v5892 = vlaneseq
    %v5893 = vshrl.u32 %v5892, 7
    %v5894 = vsub.s32 %v5891, %v5893
    %v5895 = vrot.slane %v5888, %v5894
    %v5896 = vcombine.low %v5667, %v5679
    %v5898 = vunpack.c.l.s4 1983009808
    %v5899 = vunpack.c.0.s8 %v5898
    %v5900 = vlaneseq
    %v5901 = vshrl.u32 %v5900, 7
    %v5902 = vsub.s32 %v5899, %v5901
    %v5903 = vrot.slane %v5896, %v5902
    %v5904 = vcombine.low %v5895, %v5903
    %v5905 = vcombine.high %v5895, %v5903
    %v5907 = vunpack.c.l.s4 1934713408
    %v5908 = vunpack.c.0.s8 %v5907
    %v5909 = vlaneseq
    %v5910 = vshrl.u32 %v5909, 7
    %v5911 = vsub.s32 %v5908, %v5910
    %v5912 = vrot.slane %v5904, %v5911
    %v5914 = vunpack.c.l.s4 1934713408
    %v5915 = vunpack.c.0.s8 %v5914
    %v5916 = vlaneseq
    %v5917 = vshrl.u32 %v5916, 7
    %v5918 = vsub.s32 %v5915, %v5917
    %v5919 = vrot.slane %v5905, %v5918
    %v5920 = vcombine.high %v5912, 0
    %v5921 = vcombine.high %v5919, 0
    %v5922 = vcombine.low %v5664, %v5676
    %v5924 = vunpack.c.l.s4 1983009808
    %v5925 = vunpack.c.0.s8 %v5924
    %v5926 = vlaneseq
    %v5927 = vshrl.u32 %v5926, 7
    %v5928 = vsub.s32 %v5925, %v5927
    %v5929 = vrot.slane %v5922, %v5928
    %v5930 = vcombine.low %v5670, %v5682
    %v5932 = vunpack.c.l.s4 1983009808
    %v5933 = vunpack.c.0.s8 %v5932
    %v5934 = vlaneseq
    %v5935 = vshrl.u32 %v5934, 7
    %v5936 = vsub.s32 %v5933, %v5935
    %v5937 = vrot.slane %v5930, %v5936
    %v5938 = vcombine.low %v5929, %v5937
    %v5939 = vcombine.high %v5929, %v5937
    %v5941 = vunpack.c.l.s4 1934713408
    %v5942 = vunpack.c.0.s8 %v5941
    %v5943 = vlaneseq
    %v5944 = vshrl.u32 %v5943, 7
    %v5945 = vsub.s32 %v5942, %v5944
    %v5946 = vrot.slane %v5938, %v5945
    %v5948 = vunpack.c.l.s4 1934713408
    %v5949 = vunpack.c.0.s8 %v5948
    %v5950 = vlaneseq
    %v5951 = vshrl.u32 %v5950, 7
    %v5952 = vsub.s32 %v5949, %v5951
    %v5953 = vrot.slane %v5939, %v5952
    %v5954 = vcombine.high %v5946, 0
    %v5955 = vcombine.high %v5953, 0
    %v5958 = vpack.i.b16 %v5742, %v5708
    %v5959 = vshrl.u32 %v5708, 16
    %v5960 = vshrl.u32 %v5742, 16
    %v5961 = vpack.i.b16 %v5960, %v5959
    %v5964 = vpack.i.b16 %v5750, %v5716
    %v5965 = vshrl.u32 %v5716, 16
    %v5966 = vshrl.u32 %v5750, 16
    %v5967 = vpack.i.b16 %v5966, %v5965
    %v5970 = vpack.i.b16 %v5749, %v5715
    %v5971 = vshrl.u32 %v5715, 16
    %v5972 = vshrl.u32 %v5749, 16
    %v5973 = vpack.i.b16 %v5972, %v5971
    %v5976 = vpack.i.b16 %v5751, %v5717
    %v5977 = vshrl.u32 %v5717, 16
    %v5978 = vshrl.u32 %v5751, 16
    %v5979 = vpack.i.b16 %v5978, %v5977
    %v5982 = vpack.i.b16 %v5878, %v5844
    %v5983 = vshrl.u32 %v5844, 16
    %v5984 = vshrl.u32 %v5878, 16
    %v5985 = vpack.i.b16 %v5984, %v5983
    %v5988 = vpack.i.b16 %v5886, %v5852
    %v5989 = vshrl.u32 %v5852, 16
    %v5990 = vshrl.u32 %v5886, 16
    %v5991 = vpack.i.b16 %v5990, %v5989
    %v5994 = vpack.i.b16 %v5885, %v5851
    %v5995 = vshrl.u32 %v5851, 16
    %v5996 = vshrl.u32 %v5885, 16
    %v5997 = vpack.i.b16 %v5996, %v5995
    %v6000 = vpack.i.b16 %v5887, %v5853
    %v6001 = vshrl.u32 %v5853, 16
    %v6002 = vshrl.u32 %v5887, 16
    %v6003 = vpack.i.b16 %v6002, %v6001
    %v6006 = vpack.i.b16 %v5810, %v5776
    %v6007 = vshrl.u32 %v5776, 16
    %v6008 = vshrl.u32 %v5810, 16
    %v6009 = vpack.i.b16 %v6008, %v6007
    %v6012 = vpack.i.b16 %v5818, %v5784
    %v6013 = vshrl.u32 %v5784, 16
    %v6014 = vshrl.u32 %v5818, 16
    %v6015 = vpack.i.b16 %v6014, %v6013
    %v6018 = vpack.i.b16 %v5817, %v5783
    %v6019 = vshrl.u32 %v5783, 16
    %v6020 = vshrl.u32 %v5817, 16
    %v6021 = vpack.i.b16 %v6020, %v6019
    %v6024 = vpack.i.b16 %v5819, %v5785
    %v6025 = vshrl.u32 %v5785, 16
    %v6026 = vshrl.u32 %v5819, 16
    %v6027 = vpack.i.b16 %v6026, %v6025
    %v6030 = vpack.i.b16 %v5946, %v5912
    %v6031 = vshrl.u32 %v5912, 16
    %v6032 = vshrl.u32 %v5946, 16
    %v6033 = vpack.i.b16 %v6032, %v6031
    %v6036 = vpack.i.b16 %v5954, %v5920
    %v6037 = vshrl.u32 %v5920, 16
    %v6038 = vshrl.u32 %v5954, 16
    %v6039 = vpack.i.b16 %v6038, %v6037
    %v6042 = vpack.i.b16 %v5953, %v5919
    %v6043 = vshrl.u32 %v5919, 16
    %v6044 = vshrl.u32 %v5953, 16
    %v6045 = vpack.i.b16 %v6044, %v6043
    %v6048 = vpack.i.b16 %v5955, %v5921
    %v6049 = vshrl.u32 %v5921, 16
    %v6050 = vshrl.u32 %v5955, 16
    %v6051 = vpack.i.b16 %v6050, %v6049
    %v6052 = vunpack.c.l.b16 %v5958
    %v6053 = vunpack.c.l.b16 %v6006
    %v6054 = vpack.c.b16 %v6053, %v6052
    %v6055 = vunpack.c.l.b16 %v5961
    %v6056 = vunpack.c.l.b16 %v6009
    %v6057 = vpack.c.b16 %v6056, %v6055
    %6058 = vrot.lane.b32.xlu0 %v6057, 16
    %v6059 = vpop.permute.xlu0 %6058
    %v6060 = vunpack.c.l.b16 %v5964
    %v6061 = vunpack.c.l.b16 %v6012
    %v6062 = vpack.c.b16 %v6061, %v6060
    %6063 = vrot.lane.b32.xlu0 %v6062, 32
    %v6064 = vpop.permute.xlu0 %6063
    %v6065 = vunpack.c.l.b16 %v5967
    %v6066 = vunpack.c.l.b16 %v6015
    %v6067 = vpack.c.b16 %v6066, %v6065
    %6068 = vrot.lane.b32.xlu0 %v6067, 48
    %v6069 = vpop.permute.xlu0 %6068
    %v6070 = vunpack.c.l.b16 %v5970
    %v6071 = vunpack.c.l.b16 %v6018
    %v6072 = vpack.c.b16 %v6071, %v6070
    %6073 = vrot.lane.b32.xlu0 %v6072, 64
    %v6074 = vpop.permute.xlu0 %6073
    %v6075 = vunpack.c.l.b16 %v5973
    %v6076 = vunpack.c.l.b16 %v6021
    %v6077 = vpack.c.b16 %v6076, %v6075
    %6078 = vrot.lane.b32.xlu0 %v6077, 80
    %v6079 = vpop.permute.xlu0 %6078
    %v6080 = vunpack.c.l.b16 %v5976
    %v6081 = vunpack.c.l.b16 %v6024
    %v6082 = vpack.c.b16 %v6081, %v6080
    %6083 = vrot.lane.b32.xlu0 %v6082, 96
    %v6084 = vpop.permute.xlu0 %6083
    %v6085 = vunpack.c.l.b16 %v5979
    %v6086 = vunpack.c.l.b16 %v6027
    %v6087 = vpack.c.b16 %v6086, %v6085
    %6088 = vrot.lane.b32.xlu0 %v6087, 112
    %v6089 = vpop.permute.xlu0 %6088
    %v6090 = vunpack.c.l.b16 %v5982
    %v6091 = vunpack.c.l.b16 %v6030
    %v6092 = vpack.c.b16 %v6091, %v6090
    %v6093 = vunpack.c.l.b16 %v5985
    %v6094 = vunpack.c.l.b16 %v6033
    %v6095 = vpack.c.b16 %v6094, %v6093
    %6096 = vrot.lane.b32.xlu0 %v6095, 16
    %v6097 = vpop.permute.xlu0 %6096
    %v6098 = vunpack.c.l.b16 %v5988
    %v6099 = vunpack.c.l.b16 %v6036
    %v6100 = vpack.c.b16 %v6099, %v6098
    %6101 = vrot.lane.b32.xlu0 %v6100, 32
    %v6102 = vpop.permute.xlu0 %6101
    %v6103 = vunpack.c.l.b16 %v5991
    %v6104 = vunpack.c.l.b16 %v6039
    %v6105 = vpack.c.b16 %v6104, %v6103
    %6106 = vrot.lane.b32.xlu0 %v6105, 48
    %v6107 = vpop.permute.xlu0 %6106
    %v6108 = vunpack.c.l.b16 %v5994
    %v6109 = vunpack.c.l.b16 %v6042
    %v6110 = vpack.c.b16 %v6109, %v6108
    %6111 = vrot.lane.b32.xlu0 %v6110, 64
    %v6112 = vpop.permute.xlu0 %6111
    %v6113 = vunpack.c.l.b16 %v5997
    %v6114 = vunpack.c.l.b16 %v6045
    %v6115 = vpack.c.b16 %v6114, %v6113
    %6116 = vrot.lane.b32.xlu0 %v6115, 80
    %v6117 = vpop.permute.xlu0 %6116
    %v6118 = vunpack.c.l.b16 %v6000
    %v6119 = vunpack.c.l.b16 %v6048
    %v6120 = vpack.c.b16 %v6119, %v6118
    %6121 = vrot.lane.b32.xlu0 %v6120, 96
    %v6122 = vpop.permute.xlu0 %6121
    %v6123 = vunpack.c.l.b16 %v6003
    %v6124 = vunpack.c.l.b16 %v6051
    %v6125 = vpack.c.b16 %v6124, %v6123
    %6126 = vrot.lane.b32.xlu0 %v6125, 112
    %v6127 = vpop.permute.xlu0 %6126
    %v6130 = vsel %vm508, %v6054, %v6059
    %v6132 = vsel %vm512, %v6130, %v6064
    %v6134 = vsel %vm515, %v6132, %v6069
    %v6136 = vsel %vm518, %v6134, %v6074
    %v6138 = vsel %vm521, %v6136, %v6079
    %v6140 = vsel %vm524, %v6138, %v6084
    %v6142 = vsel %vm527, %v6140, %v6089
    %v6145 = vsel %vm508, %v6092, %v6097
    %v6147 = vsel %vm512, %v6145, %v6102
    %v6149 = vsel %vm515, %v6147, %v6107
    %v6151 = vsel %vm518, %v6149, %v6112
    %v6153 = vsel %vm521, %v6151, %v6117
    %v6155 = vsel %vm524, %v6153, %v6122
    %v6157 = vsel %vm527, %v6155, %v6127
    %v6160 = vunpack.c.l.b16 %v6142
    %v6161 = vunpack.c.l.b16 %v6157
    %v6162 = vunpack.c.h.b16 %v6142
    %v6163 = vunpack.c.h.b16 %v6157
    %v6164 = vpack.c.b16 %v6161, %v6160
    %v6165 = vpack.c.b16 %v6163, %v6162
    %6168 = vst [vmem:[#allocation2 + $0x8] sm:$0xff] %v6164
    %6169 = vst [vmem:[#allocation2 + $0x18] sm:$0xff] %v6165
    %6202 = vrot.lane.b32.xlu0 %v5636, 127
    %v6203 = vpop.permute.xlu0 %6202
    %6204 = vrot.lane.b32.xlu0 %v5637, 127
    %v6205 = vpop.permute.xlu0 %6204
    %6206 = vrot.lane.b32.xlu0 %v5639, 127
    %v6207 = vpop.permute.xlu0 %6206
    %6208 = vrot.lane.b32.xlu0 %v5640, 127
    %v6209 = vpop.permute.xlu0 %6208
    %6210 = vrot.lane.b32.xlu0 %v5642, 127
    %v6211 = vpop.permute.xlu0 %6210
    %6212 = vrot.lane.b32.xlu0 %v5643, 127
    %v6213 = vpop.permute.xlu0 %6212
    %6214 = vrot.lane.b32.xlu0 %v5645, 127
    %v6215 = vpop.permute.xlu0 %6214
    %6216 = vrot.lane.b32.xlu0 %v5646, 127
    %v6217 = vpop.permute.xlu0 %6216
    %6218 = vrot.lane.b32.xlu0 %v5648, 127
    %v6219 = vpop.permute.xlu0 %6218
    %6220 = vrot.lane.b32.xlu0 %v5649, 127
    %v6221 = vpop.permute.xlu0 %6220
    %6222 = vrot.lane.b32.xlu0 %v5651, 127
    %v6223 = vpop.permute.xlu0 %6222
    %6224 = vrot.lane.b32.xlu0 %v5652, 127
    %v6225 = vpop.permute.xlu0 %6224
    %6226 = vrot.lane.b32.xlu0 %v5654, 127
    %v6227 = vpop.permute.xlu0 %6226
    %6228 = vrot.lane.b32.xlu0 %v5655, 127
    %v6229 = vpop.permute.xlu0 %6228
    %6230 = vrot.lane.b32.xlu0 %v5657, 127
    %v6231 = vpop.permute.xlu0 %6230
    %6232 = vrot.lane.b32.xlu0 %v5658, 127
    %v6233 = vpop.permute.xlu0 %6232
    %6234 = vrot.lane.b32.xlu0 %v5660, 127
    %v6235 = vpop.permute.xlu0 %6234
    %6236 = vrot.lane.b32.xlu0 %v5661, 127
    %v6237 = vpop.permute.xlu0 %6236
    %6238 = vrot.lane.b32.xlu0 %v5663, 127
    %v6239 = vpop.permute.xlu0 %6238
    %6240 = vrot.lane.b32.xlu0 %v5664, 127
    %v6241 = vpop.permute.xlu0 %6240
    %6242 = vrot.lane.b32.xlu0 %v5666, 127
    %v6243 = vpop.permute.xlu0 %6242
    %6244 = vrot.lane.b32.xlu0 %v5667, 127
    %v6245 = vpop.permute.xlu0 %6244
    %6246 = vrot.lane.b32.xlu0 %v5669, 127
    %v6247 = vpop.permute.xlu0 %6246
    %6248 = vrot.lane.b32.xlu0 %v5670, 127
    %v6249 = vpop.permute.xlu0 %6248
    %6250 = vrot.lane.b32.xlu0 %v5672, 127
    %v6251 = vpop.permute.xlu0 %6250
    %6252 = vrot.lane.b32.xlu0 %v5673, 127
    %v6253 = vpop.permute.xlu0 %6252
    %6254 = vrot.lane.b32.xlu0 %v5675, 127
    %v6255 = vpop.permute.xlu0 %6254
    %6256 = vrot.lane.b32.xlu0 %v5676, 127
    %v6257 = vpop.permute.xlu0 %6256
    %6258 = vrot.lane.b32.xlu0 %v5678, 127
    %v6259 = vpop.permute.xlu0 %6258
    %6260 = vrot.lane.b32.xlu0 %v5679, 127
    %v6261 = vpop.permute.xlu0 %6260
    %6262 = vrot.lane.b32.xlu0 %v5681, 127
    %v6263 = vpop.permute.xlu0 %6262
    %6264 = vrot.lane.b32.xlu0 %v5682, 127
    %v6265 = vpop.permute.xlu0 %6264
    %v6298 = vcombine.low %v6203, %v6219
    %v6300 = vunpack.c.l.s4 1983009808
    %v6301 = vunpack.c.0.s8 %v6300
    %v6302 = vlaneseq
    %v6303 = vshrl.u32 %v6302, 7
    %v6304 = vsub.s32 %v6301, %v6303
    %v6305 = vrot.slane %v6298, %v6304
    %v6306 = vcombine.low %v6211, %v6227
    %v6308 = vunpack.c.l.s4 1983009808
    %v6309 = vunpack.c.0.s8 %v6308
    %v6310 = vlaneseq
    %v6311 = vshrl.u32 %v6310, 7
    %v6312 = vsub.s32 %v6309, %v6311
    %v6313 = vrot.slane %v6306, %v6312
    %v6314 = vcombine.low %v6305, %v6313
    %v6315 = vcombine.high %v6305, %v6313
    %v6317 = vunpack.c.l.s4 1934713408
    %v6318 = vunpack.c.0.s8 %v6317
    %v6319 = vlaneseq
    %v6320 = vshrl.u32 %v6319, 7
    %v6321 = vsub.s32 %v6318, %v6320
    %v6322 = vrot.slane %v6314, %v6321
    %v6324 = vunpack.c.l.s4 1934713408
    %v6325 = vunpack.c.0.s8 %v6324
    %v6326 = vlaneseq
    %v6327 = vshrl.u32 %v6326, 7
    %v6328 = vsub.s32 %v6325, %v6327
    %v6329 = vrot.slane %v6315, %v6328
    %v6330 = vcombine.high %v6322, 0
    %v6331 = vcombine.high %v6329, 0
    %v6332 = vcombine.low %v6207, %v6223
    %v6334 = vunpack.c.l.s4 1983009808
    %v6335 = vunpack.c.0.s8 %v6334
    %v6336 = vlaneseq
    %v6337 = vshrl.u32 %v6336, 7
    %v6338 = vsub.s32 %v6335, %v6337
    %v6339 = vrot.slane %v6332, %v6338
    %v6340 = vcombine.low %v6215, %v6231
    %v6342 = vunpack.c.l.s4 1983009808
    %v6343 = vunpack.c.0.s8 %v6342
    %v6344 = vlaneseq
    %v6345 = vshrl.u32 %v6344, 7
    %v6346 = vsub.s32 %v6343, %v6345
    %v6347 = vrot.slane %v6340, %v6346
    %v6348 = vcombine.low %v6339, %v6347
    %v6349 = vcombine.high %v6339, %v6347
    %v6351 = vunpack.c.l.s4 1934713408
    %v6352 = vunpack.c.0.s8 %v6351
    %v6353 = vlaneseq
    %v6354 = vshrl.u32 %v6353, 7
    %v6355 = vsub.s32 %v6352, %v6354
    %v6356 = vrot.slane %v6348, %v6355
    %v6358 = vunpack.c.l.s4 1934713408
    %v6359 = vunpack.c.0.s8 %v6358
    %v6360 = vlaneseq
    %v6361 = vshrl.u32 %v6360, 7
    %v6362 = vsub.s32 %v6359, %v6361
    %v6363 = vrot.slane %v6349, %v6362
    %v6364 = vcombine.high %v6356, 0
    %v6365 = vcombine.high %v6363, 0
    %v6366 = vcombine.low %v6235, %v6251
    %v6368 = vunpack.c.l.s4 1983009808
    %v6369 = vunpack.c.0.s8 %v6368
    %v6370 = vlaneseq
    %v6371 = vshrl.u32 %v6370, 7
    %v6372 = vsub.s32 %v6369, %v6371
    %v6373 = vrot.slane %v6366, %v6372
    %v6374 = vcombine.low %v6243, %v6259
    %v6376 = vunpack.c.l.s4 1983009808
    %v6377 = vunpack.c.0.s8 %v6376
    %v6378 = vlaneseq
    %v6379 = vshrl.u32 %v6378, 7
    %v6380 = vsub.s32 %v6377, %v6379
    %v6381 = vrot.slane %v6374, %v6380
    %v6382 = vcombine.low %v6373, %v6381
    %v6383 = vcombine.high %v6373, %v6381
    %v6385 = vunpack.c.l.s4 1934713408
    %v6386 = vunpack.c.0.s8 %v6385
    %v6387 = vlaneseq
    %v6388 = vshrl.u32 %v6387, 7
    %v6389 = vsub.s32 %v6386, %v6388
    %v6390 = vrot.slane %v6382, %v6389
    %v6392 = vunpack.c.l.s4 1934713408
    %v6393 = vunpack.c.0.s8 %v6392
    %v6394 = vlaneseq
    %v6395 = vshrl.u32 %v6394, 7
    %v6396 = vsub.s32 %v6393, %v6395
    %v6397 = vrot.slane %v6383, %v6396
    %v6398 = vcombine.high %v6390, 0
    %v6399 = vcombine.high %v6397, 0
    %v6400 = vcombine.low %v6239, %v6255
    %v6402 = vunpack.c.l.s4 1983009808
    %v6403 = vunpack.c.0.s8 %v6402
    %v6404 = vlaneseq
    %v6405 = vshrl.u32 %v6404, 7
    %v6406 = vsub.s32 %v6403, %v6405
    %v6407 = vrot.slane %v6400, %v6406
    %v6408 = vcombine.low %v6247, %v6263
    %v6410 = vunpack.c.l.s4 1983009808
    %v6411 = vunpack.c.0.s8 %v6410
    %v6412 = vlaneseq
    %v6413 = vshrl.u32 %v6412, 7
    %v6414 = vsub.s32 %v6411, %v6413
    %v6415 = vrot.slane %v6408, %v6414
    %v6416 = vcombine.low %v6407, %v6415
    %v6417 = vcombine.high %v6407, %v6415
    %v6419 = vunpack.c.l.s4 1934713408
    %v6420 = vunpack.c.0.s8 %v6419
    %v6421 = vlaneseq
    %v6422 = vshrl.u32 %v6421, 7
    %v6423 = vsub.s32 %v6420, %v6422
    %v6424 = vrot.slane %v6416, %v6423
    %v6426 = vunpack.c.l.s4 1934713408
    %v6427 = vunpack.c.0.s8 %v6426
    %v6428 = vlaneseq
    %v6429 = vshrl.u32 %v6428, 7
    %v6430 = vsub.s32 %v6427, %v6429
    %v6431 = vrot.slane %v6417, %v6430
    %v6432 = vcombine.high %v6424, 0
    %v6433 = vcombine.high %v6431, 0
    %v6434 = vcombine.low %v6205, %v6221
    %v6436 = vunpack.c.l.s4 1983009808
    %v6437 = vunpack.c.0.s8 %v6436
    %v6438 = vlaneseq
    %v6439 = vshrl.u32 %v6438, 7
    %v6440 = vsub.s32 %v6437, %v6439
    %v6441 = vrot.slane %v6434, %v6440
    %v6442 = vcombine.low %v6213, %v6229
    %v6444 = vunpack.c.l.s4 1983009808
    %v6445 = vunpack.c.0.s8 %v6444
    %v6446 = vlaneseq
    %v6447 = vshrl.u32 %v6446, 7
    %v6448 = vsub.s32 %v6445, %v6447
    %v6449 = vrot.slane %v6442, %v6448
    %v6450 = vcombine.low %v6441, %v6449
    %v6451 = vcombine.high %v6441, %v6449
    %v6453 = vunpack.c.l.s4 1934713408
    %v6454 = vunpack.c.0.s8 %v6453
    %v6455 = vlaneseq
    %v6456 = vshrl.u32 %v6455, 7
    %v6457 = vsub.s32 %v6454, %v6456
    %v6458 = vrot.slane %v6450, %v6457
    %v6460 = vunpack.c.l.s4 1934713408
    %v6461 = vunpack.c.0.s8 %v6460
    %v6462 = vlaneseq
    %v6463 = vshrl.u32 %v6462, 7
    %v6464 = vsub.s32 %v6461, %v6463
    %v6465 = vrot.slane %v6451, %v6464
    %v6466 = vcombine.high %v6458, 0
    %v6467 = vcombine.high %v6465, 0
    %v6468 = vcombine.low %v6209, %v6225
    %v6470 = vunpack.c.l.s4 1983009808
    %v6471 = vunpack.c.0.s8 %v6470
    %v6472 = vlaneseq
    %v6473 = vshrl.u32 %v6472, 7
    %v6474 = vsub.s32 %v6471, %v6473
    %v6475 = vrot.slane %v6468, %v6474
    %v6476 = vcombine.low %v6217, %v6233
    %v6478 = vunpack.c.l.s4 1983009808
    %v6479 = vunpack.c.0.s8 %v6478
    %v6480 = vlaneseq
    %v6481 = vshrl.u32 %v6480, 7
    %v6482 = vsub.s32 %v6479, %v6481
    %v6483 = vrot.slane %v6476, %v6482
    %v6484 = vcombine.low %v6475, %v6483
    %v6485 = vcombine.high %v6475, %v6483
    %v6487 = vunpack.c.l.s4 1934713408
    %v6488 = vunpack.c.0.s8 %v6487
    %v6489 = vlaneseq
    %v6490 = vshrl.u32 %v6489, 7
    %v6491 = vsub.s32 %v6488, %v6490
    %v6492 = vrot.slane %v6484, %v6491
    %v6494 = vunpack.c.l.s4 1934713408
    %v6495 = vunpack.c.0.s8 %v6494
    %v6496 = vlaneseq
    %v6497 = vshrl.u32 %v6496, 7
    %v6498 = vsub.s32 %v6495, %v6497
    %v6499 = vrot.slane %v6485, %v6498
    %v6500 = vcombine.high %v6492, 0
    %v6501 = vcombine.high %v6499, 0
    %v6502 = vcombine.low %v6237, %v6253
    %v6504 = vunpack.c.l.s4 1983009808
    %v6505 = vunpack.c.0.s8 %v6504
    %v6506 = vlaneseq
    %v6507 = vshrl.u32 %v6506, 7
    %v6508 = vsub.s32 %v6505, %v6507
    %v6509 = vrot.slane %v6502, %v6508
    %v6510 = vcombine.low %v6245, %v6261
    %v6512 = vunpack.c.l.s4 1983009808
    %v6513 = vunpack.c.0.s8 %v6512
    %v6514 = vlaneseq
    %v6515 = vshrl.u32 %v6514, 7
    %v6516 = vsub.s32 %v6513, %v6515
    %v6517 = vrot.slane %v6510, %v6516
    %v6518 = vcombine.low %v6509, %v6517
    %v6519 = vcombine.high %v6509, %v6517
    %v6521 = vunpack.c.l.s4 1934713408
    %v6522 = vunpack.c.0.s8 %v6521
    %v6523 = vlaneseq
    %v6524 = vshrl.u32 %v6523, 7
    %v6525 = vsub.s32 %v6522, %v6524
    %v6526 = vrot.slane %v6518, %v6525
    %v6528 = vunpack.c.l.s4 1934713408
    %v6529 = vunpack.c.0.s8 %v6528
    %v6530 = vlaneseq
    %v6531 = vshrl.u32 %v6530, 7
    %v6532 = vsub.s32 %v6529, %v6531
    %v6533 = vrot.slane %v6519, %v6532
    %v6534 = vcombine.high %v6526, 0
    %v6535 = vcombine.high %v6533, 0
    %v6536 = vcombine.low %v6241, %v6257
    %v6538 = vunpack.c.l.s4 1983009808
    %v6539 = vunpack.c.0.s8 %v6538
    %v6540 = vlaneseq
    %v6541 = vshrl.u32 %v6540, 7
    %v6542 = vsub.s32 %v6539, %v6541
    %v6543 = vrot.slane %v6536, %v6542
    %v6544 = vcombine.low %v6249, %v6265
    %v6546 = vunpack.c.l.s4 1983009808
    %v6547 = vunpack.c.0.s8 %v6546
    %v6548 = vlaneseq
    %v6549 = vshrl.u32 %v6548, 7
    %v6550 = vsub.s32 %v6547, %v6549
    %v6551 = vrot.slane %v6544, %v6550
    %v6552 = vcombine.low %v6543, %v6551
    %v6553 = vcombine.high %v6543, %v6551
    %v6555 = vunpack.c.l.s4 1934713408
    %v6556 = vunpack.c.0.s8 %v6555
    %v6557 = vlaneseq
    %v6558 = vshrl.u32 %v6557, 7
    %v6559 = vsub.s32 %v6556, %v6558
    %v6560 = vrot.slane %v6552, %v6559
    %v6562 = vunpack.c.l.s4 1934713408
    %v6563 = vunpack.c.0.s8 %v6562
    %v6564 = vlaneseq
    %v6565 = vshrl.u32 %v6564, 7
    %v6566 = vsub.s32 %v6563, %v6565
    %v6567 = vrot.slane %v6553, %v6566
    %v6568 = vcombine.high %v6560, 0
    %v6569 = vcombine.high %v6567, 0
    %v6572 = vpack.i.b16 %v6356, %v6322
    %v6573 = vshrl.u32 %v6322, 16
    %v6574 = vshrl.u32 %v6356, 16
    %v6575 = vpack.i.b16 %v6574, %v6573
    %v6578 = vpack.i.b16 %v6364, %v6330
    %v6579 = vshrl.u32 %v6330, 16
    %v6580 = vshrl.u32 %v6364, 16
    %v6581 = vpack.i.b16 %v6580, %v6579
    %v6584 = vpack.i.b16 %v6363, %v6329
    %v6585 = vshrl.u32 %v6329, 16
    %v6586 = vshrl.u32 %v6363, 16
    %v6587 = vpack.i.b16 %v6586, %v6585
    %v6590 = vpack.i.b16 %v6365, %v6331
    %v6591 = vshrl.u32 %v6331, 16
    %v6592 = vshrl.u32 %v6365, 16
    %v6593 = vpack.i.b16 %v6592, %v6591
    %v6596 = vpack.i.b16 %v6492, %v6458
    %v6597 = vshrl.u32 %v6458, 16
    %v6598 = vshrl.u32 %v6492, 16
    %v6599 = vpack.i.b16 %v6598, %v6597
    %v6602 = vpack.i.b16 %v6500, %v6466
    %v6603 = vshrl.u32 %v6466, 16
    %v6604 = vshrl.u32 %v6500, 16
    %v6605 = vpack.i.b16 %v6604, %v6603
    %v6608 = vpack.i.b16 %v6499, %v6465
    %v6609 = vshrl.u32 %v6465, 16
    %v6610 = vshrl.u32 %v6499, 16
    %v6611 = vpack.i.b16 %v6610, %v6609
    %v6614 = vpack.i.b16 %v6501, %v6467
    %v6615 = vshrl.u32 %v6467, 16
    %v6616 = vshrl.u32 %v6501, 16
    %v6617 = vpack.i.b16 %v6616, %v6615
    %v6620 = vpack.i.b16 %v6424, %v6390
    %v6621 = vshrl.u32 %v6390, 16
    %v6622 = vshrl.u32 %v6424, 16
    %v6623 = vpack.i.b16 %v6622, %v6621
    %v6626 = vpack.i.b16 %v6432, %v6398
    %v6627 = vshrl.u32 %v6398, 16
    %v6628 = vshrl.u32 %v6432, 16
    %v6629 = vpack.i.b16 %v6628, %v6627
    %v6632 = vpack.i.b16 %v6431, %v6397
    %v6633 = vshrl.u32 %v6397, 16
    %v6634 = vshrl.u32 %v6431, 16
    %v6635 = vpack.i.b16 %v6634, %v6633
    %v6638 = vpack.i.b16 %v6433, %v6399
    %v6639 = vshrl.u32 %v6399, 16
    %v6640 = vshrl.u32 %v6433, 16
    %v6641 = vpack.i.b16 %v6640, %v6639
    %v6644 = vpack.i.b16 %v6560, %v6526
    %v6645 = vshrl.u32 %v6526, 16
    %v6646 = vshrl.u32 %v6560, 16
    %v6647 = vpack.i.b16 %v6646, %v6645
    %v6650 = vpack.i.b16 %v6568, %v6534
    %v6651 = vshrl.u32 %v6534, 16
    %v6652 = vshrl.u32 %v6568, 16
    %v6653 = vpack.i.b16 %v6652, %v6651
    %v6656 = vpack.i.b16 %v6567, %v6533
    %v6657 = vshrl.u32 %v6533, 16
    %v6658 = vshrl.u32 %v6567, 16
    %v6659 = vpack.i.b16 %v6658, %v6657
    %v6662 = vpack.i.b16 %v6569, %v6535
    %v6663 = vshrl.u32 %v6535, 16
    %v6664 = vshrl.u32 %v6569, 16
    %v6665 = vpack.i.b16 %v6664, %v6663
    %v6666 = vunpack.c.l.b16 %v6572
    %v6667 = vunpack.c.l.b16 %v6620
    %v6668 = vpack.c.b16 %v6667, %v6666
    %v6669 = vunpack.c.l.b16 %v6575
    %v6670 = vunpack.c.l.b16 %v6623
    %v6671 = vpack.c.b16 %v6670, %v6669
    %6672 = vrot.lane.b32.xlu0 %v6671, 16
    %v6673 = vpop.permute.xlu0 %6672
    %v6674 = vunpack.c.l.b16 %v6578
    %v6675 = vunpack.c.l.b16 %v6626
    %v6676 = vpack.c.b16 %v6675, %v6674
    %6677 = vrot.lane.b32.xlu0 %v6676, 32
    %v6678 = vpop.permute.xlu0 %6677
    %v6679 = vunpack.c.l.b16 %v6581
    %v6680 = vunpack.c.l.b16 %v6629
    %v6681 = vpack.c.b16 %v6680, %v6679
    %6682 = vrot.lane.b32.xlu0 %v6681, 48
    %v6683 = vpop.permute.xlu0 %6682
    %v6684 = vunpack.c.l.b16 %v6584
    %v6685 = vunpack.c.l.b16 %v6632
    %v6686 = vpack.c.b16 %v6685, %v6684
    %6687 = vrot.lane.b32.xlu0 %v6686, 64
    %v6688 = vpop.permute.xlu0 %6687
    %v6689 = vunpack.c.l.b16 %v6587
    %v6690 = vunpack.c.l.b16 %v6635
    %v6691 = vpack.c.b16 %v6690, %v6689
    %6692 = vrot.lane.b32.xlu0 %v6691, 80
    %v6693 = vpop.permute.xlu0 %6692
    %v6694 = vunpack.c.l.b16 %v6590
    %v6695 = vunpack.c.l.b16 %v6638
    %v6696 = vpack.c.b16 %v6695, %v6694
    %6697 = vrot.lane.b32.xlu0 %v6696, 96
    %v6698 = vpop.permute.xlu0 %6697
    %v6699 = vunpack.c.l.b16 %v6593
    %v6700 = vunpack.c.l.b16 %v6641
    %v6701 = vpack.c.b16 %v6700, %v6699
    %6702 = vrot.lane.b32.xlu0 %v6701, 112
    %v6703 = vpop.permute.xlu0 %6702
    %v6704 = vunpack.c.l.b16 %v6596
    %v6705 = vunpack.c.l.b16 %v6644
    %v6706 = vpack.c.b16 %v6705, %v6704
    %v6707 = vunpack.c.l.b16 %v6599
    %v6708 = vunpack.c.l.b16 %v6647
    %v6709 = vpack.c.b16 %v6708, %v6707
    %6710 = vrot.lane.b32.xlu0 %v6709, 16
    %v6711 = vpop.permute.xlu0 %6710
    %v6712 = vunpack.c.l.b16 %v6602
    %v6713 = vunpack.c.l.b16 %v6650
    %v6714 = vpack.c.b16 %v6713, %v6712
    %6715 = vrot.lane.b32.xlu0 %v6714, 32
    %v6716 = vpop.permute.xlu0 %6715
    %v6717 = vunpack.c.l.b16 %v6605
    %v6718 = vunpack.c.l.b16 %v6653
    %v6719 = vpack.c.b16 %v6718, %v6717
    %6720 = vrot.lane.b32.xlu0 %v6719, 48
    %v6721 = vpop.permute.xlu0 %6720
    %v6722 = vunpack.c.l.b16 %v6608
    %v6723 = vunpack.c.l.b16 %v6656
    %v6724 = vpack.c.b16 %v6723, %v6722
    %6725 = vrot.lane.b32.xlu0 %v6724, 64
    %v6726 = vpop.permute.xlu0 %6725
    %v6727 = vunpack.c.l.b16 %v6611
    %v6728 = vunpack.c.l.b16 %v6659
    %v6729 = vpack.c.b16 %v6728, %v6727
    %6730 = vrot.lane.b32.xlu0 %v6729, 80
    %v6731 = vpop.permute.xlu0 %6730
    %v6732 = vunpack.c.l.b16 %v6614
    %v6733 = vunpack.c.l.b16 %v6662
    %v6734 = vpack.c.b16 %v6733, %v6732
    %6735 = vrot.lane.b32.xlu0 %v6734, 96
    %v6736 = vpop.permute.xlu0 %6735
    %v6737 = vunpack.c.l.b16 %v6617
    %v6738 = vunpack.c.l.b16 %v6665
    %v6739 = vpack.c.b16 %v6738, %v6737
    %6740 = vrot.lane.b32.xlu0 %v6739, 112
    %v6741 = vpop.permute.xlu0 %6740
    %v6744 = vsel %vm508, %v6668, %v6673
    %v6746 = vsel %vm512, %v6744, %v6678
    %v6748 = vsel %vm515, %v6746, %v6683
    %v6750 = vsel %vm518, %v6748, %v6688
    %v6752 = vsel %vm521, %v6750, %v6693
    %v6754 = vsel %vm524, %v6752, %v6698
    %v6756 = vsel %vm527, %v6754, %v6703
    %v6759 = vsel %vm508, %v6706, %v6711
    %v6761 = vsel %vm512, %v6759, %v6716
    %v6763 = vsel %vm515, %v6761, %v6721
    %v6765 = vsel %vm518, %v6763, %v6726
    %v6767 = vsel %vm521, %v6765, %v6731
    %v6769 = vsel %vm524, %v6767, %v6736
    %v6771 = vsel %vm527, %v6769, %v6741
    %v6774 = vunpack.c.l.b16 %v6756
    %v6775 = vunpack.c.l.b16 %v6771
    %v6776 = vunpack.c.h.b16 %v6756
    %v6777 = vunpack.c.h.b16 %v6771
    %v6778 = vpack.c.b16 %v6775, %v6774
    %v6779 = vpack.c.b16 %v6777, %v6776
    %6782 = vst [vmem:[#allocation2 + $0x28] sm:$0xff] %v6778
    %6783 = vst [vmem:[#allocation2 + $0x38] sm:$0xff] %v6779
    %6784 = vrot.lane.b32.xlu0 %v5636, 126
    %v6785 = vpop.permute.xlu0 %6784
    %6786 = vrot.lane.b32.xlu0 %v5637, 126
    %v6787 = vpop.permute.xlu0 %6786
    %6788 = vrot.lane.b32.xlu0 %v5639, 126
    %v6789 = vpop.permute.xlu0 %6788
    %6790 = vrot.lane.b32.xlu0 %v5640, 126
    %v6791 = vpop.permute.xlu0 %6790
    %6792 = vrot.lane.b32.xlu0 %v5642, 126
    %v6793 = vpop.permute.xlu0 %6792
    %6794 = vrot.lane.b32.xlu0 %v5643, 126
    %v6795 = vpop.permute.xlu0 %6794
    %6796 = vrot.lane.b32.xlu0 %v5645, 126
    %v6797 = vpop.permute.xlu0 %6796
    %6798 = vrot.lane.b32.xlu0 %v5646, 126
    %v6799 = vpop.permute.xlu0 %6798
    %6800 = vrot.lane.b32.xlu0 %v5648, 126
    %v6801 = vpop.permute.xlu0 %6800
    %6802 = vrot.lane.b32.xlu0 %v5649, 126
    %v6803 = vpop.permute.xlu0 %6802
    %6804 = vrot.lane.b32.xlu0 %v5651, 126
    %v6805 = vpop.permute.xlu0 %6804
    %6806 = vrot.lane.b32.xlu0 %v5652, 126
    %v6807 = vpop.permute.xlu0 %6806
    %6808 = vrot.lane.b32.xlu0 %v5654, 126
    %v6809 = vpop.permute.xlu0 %6808
    %6810 = vrot.lane.b32.xlu0 %v5655, 126
    %v6811 = vpop.permute.xlu0 %6810
    %6812 = vrot.lane.b32.xlu0 %v5657, 126
    %v6813 = vpop.permute.xlu0 %6812
    %6814 = vrot.lane.b32.xlu0 %v5658, 126
    %v6815 = vpop.permute.xlu0 %6814
    %6816 = vrot.lane.b32.xlu0 %v5660, 126
    %v6817 = vpop.permute.xlu0 %6816
    %6818 = vrot.lane.b32.xlu0 %v5661, 126
    %v6819 = vpop.permute.xlu0 %6818
    %6820 = vrot.lane.b32.xlu0 %v5663, 126
    %v6821 = vpop.permute.xlu0 %6820
    %6822 = vrot.lane.b32.xlu0 %v5664, 126
    %v6823 = vpop.permute.xlu0 %6822
    %6824 = vrot.lane.b32.xlu0 %v5666, 126
    %v6825 = vpop.permute.xlu0 %6824
    %6826 = vrot.lane.b32.xlu0 %v5667, 126
    %v6827 = vpop.permute.xlu0 %6826
    %6828 = vrot.lane.b32.xlu0 %v5669, 126
    %v6829 = vpop.permute.xlu0 %6828
    %6830 = vrot.lane.b32.xlu0 %v5670, 126
    %v6831 = vpop.permute.xlu0 %6830
    %6832 = vrot.lane.b32.xlu0 %v5672, 126
    %v6833 = vpop.permute.xlu0 %6832
    %6834 = vrot.lane.b32.xlu0 %v5673, 126
    %v6835 = vpop.permute.xlu0 %6834
    %6836 = vrot.lane.b32.xlu0 %v5675, 126
    %v6837 = vpop.permute.xlu0 %6836
    %6838 = vrot.lane.b32.xlu0 %v5676, 126
    %v6839 = vpop.permute.xlu0 %6838
    %6840 = vrot.lane.b32.xlu0 %v5678, 126
    %v6841 = vpop.permute.xlu0 %6840
    %6842 = vrot.lane.b32.xlu0 %v5679, 126
    %v6843 = vpop.permute.xlu0 %6842
    %6844 = vrot.lane.b32.xlu0 %v5681, 126
    %v6845 = vpop.permute.xlu0 %6844
    %6846 = vrot.lane.b32.xlu0 %v5682, 126
    %v6847 = vpop.permute.xlu0 %6846
    %v6880 = vcombine.low %v6785, %v6801
    %v6882 = vunpack.c.l.s4 1983009808
    %v6883 = vunpack.c.0.s8 %v6882
    %v6884 = vlaneseq
    %v6885 = vshrl.u32 %v6884, 7
    %v6886 = vsub.s32 %v6883, %v6885
    %v6887 = vrot.slane %v6880, %v6886
    %v6888 = vcombine.low %v6793, %v6809
    %v6890 = vunpack.c.l.s4 1983009808
    %v6891 = vunpack.c.0.s8 %v6890
    %v6892 = vlaneseq
    %v6893 = vshrl.u32 %v6892, 7
    %v6894 = vsub.s32 %v6891, %v6893
    %v6895 = vrot.slane %v6888, %v6894
    %v6896 = vcombine.low %v6887, %v6895
    %v6897 = vcombine.high %v6887, %v6895
    %v6899 = vunpack.c.l.s4 1934713408
    %v6900 = vunpack.c.0.s8 %v6899
    %v6901 = vlaneseq
    %v6902 = vshrl.u32 %v6901, 7
    %v6903 = vsub.s32 %v6900, %v6902
    %v6904 = vrot.slane %v6896, %v6903
    %v6906 = vunpack.c.l.s4 1934713408
    %v6907 = vunpack.c.0.s8 %v6906
    %v6908 = vlaneseq
    %v6909 = vshrl.u32 %v6908, 7
    %v6910 = vsub.s32 %v6907, %v6909
    %v6911 = vrot.slane %v6897, %v6910
    %v6912 = vcombine.high %v6904, 0
    %v6913 = vcombine.high %v6911, 0
    %v6914 = vcombine.low %v6789, %v6805
    %v6916 = vunpack.c.l.s4 1983009808
    %v6917 = vunpack.c.0.s8 %v6916
    %v6918 = vlaneseq
    %v6919 = vshrl.u32 %v6918, 7
    %v6920 = vsub.s32 %v6917, %v6919
    %v6921 = vrot.slane %v6914, %v6920
    %v6922 = vcombine.low %v6797, %v6813
    %v6924 = vunpack.c.l.s4 1983009808
    %v6925 = vunpack.c.0.s8 %v6924
    %v6926 = vlaneseq
    %v6927 = vshrl.u32 %v6926, 7
    %v6928 = vsub.s32 %v6925, %v6927
    %v6929 = vrot.slane %v6922, %v6928
    %v6930 = vcombine.low %v6921, %v6929
    %v6931 = vcombine.high %v6921, %v6929
    %v6933 = vunpack.c.l.s4 1934713408
    %v6934 = vunpack.c.0.s8 %v6933
    %v6935 = vlaneseq
    %v6936 = vshrl.u32 %v6935, 7
    %v6937 = vsub.s32 %v6934, %v6936
    %v6938 = vrot.slane %v6930, %v6937
    %v6940 = vunpack.c.l.s4 1934713408
    %v6941 = vunpack.c.0.s8 %v6940
    %v6942 = vlaneseq
    %v6943 = vshrl.u32 %v6942, 7
    %v6944 = vsub.s32 %v6941, %v6943
    %v6945 = vrot.slane %v6931, %v6944
    %v6946 = vcombine.high %v6938, 0
    %v6947 = vcombine.high %v6945, 0
    %v6948 = vcombine.low %v6817, %v6833
    %v6950 = vunpack.c.l.s4 1983009808
    %v6951 = vunpack.c.0.s8 %v6950
    %v6952 = vlaneseq
    %v6953 = vshrl.u32 %v6952, 7
    %v6954 = vsub.s32 %v6951, %v6953
    %v6955 = vrot.slane %v6948, %v6954
    %v6956 = vcombine.low %v6825, %v6841
    %v6958 = vunpack.c.l.s4 1983009808
    %v6959 = vunpack.c.0.s8 %v6958
    %v6960 = vlaneseq
    %v6961 = vshrl.u32 %v6960, 7
    %v6962 = vsub.s32 %v6959, %v6961
    %v6963 = vrot.slane %v6956, %v6962
    %v6964 = vcombine.low %v6955, %v6963
    %v6965 = vcombine.high %v6955, %v6963
    %v6967 = vunpack.c.l.s4 1934713408
    %v6968 = vunpack.c.0.s8 %v6967
    %v6969 = vlaneseq
    %v6970 = vshrl.u32 %v6969, 7
    %v6971 = vsub.s32 %v6968, %v6970
    %v6972 = vrot.slane %v6964, %v6971
    %v6974 = vunpack.c.l.s4 1934713408
    %v6975 = vunpack.c.0.s8 %v6974
    %v6976 = vlaneseq
    %v6977 = vshrl.u32 %v6976, 7
    %v6978 = vsub.s32 %v6975, %v6977
    %v6979 = vrot.slane %v6965, %v6978
    %v6980 = vcombine.high %v6972, 0
    %v6981 = vcombine.high %v6979, 0
    %v6982 = vcombine.low %v6821, %v6837
    %v6984 = vunpack.c.l.s4 1983009808
    %v6985 = vunpack.c.0.s8 %v6984
    %v6986 = vlaneseq
    %v6987 = vshrl.u32 %v6986, 7
    %v6988 = vsub.s32 %v6985, %v6987
    %v6989 = vrot.slane %v6982, %v6988
    %v6990 = vcombine.low %v6829, %v6845
    %v6992 = vunpack.c.l.s4 1983009808
    %v6993 = vunpack.c.0.s8 %v6992
    %v6994 = vlaneseq
    %v6995 = vshrl.u32 %v6994, 7
    %v6996 = vsub.s32 %v6993, %v6995
    %v6997 = vrot.slane %v6990, %v6996
    %v6998 = vcombine.low %v6989, %v6997
    %v6999 = vcombine.high %v6989, %v6997
    %v7001 = vunpack.c.l.s4 1934713408
    %v7002 = vunpack.c.0.s8 %v7001
    %v7003 = vlaneseq
    %v7004 = vshrl.u32 %v7003, 7
    %v7005 = vsub.s32 %v7002, %v7004
    %v7006 = vrot.slane %v6998, %v7005
    %v7008 = vunpack.c.l.s4 1934713408
    %v7009 = vunpack.c.0.s8 %v7008
    %v7010 = vlaneseq
    %v7011 = vshrl.u32 %v7010, 7
    %v7012 = vsub.s32 %v7009, %v7011
    %v7013 = vrot.slane %v6999, %v7012
    %v7014 = vcombine.high %v7006, 0
    %v7015 = vcombine.high %v7013, 0
    %v7016 = vcombine.low %v6787, %v6803
    %v7018 = vunpack.c.l.s4 1983009808
    %v7019 = vunpack.c.0.s8 %v7018
    %v7020 = vlaneseq
    %v7021 = vshrl.u32 %v7020, 7
    %v7022 = vsub.s32 %v7019, %v7021
    %v7023 = vrot.slane %v7016, %v7022
    %v7024 = vcombine.low %v6795, %v6811
    %v7026 = vunpack.c.l.s4 1983009808
    %v7027 = vunpack.c.0.s8 %v7026
    %v7028 = vlaneseq
    %v7029 = vshrl.u32 %v7028, 7
    %v7030 = vsub.s32 %v7027, %v7029
    %v7031 = vrot.slane %v7024, %v7030
    %v7032 = vcombine.low %v7023, %v7031
    %v7033 = vcombine.high %v7023, %v7031
    %v7035 = vunpack.c.l.s4 1934713408
    %v7036 = vunpack.c.0.s8 %v7035
    %v7037 = vlaneseq
    %v7038 = vshrl.u32 %v7037, 7
    %v7039 = vsub.s32 %v7036, %v7038
    %v7040 = vrot.slane %v7032, %v7039
    %v7042 = vunpack.c.l.s4 1934713408
    %v7043 = vunpack.c.0.s8 %v7042
    %v7044 = vlaneseq
    %v7045 = vshrl.u32 %v7044, 7
    %v7046 = vsub.s32 %v7043, %v7045
    %v7047 = vrot.slane %v7033, %v7046
    %v7048 = vcombine.high %v7040, 0
    %v7049 = vcombine.high %v7047, 0
    %v7050 = vcombine.low %v6791, %v6807
    %v7052 = vunpack.c.l.s4 1983009808
    %v7053 = vunpack.c.0.s8 %v7052
    %v7054 = vlaneseq
    %v7055 = vshrl.u32 %v7054, 7
    %v7056 = vsub.s32 %v7053, %v7055
    %v7057 = vrot.slane %v7050, %v7056
    %v7058 = vcombine.low %v6799, %v6815
    %v7060 = vunpack.c.l.s4 1983009808
    %v7061 = vunpack.c.0.s8 %v7060
    %v7062 = vlaneseq
    %v7063 = vshrl.u32 %v7062, 7
    %v7064 = vsub.s32 %v7061, %v7063
    %v7065 = vrot.slane %v7058, %v7064
    %v7066 = vcombine.low %v7057, %v7065
    %v7067 = vcombine.high %v7057, %v7065
    %v7069 = vunpack.c.l.s4 1934713408
    %v7070 = vunpack.c.0.s8 %v7069
    %v7071 = vlaneseq
    %v7072 = vshrl.u32 %v7071, 7
    %v7073 = vsub.s32 %v7070, %v7072
    %v7074 = vrot.slane %v7066, %v7073
    %v7076 = vunpack.c.l.s4 1934713408
    %v7077 = vunpack.c.0.s8 %v7076
    %v7078 = vlaneseq
    %v7079 = vshrl.u32 %v7078, 7
    %v7080 = vsub.s32 %v7077, %v7079
    %v7081 = vrot.slane %v7067, %v7080
    %v7082 = vcombine.high %v7074, 0
    %v7083 = vcombine.high %v7081, 0
    %v7084 = vcombine.low %v6819, %v6835
    %v7086 = vunpack.c.l.s4 1983009808
    %v7087 = vunpack.c.0.s8 %v7086
    %v7088 = vlaneseq
    %v7089 = vshrl.u32 %v7088, 7
    %v7090 = vsub.s32 %v7087, %v7089
    %v7091 = vrot.slane %v7084, %v7090
    %v7092 = vcombine.low %v6827, %v6843
    %v7094 = vunpack.c.l.s4 1983009808
    %v7095 = vunpack.c.0.s8 %v7094
    %v7096 = vlaneseq
    %v7097 = vshrl.u32 %v7096, 7
    %v7098 = vsub.s32 %v7095, %v7097
    %v7099 = vrot.slane %v7092, %v7098
    %v7100 = vcombine.low %v7091, %v7099
    %v7101 = vcombine.high %v7091, %v7099
    %v7103 = vunpack.c.l.s4 1934713408
    %v7104 = vunpack.c.0.s8 %v7103
    %v7105 = vlaneseq
    %v7106 = vshrl.u32 %v7105, 7
    %v7107 = vsub.s32 %v7104, %v7106
    %v7108 = vrot.slane %v7100, %v7107
    %v7110 = vunpack.c.l.s4 1934713408
    %v7111 = vunpack.c.0.s8 %v7110
    %v7112 = vlaneseq
    %v7113 = vshrl.u32 %v7112, 7
    %v7114 = vsub.s32 %v7111, %v7113
    %v7115 = vrot.slane %v7101, %v7114
    %v7116 = vcombine.high %v7108, 0
    %v7117 = vcombine.high %v7115, 0
    %v7118 = vcombine.low %v6823, %v6839
    %v7120 = vunpack.c.l.s4 1983009808
    %v7121 = vunpack.c.0.s8 %v7120
    %v7122 = vlaneseq
    %v7123 = vshrl.u32 %v7122, 7
    %v7124 = vsub.s32 %v7121, %v7123
    %v7125 = vrot.slane %v7118, %v7124
    %v7126 = vcombine.low %v6831, %v6847
    %v7128 = vunpack.c.l.s4 1983009808
    %v7129 = vunpack.c.0.s8 %v7128
    %v7130 = vlaneseq
    %v7131 = vshrl.u32 %v7130, 7
    %v7132 = vsub.s32 %v7129, %v7131
    %v7133 = vrot.slane %v7126, %v7132
    %v7134 = vcombine.low %v7125, %v7133
    %v7135 = vcombine.high %v7125, %v7133
    %v7137 = vunpack.c.l.s4 1934713408
    %v7138 = vunpack.c.0.s8 %v7137
    %v7139 = vlaneseq
    %v7140 = vshrl.u32 %v7139, 7
    %v7141 = vsub.s32 %v7138, %v7140
    %v7142 = vrot.slane %v7134, %v7141
    %v7144 = vunpack.c.l.s4 1934713408
    %v7145 = vunpack.c.0.s8 %v7144
    %v7146 = vlaneseq
    %v7147 = vshrl.u32 %v7146, 7
    %v7148 = vsub.s32 %v7145, %v7147
    %v7149 = vrot.slane %v7135, %v7148
    %v7150 = vcombine.high %v7142, 0
    %v7151 = vcombine.high %v7149, 0
    %v7154 = vpack.i.b16 %v6938, %v6904
    %v7155 = vshrl.u32 %v6904, 16
    %v7156 = vshrl.u32 %v6938, 16
    %v7157 = vpack.i.b16 %v7156, %v7155
    %v7160 = vpack.i.b16 %v6946, %v6912
    %v7161 = vshrl.u32 %v6912, 16
    %v7162 = vshrl.u32 %v6946, 16
    %v7163 = vpack.i.b16 %v7162, %v7161
    %v7166 = vpack.i.b16 %v6945, %v6911
    %v7167 = vshrl.u32 %v6911, 16
    %v7168 = vshrl.u32 %v6945, 16
    %v7169 = vpack.i.b16 %v7168, %v7167
    %v7172 = vpack.i.b16 %v6947, %v6913
    %v7173 = vshrl.u32 %v6913, 16
    %v7174 = vshrl.u32 %v6947, 16
    %v7175 = vpack.i.b16 %v7174, %v7173
    %v7178 = vpack.i.b16 %v7074, %v7040
    %v7179 = vshrl.u32 %v7040, 16
    %v7180 = vshrl.u32 %v7074, 16
    %v7181 = vpack.i.b16 %v7180, %v7179
    %v7184 = vpack.i.b16 %v7082, %v7048
    %v7185 = vshrl.u32 %v7048, 16
    %v7186 = vshrl.u32 %v7082, 16
    %v7187 = vpack.i.b16 %v7186, %v7185
    %v7190 = vpack.i.b16 %v7081, %v7047
    %v7191 = vshrl.u32 %v7047, 16
    %v7192 = vshrl.u32 %v7081, 16
    %v7193 = vpack.i.b16 %v7192, %v7191
    %v7196 = vpack.i.b16 %v7083, %v7049
    %v7197 = vshrl.u32 %v7049, 16
    %v7198 = vshrl.u32 %v7083, 16
    %v7199 = vpack.i.b16 %v7198, %v7197
    %v7202 = vpack.i.b16 %v7006, %v6972
    %v7203 = vshrl.u32 %v6972, 16
    %v7204 = vshrl.u32 %v7006, 16
    %v7205 = vpack.i.b16 %v7204, %v7203
    %v7208 = vpack.i.b16 %v7014, %v6980
    %v7209 = vshrl.u32 %v6980, 16
    %v7210 = vshrl.u32 %v7014, 16
    %v7211 = vpack.i.b16 %v7210, %v7209
    %v7214 = vpack.i.b16 %v7013, %v6979
    %v7215 = vshrl.u32 %v6979, 16
    %v7216 = vshrl.u32 %v7013, 16
    %v7217 = vpack.i.b16 %v7216, %v7215
    %v7220 = vpack.i.b16 %v7015, %v6981
    %v7221 = vshrl.u32 %v6981, 16
    %v7222 = vshrl.u32 %v7015, 16
    %v7223 = vpack.i.b16 %v7222, %v7221
    %v7226 = vpack.i.b16 %v7142, %v7108
    %v7227 = vshrl.u32 %v7108, 16
    %v7228 = vshrl.u32 %v7142, 16
    %v7229 = vpack.i.b16 %v7228, %v7227
    %v7232 = vpack.i.b16 %v7150, %v7116
    %v7233 = vshrl.u32 %v7116, 16
    %v7234 = vshrl.u32 %v7150, 16
    %v7235 = vpack.i.b16 %v7234, %v7233
    %v7238 = vpack.i.b16 %v7149, %v7115
    %v7239 = vshrl.u32 %v7115, 16
    %v7240 = vshrl.u32 %v7149, 16
    %v7241 = vpack.i.b16 %v7240, %v7239
    %v7244 = vpack.i.b16 %v7151, %v7117
    %v7245 = vshrl.u32 %v7117, 16
    %v7246 = vshrl.u32 %v7151, 16
    %v7247 = vpack.i.b16 %v7246, %v7245
    %v7248 = vunpack.c.l.b16 %v7154
    %v7249 = vunpack.c.l.b16 %v7202
    %v7250 = vpack.c.b16 %v7249, %v7248
    %v7251 = vunpack.c.l.b16 %v7157
    %v7252 = vunpack.c.l.b16 %v7205
    %v7253 = vpack.c.b16 %v7252, %v7251
    %7254 = vrot.lane.b32.xlu0 %v7253, 16
    %v7255 = vpop.permute.xlu0 %7254
    %v7256 = vunpack.c.l.b16 %v7160
    %v7257 = vunpack.c.l.b16 %v7208
    %v7258 = vpack.c.b16 %v7257, %v7256
    %7259 = vrot.lane.b32.xlu0 %v7258, 32
    %v7260 = vpop.permute.xlu0 %7259
    %v7261 = vunpack.c.l.b16 %v7163
    %v7262 = vunpack.c.l.b16 %v7211
    %v7263 = vpack.c.b16 %v7262, %v7261
    %7264 = vrot.lane.b32.xlu0 %v7263, 48
    %v7265 = vpop.permute.xlu0 %7264
    %v7266 = vunpack.c.l.b16 %v7166
    %v7267 = vunpack.c.l.b16 %v7214
    %v7268 = vpack.c.b16 %v7267, %v7266
    %7269 = vrot.lane.b32.xlu0 %v7268, 64
    %v7270 = vpop.permute.xlu0 %7269
    %v7271 = vunpack.c.l.b16 %v7169
    %v7272 = vunpack.c.l.b16 %v7217
    %v7273 = vpack.c.b16 %v7272, %v7271
    %7274 = vrot.lane.b32.xlu0 %v7273, 80
    %v7275 = vpop.permute.xlu0 %7274
    %v7276 = vunpack.c.l.b16 %v7172
    %v7277 = vunpack.c.l.b16 %v7220
    %v7278 = vpack.c.b16 %v7277, %v7276
    %7279 = vrot.lane.b32.xlu0 %v7278, 96
    %v7280 = vpop.permute.xlu0 %7279
    %v7281 = vunpack.c.l.b16 %v7175
    %v7282 = vunpack.c.l.b16 %v7223
    %v7283 = vpack.c.b16 %v7282, %v7281
    %7284 = vrot.lane.b32.xlu0 %v7283, 112
    %v7285 = vpop.permute.xlu0 %7284
    %v7286 = vunpack.c.l.b16 %v7178
    %v7287 = vunpack.c.l.b16 %v7226
    %v7288 = vpack.c.b16 %v7287, %v7286
    %v7289 = vunpack.c.l.b16 %v7181
    %v7290 = vunpack.c.l.b16 %v7229
    %v7291 = vpack.c.b16 %v7290, %v7289
    %7292 = vrot.lane.b32.xlu0 %v7291, 16
    %v7293 = vpop.permute.xlu0 %7292
    %v7294 = vunpack.c.l.b16 %v7184
    %v7295 = vunpack.c.l.b16 %v7232
    %v7296 = vpack.c.b16 %v7295, %v7294
    %7297 = vrot.lane.b32.xlu0 %v7296, 32
    %v7298 = vpop.permute.xlu0 %7297
    %v7299 = vunpack.c.l.b16 %v7187
    %v7300 = vunpack.c.l.b16 %v7235
    %v7301 = vpack.c.b16 %v7300, %v7299
    %7302 = vrot.lane.b32.xlu0 %v7301, 48
    %v7303 = vpop.permute.xlu0 %7302
    %v7304 = vunpack.c.l.b16 %v7190
    %v7305 = vunpack.c.l.b16 %v7238
    %v7306 = vpack.c.b16 %v7305, %v7304
    %7307 = vrot.lane.b32.xlu0 %v7306, 64
    %v7308 = vpop.permute.xlu0 %7307
    %v7309 = vunpack.c.l.b16 %v7193
    %v7310 = vunpack.c.l.b16 %v7241
    %v7311 = vpack.c.b16 %v7310, %v7309
    %7312 = vrot.lane.b32.xlu0 %v7311, 80
    %v7313 = vpop.permute.xlu0 %7312
    %v7314 = vunpack.c.l.b16 %v7196
    %v7315 = vunpack.c.l.b16 %v7244
    %v7316 = vpack.c.b16 %v7315, %v7314
    %7317 = vrot.lane.b32.xlu0 %v7316, 96
    %v7318 = vpop.permute.xlu0 %7317
    %v7319 = vunpack.c.l.b16 %v7199
    %v7320 = vunpack.c.l.b16 %v7247
    %v7321 = vpack.c.b16 %v7320, %v7319
    %7322 = vrot.lane.b32.xlu0 %v7321, 112
    %v7323 = vpop.permute.xlu0 %7322
    %v7326 = vsel %vm508, %v7250, %v7255
    %v7328 = vsel %vm512, %v7326, %v7260
    %v7330 = vsel %vm515, %v7328, %v7265
    %v7332 = vsel %vm518, %v7330, %v7270
    %v7334 = vsel %vm521, %v7332, %v7275
    %v7336 = vsel %vm524, %v7334, %v7280
    %v7338 = vsel %vm527, %v7336, %v7285
    %v7341 = vsel %vm508, %v7288, %v7293
    %v7343 = vsel %vm512, %v7341, %v7298
    %v7345 = vsel %vm515, %v7343, %v7303
    %v7347 = vsel %vm518, %v7345, %v7308
    %v7349 = vsel %vm521, %v7347, %v7313
    %v7351 = vsel %vm524, %v7349, %v7318
    %v7353 = vsel %vm527, %v7351, %v7323
    %v7356 = vunpack.c.l.b16 %v7338
    %v7357 = vunpack.c.l.b16 %v7353
    %v7358 = vunpack.c.h.b16 %v7338
    %v7359 = vunpack.c.h.b16 %v7353
    %v7360 = vpack.c.b16 %v7357, %v7356
    %v7361 = vpack.c.b16 %v7359, %v7358
    %7364 = vst [vmem:[#allocation2 + $0x48] sm:$0xff] %v7360
    %7365 = vst [vmem:[#allocation2 + $0x58] sm:$0xff] %v7361
    %v7367 = vshrl.u32 %v5636, 16
    %v7369 = vrot.slane %v7367, 4
    %v7370 = vshll.u32 %v5636, 16
    %v7372 = vrot.slane %v7370, 5
    %v7373 = vor.u32 %v7369, %v7372
    %v7374 = vrot.slane %v7373, 4
    %v7376 = vshll.u32 %v5637, 16
    %v7378 = vrot.slane %v7376, 5
    %v7379 = vsel %vm1755, %v7374, %v7378
    %v7380 = vshrl.u32 %v5637, 16
    %v7382 = vrot.slane %v7380, 4
    %v7383 = vor.u32 %v7382, %v7378
    %v7384 = vrot.slane %v7383, 4
    %v7386 = vshll.u32 %v5638, 16
    %v7388 = vrot.slane %v7386, 5
    %v7389 = vsel %vm1755, %v7384, %v7388
    %v7391 = vshrl.u32 %v5639, 16
    %v7393 = vrot.slane %v7391, 4
    %v7394 = vshll.u32 %v5639, 16
    %v7396 = vrot.slane %v7394, 5
    %v7397 = vor.u32 %v7393, %v7396
    %v7398 = vrot.slane %v7397, 4
    %v7400 = vshll.u32 %v5640, 16
    %v7402 = vrot.slane %v7400, 5
    %v7403 = vsel %vm1755, %v7398, %v7402
    %v7404 = vshrl.u32 %v5640, 16
    %v7406 = vrot.slane %v7404, 4
    %v7407 = vor.u32 %v7406, %v7402
    %v7408 = vrot.slane %v7407, 4
    %v7410 = vshll.u32 %v5641, 16
    %v7412 = vrot.slane %v7410, 5
    %v7413 = vsel %vm1755, %v7408, %v7412
    %v7415 = vshrl.u32 %v5642, 16
    %v7417 = vrot.slane %v7415, 4
    %v7418 = vshll.u32 %v5642, 16
    %v7420 = vrot.slane %v7418, 5
    %v7421 = vor.u32 %v7417, %v7420
    %v7422 = vrot.slane %v7421, 4
    %v7424 = vshll.u32 %v5643, 16
    %v7426 = vrot.slane %v7424, 5
    %v7427 = vsel %vm1755, %v7422, %v7426
    %v7428 = vshrl.u32 %v5643, 16
    %v7430 = vrot.slane %v7428, 4
    %v7431 = vor.u32 %v7430, %v7426
    %v7432 = vrot.slane %v7431, 4
    %v7434 = vshll.u32 %v5644, 16
    %v7436 = vrot.slane %v7434, 5
    %v7437 = vsel %vm1755, %v7432, %v7436
    %v7439 = vshrl.u32 %v5645, 16
    %v7441 = vrot.slane %v7439, 4
    %v7442 = vshll.u32 %v5645, 16
    %v7444 = vrot.slane %v7442, 5
    %v7445 = vor.u32 %v7441, %v7444
    %v7446 = vrot.slane %v7445, 4
    %v7448 = vshll.u32 %v5646, 16
    %v7450 = vrot.slane %v7448, 5
    %v7451 = vsel %vm1755, %v7446, %v7450
    %v7452 = vshrl.u32 %v5646, 16
    %v7454 = vrot.slane %v7452, 4
    %v7455 = vor.u32 %v7454, %v7450
    %v7456 = vrot.slane %v7455, 4
    %v7458 = vshll.u32 %v5647, 16
    %v7460 = vrot.slane %v7458, 5
    %v7461 = vsel %vm1755, %v7456, %v7460
    %v7463 = vshrl.u32 %v5648, 16
    %v7465 = vrot.slane %v7463, 4
    %v7466 = vshll.u32 %v5648, 16
    %v7468 = vrot.slane %v7466, 5
    %v7469 = vor.u32 %v7465, %v7468
    %v7470 = vrot.slane %v7469, 4
    %v7472 = vshll.u32 %v5649, 16
    %v7474 = vrot.slane %v7472, 5
    %v7475 = vsel %vm1755, %v7470, %v7474
    %v7476 = vshrl.u32 %v5649, 16
    %v7478 = vrot.slane %v7476, 4
    %v7479 = vor.u32 %v7478, %v7474
    %v7480 = vrot.slane %v7479, 4
    %v7482 = vshll.u32 %v5650, 16
    %v7484 = vrot.slane %v7482, 5
    %v7485 = vsel %vm1755, %v7480, %v7484
    %v7487 = vshrl.u32 %v5651, 16
    %v7489 = vrot.slane %v7487, 4
    %v7490 = vshll.u32 %v5651, 16
    %v7492 = vrot.slane %v7490, 5
    %v7493 = vor.u32 %v7489, %v7492
    %v7494 = vrot.slane %v7493, 4
    %v7496 = vshll.u32 %v5652, 16
    %v7498 = vrot.slane %v7496, 5
    %v7499 = vsel %vm1755, %v7494, %v7498
    %v7500 = vshrl.u32 %v5652, 16
    %v7502 = vrot.slane %v7500, 4
    %v7503 = vor.u32 %v7502, %v7498
    %v7504 = vrot.slane %v7503, 4
    %v7506 = vshll.u32 %v5653, 16
    %v7508 = vrot.slane %v7506, 5
    %v7509 = vsel %vm1755, %v7504, %v7508
    %v7511 = vshrl.u32 %v5654, 16
    %v7513 = vrot.slane %v7511, 4
    %v7514 = vshll.u32 %v5654, 16
    %v7516 = vrot.slane %v7514, 5
    %v7517 = vor.u32 %v7513, %v7516
    %v7518 = vrot.slane %v7517, 4
    %v7520 = vshll.u32 %v5655, 16
    %v7522 = vrot.slane %v7520, 5
    %v7523 = vsel %vm1755, %v7518, %v7522
    %v7524 = vshrl.u32 %v5655, 16
    %v7526 = vrot.slane %v7524, 4
    %v7527 = vor.u32 %v7526, %v7522
    %v7528 = vrot.slane %v7527, 4
    %v7530 = vshll.u32 %v5656, 16
    %v7532 = vrot.slane %v7530, 5
    %v7533 = vsel %vm1755, %v7528, %v7532
    %v7535 = vshrl.u32 %v5657, 16
    %v7537 = vrot.slane %v7535, 4
    %v7538 = vshll.u32 %v5657, 16
    %v7540 = vrot.slane %v7538, 5
    %v7541 = vor.u32 %v7537, %v7540
    %v7542 = vrot.slane %v7541, 4
    %v7544 = vshll.u32 %v5658, 16
    %v7546 = vrot.slane %v7544, 5
    %v7547 = vsel %vm1755, %v7542, %v7546
    %v7548 = vshrl.u32 %v5658, 16
    %v7550 = vrot.slane %v7548, 4
    %v7551 = vor.u32 %v7550, %v7546
    %v7552 = vrot.slane %v7551, 4
    %v7554 = vshll.u32 %v5659, 16
    %v7556 = vrot.slane %v7554, 5
    %v7557 = vsel %vm1755, %v7552, %v7556
    %v7559 = vshrl.u32 %v5660, 16
    %v7561 = vrot.slane %v7559, 4
    %v7562 = vshll.u32 %v5660, 16
    %v7564 = vrot.slane %v7562, 5
    %v7565 = vor.u32 %v7561, %v7564
    %v7566 = vrot.slane %v7565, 4
    %v7568 = vshll.u32 %v5661, 16
    %v7570 = vrot.slane %v7568, 5
    %v7571 = vsel %vm1755, %v7566, %v7570
    %v7572 = vshrl.u32 %v5661, 16
    %v7574 = vrot.slane %v7572, 4
    %v7575 = vor.u32 %v7574, %v7570
    %v7576 = vrot.slane %v7575, 4
    %v7578 = vshll.u32 %v5662, 16
    %v7580 = vrot.slane %v7578, 5
    %v7581 = vsel %vm1755, %v7576, %v7580
    %v7583 = vshrl.u32 %v5663, 16
    %v7585 = vrot.slane %v7583, 4
    %v7586 = vshll.u32 %v5663, 16
    %v7588 = vrot.slane %v7586, 5
    %v7589 = vor.u32 %v7585, %v7588
    %v7590 = vrot.slane %v7589, 4
    %v7592 = vshll.u32 %v5664, 16
    %v7594 = vrot.slane %v7592, 5
    %v7595 = vsel %vm1755, %v7590, %v7594
    %v7596 = vshrl.u32 %v5664, 16
    %v7598 = vrot.slane %v7596, 4
    %v7599 = vor.u32 %v7598, %v7594
    %v7600 = vrot.slane %v7599, 4
    %v7602 = vshll.u32 %v5665, 16
    %v7604 = vrot.slane %v7602, 5
    %v7605 = vsel %vm1755, %v7600, %v7604
    %v7607 = vshrl.u32 %v5666, 16
    %v7609 = vrot.slane %v7607, 4
    %v7610 = vshll.u32 %v5666, 16
    %v7612 = vrot.slane %v7610, 5
    %v7613 = vor.u32 %v7609, %v7612
    %v7614 = vrot.slane %v7613, 4
    %v7616 = vshll.u32 %v5667, 16
    %v7618 = vrot.slane %v7616, 5
    %v7619 = vsel %vm1755, %v7614, %v7618
    %v7620 = vshrl.u32 %v5667, 16
    %v7622 = vrot.slane %v7620, 4
    %v7623 = vor.u32 %v7622, %v7618
    %v7624 = vrot.slane %v7623, 4
    %v7626 = vshll.u32 %v5668, 16
    %v7628 = vrot.slane %v7626, 5
    %v7629 = vsel %vm1755, %v7624, %v7628
    %v7631 = vshrl.u32 %v5669, 16
    %v7633 = vrot.slane %v7631, 4
    %v7634 = vshll.u32 %v5669, 16
    %v7636 = vrot.slane %v7634, 5
    %v7637 = vor.u32 %v7633, %v7636
    %v7638 = vrot.slane %v7637, 4
    %v7640 = vshll.u32 %v5670, 16
    %v7642 = vrot.slane %v7640, 5
    %v7643 = vsel %vm1755, %v7638, %v7642
    %v7644 = vshrl.u32 %v5670, 16
    %v7646 = vrot.slane %v7644, 4
    %v7647 = vor.u32 %v7646, %v7642
    %v7648 = vrot.slane %v7647, 4
    %v7650 = vshll.u32 %v5671, 16
    %v7652 = vrot.slane %v7650, 5
    %v7653 = vsel %vm1755, %v7648, %v7652
    %v7655 = vshrl.u32 %v5672, 16
    %v7657 = vrot.slane %v7655, 4
    %v7658 = vshll.u32 %v5672, 16
    %v7660 = vrot.slane %v7658, 5
    %v7661 = vor.u32 %v7657, %v7660
    %v7662 = vrot.slane %v7661, 4
    %v7664 = vshll.u32 %v5673, 16
    %v7666 = vrot.slane %v7664, 5
    %v7667 = vsel %vm1755, %v7662, %v7666
    %v7668 = vshrl.u32 %v5673, 16
    %v7670 = vrot.slane %v7668, 4
    %v7671 = vor.u32 %v7670, %v7666
    %v7672 = vrot.slane %v7671, 4
    %v7674 = vshll.u32 %v5674, 16
    %v7676 = vrot.slane %v7674, 5
    %v7677 = vsel %vm1755, %v7672, %v7676
    %v7679 = vshrl.u32 %v5675, 16
    %v7681 = vrot.slane %v7679, 4
    %v7682 = vshll.u32 %v5675, 16
    %v7684 = vrot.slane %v7682, 5
    %v7685 = vor.u32 %v7681, %v7684
    %v7686 = vrot.slane %v7685, 4
    %v7688 = vshll.u32 %v5676, 16
    %v7690 = vrot.slane %v7688, 5
    %v7691 = vsel %vm1755, %v7686, %v7690
    %v7692 = vshrl.u32 %v5676, 16
    %v7694 = vrot.slane %v7692, 4
    %v7695 = vor.u32 %v7694, %v7690
    %v7696 = vrot.slane %v7695, 4
    %v7698 = vshll.u32 %v5677, 16
    %v7700 = vrot.slane %v7698, 5
    %v7701 = vsel %vm1755, %v7696, %v7700
    %v7703 = vshrl.u32 %v5678, 16
    %v7705 = vrot.slane %v7703, 4
    %v7706 = vshll.u32 %v5678, 16
    %v7708 = vrot.slane %v7706, 5
    %v7709 = vor.u32 %v7705, %v7708
    %v7710 = vrot.slane %v7709, 4
    %v7712 = vshll.u32 %v5679, 16
    %v7714 = vrot.slane %v7712, 5
    %v7715 = vsel %vm1755, %v7710, %v7714
    %v7716 = vshrl.u32 %v5679, 16
    %v7718 = vrot.slane %v7716, 4
    %v7719 = vor.u32 %v7718, %v7714
    %v7720 = vrot.slane %v7719, 4
    %v7722 = vshll.u32 %v5680, 16
    %v7724 = vrot.slane %v7722, 5
    %v7725 = vsel %vm1755, %v7720, %v7724
    %v7727 = vshrl.u32 %v5681, 16
    %v7729 = vrot.slane %v7727, 4
    %v7730 = vshll.u32 %v5681, 16
    %v7732 = vrot.slane %v7730, 5
    %v7733 = vor.u32 %v7729, %v7732
    %v7734 = vrot.slane %v7733, 4
    %v7736 = vshll.u32 %v5682, 16
    %v7738 = vrot.slane %v7736, 5
    %v7739 = vsel %vm1755, %v7734, %v7738
    %v7740 = vshrl.u32 %v5682, 16
    %v7742 = vrot.slane %v7740, 4
    %v7743 = vor.u32 %v7742, %v7738
    %v7744 = vrot.slane %v7743, 4
    %v7746 = vshll.u32 %v5683, 16
    %v7748 = vrot.slane %v7746, 5
    %v7749 = vsel %vm1755, %v7744, %v7748
    %v7782 = vcombine.low %v7379, %v7475
    %v7784 = vunpack.c.l.s4 1983009808
    %v7785 = vunpack.c.0.s8 %v7784
    %v7786 = vlaneseq
    %v7787 = vshrl.u32 %v7786, 7
    %v7788 = vsub.s32 %v7785, %v7787
    %v7789 = vrot.slane %v7782, %v7788
    %v7790 = vcombine.low %v7427, %v7523
    %v7792 = vunpack.c.l.s4 1983009808
    %v7793 = vunpack.c.0.s8 %v7792
    %v7794 = vlaneseq
    %v7795 = vshrl.u32 %v7794, 7
    %v7796 = vsub.s32 %v7793, %v7795
    %v7797 = vrot.slane %v7790, %v7796
    %v7798 = vcombine.low %v7789, %v7797
    %v7799 = vcombine.high %v7789, %v7797
    %v7801 = vunpack.c.l.s4 1934713408
    %v7802 = vunpack.c.0.s8 %v7801
    %v7803 = vlaneseq
    %v7804 = vshrl.u32 %v7803, 7
    %v7805 = vsub.s32 %v7802, %v7804
    %v7806 = vrot.slane %v7798, %v7805
    %v7808 = vunpack.c.l.s4 1934713408
    %v7809 = vunpack.c.0.s8 %v7808
    %v7810 = vlaneseq
    %v7811 = vshrl.u32 %v7810, 7
    %v7812 = vsub.s32 %v7809, %v7811
    %v7813 = vrot.slane %v7799, %v7812
    %v7814 = vcombine.high %v7806, 0
    %v7815 = vcombine.high %v7813, 0
    %v7816 = vcombine.low %v7403, %v7499
    %v7818 = vunpack.c.l.s4 1983009808
    %v7819 = vunpack.c.0.s8 %v7818
    %v7820 = vlaneseq
    %v7821 = vshrl.u32 %v7820, 7
    %v7822 = vsub.s32 %v7819, %v7821
    %v7823 = vrot.slane %v7816, %v7822
    %v7824 = vcombine.low %v7451, %v7547
    %v7826 = vunpack.c.l.s4 1983009808
    %v7827 = vunpack.c.0.s8 %v7826
    %v7828 = vlaneseq
    %v7829 = vshrl.u32 %v7828, 7
    %v7830 = vsub.s32 %v7827, %v7829
    %v7831 = vrot.slane %v7824, %v7830
    %v7832 = vcombine.low %v7823, %v7831
    %v7833 = vcombine.high %v7823, %v7831
    %v7835 = vunpack.c.l.s4 1934713408
    %v7836 = vunpack.c.0.s8 %v7835
    %v7837 = vlaneseq
    %v7838 = vshrl.u32 %v7837, 7
    %v7839 = vsub.s32 %v7836, %v7838
    %v7840 = vrot.slane %v7832, %v7839
    %v7842 = vunpack.c.l.s4 1934713408
    %v7843 = vunpack.c.0.s8 %v7842
    %v7844 = vlaneseq
    %v7845 = vshrl.u32 %v7844, 7
    %v7846 = vsub.s32 %v7843, %v7845
    %v7847 = vrot.slane %v7833, %v7846
    %v7848 = vcombine.high %v7840, 0
    %v7849 = vcombine.high %v7847, 0
    %v7850 = vcombine.low %v7571, %v7667
    %v7852 = vunpack.c.l.s4 1983009808
    %v7853 = vunpack.c.0.s8 %v7852
    %v7854 = vlaneseq
    %v7855 = vshrl.u32 %v7854, 7
    %v7856 = vsub.s32 %v7853, %v7855
    %v7857 = vrot.slane %v7850, %v7856
    %v7858 = vcombine.low %v7619, %v7715
    %v7860 = vunpack.c.l.s4 1983009808
    %v7861 = vunpack.c.0.s8 %v7860
    %v7862 = vlaneseq
    %v7863 = vshrl.u32 %v7862, 7
    %v7864 = vsub.s32 %v7861, %v7863
    %v7865 = vrot.slane %v7858, %v7864
    %v7866 = vcombine.low %v7857, %v7865
    %v7867 = vcombine.high %v7857, %v7865
    %v7869 = vunpack.c.l.s4 1934713408
    %v7870 = vunpack.c.0.s8 %v7869
    %v7871 = vlaneseq
    %v7872 = vshrl.u32 %v7871, 7
    %v7873 = vsub.s32 %v7870, %v7872
    %v7874 = vrot.slane %v7866, %v7873
    %v7876 = vunpack.c.l.s4 1934713408
    %v7877 = vunpack.c.0.s8 %v7876
    %v7878 = vlaneseq
    %v7879 = vshrl.u32 %v7878, 7
    %v7880 = vsub.s32 %v7877, %v7879
    %v7881 = vrot.slane %v7867, %v7880
    %v7882 = vcombine.high %v7874, 0
    %v7883 = vcombine.high %v7881, 0
    %v7884 = vcombine.low %v7595, %v7691
    %v7886 = vunpack.c.l.s4 1983009808
    %v7887 = vunpack.c.0.s8 %v7886
    %v7888 = vlaneseq
    %v7889 = vshrl.u32 %v7888, 7
    %v7890 = vsub.s32 %v7887, %v7889
    %v7891 = vrot.slane %v7884, %v7890
    %v7892 = vcombine.low %v7643, %v7739
    %v7894 = vunpack.c.l.s4 1983009808
    %v7895 = vunpack.c.0.s8 %v7894
    %v7896 = vlaneseq
    %v7897 = vshrl.u32 %v7896, 7
    %v7898 = vsub.s32 %v7895, %v7897
    %v7899 = vrot.slane %v7892, %v7898
    %v7900 = vcombine.low %v7891, %v7899
    %v7901 = vcombine.high %v7891, %v7899
    %v7903 = vunpack.c.l.s4 1934713408
    %v7904 = vunpack.c.0.s8 %v7903
    %v7905 = vlaneseq
    %v7906 = vshrl.u32 %v7905, 7
    %v7907 = vsub.s32 %v7904, %v7906
    %v7908 = vrot.slane %v7900, %v7907
    %v7910 = vunpack.c.l.s4 1934713408
    %v7911 = vunpack.c.0.s8 %v7910
    %v7912 = vlaneseq
    %v7913 = vshrl.u32 %v7912, 7
    %v7914 = vsub.s32 %v7911, %v7913
    %v7915 = vrot.slane %v7901, %v7914
    %v7916 = vcombine.high %v7908, 0
    %v7917 = vcombine.high %v7915, 0
    %v7918 = vcombine.low %v7389, %v7485
    %v7920 = vunpack.c.l.s4 1983009808
    %v7921 = vunpack.c.0.s8 %v7920
    %v7922 = vlaneseq
    %v7923 = vshrl.u32 %v7922, 7
    %v7924 = vsub.s32 %v7921, %v7923
    %v7925 = vrot.slane %v7918, %v7924
    %v7926 = vcombine.low %v7437, %v7533
    %v7928 = vunpack.c.l.s4 1983009808
    %v7929 = vunpack.c.0.s8 %v7928
    %v7930 = vlaneseq
    %v7931 = vshrl.u32 %v7930, 7
    %v7932 = vsub.s32 %v7929, %v7931
    %v7933 = vrot.slane %v7926, %v7932
    %v7934 = vcombine.low %v7925, %v7933
    %v7935 = vcombine.high %v7925, %v7933
    %v7937 = vunpack.c.l.s4 1934713408
    %v7938 = vunpack.c.0.s8 %v7937
    %v7939 = vlaneseq
    %v7940 = vshrl.u32 %v7939, 7
    %v7941 = vsub.s32 %v7938, %v7940
    %v7942 = vrot.slane %v7934, %v7941
    %v7944 = vunpack.c.l.s4 1934713408
    %v7945 = vunpack.c.0.s8 %v7944
    %v7946 = vlaneseq
    %v7947 = vshrl.u32 %v7946, 7
    %v7948 = vsub.s32 %v7945, %v7947
    %v7949 = vrot.slane %v7935, %v7948
    %v7950 = vcombine.high %v7942, 0
    %v7951 = vcombine.high %v7949, 0
    %v7952 = vcombine.low %v7413, %v7509
    %v7954 = vunpack.c.l.s4 1983009808
    %v7955 = vunpack.c.0.s8 %v7954
    %v7956 = vlaneseq
    %v7957 = vshrl.u32 %v7956, 7
    %v7958 = vsub.s32 %v7955, %v7957
    %v7959 = vrot.slane %v7952, %v7958
    %v7960 = vcombine.low %v7461, %v7557
    %v7962 = vunpack.c.l.s4 1983009808
    %v7963 = vunpack.c.0.s8 %v7962
    %v7964 = vlaneseq
    %v7965 = vshrl.u32 %v7964, 7
    %v7966 = vsub.s32 %v7963, %v7965
    %v7967 = vrot.slane %v7960, %v7966
    %v7968 = vcombine.low %v7959, %v7967
    %v7969 = vcombine.high %v7959, %v7967
    %v7971 = vunpack.c.l.s4 1934713408
    %v7972 = vunpack.c.0.s8 %v7971
    %v7973 = vlaneseq
    %v7974 = vshrl.u32 %v7973, 7
    %v7975 = vsub.s32 %v7972, %v7974
    %v7976 = vrot.slane %v7968, %v7975
    %v7978 = vunpack.c.l.s4 1934713408
    %v7979 = vunpack.c.0.s8 %v7978
    %v7980 = vlaneseq
    %v7981 = vshrl.u32 %v7980, 7
    %v7982 = vsub.s32 %v7979, %v7981
    %v7983 = vrot.slane %v7969, %v7982
    %v7984 = vcombine.high %v7976, 0
    %v7985 = vcombine.high %v7983, 0
    %v7986 = vcombine.low %v7581, %v7677
    %v7988 = vunpack.c.l.s4 1983009808
    %v7989 = vunpack.c.0.s8 %v7988
    %v7990 = vlaneseq
    %v7991 = vshrl.u32 %v7990, 7
    %v7992 = vsub.s32 %v7989, %v7991
    %v7993 = vrot.slane %v7986, %v7992
    %v7994 = vcombine.low %v7629, %v7725
    %v7996 = vunpack.c.l.s4 1983009808
    %v7997 = vunpack.c.0.s8 %v7996
    %v7998 = vlaneseq
    %v7999 = vshrl.u32 %v7998, 7
    %v8000 = vsub.s32 %v7997, %v7999
    %v8001 = vrot.slane %v7994, %v8000
    %v8002 = vcombine.low %v7993, %v8001
    %v8003 = vcombine.high %v7993, %v8001
    %v8005 = vunpack.c.l.s4 1934713408
    %v8006 = vunpack.c.0.s8 %v8005
    %v8007 = vlaneseq
    %v8008 = vshrl.u32 %v8007, 7
    %v8009 = vsub.s32 %v8006, %v8008
    %v8010 = vrot.slane %v8002, %v8009
    %v8012 = vunpack.c.l.s4 1934713408
    %v8013 = vunpack.c.0.s8 %v8012
    %v8014 = vlaneseq
    %v8015 = vshrl.u32 %v8014, 7
    %v8016 = vsub.s32 %v8013, %v8015
    %v8017 = vrot.slane %v8003, %v8016
    %v8018 = vcombine.high %v8010, 0
    %v8019 = vcombine.high %v8017, 0
    %v8020 = vcombine.low %v7605, %v7701
    %v8022 = vunpack.c.l.s4 1983009808
    %v8023 = vunpack.c.0.s8 %v8022
    %v8024 = vlaneseq
    %v8025 = vshrl.u32 %v8024, 7
    %v8026 = vsub.s32 %v8023, %v8025
    %v8027 = vrot.slane %v8020, %v8026
    %v8028 = vcombine.low %v7653, %v7749
    %v8030 = vunpack.c.l.s4 1983009808
    %v8031 = vunpack.c.0.s8 %v8030
    %v8032 = vlaneseq
    %v8033 = vshrl.u32 %v8032, 7
    %v8034 = vsub.s32 %v8031, %v8033
    %v8035 = vrot.slane %v8028, %v8034
    %v8036 = vcombine.low %v8027, %v8035
    %v8037 = vcombine.high %v8027, %v8035
    %v8039 = vunpack.c.l.s4 1934713408
    %v8040 = vunpack.c.0.s8 %v8039
    %v8041 = vlaneseq
    %v8042 = vshrl.u32 %v8041, 7
    %v8043 = vsub.s32 %v8040, %v8042
    %v8044 = vrot.slane %v8036, %v8043
    %v8046 = vunpack.c.l.s4 1934713408
    %v8047 = vunpack.c.0.s8 %v8046
    %v8048 = vlaneseq
    %v8049 = vshrl.u32 %v8048, 7
    %v8050 = vsub.s32 %v8047, %v8049
    %v8051 = vrot.slane %v8037, %v8050
    %v8052 = vcombine.high %v8044, 0
    %v8053 = vcombine.high %v8051, 0
    %v8056 = vpack.i.b16 %v7840, %v7806
    %v8057 = vshrl.u32 %v7806, 16
    %v8058 = vshrl.u32 %v7840, 16
    %v8059 = vpack.i.b16 %v8058, %v8057
    %v8062 = vpack.i.b16 %v7848, %v7814
    %v8063 = vshrl.u32 %v7814, 16
    %v8064 = vshrl.u32 %v7848, 16
    %v8065 = vpack.i.b16 %v8064, %v8063
    %v8068 = vpack.i.b16 %v7847, %v7813
    %v8069 = vshrl.u32 %v7813, 16
    %v8070 = vshrl.u32 %v7847, 16
    %v8071 = vpack.i.b16 %v8070, %v8069
    %v8074 = vpack.i.b16 %v7849, %v7815
    %v8075 = vshrl.u32 %v7815, 16
    %v8076 = vshrl.u32 %v7849, 16
    %v8077 = vpack.i.b16 %v8076, %v8075
    %v8080 = vpack.i.b16 %v7976, %v7942
    %v8081 = vshrl.u32 %v7942, 16
    %v8082 = vshrl.u32 %v7976, 16
    %v8083 = vpack.i.b16 %v8082, %v8081
    %v8086 = vpack.i.b16 %v7984, %v7950
    %v8087 = vshrl.u32 %v7950, 16
    %v8088 = vshrl.u32 %v7984, 16
    %v8089 = vpack.i.b16 %v8088, %v8087
    %v8092 = vpack.i.b16 %v7983, %v7949
    %v8093 = vshrl.u32 %v7949, 16
    %v8094 = vshrl.u32 %v7983, 16
    %v8095 = vpack.i.b16 %v8094, %v8093
    %v8098 = vpack.i.b16 %v7985, %v7951
    %v8099 = vshrl.u32 %v7951, 16
    %v8100 = vshrl.u32 %v7985, 16
    %v8101 = vpack.i.b16 %v8100, %v8099
    %v8104 = vpack.i.b16 %v7908, %v7874
    %v8105 = vshrl.u32 %v7874, 16
    %v8106 = vshrl.u32 %v7908, 16
    %v8107 = vpack.i.b16 %v8106, %v8105
    %v8110 = vpack.i.b16 %v7916, %v7882
    %v8111 = vshrl.u32 %v7882, 16
    %v8112 = vshrl.u32 %v7916, 16
    %v8113 = vpack.i.b16 %v8112, %v8111
    %v8116 = vpack.i.b16 %v7915, %v7881
    %v8117 = vshrl.u32 %v7881, 16
    %v8118 = vshrl.u32 %v7915, 16
    %v8119 = vpack.i.b16 %v8118, %v8117
    %v8122 = vpack.i.b16 %v7917, %v7883
    %v8123 = vshrl.u32 %v7883, 16
    %v8124 = vshrl.u32 %v7917, 16
    %v8125 = vpack.i.b16 %v8124, %v8123
    %v8128 = vpack.i.b16 %v8044, %v8010
    %v8129 = vshrl.u32 %v8010, 16
    %v8130 = vshrl.u32 %v8044, 16
    %v8131 = vpack.i.b16 %v8130, %v8129
    %v8134 = vpack.i.b16 %v8052, %v8018
    %v8135 = vshrl.u32 %v8018, 16
    %v8136 = vshrl.u32 %v8052, 16
    %v8137 = vpack.i.b16 %v8136, %v8135
    %v8140 = vpack.i.b16 %v8051, %v8017
    %v8141 = vshrl.u32 %v8017, 16
    %v8142 = vshrl.u32 %v8051, 16
    %v8143 = vpack.i.b16 %v8142, %v8141
    %v8146 = vpack.i.b16 %v8053, %v8019
    %v8147 = vshrl.u32 %v8019, 16
    %v8148 = vshrl.u32 %v8053, 16
    %v8149 = vpack.i.b16 %v8148, %v8147
    %v8150 = vunpack.c.l.b16 %v8056
    %v8151 = vunpack.c.l.b16 %v8104
    %v8152 = vpack.c.b16 %v8151, %v8150
    %v8153 = vunpack.c.l.b16 %v8059
    %v8154 = vunpack.c.l.b16 %v8107
    %v8155 = vpack.c.b16 %v8154, %v8153
    %8156 = vrot.lane.b32.xlu0 %v8155, 16
    %v8157 = vpop.permute.xlu0 %8156
    %v8158 = vunpack.c.l.b16 %v8062
    %v8159 = vunpack.c.l.b16 %v8110
    %v8160 = vpack.c.b16 %v8159, %v8158
    %8161 = vrot.lane.b32.xlu0 %v8160, 32
    %v8162 = vpop.permute.xlu0 %8161
    %v8163 = vunpack.c.l.b16 %v8065
    %v8164 = vunpack.c.l.b16 %v8113
    %v8165 = vpack.c.b16 %v8164, %v8163
    %8166 = vrot.lane.b32.xlu0 %v8165, 48
    %v8167 = vpop.permute.xlu0 %8166
    %v8168 = vunpack.c.l.b16 %v8068
    %v8169 = vunpack.c.l.b16 %v8116
    %v8170 = vpack.c.b16 %v8169, %v8168
    %8171 = vrot.lane.b32.xlu0 %v8170, 64
    %v8172 = vpop.permute.xlu0 %8171
    %v8173 = vunpack.c.l.b16 %v8071
    %v8174 = vunpack.c.l.b16 %v8119
    %v8175 = vpack.c.b16 %v8174, %v8173
    %8176 = vrot.lane.b32.xlu0 %v8175, 80
    %v8177 = vpop.permute.xlu0 %8176
    %v8178 = vunpack.c.l.b16 %v8074
    %v8179 = vunpack.c.l.b16 %v8122
    %v8180 = vpack.c.b16 %v8179, %v8178
    %8181 = vrot.lane.b32.xlu0 %v8180, 96
    %v8182 = vpop.permute.xlu0 %8181
    %v8183 = vunpack.c.l.b16 %v8077
    %v8184 = vunpack.c.l.b16 %v8125
    %v8185 = vpack.c.b16 %v8184, %v8183
    %8186 = vrot.lane.b32.xlu0 %v8185, 112
    %v8187 = vpop.permute.xlu0 %8186
    %v8188 = vunpack.c.l.b16 %v8080
    %v8189 = vunpack.c.l.b16 %v8128
    %v8190 = vpack.c.b16 %v8189, %v8188
    %v8191 = vunpack.c.l.b16 %v8083
    %v8192 = vunpack.c.l.b16 %v8131
    %v8193 = vpack.c.b16 %v8192, %v8191
    %8194 = vrot.lane.b32.xlu0 %v8193, 16
    %v8195 = vpop.permute.xlu0 %8194
    %v8196 = vunpack.c.l.b16 %v8086
    %v8197 = vunpack.c.l.b16 %v8134
    %v8198 = vpack.c.b16 %v8197, %v8196
    %8199 = vrot.lane.b32.xlu0 %v8198, 32
    %v8200 = vpop.permute.xlu0 %8199
    %v8201 = vunpack.c.l.b16 %v8089
    %v8202 = vunpack.c.l.b16 %v8137
    %v8203 = vpack.c.b16 %v8202, %v8201
    %8204 = vrot.lane.b32.xlu0 %v8203, 48
    %v8205 = vpop.permute.xlu0 %8204
    %v8206 = vunpack.c.l.b16 %v8092
    %v8207 = vunpack.c.l.b16 %v8140
    %v8208 = vpack.c.b16 %v8207, %v8206
    %8209 = vrot.lane.b32.xlu0 %v8208, 64
    %v8210 = vpop.permute.xlu0 %8209
    %v8211 = vunpack.c.l.b16 %v8095
    %v8212 = vunpack.c.l.b16 %v8143
    %v8213 = vpack.c.b16 %v8212, %v8211
    %8214 = vrot.lane.b32.xlu0 %v8213, 80
    %v8215 = vpop.permute.xlu0 %8214
    %v8216 = vunpack.c.l.b16 %v8098
    %v8217 = vunpack.c.l.b16 %v8146
    %v8218 = vpack.c.b16 %v8217, %v8216
    %8219 = vrot.lane.b32.xlu0 %v8218, 96
    %v8220 = vpop.permute.xlu0 %8219
    %v8221 = vunpack.c.l.b16 %v8101
    %v8222 = vunpack.c.l.b16 %v8149
    %v8223 = vpack.c.b16 %v8222, %v8221
    %8224 = vrot.lane.b32.xlu0 %v8223, 112
    %v8225 = vpop.permute.xlu0 %8224
    %v8228 = vsel %vm508, %v8152, %v8157
    %v8230 = vsel %vm512, %v8228, %v8162
    %v8232 = vsel %vm515, %v8230, %v8167
    %v8234 = vsel %vm518, %v8232, %v8172
    %v8236 = vsel %vm521, %v8234, %v8177
    %v8238 = vsel %vm524, %v8236, %v8182
    %v8240 = vsel %vm527, %v8238, %v8187
    %v8243 = vsel %vm508, %v8190, %v8195
    %v8245 = vsel %vm512, %v8243, %v8200
    %v8247 = vsel %vm515, %v8245, %v8205
    %v8249 = vsel %vm518, %v8247, %v8210
    %v8251 = vsel %vm521, %v8249, %v8215
    %v8253 = vsel %vm524, %v8251, %v8220
    %v8255 = vsel %vm527, %v8253, %v8225
    %v8258 = vunpack.c.l.b16 %v8240
    %v8259 = vunpack.c.l.b16 %v8255
    %v8260 = vunpack.c.h.b16 %v8240
    %v8261 = vunpack.c.h.b16 %v8255
    %v8262 = vpack.c.b16 %v8259, %v8258
    %v8263 = vpack.c.b16 %v8261, %v8260
    %8266 = vst [vmem:[#allocation2 + $0x68] sm:$0xff] %v8262
    %8267 = vst [vmem:[#allocation2 + $0x78] sm:$0xff] %v8263
    %8268 = vrot.lane.b32.xlu0 %v7379, 127
    %v8269 = vpop.permute.xlu0 %8268
    %8270 = vrot.lane.b32.xlu0 %v7389, 127
    %v8271 = vpop.permute.xlu0 %8270
    %8272 = vrot.lane.b32.xlu0 %v7403, 127
    %v8273 = vpop.permute.xlu0 %8272
    %8274 = vrot.lane.b32.xlu0 %v7413, 127
    %v8275 = vpop.permute.xlu0 %8274
    %8276 = vrot.lane.b32.xlu0 %v7427, 127
    %v8277 = vpop.permute.xlu0 %8276
    %8278 = vrot.lane.b32.xlu0 %v7437, 127
    %v8279 = vpop.permute.xlu0 %8278
    %8280 = vrot.lane.b32.xlu0 %v7451, 127
    %v8281 = vpop.permute.xlu0 %8280
    %8282 = vrot.lane.b32.xlu0 %v7461, 127
    %v8283 = vpop.permute.xlu0 %8282
    %8284 = vrot.lane.b32.xlu0 %v7475, 127
    %v8285 = vpop.permute.xlu0 %8284
    %8286 = vrot.lane.b32.xlu0 %v7485, 127
    %v8287 = vpop.permute.xlu0 %8286
    %8288 = vrot.lane.b32.xlu0 %v7499, 127
    %v8289 = vpop.permute.xlu0 %8288
    %8290 = vrot.lane.b32.xlu0 %v7509, 127
    %v8291 = vpop.permute.xlu0 %8290
    %8292 = vrot.lane.b32.xlu0 %v7523, 127
    %v8293 = vpop.permute.xlu0 %8292
    %8294 = vrot.lane.b32.xlu0 %v7533, 127
    %v8295 = vpop.permute.xlu0 %8294
    %8296 = vrot.lane.b32.xlu0 %v7547, 127
    %v8297 = vpop.permute.xlu0 %8296
    %8298 = vrot.lane.b32.xlu0 %v7557, 127
    %v8299 = vpop.permute.xlu0 %8298
    %8300 = vrot.lane.b32.xlu0 %v7571, 127
    %v8301 = vpop.permute.xlu0 %8300
    %8302 = vrot.lane.b32.xlu0 %v7581, 127
    %v8303 = vpop.permute.xlu0 %8302
    %8304 = vrot.lane.b32.xlu0 %v7595, 127
    %v8305 = vpop.permute.xlu0 %8304
    %8306 = vrot.lane.b32.xlu0 %v7605, 127
    %v8307 = vpop.permute.xlu0 %8306
    %8308 = vrot.lane.b32.xlu0 %v7619, 127
    %v8309 = vpop.permute.xlu0 %8308
    %8310 = vrot.lane.b32.xlu0 %v7629, 127
    %v8311 = vpop.permute.xlu0 %8310
    %8312 = vrot.lane.b32.xlu0 %v7643, 127
    %v8313 = vpop.permute.xlu0 %8312
    %8314 = vrot.lane.b32.xlu0 %v7653, 127
    %v8315 = vpop.permute.xlu0 %8314
    %8316 = vrot.lane.b32.xlu0 %v7667, 127
    %v8317 = vpop.permute.xlu0 %8316
    %8318 = vrot.lane.b32.xlu0 %v7677, 127
    %v8319 = vpop.permute.xlu0 %8318
    %8320 = vrot.lane.b32.xlu0 %v7691, 127
    %v8321 = vpop.permute.xlu0 %8320
    %8322 = vrot.lane.b32.xlu0 %v7701, 127
    %v8323 = vpop.permute.xlu0 %8322
    %8324 = vrot.lane.b32.xlu0 %v7715, 127
    %v8325 = vpop.permute.xlu0 %8324
    %8326 = vrot.lane.b32.xlu0 %v7725, 127
    %v8327 = vpop.permute.xlu0 %8326
    %8328 = vrot.lane.b32.xlu0 %v7739, 127
    %v8329 = vpop.permute.xlu0 %8328
    %8330 = vrot.lane.b32.xlu0 %v7749, 127
    %v8331 = vpop.permute.xlu0 %8330
    %v8364 = vcombine.low %v8269, %v8285
    %v8366 = vunpack.c.l.s4 1983009808
    %v8367 = vunpack.c.0.s8 %v8366
    %v8368 = vlaneseq
    %v8369 = vshrl.u32 %v8368, 7
    %v8370 = vsub.s32 %v8367, %v8369
    %v8371 = vrot.slane %v8364, %v8370
    %v8372 = vcombine.low %v8277, %v8293
    %v8374 = vunpack.c.l.s4 1983009808
    %v8375 = vunpack.c.0.s8 %v8374
    %v8376 = vlaneseq
    %v8377 = vshrl.u32 %v8376, 7
    %v8378 = vsub.s32 %v8375, %v8377
    %v8379 = vrot.slane %v8372, %v8378
    %v8380 = vcombine.low %v8371, %v8379
    %v8381 = vcombine.high %v8371, %v8379
    %v8383 = vunpack.c.l.s4 1934713408
    %v8384 = vunpack.c.0.s8 %v8383
    %v8385 = vlaneseq
    %v8386 = vshrl.u32 %v8385, 7
    %v8387 = vsub.s32 %v8384, %v8386
    %v8388 = vrot.slane %v8380, %v8387
    %v8390 = vunpack.c.l.s4 1934713408
    %v8391 = vunpack.c.0.s8 %v8390
    %v8392 = vlaneseq
    %v8393 = vshrl.u32 %v8392, 7
    %v8394 = vsub.s32 %v8391, %v8393
    %v8395 = vrot.slane %v8381, %v8394
    %v8396 = vcombine.high %v8388, 0
    %v8397 = vcombine.high %v8395, 0
    %v8398 = vcombine.low %v8273, %v8289
    %v8400 = vunpack.c.l.s4 1983009808
    %v8401 = vunpack.c.0.s8 %v8400
    %v8402 = vlaneseq
    %v8403 = vshrl.u32 %v8402, 7
    %v8404 = vsub.s32 %v8401, %v8403
    %v8405 = vrot.slane %v8398, %v8404
    %v8406 = vcombine.low %v8281, %v8297
    %v8408 = vunpack.c.l.s4 1983009808
    %v8409 = vunpack.c.0.s8 %v8408
    %v8410 = vlaneseq
    %v8411 = vshrl.u32 %v8410, 7
    %v8412 = vsub.s32 %v8409, %v8411
    %v8413 = vrot.slane %v8406, %v8412
    %v8414 = vcombine.low %v8405, %v8413
    %v8415 = vcombine.high %v8405, %v8413
    %v8417 = vunpack.c.l.s4 1934713408
    %v8418 = vunpack.c.0.s8 %v8417
    %v8419 = vlaneseq
    %v8420 = vshrl.u32 %v8419, 7
    %v8421 = vsub.s32 %v8418, %v8420
    %v8422 = vrot.slane %v8414, %v8421
    %v8424 = vunpack.c.l.s4 1934713408
    %v8425 = vunpack.c.0.s8 %v8424
    %v8426 = vlaneseq
    %v8427 = vshrl.u32 %v8426, 7
    %v8428 = vsub.s32 %v8425, %v8427
    %v8429 = vrot.slane %v8415, %v8428
    %v8430 = vcombine.high %v8422, 0
    %v8431 = vcombine.high %v8429, 0
    %v8432 = vcombine.low %v8301, %v8317
    %v8434 = vunpack.c.l.s4 1983009808
    %v8435 = vunpack.c.0.s8 %v8434
    %v8436 = vlaneseq
    %v8437 = vshrl.u32 %v8436, 7
    %v8438 = vsub.s32 %v8435, %v8437
    %v8439 = vrot.slane %v8432, %v8438
    %v8440 = vcombine.low %v8309, %v8325
    %v8442 = vunpack.c.l.s4 1983009808
    %v8443 = vunpack.c.0.s8 %v8442
    %v8444 = vlaneseq
    %v8445 = vshrl.u32 %v8444, 7
    %v8446 = vsub.s32 %v8443, %v8445
    %v8447 = vrot.slane %v8440, %v8446
    %v8448 = vcombine.low %v8439, %v8447
    %v8449 = vcombine.high %v8439, %v8447
    %v8451 = vunpack.c.l.s4 1934713408
    %v8452 = vunpack.c.0.s8 %v8451
    %v8453 = vlaneseq
    %v8454 = vshrl.u32 %v8453, 7
    %v8455 = vsub.s32 %v8452, %v8454
    %v8456 = vrot.slane %v8448, %v8455
    %v8458 = vunpack.c.l.s4 1934713408
    %v8459 = vunpack.c.0.s8 %v8458
    %v8460 = vlaneseq
    %v8461 = vshrl.u32 %v8460, 7
    %v8462 = vsub.s32 %v8459, %v8461
    %v8463 = vrot.slane %v8449, %v8462
    %v8464 = vcombine.high %v8456, 0
    %v8465 = vcombine.high %v8463, 0
    %v8466 = vcombine.low %v8305, %v8321
    %v8468 = vunpack.c.l.s4 1983009808
    %v8469 = vunpack.c.0.s8 %v8468
    %v8470 = vlaneseq
    %v8471 = vshrl.u32 %v8470, 7
    %v8472 = vsub.s32 %v8469, %v8471
    %v8473 = vrot.slane %v8466, %v8472
    %v8474 = vcombine.low %v8313, %v8329
    %v8476 = vunpack.c.l.s4 1983009808
    %v8477 = vunpack.c.0.s8 %v8476
    %v8478 = vlaneseq
    %v8479 = vshrl.u32 %v8478, 7
    %v8480 = vsub.s32 %v8477, %v8479
    %v8481 = vrot.slane %v8474, %v8480
    %v8482 = vcombine.low %v8473, %v8481
    %v8483 = vcombine.high %v8473, %v8481
    %v8485 = vunpack.c.l.s4 1934713408
    %v8486 = vunpack.c.0.s8 %v8485
    %v8487 = vlaneseq
    %v8488 = vshrl.u32 %v8487, 7
    %v8489 = vsub.s32 %v8486, %v8488
    %v8490 = vrot.slane %v8482, %v8489
    %v8492 = vunpack.c.l.s4 1934713408
    %v8493 = vunpack.c.0.s8 %v8492
    %v8494 = vlaneseq
    %v8495 = vshrl.u32 %v8494, 7
    %v8496 = vsub.s32 %v8493, %v8495
    %v8497 = vrot.slane %v8483, %v8496
    %v8498 = vcombine.high %v8490, 0
    %v8499 = vcombine.high %v8497, 0
    %v8500 = vcombine.low %v8271, %v8287
    %v8502 = vunpack.c.l.s4 1983009808
    %v8503 = vunpack.c.0.s8 %v8502
    %v8504 = vlaneseq
    %v8505 = vshrl.u32 %v8504, 7
    %v8506 = vsub.s32 %v8503, %v8505
    %v8507 = vrot.slane %v8500, %v8506
    %v8508 = vcombine.low %v8279, %v8295
    %v8510 = vunpack.c.l.s4 1983009808
    %v8511 = vunpack.c.0.s8 %v8510
    %v8512 = vlaneseq
    %v8513 = vshrl.u32 %v8512, 7
    %v8514 = vsub.s32 %v8511, %v8513
    %v8515 = vrot.slane %v8508, %v8514
    %v8516 = vcombine.low %v8507, %v8515
    %v8517 = vcombine.high %v8507, %v8515
    %v8519 = vunpack.c.l.s4 1934713408
    %v8520 = vunpack.c.0.s8 %v8519
    %v8521 = vlaneseq
    %v8522 = vshrl.u32 %v8521, 7
    %v8523 = vsub.s32 %v8520, %v8522
    %v8524 = vrot.slane %v8516, %v8523
    %v8526 = vunpack.c.l.s4 1934713408
    %v8527 = vunpack.c.0.s8 %v8526
    %v8528 = vlaneseq
    %v8529 = vshrl.u32 %v8528, 7
    %v8530 = vsub.s32 %v8527, %v8529
    %v8531 = vrot.slane %v8517, %v8530
    %v8532 = vcombine.high %v8524, 0
    %v8533 = vcombine.high %v8531, 0
    %v8534 = vcombine.low %v8275, %v8291
    %v8536 = vunpack.c.l.s4 1983009808
    %v8537 = vunpack.c.0.s8 %v8536
    %v8538 = vlaneseq
    %v8539 = vshrl.u32 %v8538, 7
    %v8540 = vsub.s32 %v8537, %v8539
    %v8541 = vrot.slane %v8534, %v8540
    %v8542 = vcombine.low %v8283, %v8299
    %v8544 = vunpack.c.l.s4 1983009808
    %v8545 = vunpack.c.0.s8 %v8544
    %v8546 = vlaneseq
    %v8547 = vshrl.u32 %v8546, 7
    %v8548 = vsub.s32 %v8545, %v8547
    %v8549 = vrot.slane %v8542, %v8548
    %v8550 = vcombine.low %v8541, %v8549
    %v8551 = vcombine.high %v8541, %v8549
    %v8553 = vunpack.c.l.s4 1934713408
    %v8554 = vunpack.c.0.s8 %v8553
    %v8555 = vlaneseq
    %v8556 = vshrl.u32 %v8555, 7
    %v8557 = vsub.s32 %v8554, %v8556
    %v8558 = vrot.slane %v8550, %v8557
    %v8560 = vunpack.c.l.s4 1934713408
    %v8561 = vunpack.c.0.s8 %v8560
    %v8562 = vlaneseq
    %v8563 = vshrl.u32 %v8562, 7
    %v8564 = vsub.s32 %v8561, %v8563
    %v8565 = vrot.slane %v8551, %v8564
    %v8566 = vcombine.high %v8558, 0
    %v8567 = vcombine.high %v8565, 0
    %v8568 = vcombine.low %v8303, %v8319
    %v8570 = vunpack.c.l.s4 1983009808
    %v8571 = vunpack.c.0.s8 %v8570
    %v8572 = vlaneseq
    %v8573 = vshrl.u32 %v8572, 7
    %v8574 = vsub.s32 %v8571, %v8573
    %v8575 = vrot.slane %v8568, %v8574
    %v8576 = vcombine.low %v8311, %v8327
    %v8578 = vunpack.c.l.s4 1983009808
    %v8579 = vunpack.c.0.s8 %v8578
    %v8580 = vlaneseq
    %v8581 = vshrl.u32 %v8580, 7
    %v8582 = vsub.s32 %v8579, %v8581
    %v8583 = vrot.slane %v8576, %v8582
    %v8584 = vcombine.low %v8575, %v8583
    %v8585 = vcombine.high %v8575, %v8583
    %v8587 = vunpack.c.l.s4 1934713408
    %v8588 = vunpack.c.0.s8 %v8587
    %v8589 = vlaneseq
    %v8590 = vshrl.u32 %v8589, 7
    %v8591 = vsub.s32 %v8588, %v8590
    %v8592 = vrot.slane %v8584, %v8591
    %v8594 = vunpack.c.l.s4 1934713408
    %v8595 = vunpack.c.0.s8 %v8594
    %v8596 = vlaneseq
    %v8597 = vshrl.u32 %v8596, 7
    %v8598 = vsub.s32 %v8595, %v8597
    %v8599 = vrot.slane %v8585, %v8598
    %v8600 = vcombine.high %v8592, 0
    %v8601 = vcombine.high %v8599, 0
    %v8602 = vcombine.low %v8307, %v8323
    %v8604 = vunpack.c.l.s4 1983009808
    %v8605 = vunpack.c.0.s8 %v8604
    %v8606 = vlaneseq
    %v8607 = vshrl.u32 %v8606, 7
    %v8608 = vsub.s32 %v8605, %v8607
    %v8609 = vrot.slane %v8602, %v8608
    %v8610 = vcombine.low %v8315, %v8331
    %v8612 = vunpack.c.l.s4 1983009808
    %v8613 = vunpack.c.0.s8 %v8612
    %v8614 = vlaneseq
    %v8615 = vshrl.u32 %v8614, 7
    %v8616 = vsub.s32 %v8613, %v8615
    %v8617 = vrot.slane %v8610, %v8616
    %v8618 = vcombine.low %v8609, %v8617
    %v8619 = vcombine.high %v8609, %v8617
    %v8621 = vunpack.c.l.s4 1934713408
    %v8622 = vunpack.c.0.s8 %v8621
    %v8623 = vlaneseq
    %v8624 = vshrl.u32 %v8623, 7
    %v8625 = vsub.s32 %v8622, %v8624
    %v8626 = vrot.slane %v8618, %v8625
    %v8628 = vunpack.c.l.s4 1934713408
    %v8629 = vunpack.c.0.s8 %v8628
    %v8630 = vlaneseq
    %v8631 = vshrl.u32 %v8630, 7
    %v8632 = vsub.s32 %v8629, %v8631
    %v8633 = vrot.slane %v8619, %v8632
    %v8634 = vcombine.high %v8626, 0
    %v8635 = vcombine.high %v8633, 0
    %v8638 = vpack.i.b16 %v8422, %v8388
    %v8639 = vshrl.u32 %v8388, 16
    %v8640 = vshrl.u32 %v8422, 16
    %v8641 = vpack.i.b16 %v8640, %v8639
    %v8644 = vpack.i.b16 %v8430, %v8396
    %v8645 = vshrl.u32 %v8396, 16
    %v8646 = vshrl.u32 %v8430, 16
    %v8647 = vpack.i.b16 %v8646, %v8645
    %v8650 = vpack.i.b16 %v8429, %v8395
    %v8651 = vshrl.u32 %v8395, 16
    %v8652 = vshrl.u32 %v8429, 16
    %v8653 = vpack.i.b16 %v8652, %v8651
    %v8656 = vpack.i.b16 %v8431, %v8397
    %v8657 = vshrl.u32 %v8397, 16
    %v8658 = vshrl.u32 %v8431, 16
    %v8659 = vpack.i.b16 %v8658, %v8657
    %v8662 = vpack.i.b16 %v8558, %v8524
    %v8663 = vshrl.u32 %v8524, 16
    %v8664 = vshrl.u32 %v8558, 16
    %v8665 = vpack.i.b16 %v8664, %v8663
    %v8668 = vpack.i.b16 %v8566, %v8532
    %v8669 = vshrl.u32 %v8532, 16
    %v8670 = vshrl.u32 %v8566, 16
    %v8671 = vpack.i.b16 %v8670, %v8669
    %v8674 = vpack.i.b16 %v8565, %v8531
    %v8675 = vshrl.u32 %v8531, 16
    %v8676 = vshrl.u32 %v8565, 16
    %v8677 = vpack.i.b16 %v8676, %v8675
    %v8680 = vpack.i.b16 %v8567, %v8533
    %v8681 = vshrl.u32 %v8533, 16
    %v8682 = vshrl.u32 %v8567, 16
    %v8683 = vpack.i.b16 %v8682, %v8681
    %v8686 = vpack.i.b16 %v8490, %v8456
    %v8687 = vshrl.u32 %v8456, 16
    %v8688 = vshrl.u32 %v8490, 16
    %v8689 = vpack.i.b16 %v8688, %v8687
    %v8692 = vpack.i.b16 %v8498, %v8464
    %v8693 = vshrl.u32 %v8464, 16
    %v8694 = vshrl.u32 %v8498, 16
    %v8695 = vpack.i.b16 %v8694, %v8693
    %v8698 = vpack.i.b16 %v8497, %v8463
    %v8699 = vshrl.u32 %v8463, 16
    %v8700 = vshrl.u32 %v8497, 16
    %v8701 = vpack.i.b16 %v8700, %v8699
    %v8704 = vpack.i.b16 %v8499, %v8465
    %v8705 = vshrl.u32 %v8465, 16
    %v8706 = vshrl.u32 %v8499, 16
    %v8707 = vpack.i.b16 %v8706, %v8705
    %v8710 = vpack.i.b16 %v8626, %v8592
    %v8711 = vshrl.u32 %v8592, 16
    %v8712 = vshrl.u32 %v8626, 16
    %v8713 = vpack.i.b16 %v8712, %v8711
    %v8716 = vpack.i.b16 %v8634, %v8600
    %v8717 = vshrl.u32 %v8600, 16
    %v8718 = vshrl.u32 %v8634, 16
    %v8719 = vpack.i.b16 %v8718, %v8717
    %v8722 = vpack.i.b16 %v8633, %v8599
    %v8723 = vshrl.u32 %v8599, 16
    %v8724 = vshrl.u32 %v8633, 16
    %v8725 = vpack.i.b16 %v8724, %v8723
    %v8728 = vpack.i.b16 %v8635, %v8601
    %v8729 = vshrl.u32 %v8601, 16
    %v8730 = vshrl.u32 %v8635, 16
    %v8731 = vpack.i.b16 %v8730, %v8729
    %v8732 = vunpack.c.l.b16 %v8638
    %v8733 = vunpack.c.l.b16 %v8686
    %v8734 = vpack.c.b16 %v8733, %v8732
    %v8735 = vunpack.c.l.b16 %v8641
    %v8736 = vunpack.c.l.b16 %v8689
    %v8737 = vpack.c.b16 %v8736, %v8735
    %8738 = vrot.lane.b32.xlu0 %v8737, 16
    %v8739 = vpop.permute.xlu0 %8738
    %v8740 = vunpack.c.l.b16 %v8644
    %v8741 = vunpack.c.l.b16 %v8692
    %v8742 = vpack.c.b16 %v8741, %v8740
    %8743 = vrot.lane.b32.xlu0 %v8742, 32
    %v8744 = vpop.permute.xlu0 %8743
    %v8745 = vunpack.c.l.b16 %v8647
    %v8746 = vunpack.c.l.b16 %v8695
    %v8747 = vpack.c.b16 %v8746, %v8745
    %8748 = vrot.lane.b32.xlu0 %v8747, 48
    %v8749 = vpop.permute.xlu0 %8748
    %v8750 = vunpack.c.l.b16 %v8650
    %v8751 = vunpack.c.l.b16 %v8698
    %v8752 = vpack.c.b16 %v8751, %v8750
    %8753 = vrot.lane.b32.xlu0 %v8752, 64
    %v8754 = vpop.permute.xlu0 %8753
    %v8755 = vunpack.c.l.b16 %v8653
    %v8756 = vunpack.c.l.b16 %v8701
    %v8757 = vpack.c.b16 %v8756, %v8755
    %8758 = vrot.lane.b32.xlu0 %v8757, 80
    %v8759 = vpop.permute.xlu0 %8758
    %v8760 = vunpack.c.l.b16 %v8656
    %v8761 = vunpack.c.l.b16 %v8704
    %v8762 = vpack.c.b16 %v8761, %v8760
    %8763 = vrot.lane.b32.xlu0 %v8762, 96
    %v8764 = vpop.permute.xlu0 %8763
    %v8765 = vunpack.c.l.b16 %v8659
    %v8766 = vunpack.c.l.b16 %v8707
    %v8767 = vpack.c.b16 %v8766, %v8765
    %8768 = vrot.lane.b32.xlu0 %v8767, 112
    %v8769 = vpop.permute.xlu0 %8768
    %v8770 = vunpack.c.l.b16 %v8662
    %v8771 = vunpack.c.l.b16 %v8710
    %v8772 = vpack.c.b16 %v8771, %v8770
    %v8773 = vunpack.c.l.b16 %v8665
    %v8774 = vunpack.c.l.b16 %v8713
    %v8775 = vpack.c.b16 %v8774, %v8773
    %8776 = vrot.lane.b32.xlu0 %v8775, 16
    %v8777 = vpop.permute.xlu0 %8776
    %v8778 = vunpack.c.l.b16 %v8668
    %v8779 = vunpack.c.l.b16 %v8716
    %v8780 = vpack.c.b16 %v8779, %v8778
    %8781 = vrot.lane.b32.xlu0 %v8780, 32
    %v8782 = vpop.permute.xlu0 %8781
    %v8783 = vunpack.c.l.b16 %v8671
    %v8784 = vunpack.c.l.b16 %v8719
    %v8785 = vpack.c.b16 %v8784, %v8783
    %8786 = vrot.lane.b32.xlu0 %v8785, 48
    %v8787 = vpop.permute.xlu0 %8786
    %v8788 = vunpack.c.l.b16 %v8674
    %v8789 = vunpack.c.l.b16 %v8722
    %v8790 = vpack.c.b16 %v8789, %v8788
    %8791 = vrot.lane.b32.xlu0 %v8790, 64
    %v8792 = vpop.permute.xlu0 %8791
    %v8793 = vunpack.c.l.b16 %v8677
    %v8794 = vunpack.c.l.b16 %v8725
    %v8795 = vpack.c.b16 %v8794, %v8793
    %8796 = vrot.lane.b32.xlu0 %v8795, 80
    %v8797 = vpop.permute.xlu0 %8796
    %v8798 = vunpack.c.l.b16 %v8680
    %v8799 = vunpack.c.l.b16 %v8728
    %v8800 = vpack.c.b16 %v8799, %v8798
    %8801 = vrot.lane.b32.xlu0 %v8800, 96
    %v8802 = vpop.permute.xlu0 %8801
    %v8803 = vunpack.c.l.b16 %v8683
    %v8804 = vunpack.c.l.b16 %v8731
    %v8805 = vpack.c.b16 %v8804, %v8803
    %8806 = vrot.lane.b32.xlu0 %v8805, 112
    %v8807 = vpop.permute.xlu0 %8806
    %v8810 = vsel %vm508, %v8734, %v8739
    %v8812 = vsel %vm512, %v8810, %v8744
    %v8814 = vsel %vm515, %v8812, %v8749
    %v8816 = vsel %vm518, %v8814, %v8754
    %v8818 = vsel %vm521, %v8816, %v8759
    %v8820 = vsel %vm524, %v8818, %v8764
    %v8822 = vsel %vm527, %v8820, %v8769
    %v8825 = vsel %vm508, %v8772, %v8777
    %v8827 = vsel %vm512, %v8825, %v8782
    %v8829 = vsel %vm515, %v8827, %v8787
    %v8831 = vsel %vm518, %v8829, %v8792
    %v8833 = vsel %vm521, %v8831, %v8797
    %v8835 = vsel %vm524, %v8833, %v8802
    %v8837 = vsel %vm527, %v8835, %v8807
    %v8840 = vunpack.c.l.b16 %v8822
    %v8841 = vunpack.c.l.b16 %v8837
    %v8842 = vunpack.c.h.b16 %v8822
    %v8843 = vunpack.c.h.b16 %v8837
    %v8844 = vpack.c.b16 %v8841, %v8840
    %v8845 = vpack.c.b16 %v8843, %v8842
    %8848 = vst [vmem:[#allocation2 + $0x88] sm:$0xff] %v8844
    %8849 = vst [vmem:[#allocation2 + $0x98] sm:$0xff] %v8845
    %8850 = vrot.lane.b32.xlu0 %v7379, 126
    %v8851 = vpop.permute.xlu0 %8850
    %8852 = vrot.lane.b32.xlu0 %v7389, 126
    %v8853 = vpop.permute.xlu0 %8852
    %8854 = vrot.lane.b32.xlu0 %v7403, 126
    %v8855 = vpop.permute.xlu0 %8854
    %8856 = vrot.lane.b32.xlu0 %v7413, 126
    %v8857 = vpop.permute.xlu0 %8856
    %8858 = vrot.lane.b32.xlu0 %v7427, 126
    %v8859 = vpop.permute.xlu0 %8858
    %8860 = vrot.lane.b32.xlu0 %v7437, 126
    %v8861 = vpop.permute.xlu0 %8860
    %8862 = vrot.lane.b32.xlu0 %v7451, 126
    %v8863 = vpop.permute.xlu0 %8862
    %8864 = vrot.lane.b32.xlu0 %v7461, 126
    %v8865 = vpop.permute.xlu0 %8864
    %8866 = vrot.lane.b32.xlu0 %v7475, 126
    %v8867 = vpop.permute.xlu0 %8866
    %8868 = vrot.lane.b32.xlu0 %v7485, 126
    %v8869 = vpop.permute.xlu0 %8868
    %8870 = vrot.lane.b32.xlu0 %v7499, 126
    %v8871 = vpop.permute.xlu0 %8870
    %8872 = vrot.lane.b32.xlu0 %v7509, 126
    %v8873 = vpop.permute.xlu0 %8872
    %8874 = vrot.lane.b32.xlu0 %v7523, 126
    %v8875 = vpop.permute.xlu0 %8874
    %8876 = vrot.lane.b32.xlu0 %v7533, 126
    %v8877 = vpop.permute.xlu0 %8876
    %8878 = vrot.lane.b32.xlu0 %v7547, 126
    %v8879 = vpop.permute.xlu0 %8878
    %8880 = vrot.lane.b32.xlu0 %v7557, 126
    %v8881 = vpop.permute.xlu0 %8880
    %8882 = vrot.lane.b32.xlu0 %v7571, 126
    %v8883 = vpop.permute.xlu0 %8882
    %8884 = vrot.lane.b32.xlu0 %v7581, 126
    %v8885 = vpop.permute.xlu0 %8884
    %8886 = vrot.lane.b32.xlu0 %v7595, 126
    %v8887 = vpop.permute.xlu0 %8886
    %8888 = vrot.lane.b32.xlu0 %v7605, 126
    %v8889 = vpop.permute.xlu0 %8888
    %8890 = vrot.lane.b32.xlu0 %v7619, 126
    %v8891 = vpop.permute.xlu0 %8890
    %8892 = vrot.lane.b32.xlu0 %v7629, 126
    %v8893 = vpop.permute.xlu0 %8892
    %8894 = vrot.lane.b32.xlu0 %v7643, 126
    %v8895 = vpop.permute.xlu0 %8894
    %8896 = vrot.lane.b32.xlu0 %v7653, 126
    %v8897 = vpop.permute.xlu0 %8896
    %8898 = vrot.lane.b32.xlu0 %v7667, 126
    %v8899 = vpop.permute.xlu0 %8898
    %8900 = vrot.lane.b32.xlu0 %v7677, 126
    %v8901 = vpop.permute.xlu0 %8900
    %8902 = vrot.lane.b32.xlu0 %v7691, 126
    %v8903 = vpop.permute.xlu0 %8902
    %8904 = vrot.lane.b32.xlu0 %v7701, 126
    %v8905 = vpop.permute.xlu0 %8904
    %8906 = vrot.lane.b32.xlu0 %v7715, 126
    %v8907 = vpop.permute.xlu0 %8906
    %8908 = vrot.lane.b32.xlu0 %v7725, 126
    %v8909 = vpop.permute.xlu0 %8908
    %8910 = vrot.lane.b32.xlu0 %v7739, 126
    %v8911 = vpop.permute.xlu0 %8910
    %8912 = vrot.lane.b32.xlu0 %v7749, 126
    %v8913 = vpop.permute.xlu0 %8912
    %v8946 = vcombine.low %v8851, %v8867
    %v8948 = vunpack.c.l.s4 1983009808
    %v8949 = vunpack.c.0.s8 %v8948
    %v8950 = vlaneseq
    %v8951 = vshrl.u32 %v8950, 7
    %v8952 = vsub.s32 %v8949, %v8951
    %v8953 = vrot.slane %v8946, %v8952
    %v8954 = vcombine.low %v8859, %v8875
    %v8956 = vunpack.c.l.s4 1983009808
    %v8957 = vunpack.c.0.s8 %v8956
    %v8958 = vlaneseq
    %v8959 = vshrl.u32 %v8958, 7
    %v8960 = vsub.s32 %v8957, %v8959
    %v8961 = vrot.slane %v8954, %v8960
    %v8962 = vcombine.low %v8953, %v8961
    %v8963 = vcombine.high %v8953, %v8961
    %v8965 = vunpack.c.l.s4 1934713408
    %v8966 = vunpack.c.0.s8 %v8965
    %v8967 = vlaneseq
    %v8968 = vshrl.u32 %v8967, 7
    %v8969 = vsub.s32 %v8966, %v8968
    %v8970 = vrot.slane %v8962, %v8969
    %v8972 = vunpack.c.l.s4 1934713408
    %v8973 = vunpack.c.0.s8 %v8972
    %v8974 = vlaneseq
    %v8975 = vshrl.u32 %v8974, 7
    %v8976 = vsub.s32 %v8973, %v8975
    %v8977 = vrot.slane %v8963, %v8976
    %v8978 = vcombine.high %v8970, 0
    %v8979 = vcombine.high %v8977, 0
    %v8980 = vcombine.low %v8855, %v8871
    %v8982 = vunpack.c.l.s4 1983009808
    %v8983 = vunpack.c.0.s8 %v8982
    %v8984 = vlaneseq
    %v8985 = vshrl.u32 %v8984, 7
    %v8986 = vsub.s32 %v8983, %v8985
    %v8987 = vrot.slane %v8980, %v8986
    %v8988 = vcombine.low %v8863, %v8879
    %v8990 = vunpack.c.l.s4 1983009808
    %v8991 = vunpack.c.0.s8 %v8990
    %v8992 = vlaneseq
    %v8993 = vshrl.u32 %v8992, 7
    %v8994 = vsub.s32 %v8991, %v8993
    %v8995 = vrot.slane %v8988, %v8994
    %v8996 = vcombine.low %v8987, %v8995
    %v8997 = vcombine.high %v8987, %v8995
    %v8999 = vunpack.c.l.s4 1934713408
    %v9000 = vunpack.c.0.s8 %v8999
    %v9001 = vlaneseq
    %v9002 = vshrl.u32 %v9001, 7
    %v9003 = vsub.s32 %v9000, %v9002
    %v9004 = vrot.slane %v8996, %v9003
    %v9006 = vunpack.c.l.s4 1934713408
    %v9007 = vunpack.c.0.s8 %v9006
    %v9008 = vlaneseq
    %v9009 = vshrl.u32 %v9008, 7
    %v9010 = vsub.s32 %v9007, %v9009
    %v9011 = vrot.slane %v8997, %v9010
    %v9012 = vcombine.high %v9004, 0
    %v9013 = vcombine.high %v9011, 0
    %v9014 = vcombine.low %v8883, %v8899
    %v9016 = vunpack.c.l.s4 1983009808
    %v9017 = vunpack.c.0.s8 %v9016
    %v9018 = vlaneseq
    %v9019 = vshrl.u32 %v9018, 7
    %v9020 = vsub.s32 %v9017, %v9019
    %v9021 = vrot.slane %v9014, %v9020
    %v9022 = vcombine.low %v8891, %v8907
    %v9024 = vunpack.c.l.s4 1983009808
    %v9025 = vunpack.c.0.s8 %v9024
    %v9026 = vlaneseq
    %v9027 = vshrl.u32 %v9026, 7
    %v9028 = vsub.s32 %v9025, %v9027
    %v9029 = vrot.slane %v9022, %v9028
    %v9030 = vcombine.low %v9021, %v9029
    %v9031 = vcombine.high %v9021, %v9029
    %v9033 = vunpack.c.l.s4 1934713408
    %v9034 = vunpack.c.0.s8 %v9033
    %v9035 = vlaneseq
    %v9036 = vshrl.u32 %v9035, 7
    %v9037 = vsub.s32 %v9034, %v9036
    %v9038 = vrot.slane %v9030, %v9037
    %v9040 = vunpack.c.l.s4 1934713408
    %v9041 = vunpack.c.0.s8 %v9040
    %v9042 = vlaneseq
    %v9043 = vshrl.u32 %v9042, 7
    %v9044 = vsub.s32 %v9041, %v9043
    %v9045 = vrot.slane %v9031, %v9044
    %v9046 = vcombine.high %v9038, 0
    %v9047 = vcombine.high %v9045, 0
    %v9048 = vcombine.low %v8887, %v8903
    %v9050 = vunpack.c.l.s4 1983009808
    %v9051 = vunpack.c.0.s8 %v9050
    %v9052 = vlaneseq
    %v9053 = vshrl.u32 %v9052, 7
    %v9054 = vsub.s32 %v9051, %v9053
    %v9055 = vrot.slane %v9048, %v9054
    %v9056 = vcombine.low %v8895, %v8911
    %v9058 = vunpack.c.l.s4 1983009808
    %v9059 = vunpack.c.0.s8 %v9058
    %v9060 = vlaneseq
    %v9061 = vshrl.u32 %v9060, 7
    %v9062 = vsub.s32 %v9059, %v9061
    %v9063 = vrot.slane %v9056, %v9062
    %v9064 = vcombine.low %v9055, %v9063
    %v9065 = vcombine.high %v9055, %v9063
    %v9067 = vunpack.c.l.s4 1934713408
    %v9068 = vunpack.c.0.s8 %v9067
    %v9069 = vlaneseq
    %v9070 = vshrl.u32 %v9069, 7
    %v9071 = vsub.s32 %v9068, %v9070
    %v9072 = vrot.slane %v9064, %v9071
    %v9074 = vunpack.c.l.s4 1934713408
    %v9075 = vunpack.c.0.s8 %v9074
    %v9076 = vlaneseq
    %v9077 = vshrl.u32 %v9076, 7
    %v9078 = vsub.s32 %v9075, %v9077
    %v9079 = vrot.slane %v9065, %v9078
    %v9080 = vcombine.high %v9072, 0
    %v9081 = vcombine.high %v9079, 0
    %v9082 = vcombine.low %v8853, %v8869
    %v9084 = vunpack.c.l.s4 1983009808
    %v9085 = vunpack.c.0.s8 %v9084
    %v9086 = vlaneseq
    %v9087 = vshrl.u32 %v9086, 7
    %v9088 = vsub.s32 %v9085, %v9087
    %v9089 = vrot.slane %v9082, %v9088
    %v9090 = vcombine.low %v8861, %v8877
    %v9092 = vunpack.c.l.s4 1983009808
    %v9093 = vunpack.c.0.s8 %v9092
    %v9094 = vlaneseq
    %v9095 = vshrl.u32 %v9094, 7
    %v9096 = vsub.s32 %v9093, %v9095
    %v9097 = vrot.slane %v9090, %v9096
    %v9098 = vcombine.low %v9089, %v9097
    %v9099 = vcombine.high %v9089, %v9097
    %v9101 = vunpack.c.l.s4 1934713408
    %v9102 = vunpack.c.0.s8 %v9101
    %v9103 = vlaneseq
    %v9104 = vshrl.u32 %v9103, 7
    %v9105 = vsub.s32 %v9102, %v9104
    %v9106 = vrot.slane %v9098, %v9105
    %v9108 = vunpack.c.l.s4 1934713408
    %v9109 = vunpack.c.0.s8 %v9108
    %v9110 = vlaneseq
    %v9111 = vshrl.u32 %v9110, 7
    %v9112 = vsub.s32 %v9109, %v9111
    %v9113 = vrot.slane %v9099, %v9112
    %v9114 = vcombine.high %v9106, 0
    %v9115 = vcombine.high %v9113, 0
    %v9116 = vcombine.low %v8857, %v8873
    %v9118 = vunpack.c.l.s4 1983009808
    %v9119 = vunpack.c.0.s8 %v9118
    %v9120 = vlaneseq
    %v9121 = vshrl.u32 %v9120, 7
    %v9122 = vsub.s32 %v9119, %v9121
    %v9123 = vrot.slane %v9116, %v9122
    %v9124 = vcombine.low %v8865, %v8881
    %v9126 = vunpack.c.l.s4 1983009808
    %v9127 = vunpack.c.0.s8 %v9126
    %v9128 = vlaneseq
    %v9129 = vshrl.u32 %v9128, 7
    %v9130 = vsub.s32 %v9127, %v9129
    %v9131 = vrot.slane %v9124, %v9130
    %v9132 = vcombine.low %v9123, %v9131
    %v9133 = vcombine.high %v9123, %v9131
    %v9135 = vunpack.c.l.s4 1934713408
    %v9136 = vunpack.c.0.s8 %v9135
    %v9137 = vlaneseq
    %v9138 = vshrl.u32 %v9137, 7
    %v9139 = vsub.s32 %v9136, %v9138
    %v9140 = vrot.slane %v9132, %v9139
    %v9142 = vunpack.c.l.s4 1934713408
    %v9143 = vunpack.c.0.s8 %v9142
    %v9144 = vlaneseq
    %v9145 = vshrl.u32 %v9144, 7
    %v9146 = vsub.s32 %v9143, %v9145
    %v9147 = vrot.slane %v9133, %v9146
    %v9148 = vcombine.high %v9140, 0
    %v9149 = vcombine.high %v9147, 0
    %v9150 = vcombine.low %v8885, %v8901
    %v9152 = vunpack.c.l.s4 1983009808
    %v9153 = vunpack.c.0.s8 %v9152
    %v9154 = vlaneseq
    %v9155 = vshrl.u32 %v9154, 7
    %v9156 = vsub.s32 %v9153, %v9155
    %v9157 = vrot.slane %v9150, %v9156
    %v9158 = vcombine.low %v8893, %v8909
    %v9160 = vunpack.c.l.s4 1983009808
    %v9161 = vunpack.c.0.s8 %v9160
    %v9162 = vlaneseq
    %v9163 = vshrl.u32 %v9162, 7
    %v9164 = vsub.s32 %v9161, %v9163
    %v9165 = vrot.slane %v9158, %v9164
    %v9166 = vcombine.low %v9157, %v9165
    %v9167 = vcombine.high %v9157, %v9165
    %v9169 = vunpack.c.l.s4 1934713408
    %v9170 = vunpack.c.0.s8 %v9169
    %v9171 = vlaneseq
    %v9172 = vshrl.u32 %v9171, 7
    %v9173 = vsub.s32 %v9170, %v9172
    %v9174 = vrot.slane %v9166, %v9173
    %v9176 = vunpack.c.l.s4 1934713408
    %v9177 = vunpack.c.0.s8 %v9176
    %v9178 = vlaneseq
    %v9179 = vshrl.u32 %v9178, 7
    %v9180 = vsub.s32 %v9177, %v9179
    %v9181 = vrot.slane %v9167, %v9180
    %v9182 = vcombine.high %v9174, 0
    %v9183 = vcombine.high %v9181, 0
    %v9184 = vcombine.low %v8889, %v8905
    %v9186 = vunpack.c.l.s4 1983009808
    %v9187 = vunpack.c.0.s8 %v9186
    %v9188 = vlaneseq
    %v9189 = vshrl.u32 %v9188, 7
    %v9190 = vsub.s32 %v9187, %v9189
    %v9191 = vrot.slane %v9184, %v9190
    %v9192 = vcombine.low %v8897, %v8913
    %v9194 = vunpack.c.l.s4 1983009808
    %v9195 = vunpack.c.0.s8 %v9194
    %v9196 = vlaneseq
    %v9197 = vshrl.u32 %v9196, 7
    %v9198 = vsub.s32 %v9195, %v9197
    %v9199 = vrot.slane %v9192, %v9198
    %v9200 = vcombine.low %v9191, %v9199
    %v9201 = vcombine.high %v9191, %v9199
    %v9203 = vunpack.c.l.s4 1934713408
    %v9204 = vunpack.c.0.s8 %v9203
    %v9205 = vlaneseq
    %v9206 = vshrl.u32 %v9205, 7
    %v9207 = vsub.s32 %v9204, %v9206
    %v9208 = vrot.slane %v9200, %v9207
    %v9210 = vunpack.c.l.s4 1934713408
    %v9211 = vunpack.c.0.s8 %v9210
    %v9212 = vlaneseq
    %v9213 = vshrl.u32 %v9212, 7
    %v9214 = vsub.s32 %v9211, %v9213
    %v9215 = vrot.slane %v9201, %v9214
    %v9216 = vcombine.high %v9208, 0
    %v9217 = vcombine.high %v9215, 0
    %v9220 = vpack.i.b16 %v9004, %v8970
    %v9221 = vshrl.u32 %v8970, 16
    %v9222 = vshrl.u32 %v9004, 16
    %v9223 = vpack.i.b16 %v9222, %v9221
    %v9226 = vpack.i.b16 %v9012, %v8978
    %v9227 = vshrl.u32 %v8978, 16
    %v9228 = vshrl.u32 %v9012, 16
    %v9229 = vpack.i.b16 %v9228, %v9227
    %v9232 = vpack.i.b16 %v9011, %v8977
    %v9233 = vshrl.u32 %v8977, 16
    %v9234 = vshrl.u32 %v9011, 16
    %v9235 = vpack.i.b16 %v9234, %v9233
    %v9238 = vpack.i.b16 %v9013, %v8979
    %v9239 = vshrl.u32 %v8979, 16
    %v9240 = vshrl.u32 %v9013, 16
    %v9241 = vpack.i.b16 %v9240, %v9239
    %v9244 = vpack.i.b16 %v9140, %v9106
    %v9245 = vshrl.u32 %v9106, 16
    %v9246 = vshrl.u32 %v9140, 16
    %v9247 = vpack.i.b16 %v9246, %v9245
    %v9250 = vpack.i.b16 %v9148, %v9114
    %v9251 = vshrl.u32 %v9114, 16
    %v9252 = vshrl.u32 %v9148, 16
    %v9253 = vpack.i.b16 %v9252, %v9251
    %v9256 = vpack.i.b16 %v9147, %v9113
    %v9257 = vshrl.u32 %v9113, 16
    %v9258 = vshrl.u32 %v9147, 16
    %v9259 = vpack.i.b16 %v9258, %v9257
    %v9262 = vpack.i.b16 %v9149, %v9115
    %v9263 = vshrl.u32 %v9115, 16
    %v9264 = vshrl.u32 %v9149, 16
    %v9265 = vpack.i.b16 %v9264, %v9263
    %v9268 = vpack.i.b16 %v9072, %v9038
    %v9269 = vshrl.u32 %v9038, 16
    %v9270 = vshrl.u32 %v9072, 16
    %v9271 = vpack.i.b16 %v9270, %v9269
    %v9274 = vpack.i.b16 %v9080, %v9046
    %v9275 = vshrl.u32 %v9046, 16
    %v9276 = vshrl.u32 %v9080, 16
    %v9277 = vpack.i.b16 %v9276, %v9275
    %v9280 = vpack.i.b16 %v9079, %v9045
    %v9281 = vshrl.u32 %v9045, 16
    %v9282 = vshrl.u32 %v9079, 16
    %v9283 = vpack.i.b16 %v9282, %v9281
    %v9286 = vpack.i.b16 %v9081, %v9047
    %v9287 = vshrl.u32 %v9047, 16
    %v9288 = vshrl.u32 %v9081, 16
    %v9289 = vpack.i.b16 %v9288, %v9287
    %v9292 = vpack.i.b16 %v9208, %v9174
    %v9293 = vshrl.u32 %v9174, 16
    %v9294 = vshrl.u32 %v9208, 16
    %v9295 = vpack.i.b16 %v9294, %v9293
    %v9298 = vpack.i.b16 %v9216, %v9182
    %v9299 = vshrl.u32 %v9182, 16
    %v9300 = vshrl.u32 %v9216, 16
    %v9301 = vpack.i.b16 %v9300, %v9299
    %v9304 = vpack.i.b16 %v9215, %v9181
    %v9305 = vshrl.u32 %v9181, 16
    %v9306 = vshrl.u32 %v9215, 16
    %v9307 = vpack.i.b16 %v9306, %v9305
    %v9310 = vpack.i.b16 %v9217, %v9183
    %v9311 = vshrl.u32 %v9183, 16
    %v9312 = vshrl.u32 %v9217, 16
    %v9313 = vpack.i.b16 %v9312, %v9311
    %v9314 = vunpack.c.l.b16 %v9220
    %v9315 = vunpack.c.l.b16 %v9268
    %v9316 = vpack.c.b16 %v9315, %v9314
    %v9317 = vunpack.c.l.b16 %v9223
    %v9318 = vunpack.c.l.b16 %v9271
    %v9319 = vpack.c.b16 %v9318, %v9317
    %9320 = vrot.lane.b32.xlu0 %v9319, 16
    %v9321 = vpop.permute.xlu0 %9320
    %v9322 = vunpack.c.l.b16 %v9226
    %v9323 = vunpack.c.l.b16 %v9274
    %v9324 = vpack.c.b16 %v9323, %v9322
    %9325 = vrot.lane.b32.xlu0 %v9324, 32
    %v9326 = vpop.permute.xlu0 %9325
    %v9327 = vunpack.c.l.b16 %v9229
    %v9328 = vunpack.c.l.b16 %v9277
    %v9329 = vpack.c.b16 %v9328, %v9327
    %9330 = vrot.lane.b32.xlu0 %v9329, 48
    %v9331 = vpop.permute.xlu0 %9330
    %v9332 = vunpack.c.l.b16 %v9232
    %v9333 = vunpack.c.l.b16 %v9280
    %v9334 = vpack.c.b16 %v9333, %v9332
    %9335 = vrot.lane.b32.xlu0 %v9334, 64
    %v9336 = vpop.permute.xlu0 %9335
    %v9337 = vunpack.c.l.b16 %v9235
    %v9338 = vunpack.c.l.b16 %v9283
    %v9339 = vpack.c.b16 %v9338, %v9337
    %9340 = vrot.lane.b32.xlu0 %v9339, 80
    %v9341 = vpop.permute.xlu0 %9340
    %v9342 = vunpack.c.l.b16 %v9238
    %v9343 = vunpack.c.l.b16 %v9286
    %v9344 = vpack.c.b16 %v9343, %v9342
    %9345 = vrot.lane.b32.xlu0 %v9344, 96
    %v9346 = vpop.permute.xlu0 %9345
    %v9347 = vunpack.c.l.b16 %v9241
    %v9348 = vunpack.c.l.b16 %v9289
    %v9349 = vpack.c.b16 %v9348, %v9347
    %9350 = vrot.lane.b32.xlu0 %v9349, 112
    %v9351 = vpop.permute.xlu0 %9350
    %v9352 = vunpack.c.l.b16 %v9244
    %v9353 = vunpack.c.l.b16 %v9292
    %v9354 = vpack.c.b16 %v9353, %v9352
    %v9355 = vunpack.c.l.b16 %v9247
    %v9356 = vunpack.c.l.b16 %v9295
    %v9357 = vpack.c.b16 %v9356, %v9355
    %9358 = vrot.lane.b32.xlu0 %v9357, 16
    %v9359 = vpop.permute.xlu0 %9358
    %v9360 = vunpack.c.l.b16 %v9250
    %v9361 = vunpack.c.l.b16 %v9298
    %v9362 = vpack.c.b16 %v9361, %v9360
    %9363 = vrot.lane.b32.xlu0 %v9362, 32
    %v9364 = vpop.permute.xlu0 %9363
    %v9365 = vunpack.c.l.b16 %v9253
    %v9366 = vunpack.c.l.b16 %v9301
    %v9367 = vpack.c.b16 %v9366, %v9365
    %9368 = vrot.lane.b32.xlu0 %v9367, 48
    %v9369 = vpop.permute.xlu0 %9368
    %v9370 = vunpack.c.l.b16 %v9256
    %v9371 = vunpack.c.l.b16 %v9304
    %v9372 = vpack.c.b16 %v9371, %v9370
    %9373 = vrot.lane.b32.xlu0 %v9372, 64
    %v9374 = vpop.permute.xlu0 %9373
    %v9375 = vunpack.c.l.b16 %v9259
    %v9376 = vunpack.c.l.b16 %v9307
    %v9377 = vpack.c.b16 %v9376, %v9375
    %9378 = vrot.lane.b32.xlu0 %v9377, 80
    %v9379 = vpop.permute.xlu0 %9378
    %v9380 = vunpack.c.l.b16 %v9262
    %v9381 = vunpack.c.l.b16 %v9310
    %v9382 = vpack.c.b16 %v9381, %v9380
    %9383 = vrot.lane.b32.xlu0 %v9382, 96
    %v9384 = vpop.permute.xlu0 %9383
    %v9385 = vunpack.c.l.b16 %v9265
    %v9386 = vunpack.c.l.b16 %v9313
    %v9387 = vpack.c.b16 %v9386, %v9385
    %9388 = vrot.lane.b32.xlu0 %v9387, 112
    %v9389 = vpop.permute.xlu0 %9388
    %v9392 = vsel %vm508, %v9316, %v9321
    %v9394 = vsel %vm512, %v9392, %v9326
    %v9396 = vsel %vm515, %v9394, %v9331
    %v9398 = vsel %vm518, %v9396, %v9336
    %v9400 = vsel %vm521, %v9398, %v9341
    %v9402 = vsel %vm524, %v9400, %v9346
    %v9404 = vsel %vm527, %v9402, %v9351
    %v9407 = vsel %vm508, %v9354, %v9359
    %v9409 = vsel %vm512, %v9407, %v9364
    %v9411 = vsel %vm515, %v9409, %v9369
    %v9413 = vsel %vm518, %v9411, %v9374
    %v9415 = vsel %vm521, %v9413, %v9379
    %v9417 = vsel %vm524, %v9415, %v9384
    %v9419 = vsel %vm527, %v9417, %v9389
    %v9422 = vunpack.c.l.b16 %v9404
    %v9423 = vunpack.c.l.b16 %v9419
    %v9424 = vunpack.c.h.b16 %v9404
    %v9425 = vunpack.c.h.b16 %v9419
    %v9426 = vpack.c.b16 %v9423, %v9422
    %v9427 = vpack.c.b16 %v9425, %v9424
    %9430 = vst [vmem:[#allocation2 + $0xa8] sm:$0xff] %v9426
    %9431 = vst [vmem:[#allocation2 + $0xb8] sm:$0xff] %v9427
    %v9448 = vrot.slane %v5636, 5
    %v9449 = vrot.slane %v9448, 4
    %v9450 = vrot.slane %v5637, 5
    %v9451 = vsel %vm3840, %v9449, %v9450
    %v9452 = vrot.slane %v9450, 4
    %v9453 = vrot.slane %v5638, 5
    %v9454 = vsel %vm3840, %v9452, %v9453
    %v9455 = vrot.slane %v5639, 5
    %v9456 = vrot.slane %v9455, 4
    %v9457 = vrot.slane %v5640, 5
    %v9458 = vsel %vm3840, %v9456, %v9457
    %v9459 = vrot.slane %v9457, 4
    %v9460 = vrot.slane %v5641, 5
    %v9461 = vsel %vm3840, %v9459, %v9460
    %v9462 = vrot.slane %v5642, 5
    %v9463 = vrot.slane %v9462, 4
    %v9464 = vrot.slane %v5643, 5
    %v9465 = vsel %vm3840, %v9463, %v9464
    %v9466 = vrot.slane %v9464, 4
    %v9467 = vrot.slane %v5644, 5
    %v9468 = vsel %vm3840, %v9466, %v9467
    %v9469 = vrot.slane %v5645, 5
    %v9470 = vrot.slane %v9469, 4
    %v9471 = vrot.slane %v5646, 5
    %v9472 = vsel %vm3840, %v9470, %v9471
    %v9473 = vrot.slane %v9471, 4
    %v9474 = vrot.slane %v5647, 5
    %v9475 = vsel %vm3840, %v9473, %v9474
    %v9476 = vrot.slane %v5648, 5
    %v9477 = vrot.slane %v9476, 4
    %v9478 = vrot.slane %v5649, 5
    %v9479 = vsel %vm3840, %v9477, %v9478
    %v9480 = vrot.slane %v9478, 4
    %v9481 = vrot.slane %v5650, 5
    %v9482 = vsel %vm3840, %v9480, %v9481
    %v9483 = vrot.slane %v5651, 5
    %v9484 = vrot.slane %v9483, 4
    %v9485 = vrot.slane %v5652, 5
    %v9486 = vsel %vm3840, %v9484, %v9485
    %v9487 = vrot.slane %v9485, 4
    %v9488 = vrot.slane %v5653, 5
    %v9489 = vsel %vm3840, %v9487, %v9488
    %v9490 = vrot.slane %v5654, 5
    %v9491 = vrot.slane %v9490, 4
    %v9492 = vrot.slane %v5655, 5
    %v9493 = vsel %vm3840, %v9491, %v9492
    %v9494 = vrot.slane %v9492, 4
    %v9495 = vrot.slane %v5656, 5
    %v9496 = vsel %vm3840, %v9494, %v9495
    %v9497 = vrot.slane %v5657, 5
    %v9498 = vrot.slane %v9497, 4
    %v9499 = vrot.slane %v5658, 5
    %v9500 = vsel %vm3840, %v9498, %v9499
    %v9501 = vrot.slane %v9499, 4
    %v9502 = vrot.slane %v5659, 5
    %v9503 = vsel %vm3840, %v9501, %v9502
    %v9504 = vrot.slane %v5660, 5
    %v9505 = vrot.slane %v9504, 4
    %v9506 = vrot.slane %v5661, 5
    %v9507 = vsel %vm3840, %v9505, %v9506
    %v9508 = vrot.slane %v9506, 4
    %v9509 = vrot.slane %v5662, 5
    %v9510 = vsel %vm3840, %v9508, %v9509
    %v9511 = vrot.slane %v5663, 5
    %v9512 = vrot.slane %v9511, 4
    %v9513 = vrot.slane %v5664, 5
    %v9514 = vsel %vm3840, %v9512, %v9513
    %v9515 = vrot.slane %v9513, 4
    %v9516 = vrot.slane %v5665, 5
    %v9517 = vsel %vm3840, %v9515, %v9516
    %v9518 = vrot.slane %v5666, 5
    %v9519 = vrot.slane %v9518, 4
    %v9520 = vrot.slane %v5667, 5
    %v9521 = vsel %vm3840, %v9519, %v9520
    %v9522 = vrot.slane %v9520, 4
    %v9523 = vrot.slane %v5668, 5
    %v9524 = vsel %vm3840, %v9522, %v9523
    %v9525 = vrot.slane %v5669, 5
    %v9526 = vrot.slane %v9525, 4
    %v9527 = vrot.slane %v5670, 5
    %v9528 = vsel %vm3840, %v9526, %v9527
    %v9529 = vrot.slane %v9527, 4
    %v9530 = vrot.slane %v5671, 5
    %v9531 = vsel %vm3840, %v9529, %v9530
    %v9532 = vrot.slane %v5672, 5
    %v9533 = vrot.slane %v9532, 4
    %v9534 = vrot.slane %v5673, 5
    %v9535 = vsel %vm3840, %v9533, %v9534
    %v9536 = vrot.slane %v9534, 4
    %v9537 = vrot.slane %v5674, 5
    %v9538 = vsel %vm3840, %v9536, %v9537
    %v9539 = vrot.slane %v5675, 5
    %v9540 = vrot.slane %v9539, 4
    %v9541 = vrot.slane %v5676, 5
    %v9542 = vsel %vm3840, %v9540, %v9541
    %v9543 = vrot.slane %v9541, 4
    %v9544 = vrot.slane %v5677, 5
    %v9545 = vsel %vm3840, %v9543, %v9544
    %v9546 = vrot.slane %v5678, 5
    %v9547 = vrot.slane %v9546, 4
    %v9548 = vrot.slane %v5679, 5
    %v9549 = vsel %vm3840, %v9547, %v9548
    %v9550 = vrot.slane %v9548, 4
    %v9551 = vrot.slane %v5680, 5
    %v9552 = vsel %vm3840, %v9550, %v9551
    %v9553 = vrot.slane %v5681, 5
    %v9554 = vrot.slane %v9553, 4
    %v9555 = vrot.slane %v5682, 5
    %v9556 = vsel %vm3840, %v9554, %v9555
    %v9557 = vrot.slane %v9555, 4
    %v9558 = vrot.slane %v5683, 5
    %v9559 = vsel %vm3840, %v9557, %v9558
    %v9592 = vcombine.low %v9451, %v9479
    %v9594 = vunpack.c.l.s4 1983009808
    %v9595 = vunpack.c.0.s8 %v9594
    %v9596 = vlaneseq
    %v9597 = vshrl.u32 %v9596, 7
    %v9598 = vsub.s32 %v9595, %v9597
    %v9599 = vrot.slane %v9592, %v9598
    %v9600 = vcombine.low %v9465, %v9493
    %v9602 = vunpack.c.l.s4 1983009808
    %v9603 = vunpack.c.0.s8 %v9602
    %v9604 = vlaneseq
    %v9605 = vshrl.u32 %v9604, 7
    %v9606 = vsub.s32 %v9603, %v9605
    %v9607 = vrot.slane %v9600, %v9606
    %v9608 = vcombine.low %v9599, %v9607
    %v9609 = vcombine.high %v9599, %v9607
    %v9611 = vunpack.c.l.s4 1934713408
    %v9612 = vunpack.c.0.s8 %v9611
    %v9613 = vlaneseq
    %v9614 = vshrl.u32 %v9613, 7
    %v9615 = vsub.s32 %v9612, %v9614
    %v9616 = vrot.slane %v9608, %v9615
    %v9618 = vunpack.c.l.s4 1934713408
    %v9619 = vunpack.c.0.s8 %v9618
    %v9620 = vlaneseq
    %v9621 = vshrl.u32 %v9620, 7
    %v9622 = vsub.s32 %v9619, %v9621
    %v9623 = vrot.slane %v9609, %v9622
    %v9624 = vcombine.high %v9616, 0
    %v9625 = vcombine.high %v9623, 0
    %v9626 = vcombine.low %v9458, %v9486
    %v9628 = vunpack.c.l.s4 1983009808
    %v9629 = vunpack.c.0.s8 %v9628
    %v9630 = vlaneseq
    %v9631 = vshrl.u32 %v9630, 7
    %v9632 = vsub.s32 %v9629, %v9631
    %v9633 = vrot.slane %v9626, %v9632
    %v9634 = vcombine.low %v9472, %v9500
    %v9636 = vunpack.c.l.s4 1983009808
    %v9637 = vunpack.c.0.s8 %v9636
    %v9638 = vlaneseq
    %v9639 = vshrl.u32 %v9638, 7
    %v9640 = vsub.s32 %v9637, %v9639
    %v9641 = vrot.slane %v9634, %v9640
    %v9642 = vcombine.low %v9633, %v9641
    %v9643 = vcombine.high %v9633, %v9641
    %v9645 = vunpack.c.l.s4 1934713408
    %v9646 = vunpack.c.0.s8 %v9645
    %v9647 = vlaneseq
    %v9648 = vshrl.u32 %v9647, 7
    %v9649 = vsub.s32 %v9646, %v9648
    %v9650 = vrot.slane %v9642, %v9649
    %v9652 = vunpack.c.l.s4 1934713408
    %v9653 = vunpack.c.0.s8 %v9652
    %v9654 = vlaneseq
    %v9655 = vshrl.u32 %v9654, 7
    %v9656 = vsub.s32 %v9653, %v9655
    %v9657 = vrot.slane %v9643, %v9656
    %v9658 = vcombine.high %v9650, 0
    %v9659 = vcombine.high %v9657, 0
    %v9660 = vcombine.low %v9507, %v9535
    %v9662 = vunpack.c.l.s4 1983009808
    %v9663 = vunpack.c.0.s8 %v9662
    %v9664 = vlaneseq
    %v9665 = vshrl.u32 %v9664, 7
    %v9666 = vsub.s32 %v9663, %v9665
    %v9667 = vrot.slane %v9660, %v9666
    %v9668 = vcombine.low %v9521, %v9549
    %v9670 = vunpack.c.l.s4 1983009808
    %v9671 = vunpack.c.0.s8 %v9670
    %v9672 = vlaneseq
    %v9673 = vshrl.u32 %v9672, 7
    %v9674 = vsub.s32 %v9671, %v9673
    %v9675 = vrot.slane %v9668, %v9674
    %v9676 = vcombine.low %v9667, %v9675
    %v9677 = vcombine.high %v9667, %v9675
    %v9679 = vunpack.c.l.s4 1934713408
    %v9680 = vunpack.c.0.s8 %v9679
    %v9681 = vlaneseq
    %v9682 = vshrl.u32 %v9681, 7
    %v9683 = vsub.s32 %v9680, %v9682
    %v9684 = vrot.slane %v9676, %v9683
    %v9686 = vunpack.c.l.s4 1934713408
    %v9687 = vunpack.c.0.s8 %v9686
    %v9688 = vlaneseq
    %v9689 = vshrl.u32 %v9688, 7
    %v9690 = vsub.s32 %v9687, %v9689
    %v9691 = vrot.slane %v9677, %v9690
    %v9692 = vcombine.high %v9684, 0
    %v9693 = vcombine.high %v9691, 0
    %v9694 = vcombine.low %v9514, %v9542
    %v9696 = vunpack.c.l.s4 1983009808
    %v9697 = vunpack.c.0.s8 %v9696
    %v9698 = vlaneseq
    %v9699 = vshrl.u32 %v9698, 7
    %v9700 = vsub.s32 %v9697, %v9699
    %v9701 = vrot.slane %v9694, %v9700
    %v9702 = vcombine.low %v9528, %v9556
    %v9704 = vunpack.c.l.s4 1983009808
    %v9705 = vunpack.c.0.s8 %v9704
    %v9706 = vlaneseq
    %v9707 = vshrl.u32 %v9706, 7
    %v9708 = vsub.s32 %v9705, %v9707
    %v9709 = vrot.slane %v9702, %v9708
    %v9710 = vcombine.low %v9701, %v9709
    %v9711 = vcombine.high %v9701, %v9709
    %v9713 = vunpack.c.l.s4 1934713408
    %v9714 = vunpack.c.0.s8 %v9713
    %v9715 = vlaneseq
    %v9716 = vshrl.u32 %v9715, 7
    %v9717 = vsub.s32 %v9714, %v9716
    %v9718 = vrot.slane %v9710, %v9717
    %v9720 = vunpack.c.l.s4 1934713408
    %v9721 = vunpack.c.0.s8 %v9720
    %v9722 = vlaneseq
    %v9723 = vshrl.u32 %v9722, 7
    %v9724 = vsub.s32 %v9721, %v9723
    %v9725 = vrot.slane %v9711, %v9724
    %v9726 = vcombine.high %v9718, 0
    %v9727 = vcombine.high %v9725, 0
    %v9728 = vcombine.low %v9454, %v9482
    %v9730 = vunpack.c.l.s4 1983009808
    %v9731 = vunpack.c.0.s8 %v9730
    %v9732 = vlaneseq
    %v9733 = vshrl.u32 %v9732, 7
    %v9734 = vsub.s32 %v9731, %v9733
    %v9735 = vrot.slane %v9728, %v9734
    %v9736 = vcombine.low %v9468, %v9496
    %v9738 = vunpack.c.l.s4 1983009808
    %v9739 = vunpack.c.0.s8 %v9738
    %v9740 = vlaneseq
    %v9741 = vshrl.u32 %v9740, 7
    %v9742 = vsub.s32 %v9739, %v9741
    %v9743 = vrot.slane %v9736, %v9742
    %v9744 = vcombine.low %v9735, %v9743
    %v9745 = vcombine.high %v9735, %v9743
    %v9747 = vunpack.c.l.s4 1934713408
    %v9748 = vunpack.c.0.s8 %v9747
    %v9749 = vlaneseq
    %v9750 = vshrl.u32 %v9749, 7
    %v9751 = vsub.s32 %v9748, %v9750
    %v9752 = vrot.slane %v9744, %v9751
    %v9754 = vunpack.c.l.s4 1934713408
    %v9755 = vunpack.c.0.s8 %v9754
    %v9756 = vlaneseq
    %v9757 = vshrl.u32 %v9756, 7
    %v9758 = vsub.s32 %v9755, %v9757
    %v9759 = vrot.slane %v9745, %v9758
    %v9760 = vcombine.high %v9752, 0
    %v9761 = vcombine.high %v9759, 0
    %v9762 = vcombine.low %v9461, %v9489
    %v9764 = vunpack.c.l.s4 1983009808
    %v9765 = vunpack.c.0.s8 %v9764
    %v9766 = vlaneseq
    %v9767 = vshrl.u32 %v9766, 7
    %v9768 = vsub.s32 %v9765, %v9767
    %v9769 = vrot.slane %v9762, %v9768
    %v9770 = vcombine.low %v9475, %v9503
    %v9772 = vunpack.c.l.s4 1983009808
    %v9773 = vunpack.c.0.s8 %v9772
    %v9774 = vlaneseq
    %v9775 = vshrl.u32 %v9774, 7
    %v9776 = vsub.s32 %v9773, %v9775
    %v9777 = vrot.slane %v9770, %v9776
    %v9778 = vcombine.low %v9769, %v9777
    %v9779 = vcombine.high %v9769, %v9777
    %v9781 = vunpack.c.l.s4 1934713408
    %v9782 = vunpack.c.0.s8 %v9781
    %v9783 = vlaneseq
    %v9784 = vshrl.u32 %v9783, 7
    %v9785 = vsub.s32 %v9782, %v9784
    %v9786 = vrot.slane %v9778, %v9785
    %v9788 = vunpack.c.l.s4 1934713408
    %v9789 = vunpack.c.0.s8 %v9788
    %v9790 = vlaneseq
    %v9791 = vshrl.u32 %v9790, 7
    %v9792 = vsub.s32 %v9789, %v9791
    %v9793 = vrot.slane %v9779, %v9792
    %v9794 = vcombine.high %v9786, 0
    %v9795 = vcombine.high %v9793, 0
    %v9796 = vcombine.low %v9510, %v9538
    %v9798 = vunpack.c.l.s4 1983009808
    %v9799 = vunpack.c.0.s8 %v9798
    %v9800 = vlaneseq
    %v9801 = vshrl.u32 %v9800, 7
    %v9802 = vsub.s32 %v9799, %v9801
    %v9803 = vrot.slane %v9796, %v9802
    %v9804 = vcombine.low %v9524, %v9552
    %v9806 = vunpack.c.l.s4 1983009808
    %v9807 = vunpack.c.0.s8 %v9806
    %v9808 = vlaneseq
    %v9809 = vshrl.u32 %v9808, 7
    %v9810 = vsub.s32 %v9807, %v9809
    %v9811 = vrot.slane %v9804, %v9810
    %v9812 = vcombine.low %v9803, %v9811
    %v9813 = vcombine.high %v9803, %v9811
    %v9815 = vunpack.c.l.s4 1934713408
    %v9816 = vunpack.c.0.s8 %v9815
    %v9817 = vlaneseq
    %v9818 = vshrl.u32 %v9817, 7
    %v9819 = vsub.s32 %v9816, %v9818
    %v9820 = vrot.slane %v9812, %v9819
    %v9822 = vunpack.c.l.s4 1934713408
    %v9823 = vunpack.c.0.s8 %v9822
    %v9824 = vlaneseq
    %v9825 = vshrl.u32 %v9824, 7
    %v9826 = vsub.s32 %v9823, %v9825
    %v9827 = vrot.slane %v9813, %v9826
    %v9828 = vcombine.high %v9820, 0
    %v9829 = vcombine.high %v9827, 0
    %v9830 = vcombine.low %v9517, %v9545
    %v9832 = vunpack.c.l.s4 1983009808
    %v9833 = vunpack.c.0.s8 %v9832
    %v9834 = vlaneseq
    %v9835 = vshrl.u32 %v9834, 7
    %v9836 = vsub.s32 %v9833, %v9835
    %v9837 = vrot.slane %v9830, %v9836
    %v9838 = vcombine.low %v9531, %v9559
    %v9840 = vunpack.c.l.s4 1983009808
    %v9841 = vunpack.c.0.s8 %v9840
    %v9842 = vlaneseq
    %v9843 = vshrl.u32 %v9842, 7
    %v9844 = vsub.s32 %v9841, %v9843
    %v9845 = vrot.slane %v9838, %v9844
    %v9846 = vcombine.low %v9837, %v9845
    %v9847 = vcombine.high %v9837, %v9845
    %v9849 = vunpack.c.l.s4 1934713408
    %v9850 = vunpack.c.0.s8 %v9849
    %v9851 = vlaneseq
    %v9852 = vshrl.u32 %v9851, 7
    %v9853 = vsub.s32 %v9850, %v9852
    %v9854 = vrot.slane %v9846, %v9853
    %v9856 = vunpack.c.l.s4 1934713408
    %v9857 = vunpack.c.0.s8 %v9856
    %v9858 = vlaneseq
    %v9859 = vshrl.u32 %v9858, 7
    %v9860 = vsub.s32 %v9857, %v9859
    %v9861 = vrot.slane %v9847, %v9860
    %v9862 = vcombine.high %v9854, 0
    %v9863 = vcombine.high %v9861, 0
    %v9866 = vpack.i.b16 %v9650, %v9616
    %v9867 = vshrl.u32 %v9616, 16
    %v9868 = vshrl.u32 %v9650, 16
    %v9869 = vpack.i.b16 %v9868, %v9867
    %v9872 = vpack.i.b16 %v9658, %v9624
    %v9873 = vshrl.u32 %v9624, 16
    %v9874 = vshrl.u32 %v9658, 16
    %v9875 = vpack.i.b16 %v9874, %v9873
    %v9878 = vpack.i.b16 %v9657, %v9623
    %v9879 = vshrl.u32 %v9623, 16
    %v9880 = vshrl.u32 %v9657, 16
    %v9881 = vpack.i.b16 %v9880, %v9879
    %v9884 = vpack.i.b16 %v9659, %v9625
    %v9885 = vshrl.u32 %v9625, 16
    %v9886 = vshrl.u32 %v9659, 16
    %v9887 = vpack.i.b16 %v9886, %v9885
    %v9890 = vpack.i.b16 %v9786, %v9752
    %v9891 = vshrl.u32 %v9752, 16
    %v9892 = vshrl.u32 %v9786, 16
    %v9893 = vpack.i.b16 %v9892, %v9891
    %v9896 = vpack.i.b16 %v9794, %v9760
    %v9897 = vshrl.u32 %v9760, 16
    %v9898 = vshrl.u32 %v9794, 16
    %v9899 = vpack.i.b16 %v9898, %v9897
    %v9902 = vpack.i.b16 %v9793, %v9759
    %v9903 = vshrl.u32 %v9759, 16
    %v9904 = vshrl.u32 %v9793, 16
    %v9905 = vpack.i.b16 %v9904, %v9903
    %v9908 = vpack.i.b16 %v9795, %v9761
    %v9909 = vshrl.u32 %v9761, 16
    %v9910 = vshrl.u32 %v9795, 16
    %v9911 = vpack.i.b16 %v9910, %v9909
    %v9914 = vpack.i.b16 %v9718, %v9684
    %v9915 = vshrl.u32 %v9684, 16
    %v9916 = vshrl.u32 %v9718, 16
    %v9917 = vpack.i.b16 %v9916, %v9915
    %v9920 = vpack.i.b16 %v9726, %v9692
    %v9921 = vshrl.u32 %v9692, 16
    %v9922 = vshrl.u32 %v9726, 16
    %v9923 = vpack.i.b16 %v9922, %v9921
    %v9926 = vpack.i.b16 %v9725, %v9691
    %v9927 = vshrl.u32 %v9691, 16
    %v9928 = vshrl.u32 %v9725, 16
    %v9929 = vpack.i.b16 %v9928, %v9927
    %v9932 = vpack.i.b16 %v9727, %v9693
    %v9933 = vshrl.u32 %v9693, 16
    %v9934 = vshrl.u32 %v9727, 16
    %v9935 = vpack.i.b16 %v9934, %v9933
    %v9938 = vpack.i.b16 %v9854, %v9820
    %v9939 = vshrl.u32 %v9820, 16
    %v9940 = vshrl.u32 %v9854, 16
    %v9941 = vpack.i.b16 %v9940, %v9939
    %v9944 = vpack.i.b16 %v9862, %v9828
    %v9945 = vshrl.u32 %v9828, 16
    %v9946 = vshrl.u32 %v9862, 16
    %v9947 = vpack.i.b16 %v9946, %v9945
    %v9950 = vpack.i.b16 %v9861, %v9827
    %v9951 = vshrl.u32 %v9827, 16
    %v9952 = vshrl.u32 %v9861, 16
    %v9953 = vpack.i.b16 %v9952, %v9951
    %v9956 = vpack.i.b16 %v9863, %v9829
    %v9957 = vshrl.u32 %v9829, 16
    %v9958 = vshrl.u32 %v9863, 16
    %v9959 = vpack.i.b16 %v9958, %v9957
    %v9960 = vunpack.c.l.b16 %v9866
    %v9961 = vunpack.c.l.b16 %v9914
    %v9962 = vpack.c.b16 %v9961, %v9960
    %v9963 = vunpack.c.l.b16 %v9869
    %v9964 = vunpack.c.l.b16 %v9917
    %v9965 = vpack.c.b16 %v9964, %v9963
    %9966 = vrot.lane.b32.xlu0 %v9965, 16
    %v9967 = vpop.permute.xlu0 %9966
    %v9968 = vunpack.c.l.b16 %v9872
    %v9969 = vunpack.c.l.b16 %v9920
    %v9970 = vpack.c.b16 %v9969, %v9968
    %9971 = vrot.lane.b32.xlu0 %v9970, 32
    %v9972 = vpop.permute.xlu0 %9971
    %v9973 = vunpack.c.l.b16 %v9875
    %v9974 = vunpack.c.l.b16 %v9923
    %v9975 = vpack.c.b16 %v9974, %v9973
    %9976 = vrot.lane.b32.xlu0 %v9975, 48
    %v9977 = vpop.permute.xlu0 %9976
    %v9978 = vunpack.c.l.b16 %v9878
    %v9979 = vunpack.c.l.b16 %v9926
    %v9980 = vpack.c.b16 %v9979, %v9978
    %9981 = vrot.lane.b32.xlu0 %v9980, 64
    %v9982 = vpop.permute.xlu0 %9981
    %v9983 = vunpack.c.l.b16 %v9881
    %v9984 = vunpack.c.l.b16 %v9929
    %v9985 = vpack.c.b16 %v9984, %v9983
    %9986 = vrot.lane.b32.xlu0 %v9985, 80
    %v9987 = vpop.permute.xlu0 %9986
    %v9988 = vunpack.c.l.b16 %v9884
    %v9989 = vunpack.c.l.b16 %v9932
    %v9990 = vpack.c.b16 %v9989, %v9988
    %9991 = vrot.lane.b32.xlu0 %v9990, 96
    %v9992 = vpop.permute.xlu0 %9991
    %v9993 = vunpack.c.l.b16 %v9887
    %v9994 = vunpack.c.l.b16 %v9935
    %v9995 = vpack.c.b16 %v9994, %v9993
    %9996 = vrot.lane.b32.xlu0 %v9995, 112
    %v9997 = vpop.permute.xlu0 %9996
    %v9998 = vunpack.c.l.b16 %v9890
    %v9999 = vunpack.c.l.b16 %v9938
    %v10000 = vpack.c.b16 %v9999, %v9998
    %v10001 = vunpack.c.l.b16 %v9893
    %v10002 = vunpack.c.l.b16 %v9941
    %v10003 = vpack.c.b16 %v10002, %v10001
    %10004 = vrot.lane.b32.xlu0 %v10003, 16
    %v10005 = vpop.permute.xlu0 %10004
    %v10006 = vunpack.c.l.b16 %v9896
    %v10007 = vunpack.c.l.b16 %v9944
    %v10008 = vpack.c.b16 %v10007, %v10006
    %10009 = vrot.lane.b32.xlu0 %v10008, 32
    %v10010 = vpop.permute.xlu0 %10009
    %v10011 = vunpack.c.l.b16 %v9899
    %v10012 = vunpack.c.l.b16 %v9947
    %v10013 = vpack.c.b16 %v10012, %v10011
    %10014 = vrot.lane.b32.xlu0 %v10013, 48
    %v10015 = vpop.permute.xlu0 %10014
    %v10016 = vunpack.c.l.b16 %v9902
    %v10017 = vunpack.c.l.b16 %v9950
    %v10018 = vpack.c.b16 %v10017, %v10016
    %10019 = vrot.lane.b32.xlu0 %v10018, 64
    %v10020 = vpop.permute.xlu0 %10019
    %v10021 = vunpack.c.l.b16 %v9905
    %v10022 = vunpack.c.l.b16 %v9953
    %v10023 = vpack.c.b16 %v10022, %v10021
    %10024 = vrot.lane.b32.xlu0 %v10023, 80
    %v10025 = vpop.permute.xlu0 %10024
    %v10026 = vunpack.c.l.b16 %v9908
    %v10027 = vunpack.c.l.b16 %v9956
    %v10028 = vpack.c.b16 %v10027, %v10026
    %10029 = vrot.lane.b32.xlu0 %v10028, 96
    %v10030 = vpop.permute.xlu0 %10029
    %v10031 = vunpack.c.l.b16 %v9911
    %v10032 = vunpack.c.l.b16 %v9959
    %v10033 = vpack.c.b16 %v10032, %v10031
    %10034 = vrot.lane.b32.xlu0 %v10033, 112
    %v10035 = vpop.permute.xlu0 %10034
    %v10038 = vsel %vm508, %v9962, %v9967
    %v10040 = vsel %vm512, %v10038, %v9972
    %v10042 = vsel %vm515, %v10040, %v9977
    %v10044 = vsel %vm518, %v10042, %v9982
    %v10046 = vsel %vm521, %v10044, %v9987
    %v10048 = vsel %vm524, %v10046, %v9992
    %v10050 = vsel %vm527, %v10048, %v9997
    %v10053 = vsel %vm508, %v10000, %v10005
    %v10055 = vsel %vm512, %v10053, %v10010
    %v10057 = vsel %vm515, %v10055, %v10015
    %v10059 = vsel %vm518, %v10057, %v10020
    %v10061 = vsel %vm521, %v10059, %v10025
    %v10063 = vsel %vm524, %v10061, %v10030
    %v10065 = vsel %vm527, %v10063, %v10035
    %v10068 = vunpack.c.l.b16 %v10050
    %v10069 = vunpack.c.l.b16 %v10065
    %v10070 = vunpack.c.h.b16 %v10050
    %v10071 = vunpack.c.h.b16 %v10065
    %v10072 = vpack.c.b16 %v10069, %v10068
    %v10073 = vpack.c.b16 %v10071, %v10070
    %10076 = vst [vmem:[#allocation2 + $0xc8] sm:$0xff] %v10072
    %10077 = vst [vmem:[#allocation2 + $0xd8] sm:$0xff] %v10073
    %10078 = vrot.lane.b32.xlu0 %v9451, 127
    %v10079 = vpop.permute.xlu0 %10078
    %10080 = vrot.lane.b32.xlu0 %v9454, 127
    %v10081 = vpop.permute.xlu0 %10080
    %10082 = vrot.lane.b32.xlu0 %v9458, 127
    %v10083 = vpop.permute.xlu0 %10082
    %10084 = vrot.lane.b32.xlu0 %v9461, 127
    %v10085 = vpop.permute.xlu0 %10084
    %10086 = vrot.lane.b32.xlu0 %v9465, 127
    %v10087 = vpop.permute.xlu0 %10086
    %10088 = vrot.lane.b32.xlu0 %v9468, 127
    %v10089 = vpop.permute.xlu0 %10088
    %10090 = vrot.lane.b32.xlu0 %v9472, 127
    %v10091 = vpop.permute.xlu0 %10090
    %10092 = vrot.lane.b32.xlu0 %v9475, 127
    %v10093 = vpop.permute.xlu0 %10092
    %10094 = vrot.lane.b32.xlu0 %v9479, 127
    %v10095 = vpop.permute.xlu0 %10094
    %10096 = vrot.lane.b32.xlu0 %v9482, 127
    %v10097 = vpop.permute.xlu0 %10096
    %10098 = vrot.lane.b32.xlu0 %v9486, 127
    %v10099 = vpop.permute.xlu0 %10098
    %10100 = vrot.lane.b32.xlu0 %v9489, 127
    %v10101 = vpop.permute.xlu0 %10100
    %10102 = vrot.lane.b32.xlu0 %v9493, 127
    %v10103 = vpop.permute.xlu0 %10102
    %10104 = vrot.lane.b32.xlu0 %v9496, 127
    %v10105 = vpop.permute.xlu0 %10104
    %10106 = vrot.lane.b32.xlu0 %v9500, 127
    %v10107 = vpop.permute.xlu0 %10106
    %10108 = vrot.lane.b32.xlu0 %v9503, 127
    %v10109 = vpop.permute.xlu0 %10108
    %10110 = vrot.lane.b32.xlu0 %v9507, 127
    %v10111 = vpop.permute.xlu0 %10110
    %10112 = vrot.lane.b32.xlu0 %v9510, 127
    %v10113 = vpop.permute.xlu0 %10112
    %10114 = vrot.lane.b32.xlu0 %v9514, 127
    %v10115 = vpop.permute.xlu0 %10114
    %10116 = vrot.lane.b32.xlu0 %v9517, 127
    %v10117 = vpop.permute.xlu0 %10116
    %10118 = vrot.lane.b32.xlu0 %v9521, 127
    %v10119 = vpop.permute.xlu0 %10118
    %10120 = vrot.lane.b32.xlu0 %v9524, 127
    %v10121 = vpop.permute.xlu0 %10120
    %10122 = vrot.lane.b32.xlu0 %v9528, 127
    %v10123 = vpop.permute.xlu0 %10122
    %10124 = vrot.lane.b32.xlu0 %v9531, 127
    %v10125 = vpop.permute.xlu0 %10124
    %10126 = vrot.lane.b32.xlu0 %v9535, 127
    %v10127 = vpop.permute.xlu0 %10126
    %10128 = vrot.lane.b32.xlu0 %v9538, 127
    %v10129 = vpop.permute.xlu0 %10128
    %10130 = vrot.lane.b32.xlu0 %v9542, 127
    %v10131 = vpop.permute.xlu0 %10130
    %10132 = vrot.lane.b32.xlu0 %v9545, 127
    %v10133 = vpop.permute.xlu0 %10132
    %10134 = vrot.lane.b32.xlu0 %v9549, 127
    %v10135 = vpop.permute.xlu0 %10134
    %10136 = vrot.lane.b32.xlu0 %v9552, 127
    %v10137 = vpop.permute.xlu0 %10136
    %10138 = vrot.lane.b32.xlu0 %v9556, 127
    %v10139 = vpop.permute.xlu0 %10138
    %10140 = vrot.lane.b32.xlu0 %v9559, 127
    %v10141 = vpop.permute.xlu0 %10140
    %v10174 = vcombine.low %v10079, %v10095
    %v10176 = vunpack.c.l.s4 1983009808
    %v10177 = vunpack.c.0.s8 %v10176
    %v10178 = vlaneseq
    %v10179 = vshrl.u32 %v10178, 7
    %v10180 = vsub.s32 %v10177, %v10179
    %v10181 = vrot.slane %v10174, %v10180
    %v10182 = vcombine.low %v10087, %v10103
    %v10184 = vunpack.c.l.s4 1983009808
    %v10185 = vunpack.c.0.s8 %v10184
    %v10186 = vlaneseq
    %v10187 = vshrl.u32 %v10186, 7
    %v10188 = vsub.s32 %v10185, %v10187
    %v10189 = vrot.slane %v10182, %v10188
    %v10190 = vcombine.low %v10181, %v10189
    %v10191 = vcombine.high %v10181, %v10189
    %v10193 = vunpack.c.l.s4 1934713408
    %v10194 = vunpack.c.0.s8 %v10193
    %v10195 = vlaneseq
    %v10196 = vshrl.u32 %v10195, 7
    %v10197 = vsub.s32 %v10194, %v10196
    %v10198 = vrot.slane %v10190, %v10197
    %v10200 = vunpack.c.l.s4 1934713408
    %v10201 = vunpack.c.0.s8 %v10200
    %v10202 = vlaneseq
    %v10203 = vshrl.u32 %v10202, 7
    %v10204 = vsub.s32 %v10201, %v10203
    %v10205 = vrot.slane %v10191, %v10204
    %v10206 = vcombine.high %v10198, 0
    %v10207 = vcombine.high %v10205, 0
    %v10208 = vcombine.low %v10083, %v10099
    %v10210 = vunpack.c.l.s4 1983009808
    %v10211 = vunpack.c.0.s8 %v10210
    %v10212 = vlaneseq
    %v10213 = vshrl.u32 %v10212, 7
    %v10214 = vsub.s32 %v10211, %v10213
    %v10215 = vrot.slane %v10208, %v10214
    %v10216 = vcombine.low %v10091, %v10107
    %v10218 = vunpack.c.l.s4 1983009808
    %v10219 = vunpack.c.0.s8 %v10218
    %v10220 = vlaneseq
    %v10221 = vshrl.u32 %v10220, 7
    %v10222 = vsub.s32 %v10219, %v10221
    %v10223 = vrot.slane %v10216, %v10222
    %v10224 = vcombine.low %v10215, %v10223
    %v10225 = vcombine.high %v10215, %v10223
    %v10227 = vunpack.c.l.s4 1934713408
    %v10228 = vunpack.c.0.s8 %v10227
    %v10229 = vlaneseq
    %v10230 = vshrl.u32 %v10229, 7
    %v10231 = vsub.s32 %v10228, %v10230
    %v10232 = vrot.slane %v10224, %v10231
    %v10234 = vunpack.c.l.s4 1934713408
    %v10235 = vunpack.c.0.s8 %v10234
    %v10236 = vlaneseq
    %v10237 = vshrl.u32 %v10236, 7
    %v10238 = vsub.s32 %v10235, %v10237
    %v10239 = vrot.slane %v10225, %v10238
    %v10240 = vcombine.high %v10232, 0
    %v10241 = vcombine.high %v10239, 0
    %v10242 = vcombine.low %v10111, %v10127
    %v10244 = vunpack.c.l.s4 1983009808
    %v10245 = vunpack.c.0.s8 %v10244
    %v10246 = vlaneseq
    %v10247 = vshrl.u32 %v10246, 7
    %v10248 = vsub.s32 %v10245, %v10247
    %v10249 = vrot.slane %v10242, %v10248
    %v10250 = vcombine.low %v10119, %v10135
    %v10252 = vunpack.c.l.s4 1983009808
    %v10253 = vunpack.c.0.s8 %v10252
    %v10254 = vlaneseq
    %v10255 = vshrl.u32 %v10254, 7
    %v10256 = vsub.s32 %v10253, %v10255
    %v10257 = vrot.slane %v10250, %v10256
    %v10258 = vcombine.low %v10249, %v10257
    %v10259 = vcombine.high %v10249, %v10257
    %v10261 = vunpack.c.l.s4 1934713408
    %v10262 = vunpack.c.0.s8 %v10261
    %v10263 = vlaneseq
    %v10264 = vshrl.u32 %v10263, 7
    %v10265 = vsub.s32 %v10262, %v10264
    %v10266 = vrot.slane %v10258, %v10265
    %v10268 = vunpack.c.l.s4 1934713408
    %v10269 = vunpack.c.0.s8 %v10268
    %v10270 = vlaneseq
    %v10271 = vshrl.u32 %v10270, 7
    %v10272 = vsub.s32 %v10269, %v10271
    %v10273 = vrot.slane %v10259, %v10272
    %v10274 = vcombine.high %v10266, 0
    %v10275 = vcombine.high %v10273, 0
    %v10276 = vcombine.low %v10115, %v10131
    %v10278 = vunpack.c.l.s4 1983009808
    %v10279 = vunpack.c.0.s8 %v10278
    %v10280 = vlaneseq
    %v10281 = vshrl.u32 %v10280, 7
    %v10282 = vsub.s32 %v10279, %v10281
    %v10283 = vrot.slane %v10276, %v10282
    %v10284 = vcombine.low %v10123, %v10139
    %v10286 = vunpack.c.l.s4 1983009808
    %v10287 = vunpack.c.0.s8 %v10286
    %v10288 = vlaneseq
    %v10289 = vshrl.u32 %v10288, 7
    %v10290 = vsub.s32 %v10287, %v10289
    %v10291 = vrot.slane %v10284, %v10290
    %v10292 = vcombine.low %v10283, %v10291
    %v10293 = vcombine.high %v10283, %v10291
    %v10295 = vunpack.c.l.s4 1934713408
    %v10296 = vunpack.c.0.s8 %v10295
    %v10297 = vlaneseq
    %v10298 = vshrl.u32 %v10297, 7
    %v10299 = vsub.s32 %v10296, %v10298
    %v10300 = vrot.slane %v10292, %v10299
    %v10302 = vunpack.c.l.s4 1934713408
    %v10303 = vunpack.c.0.s8 %v10302
    %v10304 = vlaneseq
    %v10305 = vshrl.u32 %v10304, 7
    %v10306 = vsub.s32 %v10303, %v10305
    %v10307 = vrot.slane %v10293, %v10306
    %v10308 = vcombine.high %v10300, 0
    %v10309 = vcombine.high %v10307, 0
    %v10310 = vcombine.low %v10081, %v10097
    %v10312 = vunpack.c.l.s4 1983009808
    %v10313 = vunpack.c.0.s8 %v10312
    %v10314 = vlaneseq
    %v10315 = vshrl.u32 %v10314, 7
    %v10316 = vsub.s32 %v10313, %v10315
    %v10317 = vrot.slane %v10310, %v10316
    %v10318 = vcombine.low %v10089, %v10105
    %v10320 = vunpack.c.l.s4 1983009808
    %v10321 = vunpack.c.0.s8 %v10320
    %v10322 = vlaneseq
    %v10323 = vshrl.u32 %v10322, 7
    %v10324 = vsub.s32 %v10321, %v10323
    %v10325 = vrot.slane %v10318, %v10324
    %v10326 = vcombine.low %v10317, %v10325
    %v10327 = vcombine.high %v10317, %v10325
    %v10329 = vunpack.c.l.s4 1934713408
    %v10330 = vunpack.c.0.s8 %v10329
    %v10331 = vlaneseq
    %v10332 = vshrl.u32 %v10331, 7
    %v10333 = vsub.s32 %v10330, %v10332
    %v10334 = vrot.slane %v10326, %v10333
    %v10336 = vunpack.c.l.s4 1934713408
    %v10337 = vunpack.c.0.s8 %v10336
    %v10338 = vlaneseq
    %v10339 = vshrl.u32 %v10338, 7
    %v10340 = vsub.s32 %v10337, %v10339
    %v10341 = vrot.slane %v10327, %v10340
    %v10342 = vcombine.high %v10334, 0
    %v10343 = vcombine.high %v10341, 0
    %v10344 = vcombine.low %v10085, %v10101
    %v10346 = vunpack.c.l.s4 1983009808
    %v10347 = vunpack.c.0.s8 %v10346
    %v10348 = vlaneseq
    %v10349 = vshrl.u32 %v10348, 7
    %v10350 = vsub.s32 %v10347, %v10349
    %v10351 = vrot.slane %v10344, %v10350
    %v10352 = vcombine.low %v10093, %v10109
    %v10354 = vunpack.c.l.s4 1983009808
    %v10355 = vunpack.c.0.s8 %v10354
    %v10356 = vlaneseq
    %v10357 = vshrl.u32 %v10356, 7
    %v10358 = vsub.s32 %v10355, %v10357
    %v10359 = vrot.slane %v10352, %v10358
    %v10360 = vcombine.low %v10351, %v10359
    %v10361 = vcombine.high %v10351, %v10359
    %v10363 = vunpack.c.l.s4 1934713408
    %v10364 = vunpack.c.0.s8 %v10363
    %v10365 = vlaneseq
    %v10366 = vshrl.u32 %v10365, 7
    %v10367 = vsub.s32 %v10364, %v10366
    %v10368 = vrot.slane %v10360, %v10367
    %v10370 = vunpack.c.l.s4 1934713408
    %v10371 = vunpack.c.0.s8 %v10370
    %v10372 = vlaneseq
    %v10373 = vshrl.u32 %v10372, 7
    %v10374 = vsub.s32 %v10371, %v10373
    %v10375 = vrot.slane %v10361, %v10374
    %v10376 = vcombine.high %v10368, 0
    %v10377 = vcombine.high %v10375, 0
    %v10378 = vcombine.low %v10113, %v10129
    %v10380 = vunpack.c.l.s4 1983009808
    %v10381 = vunpack.c.0.s8 %v10380
    %v10382 = vlaneseq
    %v10383 = vshrl.u32 %v10382, 7
    %v10384 = vsub.s32 %v10381, %v10383
    %v10385 = vrot.slane %v10378, %v10384
    %v10386 = vcombine.low %v10121, %v10137
    %v10388 = vunpack.c.l.s4 1983009808
    %v10389 = vunpack.c.0.s8 %v10388
    %v10390 = vlaneseq
    %v10391 = vshrl.u32 %v10390, 7
    %v10392 = vsub.s32 %v10389, %v10391
    %v10393 = vrot.slane %v10386, %v10392
    %v10394 = vcombine.low %v10385, %v10393
    %v10395 = vcombine.high %v10385, %v10393
    %v10397 = vunpack.c.l.s4 1934713408
    %v10398 = vunpack.c.0.s8 %v10397
    %v10399 = vlaneseq
    %v10400 = vshrl.u32 %v10399, 7
    %v10401 = vsub.s32 %v10398, %v10400
    %v10402 = vrot.slane %v10394, %v10401
    %v10404 = vunpack.c.l.s4 1934713408
    %v10405 = vunpack.c.0.s8 %v10404
    %v10406 = vlaneseq
    %v10407 = vshrl.u32 %v10406, 7
    %v10408 = vsub.s32 %v10405, %v10407
    %v10409 = vrot.slane %v10395, %v10408
    %v10410 = vcombine.high %v10402, 0
    %v10411 = vcombine.high %v10409, 0
    %v10412 = vcombine.low %v10117, %v10133
    %v10414 = vunpack.c.l.s4 1983009808
    %v10415 = vunpack.c.0.s8 %v10414
    %v10416 = vlaneseq
    %v10417 = vshrl.u32 %v10416, 7
    %v10418 = vsub.s32 %v10415, %v10417
    %v10419 = vrot.slane %v10412, %v10418
    %v10420 = vcombine.low %v10125, %v10141
    %v10422 = vunpack.c.l.s4 1983009808
    %v10423 = vunpack.c.0.s8 %v10422
    %v10424 = vlaneseq
    %v10425 = vshrl.u32 %v10424, 7
    %v10426 = vsub.s32 %v10423, %v10425
    %v10427 = vrot.slane %v10420, %v10426
    %v10428 = vcombine.low %v10419, %v10427
    %v10429 = vcombine.high %v10419, %v10427
    %v10431 = vunpack.c.l.s4 1934713408
    %v10432 = vunpack.c.0.s8 %v10431
    %v10433 = vlaneseq
    %v10434 = vshrl.u32 %v10433, 7
    %v10435 = vsub.s32 %v10432, %v10434
    %v10436 = vrot.slane %v10428, %v10435
    %v10438 = vunpack.c.l.s4 1934713408
    %v10439 = vunpack.c.0.s8 %v10438
    %v10440 = vlaneseq
    %v10441 = vshrl.u32 %v10440, 7
    %v10442 = vsub.s32 %v10439, %v10441
    %v10443 = vrot.slane %v10429, %v10442
    %v10444 = vcombine.high %v10436, 0
    %v10445 = vcombine.high %v10443, 0
    %v10448 = vpack.i.b16 %v10232, %v10198
    %v10449 = vshrl.u32 %v10198, 16
    %v10450 = vshrl.u32 %v10232, 16
    %v10451 = vpack.i.b16 %v10450, %v10449
    %v10454 = vpack.i.b16 %v10240, %v10206
    %v10455 = vshrl.u32 %v10206, 16
    %v10456 = vshrl.u32 %v10240, 16
    %v10457 = vpack.i.b16 %v10456, %v10455
    %v10460 = vpack.i.b16 %v10239, %v10205
    %v10461 = vshrl.u32 %v10205, 16
    %v10462 = vshrl.u32 %v10239, 16
    %v10463 = vpack.i.b16 %v10462, %v10461
    %v10466 = vpack.i.b16 %v10241, %v10207
    %v10467 = vshrl.u32 %v10207, 16
    %v10468 = vshrl.u32 %v10241, 16
    %v10469 = vpack.i.b16 %v10468, %v10467
    %v10472 = vpack.i.b16 %v10368, %v10334
    %v10473 = vshrl.u32 %v10334, 16
    %v10474 = vshrl.u32 %v10368, 16
    %v10475 = vpack.i.b16 %v10474, %v10473
    %v10478 = vpack.i.b16 %v10376, %v10342
    %v10479 = vshrl.u32 %v10342, 16
    %v10480 = vshrl.u32 %v10376, 16
    %v10481 = vpack.i.b16 %v10480, %v10479
    %v10484 = vpack.i.b16 %v10375, %v10341
    %v10485 = vshrl.u32 %v10341, 16
    %v10486 = vshrl.u32 %v10375, 16
    %v10487 = vpack.i.b16 %v10486, %v10485
    %v10490 = vpack.i.b16 %v10377, %v10343
    %v10491 = vshrl.u32 %v10343, 16
    %v10492 = vshrl.u32 %v10377, 16
    %v10493 = vpack.i.b16 %v10492, %v10491
    %v10496 = vpack.i.b16 %v10300, %v10266
    %v10497 = vshrl.u32 %v10266, 16
    %v10498 = vshrl.u32 %v10300, 16
    %v10499 = vpack.i.b16 %v10498, %v10497
    %v10502 = vpack.i.b16 %v10308, %v10274
    %v10503 = vshrl.u32 %v10274, 16
    %v10504 = vshrl.u32 %v10308, 16
    %v10505 = vpack.i.b16 %v10504, %v10503
    %v10508 = vpack.i.b16 %v10307, %v10273
    %v10509 = vshrl.u32 %v10273, 16
    %v10510 = vshrl.u32 %v10307, 16
    %v10511 = vpack.i.b16 %v10510, %v10509
    %v10514 = vpack.i.b16 %v10309, %v10275
    %v10515 = vshrl.u32 %v10275, 16
    %v10516 = vshrl.u32 %v10309, 16
    %v10517 = vpack.i.b16 %v10516, %v10515
    %v10520 = vpack.i.b16 %v10436, %v10402
    %v10521 = vshrl.u32 %v10402, 16
    %v10522 = vshrl.u32 %v10436, 16
    %v10523 = vpack.i.b16 %v10522, %v10521
    %v10526 = vpack.i.b16 %v10444, %v10410
    %v10527 = vshrl.u32 %v10410, 16
    %v10528 = vshrl.u32 %v10444, 16
    %v10529 = vpack.i.b16 %v10528, %v10527
    %v10532 = vpack.i.b16 %v10443, %v10409
    %v10533 = vshrl.u32 %v10409, 16
    %v10534 = vshrl.u32 %v10443, 16
    %v10535 = vpack.i.b16 %v10534, %v10533
    %v10538 = vpack.i.b16 %v10445, %v10411
    %v10539 = vshrl.u32 %v10411, 16
    %v10540 = vshrl.u32 %v10445, 16
    %v10541 = vpack.i.b16 %v10540, %v10539
    %v10542 = vunpack.c.l.b16 %v10448
    %v10543 = vunpack.c.l.b16 %v10496
    %v10544 = vpack.c.b16 %v10543, %v10542
    %v10545 = vunpack.c.l.b16 %v10451
    %v10546 = vunpack.c.l.b16 %v10499
    %v10547 = vpack.c.b16 %v10546, %v10545
    %10548 = vrot.lane.b32.xlu0 %v10547, 16
    %v10549 = vpop.permute.xlu0 %10548
    %v10550 = vunpack.c.l.b16 %v10454
    %v10551 = vunpack.c.l.b16 %v10502
    %v10552 = vpack.c.b16 %v10551, %v10550
    %10553 = vrot.lane.b32.xlu0 %v10552, 32
    %v10554 = vpop.permute.xlu0 %10553
    %v10555 = vunpack.c.l.b16 %v10457
    %v10556 = vunpack.c.l.b16 %v10505
    %v10557 = vpack.c.b16 %v10556, %v10555
    %10558 = vrot.lane.b32.xlu0 %v10557, 48
    %v10559 = vpop.permute.xlu0 %10558
    %v10560 = vunpack.c.l.b16 %v10460
    %v10561 = vunpack.c.l.b16 %v10508
    %v10562 = vpack.c.b16 %v10561, %v10560
    %10563 = vrot.lane.b32.xlu0 %v10562, 64
    %v10564 = vpop.permute.xlu0 %10563
    %v10565 = vunpack.c.l.b16 %v10463
    %v10566 = vunpack.c.l.b16 %v10511
    %v10567 = vpack.c.b16 %v10566, %v10565
    %10568 = vrot.lane.b32.xlu0 %v10567, 80
    %v10569 = vpop.permute.xlu0 %10568
    %v10570 = vunpack.c.l.b16 %v10466
    %v10571 = vunpack.c.l.b16 %v10514
    %v10572 = vpack.c.b16 %v10571, %v10570
    %10573 = vrot.lane.b32.xlu0 %v10572, 96
    %v10574 = vpop.permute.xlu0 %10573
    %v10575 = vunpack.c.l.b16 %v10469
    %v10576 = vunpack.c.l.b16 %v10517
    %v10577 = vpack.c.b16 %v10576, %v10575
    %10578 = vrot.lane.b32.xlu0 %v10577, 112
    %v10579 = vpop.permute.xlu0 %10578
    %v10580 = vunpack.c.l.b16 %v10472
    %v10581 = vunpack.c.l.b16 %v10520
    %v10582 = vpack.c.b16 %v10581, %v10580
    %v10583 = vunpack.c.l.b16 %v10475
    %v10584 = vunpack.c.l.b16 %v10523
    %v10585 = vpack.c.b16 %v10584, %v10583
    %10586 = vrot.lane.b32.xlu0 %v10585, 16
    %v10587 = vpop.permute.xlu0 %10586
    %v10588 = vunpack.c.l.b16 %v10478
    %v10589 = vunpack.c.l.b16 %v10526
    %v10590 = vpack.c.b16 %v10589, %v10588
    %10591 = vrot.lane.b32.xlu0 %v10590, 32
    %v10592 = vpop.permute.xlu0 %10591
    %v10593 = vunpack.c.l.b16 %v10481
    %v10594 = vunpack.c.l.b16 %v10529
    %v10595 = vpack.c.b16 %v10594, %v10593
    %10596 = vrot.lane.b32.xlu0 %v10595, 48
    %v10597 = vpop.permute.xlu0 %10596
    %v10598 = vunpack.c.l.b16 %v10484
    %v10599 = vunpack.c.l.b16 %v10532
    %v10600 = vpack.c.b16 %v10599, %v10598
    %10601 = vrot.lane.b32.xlu0 %v10600, 64
    %v10602 = vpop.permute.xlu0 %10601
    %v10603 = vunpack.c.l.b16 %v10487
    %v10604 = vunpack.c.l.b16 %v10535
    %v10605 = vpack.c.b16 %v10604, %v10603
    %10606 = vrot.lane.b32.xlu0 %v10605, 80
    %v10607 = vpop.permute.xlu0 %10606
    %v10608 = vunpack.c.l.b16 %v10490
    %v10609 = vunpack.c.l.b16 %v10538
    %v10610 = vpack.c.b16 %v10609, %v10608
    %10611 = vrot.lane.b32.xlu0 %v10610, 96
    %v10612 = vpop.permute.xlu0 %10611
    %v10613 = vunpack.c.l.b16 %v10493
    %v10614 = vunpack.c.l.b16 %v10541
    %v10615 = vpack.c.b16 %v10614, %v10613
    %10616 = vrot.lane.b32.xlu0 %v10615, 112
    %v10617 = vpop.permute.xlu0 %10616
    %v10620 = vsel %vm508, %v10544, %v10549
    %v10622 = vsel %vm512, %v10620, %v10554
    %v10624 = vsel %vm515, %v10622, %v10559
    %v10626 = vsel %vm518, %v10624, %v10564
    %v10628 = vsel %vm521, %v10626, %v10569
    %v10630 = vsel %vm524, %v10628, %v10574
    %v10632 = vsel %vm527, %v10630, %v10579
    %v10635 = vsel %vm508, %v10582, %v10587
    %v10637 = vsel %vm512, %v10635, %v10592
    %v10639 = vsel %vm515, %v10637, %v10597
    %v10641 = vsel %vm518, %v10639, %v10602
    %v10643 = vsel %vm521, %v10641, %v10607
    %v10645 = vsel %vm524, %v10643, %v10612
    %v10647 = vsel %vm527, %v10645, %v10617
    %v10650 = vunpack.c.l.b16 %v10632
    %v10651 = vunpack.c.l.b16 %v10647
    %v10652 = vunpack.c.h.b16 %v10632
    %v10653 = vunpack.c.h.b16 %v10647
    %v10654 = vpack.c.b16 %v10651, %v10650
    %v10655 = vpack.c.b16 %v10653, %v10652
    %10658 = vst [vmem:[#allocation2 + $0xe8] sm:$0xff] %v10654
    %10659 = vst [vmem:[#allocation2 + $0xf8] sm:$0xff] %v10655
    %10660 = vrot.lane.b32.xlu0 %v9451, 126
    %v10661 = vpop.permute.xlu0 %10660
    %10662 = vrot.lane.b32.xlu0 %v9454, 126
    %v10663 = vpop.permute.xlu0 %10662
    %10664 = vrot.lane.b32.xlu0 %v9458, 126
    %v10665 = vpop.permute.xlu0 %10664
    %10666 = vrot.lane.b32.xlu0 %v9461, 126
    %v10667 = vpop.permute.xlu0 %10666
    %10668 = vrot.lane.b32.xlu0 %v9465, 126
    %v10669 = vpop.permute.xlu0 %10668
    %10670 = vrot.lane.b32.xlu0 %v9468, 126
    %v10671 = vpop.permute.xlu0 %10670
    %10672 = vrot.lane.b32.xlu0 %v9472, 126
    %v10673 = vpop.permute.xlu0 %10672
    %10674 = vrot.lane.b32.xlu0 %v9475, 126
    %v10675 = vpop.permute.xlu0 %10674
    %10676 = vrot.lane.b32.xlu0 %v9479, 126
    %v10677 = vpop.permute.xlu0 %10676
    %10678 = vrot.lane.b32.xlu0 %v9482, 126
    %v10679 = vpop.permute.xlu0 %10678
    %10680 = vrot.lane.b32.xlu0 %v9486, 126
    %v10681 = vpop.permute.xlu0 %10680
    %10682 = vrot.lane.b32.xlu0 %v9489, 126
    %v10683 = vpop.permute.xlu0 %10682
    %10684 = vrot.lane.b32.xlu0 %v9493, 126
    %v10685 = vpop.permute.xlu0 %10684
    %10686 = vrot.lane.b32.xlu0 %v9496, 126
    %v10687 = vpop.permute.xlu0 %10686
    %10688 = vrot.lane.b32.xlu0 %v9500, 126
    %v10689 = vpop.permute.xlu0 %10688
    %10690 = vrot.lane.b32.xlu0 %v9503, 126
    %v10691 = vpop.permute.xlu0 %10690
    %10692 = vrot.lane.b32.xlu0 %v9507, 126
    %v10693 = vpop.permute.xlu0 %10692
    %10694 = vrot.lane.b32.xlu0 %v9510, 126
    %v10695 = vpop.permute.xlu0 %10694
    %10696 = vrot.lane.b32.xlu0 %v9514, 126
    %v10697 = vpop.permute.xlu0 %10696
    %10698 = vrot.lane.b32.xlu0 %v9517, 126
    %v10699 = vpop.permute.xlu0 %10698
    %10700 = vrot.lane.b32.xlu0 %v9521, 126
    %v10701 = vpop.permute.xlu0 %10700
    %10702 = vrot.lane.b32.xlu0 %v9524, 126
    %v10703 = vpop.permute.xlu0 %10702
    %10704 = vrot.lane.b32.xlu0 %v9528, 126
    %v10705 = vpop.permute.xlu0 %10704
    %10706 = vrot.lane.b32.xlu0 %v9531, 126
    %v10707 = vpop.permute.xlu0 %10706
    %10708 = vrot.lane.b32.xlu0 %v9535, 126
    %v10709 = vpop.permute.xlu0 %10708
    %10710 = vrot.lane.b32.xlu0 %v9538, 126
    %v10711 = vpop.permute.xlu0 %10710
    %10712 = vrot.lane.b32.xlu0 %v9542, 126
    %v10713 = vpop.permute.xlu0 %10712
    %10714 = vrot.lane.b32.xlu0 %v9545, 126
    %v10715 = vpop.permute.xlu0 %10714
    %10716 = vrot.lane.b32.xlu0 %v9549, 126
    %v10717 = vpop.permute.xlu0 %10716
    %10718 = vrot.lane.b32.xlu0 %v9552, 126
    %v10719 = vpop.permute.xlu0 %10718
    %10720 = vrot.lane.b32.xlu0 %v9556, 126
    %v10721 = vpop.permute.xlu0 %10720
    %10722 = vrot.lane.b32.xlu0 %v9559, 126
    %v10723 = vpop.permute.xlu0 %10722
    %v10756 = vcombine.low %v10661, %v10677
    %v10758 = vunpack.c.l.s4 1983009808
    %v10759 = vunpack.c.0.s8 %v10758
    %v10760 = vlaneseq
    %v10761 = vshrl.u32 %v10760, 7
    %v10762 = vsub.s32 %v10759, %v10761
    %v10763 = vrot.slane %v10756, %v10762
    %v10764 = vcombine.low %v10669, %v10685
    %v10766 = vunpack.c.l.s4 1983009808
    %v10767 = vunpack.c.0.s8 %v10766
    %v10768 = vlaneseq
    %v10769 = vshrl.u32 %v10768, 7
    %v10770 = vsub.s32 %v10767, %v10769
    %v10771 = vrot.slane %v10764, %v10770
    %v10772 = vcombine.low %v10763, %v10771
    %v10773 = vcombine.high %v10763, %v10771
    %v10775 = vunpack.c.l.s4 1934713408
    %v10776 = vunpack.c.0.s8 %v10775
    %v10777 = vlaneseq
    %v10778 = vshrl.u32 %v10777, 7
    %v10779 = vsub.s32 %v10776, %v10778
    %v10780 = vrot.slane %v10772, %v10779
    %v10782 = vunpack.c.l.s4 1934713408
    %v10783 = vunpack.c.0.s8 %v10782
    %v10784 = vlaneseq
    %v10785 = vshrl.u32 %v10784, 7
    %v10786 = vsub.s32 %v10783, %v10785
    %v10787 = vrot.slane %v10773, %v10786
    %v10788 = vcombine.high %v10780, 0
    %v10789 = vcombine.high %v10787, 0
    %v10790 = vcombine.low %v10665, %v10681
    %v10792 = vunpack.c.l.s4 1983009808
    %v10793 = vunpack.c.0.s8 %v10792
    %v10794 = vlaneseq
    %v10795 = vshrl.u32 %v10794, 7
    %v10796 = vsub.s32 %v10793, %v10795
    %v10797 = vrot.slane %v10790, %v10796
    %v10798 = vcombine.low %v10673, %v10689
    %v10800 = vunpack.c.l.s4 1983009808
    %v10801 = vunpack.c.0.s8 %v10800
    %v10802 = vlaneseq
    %v10803 = vshrl.u32 %v10802, 7
    %v10804 = vsub.s32 %v10801, %v10803
    %v10805 = vrot.slane %v10798, %v10804
    %v10806 = vcombine.low %v10797, %v10805
    %v10807 = vcombine.high %v10797, %v10805
    %v10809 = vunpack.c.l.s4 1934713408
    %v10810 = vunpack.c.0.s8 %v10809
    %v10811 = vlaneseq
    %v10812 = vshrl.u32 %v10811, 7
    %v10813 = vsub.s32 %v10810, %v10812
    %v10814 = vrot.slane %v10806, %v10813
    %v10816 = vunpack.c.l.s4 1934713408
    %v10817 = vunpack.c.0.s8 %v10816
    %v10818 = vlaneseq
    %v10819 = vshrl.u32 %v10818, 7
    %v10820 = vsub.s32 %v10817, %v10819
    %v10821 = vrot.slane %v10807, %v10820
    %v10822 = vcombine.high %v10814, 0
    %v10823 = vcombine.high %v10821, 0
    %v10824 = vcombine.low %v10693, %v10709
    %v10826 = vunpack.c.l.s4 1983009808
    %v10827 = vunpack.c.0.s8 %v10826
    %v10828 = vlaneseq
    %v10829 = vshrl.u32 %v10828, 7
    %v10830 = vsub.s32 %v10827, %v10829
    %v10831 = vrot.slane %v10824, %v10830
    %v10832 = vcombine.low %v10701, %v10717
    %v10834 = vunpack.c.l.s4 1983009808
    %v10835 = vunpack.c.0.s8 %v10834
    %v10836 = vlaneseq
    %v10837 = vshrl.u32 %v10836, 7
    %v10838 = vsub.s32 %v10835, %v10837
    %v10839 = vrot.slane %v10832, %v10838
    %v10840 = vcombine.low %v10831, %v10839
    %v10841 = vcombine.high %v10831, %v10839
    %v10843 = vunpack.c.l.s4 1934713408
    %v10844 = vunpack.c.0.s8 %v10843
    %v10845 = vlaneseq
    %v10846 = vshrl.u32 %v10845, 7
    %v10847 = vsub.s32 %v10844, %v10846
    %v10848 = vrot.slane %v10840, %v10847
    %v10850 = vunpack.c.l.s4 1934713408
    %v10851 = vunpack.c.0.s8 %v10850
    %v10852 = vlaneseq
    %v10853 = vshrl.u32 %v10852, 7
    %v10854 = vsub.s32 %v10851, %v10853
    %v10855 = vrot.slane %v10841, %v10854
    %v10856 = vcombine.high %v10848, 0
    %v10857 = vcombine.high %v10855, 0
    %v10858 = vcombine.low %v10697, %v10713
    %v10860 = vunpack.c.l.s4 1983009808
    %v10861 = vunpack.c.0.s8 %v10860
    %v10862 = vlaneseq
    %v10863 = vshrl.u32 %v10862, 7
    %v10864 = vsub.s32 %v10861, %v10863
    %v10865 = vrot.slane %v10858, %v10864
    %v10866 = vcombine.low %v10705, %v10721
    %v10868 = vunpack.c.l.s4 1983009808
    %v10869 = vunpack.c.0.s8 %v10868
    %v10870 = vlaneseq
    %v10871 = vshrl.u32 %v10870, 7
    %v10872 = vsub.s32 %v10869, %v10871
    %v10873 = vrot.slane %v10866, %v10872
    %v10874 = vcombine.low %v10865, %v10873
    %v10875 = vcombine.high %v10865, %v10873
    %v10877 = vunpack.c.l.s4 1934713408
    %v10878 = vunpack.c.0.s8 %v10877
    %v10879 = vlaneseq
    %v10880 = vshrl.u32 %v10879, 7
    %v10881 = vsub.s32 %v10878, %v10880
    %v10882 = vrot.slane %v10874, %v10881
    %v10884 = vunpack.c.l.s4 1934713408
    %v10885 = vunpack.c.0.s8 %v10884
    %v10886 = vlaneseq
    %v10887 = vshrl.u32 %v10886, 7
    %v10888 = vsub.s32 %v10885, %v10887
    %v10889 = vrot.slane %v10875, %v10888
    %v10890 = vcombine.high %v10882, 0
    %v10891 = vcombine.high %v10889, 0
    %v10892 = vcombine.low %v10663, %v10679
    %v10894 = vunpack.c.l.s4 1983009808
    %v10895 = vunpack.c.0.s8 %v10894
    %v10896 = vlaneseq
    %v10897 = vshrl.u32 %v10896, 7
    %v10898 = vsub.s32 %v10895, %v10897
    %v10899 = vrot.slane %v10892, %v10898
    %v10900 = vcombine.low %v10671, %v10687
    %v10902 = vunpack.c.l.s4 1983009808
    %v10903 = vunpack.c.0.s8 %v10902
    %v10904 = vlaneseq
    %v10905 = vshrl.u32 %v10904, 7
    %v10906 = vsub.s32 %v10903, %v10905
    %v10907 = vrot.slane %v10900, %v10906
    %v10908 = vcombine.low %v10899, %v10907
    %v10909 = vcombine.high %v10899, %v10907
    %v10911 = vunpack.c.l.s4 1934713408
    %v10912 = vunpack.c.0.s8 %v10911
    %v10913 = vlaneseq
    %v10914 = vshrl.u32 %v10913, 7
    %v10915 = vsub.s32 %v10912, %v10914
    %v10916 = vrot.slane %v10908, %v10915
    %v10918 = vunpack.c.l.s4 1934713408
    %v10919 = vunpack.c.0.s8 %v10918
    %v10920 = vlaneseq
    %v10921 = vshrl.u32 %v10920, 7
    %v10922 = vsub.s32 %v10919, %v10921
    %v10923 = vrot.slane %v10909, %v10922
    %v10924 = vcombine.high %v10916, 0
    %v10925 = vcombine.high %v10923, 0
    %v10926 = vcombine.low %v10667, %v10683
    %v10928 = vunpack.c.l.s4 1983009808
    %v10929 = vunpack.c.0.s8 %v10928
    %v10930 = vlaneseq
    %v10931 = vshrl.u32 %v10930, 7
    %v10932 = vsub.s32 %v10929, %v10931
    %v10933 = vrot.slane %v10926, %v10932
    %v10934 = vcombine.low %v10675, %v10691
    %v10936 = vunpack.c.l.s4 1983009808
    %v10937 = vunpack.c.0.s8 %v10936
    %v10938 = vlaneseq
    %v10939 = vshrl.u32 %v10938, 7
    %v10940 = vsub.s32 %v10937, %v10939
    %v10941 = vrot.slane %v10934, %v10940
    %v10942 = vcombine.low %v10933, %v10941
    %v10943 = vcombine.high %v10933, %v10941
    %v10945 = vunpack.c.l.s4 1934713408
    %v10946 = vunpack.c.0.s8 %v10945
    %v10947 = vlaneseq
    %v10948 = vshrl.u32 %v10947, 7
    %v10949 = vsub.s32 %v10946, %v10948
    %v10950 = vrot.slane %v10942, %v10949
    %v10952 = vunpack.c.l.s4 1934713408
    %v10953 = vunpack.c.0.s8 %v10952
    %v10954 = vlaneseq
    %v10955 = vshrl.u32 %v10954, 7
    %v10956 = vsub.s32 %v10953, %v10955
    %v10957 = vrot.slane %v10943, %v10956
    %v10958 = vcombine.high %v10950, 0
    %v10959 = vcombine.high %v10957, 0
    %v10960 = vcombine.low %v10695, %v10711
    %v10962 = vunpack.c.l.s4 1983009808
    %v10963 = vunpack.c.0.s8 %v10962
    %v10964 = vlaneseq
    %v10965 = vshrl.u32 %v10964, 7
    %v10966 = vsub.s32 %v10963, %v10965
    %v10967 = vrot.slane %v10960, %v10966
    %v10968 = vcombine.low %v10703, %v10719
    %v10970 = vunpack.c.l.s4 1983009808
    %v10971 = vunpack.c.0.s8 %v10970
    %v10972 = vlaneseq
    %v10973 = vshrl.u32 %v10972, 7
    %v10974 = vsub.s32 %v10971, %v10973
    %v10975 = vrot.slane %v10968, %v10974
    %v10976 = vcombine.low %v10967, %v10975
    %v10977 = vcombine.high %v10967, %v10975
    %v10979 = vunpack.c.l.s4 1934713408
    %v10980 = vunpack.c.0.s8 %v10979
    %v10981 = vlaneseq
    %v10982 = vshrl.u32 %v10981, 7
    %v10983 = vsub.s32 %v10980, %v10982
    %v10984 = vrot.slane %v10976, %v10983
    %v10986 = vunpack.c.l.s4 1934713408
    %v10987 = vunpack.c.0.s8 %v10986
    %v10988 = vlaneseq
    %v10989 = vshrl.u32 %v10988, 7
    %v10990 = vsub.s32 %v10987, %v10989
    %v10991 = vrot.slane %v10977, %v10990
    %v10992 = vcombine.high %v10984, 0
    %v10993 = vcombine.high %v10991, 0
    %v10994 = vcombine.low %v10699, %v10715
    %v10996 = vunpack.c.l.s4 1983009808
    %v10997 = vunpack.c.0.s8 %v10996
    %v10998 = vlaneseq
    %v10999 = vshrl.u32 %v10998, 7
    %v11000 = vsub.s32 %v10997, %v10999
    %v11001 = vrot.slane %v10994, %v11000
    %v11002 = vcombine.low %v10707, %v10723
    %v11004 = vunpack.c.l.s4 1983009808
    %v11005 = vunpack.c.0.s8 %v11004
    %v11006 = vlaneseq
    %v11007 = vshrl.u32 %v11006, 7
    %v11008 = vsub.s32 %v11005, %v11007
    %v11009 = vrot.slane %v11002, %v11008
    %v11010 = vcombine.low %v11001, %v11009
    %v11011 = vcombine.high %v11001, %v11009
    %v11013 = vunpack.c.l.s4 1934713408
    %v11014 = vunpack.c.0.s8 %v11013
    %v11015 = vlaneseq
    %v11016 = vshrl.u32 %v11015, 7
    %v11017 = vsub.s32 %v11014, %v11016
    %v11018 = vrot.slane %v11010, %v11017
    %v11020 = vunpack.c.l.s4 1934713408
    %v11021 = vunpack.c.0.s8 %v11020
    %v11022 = vlaneseq
    %v11023 = vshrl.u32 %v11022, 7
    %v11024 = vsub.s32 %v11021, %v11023
    %v11025 = vrot.slane %v11011, %v11024
    %v11026 = vcombine.high %v11018, 0
    %v11027 = vcombine.high %v11025, 0
    %v11030 = vpack.i.b16 %v10814, %v10780
    %v11031 = vshrl.u32 %v10780, 16
    %v11032 = vshrl.u32 %v10814, 16
    %v11033 = vpack.i.b16 %v11032, %v11031
    %v11036 = vpack.i.b16 %v10822, %v10788
    %v11037 = vshrl.u32 %v10788, 16
    %v11038 = vshrl.u32 %v10822, 16
    %v11039 = vpack.i.b16 %v11038, %v11037
    %v11042 = vpack.i.b16 %v10821, %v10787
    %v11043 = vshrl.u32 %v10787, 16
    %v11044 = vshrl.u32 %v10821, 16
    %v11045 = vpack.i.b16 %v11044, %v11043
    %v11048 = vpack.i.b16 %v10823, %v10789
    %v11049 = vshrl.u32 %v10789, 16
    %v11050 = vshrl.u32 %v10823, 16
    %v11051 = vpack.i.b16 %v11050, %v11049
    %v11054 = vpack.i.b16 %v10950, %v10916
    %v11055 = vshrl.u32 %v10916, 16
    %v11056 = vshrl.u32 %v10950, 16
    %v11057 = vpack.i.b16 %v11056, %v11055
    %v11060 = vpack.i.b16 %v10958, %v10924
    %v11061 = vshrl.u32 %v10924, 16
    %v11062 = vshrl.u32 %v10958, 16
    %v11063 = vpack.i.b16 %v11062, %v11061
    %v11066 = vpack.i.b16 %v10957, %v10923
    %v11067 = vshrl.u32 %v10923, 16
    %v11068 = vshrl.u32 %v10957, 16
    %v11069 = vpack.i.b16 %v11068, %v11067
    %v11072 = vpack.i.b16 %v10959, %v10925
    %v11073 = vshrl.u32 %v10925, 16
    %v11074 = vshrl.u32 %v10959, 16
    %v11075 = vpack.i.b16 %v11074, %v11073
    %v11078 = vpack.i.b16 %v10882, %v10848
    %v11079 = vshrl.u32 %v10848, 16
    %v11080 = vshrl.u32 %v10882, 16
    %v11081 = vpack.i.b16 %v11080, %v11079
    %v11084 = vpack.i.b16 %v10890, %v10856
    %v11085 = vshrl.u32 %v10856, 16
    %v11086 = vshrl.u32 %v10890, 16
    %v11087 = vpack.i.b16 %v11086, %v11085
    %v11090 = vpack.i.b16 %v10889, %v10855
    %v11091 = vshrl.u32 %v10855, 16
    %v11092 = vshrl.u32 %v10889, 16
    %v11093 = vpack.i.b16 %v11092, %v11091
    %v11096 = vpack.i.b16 %v10891, %v10857
    %v11097 = vshrl.u32 %v10857, 16
    %v11098 = vshrl.u32 %v10891, 16
    %v11099 = vpack.i.b16 %v11098, %v11097
    %v11102 = vpack.i.b16 %v11018, %v10984
    %v11103 = vshrl.u32 %v10984, 16
    %v11104 = vshrl.u32 %v11018, 16
    %v11105 = vpack.i.b16 %v11104, %v11103
    %v11108 = vpack.i.b16 %v11026, %v10992
    %v11109 = vshrl.u32 %v10992, 16
    %v11110 = vshrl.u32 %v11026, 16
    %v11111 = vpack.i.b16 %v11110, %v11109
    %v11114 = vpack.i.b16 %v11025, %v10991
    %v11115 = vshrl.u32 %v10991, 16
    %v11116 = vshrl.u32 %v11025, 16
    %v11117 = vpack.i.b16 %v11116, %v11115
    %v11120 = vpack.i.b16 %v11027, %v10993
    %v11121 = vshrl.u32 %v10993, 16
    %v11122 = vshrl.u32 %v11027, 16
    %v11123 = vpack.i.b16 %v11122, %v11121
    %v11124 = vunpack.c.l.b16 %v11030
    %v11125 = vunpack.c.l.b16 %v11078
    %v11126 = vpack.c.b16 %v11125, %v11124
    %v11127 = vunpack.c.l.b16 %v11033
    %v11128 = vunpack.c.l.b16 %v11081
    %v11129 = vpack.c.b16 %v11128, %v11127
    %11130 = vrot.lane.b32.xlu0 %v11129, 16
    %v11131 = vpop.permute.xlu0 %11130
    %v11132 = vunpack.c.l.b16 %v11036
    %v11133 = vunpack.c.l.b16 %v11084
    %v11134 = vpack.c.b16 %v11133, %v11132
    %11135 = vrot.lane.b32.xlu0 %v11134, 32
    %v11136 = vpop.permute.xlu0 %11135
    %v11137 = vunpack.c.l.b16 %v11039
    %v11138 = vunpack.c.l.b16 %v11087
    %v11139 = vpack.c.b16 %v11138, %v11137
    %11140 = vrot.lane.b32.xlu0 %v11139, 48
    %v11141 = vpop.permute.xlu0 %11140
    %v11142 = vunpack.c.l.b16 %v11042
    %v11143 = vunpack.c.l.b16 %v11090
    %v11144 = vpack.c.b16 %v11143, %v11142
    %11145 = vrot.lane.b32.xlu0 %v11144, 64
    %v11146 = vpop.permute.xlu0 %11145
    %v11147 = vunpack.c.l.b16 %v11045
    %v11148 = vunpack.c.l.b16 %v11093
    %v11149 = vpack.c.b16 %v11148, %v11147
    %11150 = vrot.lane.b32.xlu0 %v11149, 80
    %v11151 = vpop.permute.xlu0 %11150
    %v11152 = vunpack.c.l.b16 %v11048
    %v11153 = vunpack.c.l.b16 %v11096
    %v11154 = vpack.c.b16 %v11153, %v11152
    %11155 = vrot.lane.b32.xlu0 %v11154, 96
    %v11156 = vpop.permute.xlu0 %11155
    %v11157 = vunpack.c.l.b16 %v11051
    %v11158 = vunpack.c.l.b16 %v11099
    %v11159 = vpack.c.b16 %v11158, %v11157
    %11160 = vrot.lane.b32.xlu0 %v11159, 112
    %v11161 = vpop.permute.xlu0 %11160
    %v11162 = vunpack.c.l.b16 %v11054
    %v11163 = vunpack.c.l.b16 %v11102
    %v11164 = vpack.c.b16 %v11163, %v11162
    %v11165 = vunpack.c.l.b16 %v11057
    %v11166 = vunpack.c.l.b16 %v11105
    %v11167 = vpack.c.b16 %v11166, %v11165
    %11168 = vrot.lane.b32.xlu0 %v11167, 16
    %v11169 = vpop.permute.xlu0 %11168
    %v11170 = vunpack.c.l.b16 %v11060
    %v11171 = vunpack.c.l.b16 %v11108
    %v11172 = vpack.c.b16 %v11171, %v11170
    %11173 = vrot.lane.b32.xlu0 %v11172, 32
    %v11174 = vpop.permute.xlu0 %11173
    %v11175 = vunpack.c.l.b16 %v11063
    %v11176 = vunpack.c.l.b16 %v11111
    %v11177 = vpack.c.b16 %v11176, %v11175
    %11178 = vrot.lane.b32.xlu0 %v11177, 48
    %v11179 = vpop.permute.xlu0 %11178
    %v11180 = vunpack.c.l.b16 %v11066
    %v11181 = vunpack.c.l.b16 %v11114
    %v11182 = vpack.c.b16 %v11181, %v11180
    %11183 = vrot.lane.b32.xlu0 %v11182, 64
    %v11184 = vpop.permute.xlu0 %11183
    %v11185 = vunpack.c.l.b16 %v11069
    %v11186 = vunpack.c.l.b16 %v11117
    %v11187 = vpack.c.b16 %v11186, %v11185
    %11188 = vrot.lane.b32.xlu0 %v11187, 80
    %v11189 = vpop.permute.xlu0 %11188
    %v11190 = vunpack.c.l.b16 %v11072
    %v11191 = vunpack.c.l.b16 %v11120
    %v11192 = vpack.c.b16 %v11191, %v11190
    %11193 = vrot.lane.b32.xlu0 %v11192, 96
    %v11194 = vpop.permute.xlu0 %11193
    %v11195 = vunpack.c.l.b16 %v11075
    %v11196 = vunpack.c.l.b16 %v11123
    %v11197 = vpack.c.b16 %v11196, %v11195
    %11198 = vrot.lane.b32.xlu0 %v11197, 112
    %v11199 = vpop.permute.xlu0 %11198
    %v11202 = vsel %vm508, %v11126, %v11131
    %v11204 = vsel %vm512, %v11202, %v11136
    %v11206 = vsel %vm515, %v11204, %v11141
    %v11208 = vsel %vm518, %v11206, %v11146
    %v11210 = vsel %vm521, %v11208, %v11151
    %v11212 = vsel %vm524, %v11210, %v11156
    %v11214 = vsel %vm527, %v11212, %v11161
    %v11217 = vsel %vm508, %v11164, %v11169
    %v11219 = vsel %vm512, %v11217, %v11174
    %v11221 = vsel %vm515, %v11219, %v11179
    %v11223 = vsel %vm518, %v11221, %v11184
    %v11225 = vsel %vm521, %v11223, %v11189
    %v11227 = vsel %vm524, %v11225, %v11194
    %v11229 = vsel %vm527, %v11227, %v11199
    %v11232 = vunpack.c.l.b16 %v11214
    %v11233 = vunpack.c.l.b16 %v11229
    %v11234 = vunpack.c.h.b16 %v11214
    %v11235 = vunpack.c.h.b16 %v11229
    %v11236 = vpack.c.b16 %v11233, %v11232
    %v11237 = vpack.c.b16 %v11235, %v11234
    %11240 = vst [vmem:[#allocation2 + $0x108] sm:$0xff] %v11236
    %11241 = vst [vmem:[#allocation2 + $0x118] sm:$0xff] %v11237
    %v11242 = vld [vmem:[%s1] sm:$0xff]
    %v11243 = vld [vmem:[#allocation2] sm:$0xff]
    %v11244 = vld [vmem:[#allocation2 + $0x8] sm:$0xff]
    %v11245 = vld [vmem:[#allocation2 + $0x10] sm:$0xff]
    %v11246 = vld [vmem:[#allocation2 + $0x18] sm:$0xff]
    %v11247 = vld [vmem:[#allocation2 + $0x20] sm:$0xff]
    %v11248 = vld [vmem:[#allocation2 + $0x28] sm:$0xff]
    %v11249 = vld [vmem:[#allocation2 + $0x30] sm:$0xff]
    %v11250 = vld [vmem:[#allocation2 + $0x38] sm:$0xff]
    %v11251 = vld [vmem:[#allocation2 + $0x40] sm:$0xff]
    %v11252 = vld [vmem:[#allocation2 + $0x48] sm:$0xff]
    %v11253 = vld [vmem:[#allocation2 + $0x50] sm:$0xff]
    %v11254 = vld [vmem:[#allocation2 + $0x58] sm:$0xff]
    %v11255 = vld [vmem:[#allocation2 + $0x60] sm:$0xff]
    %v11256 = vld [vmem:[#allocation2 + $0x68] sm:$0xff]
    %v11257 = vld [vmem:[#allocation2 + $0x70] sm:$0xff]
    %v11258 = vld [vmem:[#allocation2 + $0x78] sm:$0xff]
    %v11259 = vld [vmem:[#allocation2 + $0x80] sm:$0xff]
    %v11260 = vld [vmem:[#allocation2 + $0x88] sm:$0xff]
    %v11261 = vld [vmem:[#allocation2 + $0x90] sm:$0xff]
    %v11262 = vld [vmem:[#allocation2 + $0x98] sm:$0xff]
    %v11263 = vld [vmem:[#allocation2 + $0xa0] sm:$0xff]
    %v11264 = vld [vmem:[#allocation2 + $0xa8] sm:$0xff]
    %v11265 = vld [vmem:[#allocation2 + $0xb0] sm:$0xff]
    %v11266 = vld [vmem:[#allocation2 + $0xb8] sm:$0xff]
    %v11267 = vld [vmem:[#allocation2 + $0xc0] sm:$0xff]
    %v11268 = vld [vmem:[#allocation2 + $0xc8] sm:$0xff]
    %v11269 = vld [vmem:[#allocation2 + $0xd0] sm:$0xff]
    %v11270 = vld [vmem:[#allocation2 + $0xd8] sm:$0xff]
    %v11271 = vld [vmem:[#allocation2 + $0xe0] sm:$0xff]
    %v11272 = vld [vmem:[#allocation2 + $0xe8] sm:$0xff]
    %v11273 = vld [vmem:[#allocation2 + $0xf0] sm:$0xff]
    %v11274 = vld [vmem:[#allocation2 + $0xf8] sm:$0xff]
    %v11275 = vld [vmem:[#allocation2 + $0x100] sm:$0xff]
    %v11276 = vld [vmem:[#allocation2 + $0x108] sm:$0xff]
    %v11277 = vld [vmem:[#allocation2 + $0x110] sm:$0xff]
    %v11278 = vld [vmem:[#allocation2 + $0x118] sm:$0xff]
    %v11279 = vld [vmem:[%s2] sm:$0xff]
    %11281 = vset.pattern.permute.xlu0 0
    %11282 = vperm.xlu0 %11281, %v11279
    %v11283 = vpop.permute.xlu0 %11282
    %v11286 = vunpack.c.l.b16 %v11242
    %v11287 = vunpack.c.h.b16 %v11242
    %v11288 = vpack.c.b16 %v11286, %v11286
    %v11289 = vpack.c.b16 %v11287, %v11287
    %v11327 = vunpack.c.l.b16 %v11243
    %v11328 = vunpack.c.h.b16 %v11243
    %v11329 = vunpack.c.l.b16 %v11244
    %v11330 = vunpack.c.h.b16 %v11244
    %v11331 = vunpack.c.l.b16 %v11245
    %v11332 = vunpack.c.h.b16 %v11245
    %v11333 = vunpack.c.l.b16 %v11246
    %v11334 = vunpack.c.h.b16 %v11246
    %v11335 = vunpack.c.l.b16 %v11247
    %v11336 = vunpack.c.h.b16 %v11247
    %v11337 = vunpack.c.l.b16 %v11248
    %v11338 = vunpack.c.h.b16 %v11248
    %v11339 = vunpack.c.l.b16 %v11249
    %v11340 = vunpack.c.h.b16 %v11249
    %v11341 = vunpack.c.l.b16 %v11250
    %v11342 = vunpack.c.h.b16 %v11250
    %v11343 = vunpack.c.l.b16 %v11251
    %v11344 = vunpack.c.h.b16 %v11251
    %v11345 = vunpack.c.l.b16 %v11252
    %v11346 = vunpack.c.h.b16 %v11252
    %v11347 = vunpack.c.l.b16 %v11253
    %v11348 = vunpack.c.h.b16 %v11253
    %v11349 = vunpack.c.l.b16 %v11254
    %v11350 = vunpack.c.h.b16 %v11254
    %v11351 = vunpack.c.l.b16 %v11255
    %v11352 = vunpack.c.h.b16 %v11255
    %v11353 = vunpack.c.l.b16 %v11256
    %v11354 = vunpack.c.h.b16 %v11256
    %v11355 = vunpack.c.l.b16 %v11257
    %v11356 = vunpack.c.h.b16 %v11257
    %v11357 = vunpack.c.l.b16 %v11258
    %v11358 = vunpack.c.h.b16 %v11258
    %v11359 = vunpack.c.l.b16 %v11259
    %v11360 = vunpack.c.h.b16 %v11259
    %v11361 = vunpack.c.l.b16 %v11260
    %v11362 = vunpack.c.h.b16 %v11260
    %v11363 = vunpack.c.l.b16 %v11261
    %v11364 = vunpack.c.h.b16 %v11261
    %v11365 = vunpack.c.l.b16 %v11262
    %v11366 = vunpack.c.h.b16 %v11262
    %v11367 = vunpack.c.l.b16 %v11263
    %v11368 = vunpack.c.h.b16 %v11263
    %v11369 = vunpack.c.l.b16 %v11264
    %v11370 = vunpack.c.h.b16 %v11264
    %v11371 = vunpack.c.l.b16 %v11265
    %v11372 = vunpack.c.h.b16 %v11265
    %v11373 = vunpack.c.l.b16 %v11266
    %v11374 = vunpack.c.h.b16 %v11266
    %v11375 = vunpack.c.l.b16 %v11267
    %v11376 = vunpack.c.h.b16 %v11267
    %v11377 = vunpack.c.l.b16 %v11268
    %v11378 = vunpack.c.h.b16 %v11268
    %v11379 = vunpack.c.l.b16 %v11269
    %v11380 = vunpack.c.h.b16 %v11269
    %v11381 = vunpack.c.l.b16 %v11270
    %v11382 = vunpack.c.h.b16 %v11270
    %v11383 = vunpack.c.l.b16 %v11271
    %v11384 = vunpack.c.h.b16 %v11271
    %v11385 = vunpack.c.l.b16 %v11272
    %v11386 = vunpack.c.h.b16 %v11272
    %v11387 = vunpack.c.l.b16 %v11273
    %v11388 = vunpack.c.h.b16 %v11273
    %v11389 = vunpack.c.l.b16 %v11274
    %v11390 = vunpack.c.h.b16 %v11274
    %v11391 = vunpack.c.l.b16 %v11275
    %v11392 = vunpack.c.h.b16 %v11275
    %v11393 = vunpack.c.l.b16 %v11276
    %v11394 = vunpack.c.h.b16 %v11276
    %v11395 = vunpack.c.l.b16 %v11277
    %v11396 = vunpack.c.h.b16 %v11277
    %v11397 = vunpack.c.l.b16 %v11278
    %v11398 = vunpack.c.h.b16 %v11278
    %v11399 = vpack.c.b16 %v11331, %v11327
    %v11400 = vpack.c.b16 %v11332, %v11328
    %v11401 = vpack.c.b16 %v11333, %v11329
    %v11402 = vpack.c.b16 %v11334, %v11330
    %v11403 = vpack.c.b16 %v11339, %v11335
    %v11404 = vpack.c.b16 %v11340, %v11336
    %v11405 = vpack.c.b16 %v11341, %v11337
    %v11406 = vpack.c.b16 %v11342, %v11338
    %v11407 = vpack.c.b16 %v11347, %v11343
    %v11408 = vpack.c.b16 %v11348, %v11344
    %v11409 = vpack.c.b16 %v11349, %v11345
    %v11410 = vpack.c.b16 %v11350, %v11346
    %v11411 = vpack.c.b16 %v11355, %v11351
    %v11412 = vpack.c.b16 %v11356, %v11352
    %v11413 = vpack.c.b16 %v11357, %v11353
    %v11414 = vpack.c.b16 %v11358, %v11354
    %v11415 = vpack.c.b16 %v11363, %v11359
    %v11416 = vpack.c.b16 %v11364, %v11360
    %v11417 = vpack.c.b16 %v11365, %v11361
    %v11418 = vpack.c.b16 %v11366, %v11362
    %v11419 = vpack.c.b16 %v11371, %v11367
    %v11420 = vpack.c.b16 %v11372, %v11368
    %v11421 = vpack.c.b16 %v11373, %v11369
    %v11422 = vpack.c.b16 %v11374, %v11370
    %v11423 = vpack.c.b16 %v11379, %v11375
    %v11424 = vpack.c.b16 %v11380, %v11376
    %v11425 = vpack.c.b16 %v11381, %v11377
    %v11426 = vpack.c.b16 %v11382, %v11378
    %v11427 = vpack.c.b16 %v11387, %v11383
    %v11428 = vpack.c.b16 %v11388, %v11384
    %v11429 = vpack.c.b16 %v11389, %v11385
    %v11430 = vpack.c.b16 %v11390, %v11386
    %v11431 = vpack.c.b16 %v11395, %v11391
    %v11432 = vpack.c.b16 %v11396, %v11392
    %v11433 = vpack.c.b16 %v11397, %v11393
    %v11434 = vpack.c.b16 %v11398, %v11394
    %v11472 = vsel %vm508, %v11289, 0
    %11474 = vmatprep.subr.bf16.mxu0 %v11428
    %11475 = vmatpush1.bf16.msra.mxu0 %v11427
    %11476 = vmatprep.subr.bf16.mxu0 %v11424
    %11477 = vmatpush1.bf16.msra.mxu0 %v11423
    %11478 = vmatprep.subr.bf16.mxu0 %v11420
    %11479 = vmatpush1.bf16.msra.mxu0 %v11419
    %11480 = vmatprep.subr.bf16.mxu0 %v11416
    %11481 = vmatpush1.bf16.msra.mxu0 %v11415
    %11482 = vmatprep.subr.bf16.mxu0 %v11412
    %11483 = vmatpush1.bf16.msra.mxu0 %v11411
    %11484 = vmatprep.subr.bf16.mxu0 %v11408
    %11485 = vmatpush1.bf16.msra.mxu0 %v11407
    %11486 = vmatprep.subr.bf16.mxu0 %v11404
    %11487 = vmatpush1.bf16.msra.mxu0 %v11403
    %11488 = vmatprep.subr.bf16.mxu0 %v11400
    %11489 = vmatpush1.bf16.msra.mxu0 %v11399
    %11490 = vmatprep.subr.bf16.mxu0 0
    %11491 = vmatpush2.bf16.msra.mxu0 0
    %11492 = vmatprep.subr.bf16.mxu0 0
    %11493 = vmatpush2.bf16.msra.mxu0 0
    %11494 = vmatprep.subr.bf16.mxu0 0
    %11495 = vmatpush2.bf16.msra.mxu0 0
    %11496 = vmatprep.subr.bf16.mxu0 0
    %11497 = vmatpush2.bf16.msra.mxu0 0
    %11498 = vmatprep.subr.bf16.mxu0 0
    %11499 = vmatpush2.bf16.msra.mxu0 0
    %11500 = vmatprep.subr.bf16.mxu0 0
    %11501 = vmatpush2.bf16.msra.mxu0 0
    %11502 = vmatprep.subr.bf16.mxu0 0
    %11503 = vmatpush2.bf16.msra.mxu0 0
    %11504 = vmatprep.subr.bf16.mxu0 %v11432
    %11505 = vmatpush2.bf16.msra.mxu0 %v11431
    %11506 = vmatprep.mubr.bf16.mxu0 %v11472
    %11507 = vmatmul.mubr.bf16.gmra.mxu0 %v11288
    %v11508 = vpop.f32.mrf.mxu0
    %v11509 = vadd.f32 %v11283, %v11508
    %v11510 = vpop.f32.mrf.mxu0
    %v11511 = vadd.f32 %v11283, %v11510
    %v11512 = vpop.f32.mrf.mxu0
    %v11513 = vpop.f32.mrf.mxu0
    %11514 = vdwg.mxu0
    %11515 = vmatprep.subr.bf16.mxu0 %v11430
    %11516 = vmatpush1.bf16.msra.mxu0 %v11429
    %11517 = vmatprep.subr.bf16.mxu0 %v11426
    %11518 = vmatpush1.bf16.msra.mxu0 %v11425
    %11519 = vmatprep.subr.bf16.mxu0 %v11422
    %11520 = vmatpush1.bf16.msra.mxu0 %v11421
    %11521 = vmatprep.subr.bf16.mxu0 %v11418
    %11522 = vmatpush1.bf16.msra.mxu0 %v11417
    %11523 = vmatprep.subr.bf16.mxu0 %v11414
    %11524 = vmatpush1.bf16.msra.mxu0 %v11413
    %11525 = vmatprep.subr.bf16.mxu0 %v11410
    %11526 = vmatpush1.bf16.msra.mxu0 %v11409
    %11527 = vmatprep.subr.bf16.mxu0 %v11406
    %11528 = vmatpush1.bf16.msra.mxu0 %v11405
    %11529 = vmatprep.subr.bf16.mxu0 %v11402
    %11530 = vmatpush1.bf16.msra.mxu0 %v11401
    %11531 = vmatprep.subr.bf16.mxu0 0
    %11532 = vmatpush2.bf16.msra.mxu0 0
    %11533 = vmatprep.subr.bf16.mxu0 0
    %11534 = vmatpush2.bf16.msra.mxu0 0
    %11535 = vmatprep.subr.bf16.mxu0 0
    %11536 = vmatpush2.bf16.msra.mxu0 0
    %11537 = vmatprep.subr.bf16.mxu0 0
    %11538 = vmatpush2.bf16.msra.mxu0 0
    %11539 = vmatprep.subr.bf16.mxu0 0
    %11540 = vmatpush2.bf16.msra.mxu0 0
    %11541 = vmatprep.subr.bf16.mxu0 0
    %11542 = vmatpush2.bf16.msra.mxu0 0
    %11543 = vmatprep.subr.bf16.mxu0 0
    %11544 = vmatpush2.bf16.msra.mxu0 0
    %11545 = vmatprep.subr.bf16.mxu0 %v11434
    %11546 = vmatpush2.bf16.msra.mxu0 %v11433
    %11547 = vmatprep.mubr.bf16.mxu0 %v11472
    %11548 = vmatmul.mubr.bf16.gmra.mxu0 %v11288
    %v11549 = vpop.f32.mrf.mxu0
    %v11550 = vadd.f32 %v11283, %v11549
    %v11551 = vpop.f32.mrf.mxu0
    %v11552 = vadd.f32 %v11283, %v11551
    %v11553 = vpop.f32.mrf.mxu0
    %v11554 = vpop.f32.mrf.mxu0
    %11555 = vdwg.mxu0
    %11556 = vst [vmem:[#allocation3] sm:$0xff] %v11509
    %11557 = vst [vmem:[#allocation3 + $0x8] sm:$0xff] %v11511
    %s11558 = scalar_lea.vmem [#allocation3], 16
    %11559 = vst [vmem:[%s11558] sm:$0xff] %v11550
    %11560 = vst [vmem:[%s11558 + $0x8] sm:$0xff] %v11552
    // Predicated region
    $region14: #{tpu_custom_call.1} parent=1 // pred_check
      _
    $region15: #{tpu_custom_call.1} parent=1 // pred_check_branch
      %11562 = sbr.rel (0) target = $region17
    $region16: #{tpu_custom_call.1} parent=1 // pred_region
      %s11564 = ssub.s32 512, 512
      %11565 = vsyncadd [#allocation4], %s11564
      %s11566 = sshll.u32 [#allocation3], 4
      %s11567 = int_to_ptr.vmem [resolvable:$true] %s11566
      %11572 = dma.vmem_to_hbm [thread:$0]  %s11567, 512, %s3, [#allocation4], 256, 256, 16
    $region17: #{tpu_custom_call.1} parent=1 // pred_fallthru
      _
    // Predicated region
    $region18: #{tpu_custom_call.1} parent=1 // pred_check
      _
    $region19: #{tpu_custom_call.1} parent=1 // pred_check_branch
      %11574 = sbr.rel (0) target = $region21
    $region20: #{tpu_custom_call.1} parent=1 // pred_region
      %11575 = dma.done [#allocation4], 512
    $region21: #{tpu_custom_call.1} parent=1 // pred_fallthru
      _
    %11576 = vsyncpa [#allocation4], 1

</llo_original>
